<compile_context>
chip_gen: v6e
topology: v6e:2x2x1
jax: 0.10.0
libtpu: 0.0.40
codegen_flags: <defaults>
</compile_context>

<pallas_src>
import functools

import jax
import jax.numpy as jnp
from jax import lax
from jax.experimental import pallas as pl
from jax.experimental.pallas import tpu as pltpu


def _round_up(x, m):
    return (x + m - 1) // m * m


def _make_mlp_kernel(block_rows, lane_chunk, precision):
    """Transposed (lane-dense) MLP kernel; batch lives on the lane axis."""
    n_chunks = block_rows // lane_chunk

    def _mm(w, a):
        return jnp.dot(w, a, preferred_element_type=jnp.float32,
                       precision=precision)

    def kernel(x_ref, w1_ref, b1_ref, w2_ref, b2_ref, w3_ref, b3_ref, o_ref):
        # x_ref: (d_in, block_rows) -- batch on the lane axis.
        w1, b1 = w1_ref[...], b1_ref[...]
        w2, b2 = w2_ref[...], b2_ref[...]
        w3, b3 = w3_ref[...], b3_ref[...]
        # Static lane-chunk loop: bounds the live activation working set to
        # ~(inner, lane_chunk) f32 (~16 vregs) no matter how big block_rows is.
        for c in range(n_chunks):
            cols = slice(c * lane_chunk, (c + 1) * lane_chunk)
            xT = x_ref[:, cols]                                # (d_in, chunk)
            h = jnp.tanh(_mm(w1, xT) + b1)                     # (h1, chunk)
            h = jnp.tanh(_mm(w2, h) + b2)                      # (h2, chunk)
            o_ref[:, cols] = (_mm(w3, h) + b3).astype(o_ref.dtype)

    return kernel


@functools.partial(
    jax.jit,
    static_argnames=("block_rows", "lane_chunk", "precision", "transposed_layout"),
)
def feed_forward(x, params, *, block_rows=1024, lane_chunk=512,
                 precision=None, transposed_layout=False):
    """MLP forward pass.

    x:       (N, D_in) array (torch layout), or (D_in, N) if
             transposed_layout=True (then the output is (D_out, N) and the
             wrapper does no layout ops at all).
    params:  (w1, b1, w2, b2, w3, b3); w_i in torch layout (out, in), b_i as
             (out, 1) so they broadcast along the lane (batch) axis in-kernel.
    precision: None -> fast MXU path; lax.Precision.HIGHEST -> f32 parity.
    """
    w1, b1, w2, b2, w3, b3 = params
    if transposed_layout:
        d_in, n = x.shape
        xT = x
    else:
        n, d_in = x.shape
        xT = x.T  # tiny (N*D_in) relayout; avoid it via transposed_layout=True
    d_h1, d_h2, d_out = w1.shape[0], w2.shape[0], w3.shape[0]

    # Shrink the tile for small problems while keeping lane alignment and the
    # chunk loop valid; block_rows stays a multiple of lane_chunk (mult of 128).
    block_rows = min(block_rows, _round_up(n, lane_chunk))
    lane_chunk = min(lane_chunk, block_rows)
    assert lane_chunk % 128 == 0, "lane_chunk must be a multiple of 128"
    assert block_rows % lane_chunk == 0, "block_rows must be a multiple of lane_chunk"

    # Ragged tail: handled by the cdiv grid (clipped DMAs), no jnp.pad pass.
    num_blocks = pl.cdiv(n, block_rows)

    # Constant index maps + single buffering: weights/biases are fetched once
    # and stay resident in VMEM without a second (useless) pipeline buffer.
    def const(shape):
        return pl.BlockSpec(shape, lambda i: (0,) * len(shape),
                            pipeline_mode=pl.Buffered(1))

    outT = pl.pallas_call(
        _make_mlp_kernel(block_rows, lane_chunk, precision),
        out_shape=jax.ShapeDtypeStruct((d_out, n), x.dtype),
        grid_spec=pltpu.PrefetchScalarGridSpec(
            num_scalar_prefetch=0,
            grid=(num_blocks,),
            in_specs=[
                pl.BlockSpec((d_in, block_rows), lambda i: (0, i)),
                const((d_h1, d_in)), const((d_h1, 1)),
                const((d_h2, d_h1)), const((d_h2, 1)),
                const((d_out, d_h2)), const((d_out, 1)),
            ],
            out_specs=pl.BlockSpec((d_out, block_rows), lambda i: (0, i)),
        ),
        compiler_params=pltpu.CompilerParams(
            dimension_semantics=("parallel",),
            # Well under v7x's 64 MiB physical VMEM; also fine on v5e/v6e.
            vmem_limit_bytes=32 * 1024 * 1024,
        ),
    )(xT, w1, b1, w2, b2, w3, b3)

    return outT if transposed_layout else outT.T


def init_params(key, d_in, inner_size, d_out):
    """Deterministic init mimicking torch nn.Linear defaults.

    Weights in torch layout (fan_out, fan_in); biases as (fan_out, 1) so they
    broadcast along the lane (batch) axis in-kernel.
    """
    dims = [d_in, inner_size, inner_size, d_out]
    params = []
    for i in range(3):
        fan_in, fan_out = dims[i], dims[i + 1]
        key, kw, kb = jax.random.split(key, 3)
        bound = 1.0 / (fan_in ** 0.5)
        w = jax.random.uniform(kw, (fan_out, fan_in), jnp.float32,
                               minval=-bound, maxval=bound)
        b = jax.random.uniform(kb, (fan_out, 1), jnp.float32,
                               minval=-bound, maxval=bound)
        params.extend([w, b])
    return tuple(params)


def reference_forward(x, params, precision=None):
    """Pure-JAX reference with torch nn.Linear semantics: y = x @ W.T + b."""
    w1, b1, w2, b2, w3, b3 = params
    dot = lambda a, b: jnp.dot(a, b, precision=precision)
    h = jnp.tanh(dot(x, w1.T) + b1.T)
    h = jnp.tanh(dot(h, w2.T) + b2.T)
    return dot(h, w3.T) + b3.T


if __name__ == "__main__":
    key = jax.random.PRNGKey(0)
    k_x, k_p = jax.random.split(key)

    # 4 input vars -> inner_size=32 (2 hidden tanh layers) -> 3 output vars.
    # N = 1030 is deliberately NOT a multiple of the tile (exercises the
    # cdiv ragged-tail path) and block_rows=1024 gives exactly 2 parallel grid
    # steps -> balanced across v7x's two TensorCores.
    N, D_IN, INNER, D_OUT = 1030, 4, 32, 3

    x = jax.random.normal(k_x, (N, D_IN), jnp.float32)
    params = init_params(k_p, D_IN, INNER, D_OUT)

    # Bit-faithful f32 path, checked tightly against an f32 reference.
    out_exact = feed_forward(x, params, precision=lax.Precision.HIGHEST)
    jax.block_until_ready(out_exact)
    ref = reference_forward(x, params, precision=lax.Precision.HIGHEST)
    assert out_exact.shape == (N, D_OUT)
    assert jnp.allclose(out_exact, ref, atol=1e-4, rtol=1e-4), "exact-path mismatch"

    # Default fast path (bf16 MXU passes on f32 data): loose sanity check only
    # (operand rounding to bf16 cannot meet a 1e-5 tolerance by construction).
    out_fast = feed_forward(x, params)
    jax.block_until_ready(out_fast)
    assert out_fast.shape == (N, D_OUT)
    assert bool(jnp.all(jnp.isfinite(out_fast)))
    assert float(jnp.max(jnp.abs(out_fast - ref))) < 0.1, "fast-path sanity check"

    print("KERNEL_OK")
</pallas_src>

<mosaic_0001>
module attributes {stable_mosaic.version = 11 : i64} {
  func.func @kernel(%arg0: i32, %arg1: memref<4x1024xf32, #tpu.memory_space<vmem>>, %arg2: memref<32x4xf32, #tpu.memory_space<vmem>>, %arg3: memref<32x1xf32, #tpu.memory_space<vmem>>, %arg4: memref<32x32xf32, #tpu.memory_space<vmem>>, %arg5: memref<32x1xf32, #tpu.memory_space<vmem>>, %arg6: memref<3x32xf32, #tpu.memory_space<vmem>>, %arg7: memref<3x1xf32, #tpu.memory_space<vmem>>, %arg8: memref<3x1024xf32, #tpu.memory_space<vmem>>) attributes {dimension_semantics = [#tpu.dimension_semantics<parallel>], iteration_bounds = array<i64: 2>, scalar_prefetch = 0 : i64, scratch_operands = 0 : i64, tpu.core_type = #tpu.core_type<tc>, window_params = [{transform_indices = @transform_0, window_bounds = array<i64: 4, 1024>}, {pipeline_mode = #tpu.pipeline_mode<synchronous>, transform_indices = @transform_1, window_bounds = array<i64: 32, 4>}, {pipeline_mode = #tpu.pipeline_mode<synchronous>, transform_indices = @transform_2, window_bounds = array<i64: 32, 1>}, {pipeline_mode = #tpu.pipeline_mode<synchronous>, transform_indices = @transform_3, window_bounds = array<i64: 32, 32>}, {pipeline_mode = #tpu.pipeline_mode<synchronous>, transform_indices = @transform_4, window_bounds = array<i64: 32, 1>}, {pipeline_mode = #tpu.pipeline_mode<synchronous>, transform_indices = @transform_5, window_bounds = array<i64: 3, 32>}, {pipeline_mode = #tpu.pipeline_mode<synchronous>, transform_indices = @transform_6, window_bounds = array<i64: 3, 1>}, {transform_indices = @transform_7, window_bounds = array<i64: 3, 1024>}]} {
    %c0 = arith.constant 0 : index
    %c0_0 = arith.constant 0 : index
    %0 = vector.load %arg2[%c0, %c0_0] : memref<32x4xf32, #tpu.memory_space<vmem>>, vector<32x4xf32>
    %c0_1 = arith.constant 0 : index
    %c0_2 = arith.constant 0 : index
    %1 = vector.load %arg3[%c0_1, %c0_2] : memref<32x1xf32, #tpu.memory_space<vmem>>, vector<32x1xf32>
    %c0_3 = arith.constant 0 : index
    %c0_4 = arith.constant 0 : index
    %2 = vector.load %arg4[%c0_3, %c0_4] : memref<32x32xf32, #tpu.memory_space<vmem>>, vector<32x32xf32>
    %c0_5 = arith.constant 0 : index
    %c0_6 = arith.constant 0 : index
    %3 = vector.load %arg5[%c0_5, %c0_6] : memref<32x1xf32, #tpu.memory_space<vmem>>, vector<32x1xf32>
    %c0_7 = arith.constant 0 : index
    %c0_8 = arith.constant 0 : index
    %4 = vector.load %arg6[%c0_7, %c0_8] : memref<3x32xf32, #tpu.memory_space<vmem>>, vector<3x32xf32>
    %c0_9 = arith.constant 0 : index
    %c0_10 = arith.constant 0 : index
    %5 = vector.load %arg7[%c0_9, %c0_10] : memref<3x1xf32, #tpu.memory_space<vmem>>, vector<3x1xf32>
    %c0_11 = arith.constant 0 : index
    %c0_12 = arith.constant 0 : index
    %6 = vector.load %arg1[%c0_11, %c0_12] : memref<4x1024xf32, #tpu.memory_space<vmem>>, vector<4x512xf32>
    %cst = arith.constant dense<0.000000e+00> : vector<32x512xf32>
    %7 = tpu.matmul %0, %6, %cst {dimension_numbers = #tpu.dot_dimension_numbers<[1], [0], [0], [1], [0, 0, 1, 1], [], []>, precision = #tpu.contract_precision<fp32>} : vector<32x4xf32>, vector<4x512xf32>, vector<32x512xf32> -> vector<32x512xf32>
    %8 = vector.broadcast %1 : vector<32x1xf32> to vector<32x512xf32>
    %9 = arith.addf %7, %8 : vector<32x512xf32>
    %10 = math.tanh %9 : vector<32x512xf32>
    %cst_13 = arith.constant dense<0.000000e+00> : vector<32x512xf32>
    %11 = tpu.matmul %2, %10, %cst_13 {dimension_numbers = #tpu.dot_dimension_numbers<[1], [0], [0], [1], [0, 0, 1, 1], [], []>, precision = #tpu.contract_precision<fp32>} : vector<32x32xf32>, vector<32x512xf32>, vector<32x512xf32> -> vector<32x512xf32>
    %12 = vector.broadcast %3 : vector<32x1xf32> to vector<32x512xf32>
    %13 = arith.addf %11, %12 : vector<32x512xf32>
    %14 = math.tanh %13 : vector<32x512xf32>
    %cst_14 = arith.constant dense<0.000000e+00> : vector<3x512xf32>
    %15 = tpu.matmul %4, %14, %cst_14 {dimension_numbers = #tpu.dot_dimension_numbers<[1], [0], [0], [1], [0, 0, 1, 1], [], []>, precision = #tpu.contract_precision<fp32>} : vector<3x32xf32>, vector<32x512xf32>, vector<3x512xf32> -> vector<3x512xf32>
    %16 = vector.broadcast %5 : vector<3x1xf32> to vector<3x512xf32>
    %17 = arith.addf %15, %16 : vector<3x512xf32>
    %c0_15 = arith.constant 0 : index
    %c0_16 = arith.constant 0 : index
    %18 = vector.load %arg8[%c0_15, %c0_16] : memref<3x1024xf32, #tpu.memory_space<vmem>>, vector<3x512xf32>
    tpu.vector_store %arg8[%c0_15, %c0_16], %17 {strides = array<i32>} : memref<3x1024xf32, #tpu.memory_space<vmem>>, vector<3x512xf32>,
    %c0_17 = arith.constant 0 : index
    %c512 = arith.constant 512 : index
    %19 = vector.load %arg1[%c0_17, %c512] : memref<4x1024xf32, #tpu.memory_space<vmem>>, vector<4x512xf32>
    %cst_18 = arith.constant dense<0.000000e+00> : vector<32x512xf32>
    %20 = tpu.matmul %0, %19, %cst_18 {dimension_numbers = #tpu.dot_dimension_numbers<[1], [0], [0], [1], [0, 0, 1, 1], [], []>, precision = #tpu.contract_precision<fp32>} : vector<32x4xf32>, vector<4x512xf32>, vector<32x512xf32> -> vector<32x512xf32>
    %21 = vector.broadcast %1 : vector<32x1xf32> to vector<32x512xf32>
    %22 = arith.addf %20, %21 : vector<32x512xf32>
    %23 = math.tanh %22 : vector<32x512xf32>
    %cst_19 = arith.constant dense<0.000000e+00> : vector<32x512xf32>
    %24 = tpu.matmul %2, %23, %cst_19 {dimension_numbers = #tpu.dot_dimension_numbers<[1], [0], [0], [1], [0, 0, 1, 1], [], []>, precision = #tpu.contract_precision<fp32>} : vector<32x32xf32>, vector<32x512xf32>, vector<32x512xf32> -> vector<32x512xf32>
    %25 = vector.broadcast %3 : vector<32x1xf32> to vector<32x512xf32>
    %26 = arith.addf %24, %25 : vector<32x512xf32>
    %27 = math.tanh %26 : vector<32x512xf32>
    %cst_20 = arith.constant dense<0.000000e+00> : vector<3x512xf32>
    %28 = tpu.matmul %4, %27, %cst_20 {dimension_numbers = #tpu.dot_dimension_numbers<[1], [0], [0], [1], [0, 0, 1, 1], [], []>, precision = #tpu.contract_precision<fp32>} : vector<3x32xf32>, vector<32x512xf32>, vector<3x512xf32> -> vector<3x512xf32>
    %29 = vector.broadcast %5 : vector<3x1xf32> to vector<3x512xf32>
    %30 = arith.addf %28, %29 : vector<3x512xf32>
    %c0_21 = arith.constant 0 : index
    %c512_22 = arith.constant 512 : index
    %31 = vector.load %arg8[%c0_21, %c512_22] : memref<3x1024xf32, #tpu.memory_space<vmem>>, vector<3x512xf32>
    tpu.vector_store %arg8[%c0_21, %c512_22], %30 {strides = array<i32>} : memref<3x1024xf32, #tpu.memory_space<vmem>>, vector<3x512xf32>,
    return
  }
  func.func @transform_0(%arg0: i32) -> (i32, i32) {
    %c0_i32 = arith.constant 0 : i32
    %c0_i32_0 = arith.constant 0 : i32
    return %c0_i32, %arg0 : i32, i32
  }
  func.func @transform_1(%arg0: i32) -> (i32, i32) {
    %c0_i32 = arith.constant 0 : i32
    %c0_i32_0 = arith.constant 0 : i32
    %c0_i32_1 = arith.constant 0 : i32
    return %c0_i32, %c0_i32_0 : i32, i32
  }
  func.func @transform_2(%arg0: i32) -> (i32, i32) {
    %c0_i32 = arith.constant 0 : i32
    %c0_i32_0 = arith.constant 0 : i32
    %c0_i32_1 = arith.constant 0 : i32
    return %c0_i32, %c0_i32_0 : i32, i32
  }
  func.func @transform_3(%arg0: i32) -> (i32, i32) {
    %c0_i32 = arith.constant 0 : i32
    %c0_i32_0 = arith.constant 0 : i32
    %c0_i32_1 = arith.constant 0 : i32
    return %c0_i32, %c0_i32_0 : i32, i32
  }
  func.func @transform_4(%arg0: i32) -> (i32, i32) {
    %c0_i32 = arith.constant 0 : i32
    %c0_i32_0 = arith.constant 0 : i32
    %c0_i32_1 = arith.constant 0 : i32
    return %c0_i32, %c0_i32_0 : i32, i32
  }
  func.func @transform_5(%arg0: i32) -> (i32, i32) {
    %c0_i32 = arith.constant 0 : i32
    %c0_i32_0 = arith.constant 0 : i32
    %c0_i32_1 = arith.constant 0 : i32
    return %c0_i32, %c0_i32_0 : i32, i32
  }
  func.func @transform_6(%arg0: i32) -> (i32, i32) {
    %c0_i32 = arith.constant 0 : i32
    %c0_i32_0 = arith.constant 0 : i32
    %c0_i32_1 = arith.constant 0 : i32
    return %c0_i32, %c0_i32_0 : i32, i32
  }
  func.func @transform_7(%arg0: i32) -> (i32, i32) {
    %c0_i32 = arith.constant 0 : i32
    %c0_i32_0 = arith.constant 0 : i32
    return %c0_i32, %arg0 : i32, i32
  }
}

</mosaic_0001>

<llo_original>
// kernel: feed_forward.1
$region0: #{feed_forward.1}
  #allocation0 [shape = 'u32[]', space=smem, size = 0x4, offset = 0x4, fixed_abs, tag = 'smem constant byte address 0x4 - core index']
  #allocation1 [shape = 'u32[144,128]{1,0:T(1,128)}', space=vmem, size = 0x12000, scoped, tag = 'internal scratch']
  %s0 = inlined_call_operand.vmem [shape: f32[4,1030], index: 0, kind: input, shape index: {}]
  %s1 = inlined_call_operand.vmem [shape: f32[32,4], index: 1, kind: input, shape index: {}]
  %s2 = inlined_call_operand.vmem [shape: f32[32,1], index: 2, kind: input, shape index: {}]
  %s3 = inlined_call_operand.vmem [shape: f32[32,32], index: 3, kind: input, shape index: {}]
  %s4 = inlined_call_operand.vmem [shape: f32[32,1], index: 4, kind: input, shape index: {}]
  %s5 = inlined_call_operand.vmem [shape: f32[3,32], index: 5, kind: input, shape index: {}]
  %s6 = inlined_call_operand.vmem [shape: f32[3,1], index: 6, kind: input, shape index: {}]
  %s7 = inlined_call_operand.hbm [shape: f32[3,1030], index: 7, kind: output, shape index: {}]
  %s8 = sld [smem:[#allocation0]]
  $region61: #{feed_forward.1} parent=0
    _
  %s10 = ssub.s32 1, %s8
  %s11 = scalar_select 0, %s10, %s8
  $region1: #{feed_forward.1} parent=0
    #allocation2 [shape = 'u8[32768]{0}', space=vmem, size = 0x8000, scoped, tag = 'output window, operand 0']
    #allocation3 [shape = 's32[2]{0}', space=sflag, size = 0x8, scoped, tag = 'scoped memory for feed_forward.1']
    %12 = vsyncpa [#allocation3], 0
    %s13 = scalar_lea.sflag [#allocation3], 1
    %14 = vsyncpa %s13, 0
    loop: start=0, step=1, limit=4
    $region2: #{feed_forward.1} parent=1 // loop_pre_header
      _
    $region3: #{feed_forward.1} parent=1 // loop_header
      %s16 = sphi 0, %s20
      %p17 = scmp.ge.s32.totalorder %s16, 4
      %s26 = sphi 0, %s28
      %s29 = sphi 0, %s26
      %s30 = sphi 0, %s29
      %s46 = sphi 0, %s30
      %s50 = sphi 0, %s50
      %s52 = sphi 0, %s50
      %s53 = sphi 0, %s52
      %s67 = sphi 0, %s53
      %s71 = sphi 0, %s71
      %s73 = sphi 0, %s71
      %s74 = sphi 0, %s73
      %s88 = sphi 0, %s74
      %s92 = sphi 0, %s92
      %s94 = sphi 0, %s92
      %s95 = sphi 0, %s94
      %s109 = sphi 0, %s95
      %s113 = sphi 0, %s113
      %s115 = sphi 0, %s113
      %s116 = sphi 0, %s115
      %s130 = sphi 0, %s116
      %s134 = sphi 0, %s134
      %s136 = sphi 0, %s134
      %s137 = sphi 0, %s136
      %s151 = sphi 0, %s137
      %s155 = sphi 0, %s155
      %s157 = sphi 0, %s155
      %s158 = sphi 0, %s157
      %s172 = sphi 0, %s158
      %s178 = sphi 0, %s180
      %s181 = sphi 0, %s178
      %s182 = sphi 0, %s181
      %s198 = sphi 0, %s182
    $region4: #{feed_forward.1} parent=1 // loop_header_branch
      %19 = sbr.rel (%p17) target = $region8
    $region5: #{feed_forward.1} parent=1 // loop_body
      %s21 = ssub.s32 %s16, 1
      %s22 = ssub.s32 %s16, 2
      %s23 = sadd.s32 %s16, 1
      %s24 = ssub.s32 %s16, %s23
      %p25 = scmp.eq.s32.totalorder %s24, 0
      %s27 = sadd.s32 %s26, 1
      %s28 = scalar_select %p25, %s26, %s27
      %p31 = pneg %p25
      %p32 = scmp.eq.s32.totalorder %s16, 1
      %p33 = por %p31, %p32
      %p34 = scmp.ne.s32.totalorder %s26, %s29
      %p35 = scmp.eq.s32.totalorder %s16, 0
      %p36 = por %p34, %p35
      %p37 = scmp.ne.s32.totalorder %s26, %s29
      %p38 = scmp.eq.s32.totalorder %s21, 1
      %p39 = por %p37, %p38
      %p40 = scmp.ne.s32.totalorder %s29, %s30
      %p41 = scmp.eq.s32.totalorder %s21, 0
      %p42 = por %p40, %p41
      %p43 = scmp.ne.s32.totalorder %s29, %s30
      %p44 = scmp.eq.s32.totalorder %s22, 1
      %p45 = por %p43, %p44
      %p47 = scmp.ne.s32.totalorder %s30, %s46
      %p48 = scmp.eq.s32.totalorder %s22, 0
      %p49 = por %p47, %p48
      %s51 = sadd.s32 %s50, 1
      %p54 = scmp.eq.s32.totalorder %s16, 1
      %p55 = scmp.ne.s32.totalorder %s50, %s52
      %p56 = scmp.eq.s32.totalorder %s16, 0
      %p57 = por %p55, %p56
      %p58 = scmp.ne.s32.totalorder %s50, %s52
      %p59 = scmp.eq.s32.totalorder %s21, 1
      %p60 = por %p58, %p59
      %p61 = scmp.ne.s32.totalorder %s52, %s53
      %p62 = scmp.eq.s32.totalorder %s21, 0
      %p63 = por %p61, %p62
      %p64 = scmp.ne.s32.totalorder %s52, %s53
      %p65 = scmp.eq.s32.totalorder %s22, 1
      %p66 = por %p64, %p65
      %p68 = scmp.ne.s32.totalorder %s53, %s67
      %p69 = scmp.eq.s32.totalorder %s22, 0
      %p70 = por %p68, %p69
      %s72 = sadd.s32 %s71, 1
      %p75 = scmp.eq.s32.totalorder %s16, 1
      %p76 = scmp.ne.s32.totalorder %s71, %s73
      %p77 = scmp.eq.s32.totalorder %s16, 0
      %p78 = por %p76, %p77
      %p79 = scmp.ne.s32.totalorder %s71, %s73
      %p80 = scmp.eq.s32.totalorder %s21, 1
      %p81 = por %p79, %p80
      %p82 = scmp.ne.s32.totalorder %s73, %s74
      %p83 = scmp.eq.s32.totalorder %s21, 0
      %p84 = por %p82, %p83
      %p85 = scmp.ne.s32.totalorder %s73, %s74
      %p86 = scmp.eq.s32.totalorder %s22, 1
      %p87 = por %p85, %p86
      %p89 = scmp.ne.s32.totalorder %s74, %s88
      %p90 = scmp.eq.s32.totalorder %s22, 0
      %p91 = por %p89, %p90
      %s93 = sadd.s32 %s92, 1
      %p96 = scmp.eq.s32.totalorder %s16, 1
      %p97 = scmp.ne.s32.totalorder %s92, %s94
      %p98 = scmp.eq.s32.totalorder %s16, 0
      %p99 = por %p97, %p98
      %p100 = scmp.ne.s32.totalorder %s92, %s94
      %p101 = scmp.eq.s32.totalorder %s21, 1
      %p102 = por %p100, %p101
      %p103 = scmp.ne.s32.totalorder %s94, %s95
      %p104 = scmp.eq.s32.totalorder %s21, 0
      %p105 = por %p103, %p104
      %p106 = scmp.ne.s32.totalorder %s94, %s95
      %p107 = scmp.eq.s32.totalorder %s22, 1
      %p108 = por %p106, %p107
      %p110 = scmp.ne.s32.totalorder %s95, %s109
      %p111 = scmp.eq.s32.totalorder %s22, 0
      %p112 = por %p110, %p111
      %s114 = sadd.s32 %s113, 1
      %p117 = scmp.eq.s32.totalorder %s16, 1
      %p118 = scmp.ne.s32.totalorder %s113, %s115
      %p119 = scmp.eq.s32.totalorder %s16, 0
      %p120 = por %p118, %p119
      %p121 = scmp.ne.s32.totalorder %s113, %s115
      %p122 = scmp.eq.s32.totalorder %s21, 1
      %p123 = por %p121, %p122
      %p124 = scmp.ne.s32.totalorder %s115, %s116
      %p125 = scmp.eq.s32.totalorder %s21, 0
      %p126 = por %p124, %p125
      %p127 = scmp.ne.s32.totalorder %s115, %s116
      %p128 = scmp.eq.s32.totalorder %s22, 1
      %p129 = por %p127, %p128
      %p131 = scmp.ne.s32.totalorder %s116, %s130
      %p132 = scmp.eq.s32.totalorder %s22, 0
      %p133 = por %p131, %p132
      %s135 = sadd.s32 %s134, 1
      %p138 = scmp.eq.s32.totalorder %s16, 1
      %p139 = scmp.ne.s32.totalorder %s134, %s136
      %p140 = scmp.eq.s32.totalorder %s16, 0
      %p141 = por %p139, %p140
      %p142 = scmp.ne.s32.totalorder %s134, %s136
      %p143 = scmp.eq.s32.totalorder %s21, 1
      %p144 = por %p142, %p143
      %p145 = scmp.ne.s32.totalorder %s136, %s137
      %p146 = scmp.eq.s32.totalorder %s21, 0
      %p147 = por %p145, %p146
      %p148 = scmp.ne.s32.totalorder %s136, %s137
      %p149 = scmp.eq.s32.totalorder %s22, 1
      %p150 = por %p148, %p149
      %p152 = scmp.ne.s32.totalorder %s137, %s151
      %p153 = scmp.eq.s32.totalorder %s22, 0
      %p154 = por %p152, %p153
      %s156 = sadd.s32 %s155, 1
      %p159 = scmp.eq.s32.totalorder %s16, 1
      %p160 = scmp.ne.s32.totalorder %s155, %s157
      %p161 = scmp.eq.s32.totalorder %s16, 0
      %p162 = por %p160, %p161
      %p163 = scmp.ne.s32.totalorder %s155, %s157
      %p164 = scmp.eq.s32.totalorder %s21, 1
      %p165 = por %p163, %p164
      %p166 = scmp.ne.s32.totalorder %s157, %s158
      %p167 = scmp.eq.s32.totalorder %s21, 0
      %p168 = por %p166, %p167
      %p169 = scmp.ne.s32.totalorder %s157, %s158
      %p170 = scmp.eq.s32.totalorder %s22, 1
      %p171 = por %p169, %p170
      %p173 = scmp.ne.s32.totalorder %s158, %s172
      %p174 = scmp.eq.s32.totalorder %s22, 0
      %p175 = por %p173, %p174
      %s176 = ssub.s32 %s16, %s23
      %p177 = scmp.eq.s32.totalorder %s176, 0
      %s179 = sadd.s32 %s178, 1
      %s180 = scalar_select %p177, %s178, %s179
      %p183 = pneg %p177
      %p184 = scmp.eq.s32.totalorder %s16, 1
      %p185 = por %p183, %p184
      %p186 = scmp.ne.s32.totalorder %s178, %s181
      %p187 = scmp.eq.s32.totalorder %s16, 0
      %p188 = por %p186, %p187
      %p189 = scmp.ne.s32.totalorder %s178, %s181
      %p190 = scmp.eq.s32.totalorder %s21, 1
      %p191 = por %p189, %p190
      %p192 = scmp.ne.s32.totalorder %s181, %s182
      %p193 = scmp.eq.s32.totalorder %s21, 0
      %p194 = por %p192, %p193
      %p195 = scmp.ne.s32.totalorder %s181, %s182
      %p196 = scmp.eq.s32.totalorder %s22, 1
      %p197 = por %p195, %p196
      %p199 = scmp.ne.s32.totalorder %s182, %s198
      %p200 = scmp.eq.s32.totalorder %s22, 0
      %p201 = por %p199, %p200
      %p202 = scmp.le.s32.totalorder 1, %s16
      %p203 = scmp.lt.s32.totalorder %s16, 3
      %p204 = pnand %p202, %p203
      %p205 = pneg %p204
      // Predicated region
      $region9: #{feed_forward.1} parent=5 // pred_check
        _
      $region10: #{feed_forward.1} parent=5 // pred_check_branch
        %207 = sbr.rel (%p204) target = $region12
      $region11: #{feed_forward.1} parent=5 // pred_region
        %s208 = ssub.s32 %s16, 1
        // Predicated region
        $region13: #{feed_forward.1} parent=11 // pred_check
          %p209 = pneg %p63
        $region14: #{feed_forward.1} parent=11 // pred_check_branch
          %211 = sbr.rel (%p209) target = $region16
        $region15: #{feed_forward.1} parent=11 // pred_region
          _
        $region16: #{feed_forward.1} parent=11 // pred_fallthru
          _
        // Predicated region
        $region17: #{feed_forward.1} parent=11 // pred_check
          %p212 = pneg %p84
        $region18: #{feed_forward.1} parent=11 // pred_check_branch
          %214 = sbr.rel (%p212) target = $region20
        $region19: #{feed_forward.1} parent=11 // pred_region
          _
        $region20: #{feed_forward.1} parent=11 // pred_fallthru
          _
        // Predicated region
        $region21: #{feed_forward.1} parent=11 // pred_check
          %p215 = pneg %p105
        $region22: #{feed_forward.1} parent=11 // pred_check_branch
          %217 = sbr.rel (%p215) target = $region24
        $region23: #{feed_forward.1} parent=11 // pred_region
          _
        $region24: #{feed_forward.1} parent=11 // pred_fallthru
          _
        // Predicated region
        $region25: #{feed_forward.1} parent=11 // pred_check
          %p218 = pneg %p126
        $region26: #{feed_forward.1} parent=11 // pred_check_branch
          %220 = sbr.rel (%p218) target = $region28
        $region27: #{feed_forward.1} parent=11 // pred_region
          _
        $region28: #{feed_forward.1} parent=11 // pred_fallthru
          _
        // Predicated region
        $region29: #{feed_forward.1} parent=11 // pred_check
          %p221 = pneg %p147
        $region30: #{feed_forward.1} parent=11 // pred_check_branch
          %223 = sbr.rel (%p221) target = $region32
        $region31: #{feed_forward.1} parent=11 // pred_region
          _
        $region32: #{feed_forward.1} parent=11 // pred_fallthru
          _
        // Predicated region
        $region33: #{feed_forward.1} parent=11 // pred_check
          %p224 = pneg %p168
        $region34: #{feed_forward.1} parent=11 // pred_check_branch
          %226 = sbr.rel (%p224) target = $region36
        $region35: #{feed_forward.1} parent=11 // pred_region
          _
        $region36: #{feed_forward.1} parent=11 // pred_fallthru
          _
      $region12: #{feed_forward.1} parent=5 // pred_fallthru
        _
      %p227 = scmp.lt.s32.totalorder %s16, 2
      // Predicated region
      $region37: #{feed_forward.1} parent=5 // pred_check
        %p228 = pneg %p227
      $region38: #{feed_forward.1} parent=5 // pred_check_branch
        %230 = sbr.rel (%p228) target = $region40
      $region39: #{feed_forward.1} parent=5 // pred_region
        // Predicated region
        $region41: #{feed_forward.1} parent=39 // pred_check
          %p231 = pneg %p36
        $region42: #{feed_forward.1} parent=39 // pred_check_branch
          %233 = sbr.rel (%p231) target = $region44
        $region43: #{feed_forward.1} parent=39 // pred_region
          %s234 = smul.u32 8, %s16
          %s235 = ssub.s32 9, %s234
          %p236 = scmp.lt.s32.totalorder %s235, 8
          %s237 = scalar_select %p236, %s235, 8
          %s238 = smul.u32 64, %s237
          %p239 = scmp.lt.s32.totalorder %s234, 8
          %s240 = scalar_select %p239, %s234, 8
          %s241 = smul.addr %s240, 4
          %s242 = scalar_lea.vmem %s0, %s241
          %s243 = smul.u32 8, %s16
          %s244 = ssub.s32 9, %s243
          %p245 = scmp.lt.s32.totalorder %s244, 8
          %s246 = scalar_select %p245, %s244, 8
          %s247 = smul.u32 64, %s246
        $region44: #{feed_forward.1} parent=39 // pred_fallthru
          _
      $region40: #{feed_forward.1} parent=5 // pred_fallthru
        _
      %p248 = scmp.le.s32.totalorder 1, %s16
      %p249 = scmp.lt.s32.totalorder %s16, 3
      %p250 = pnand %p248, %p249
      %p251 = pneg %p250
      // Predicated region
      $region45: #{feed_forward.1} parent=5 // pred_check
        _
      $region46: #{feed_forward.1} parent=5 // pred_check_branch
        %253 = sbr.rel (%p250) target = $region48
      $region47: #{feed_forward.1} parent=5 // pred_region
        %s254 = ssub.s32 %s16, 1
        %s255 = smul.u32 8, %s21
        %s256 = ssub.s32 9, %s255
        %p257 = scmp.lt.s32.totalorder %s256, 8
        %s258 = scalar_select %p257, %s256, 8
        %s259 = smul.u32 64, %s258
        %p260 = scmp.lt.s32.totalorder %s255, 8
        %s261 = scalar_select %p260, %s255, 8
        %s262 = smul.addr %s261, 4
        %s263 = scalar_lea.vmem %s0, %s262
        %p264 = pneg %p42
        %p265 = pneg %p39
        %p266 = pneg %p63
        %p267 = pneg %p60
        %p268 = pneg %p84
        %p269 = pneg %p81
        %p270 = pneg %p105
        %p271 = pneg %p102
        %p272 = pneg %p126
        %p273 = pneg %p123
        %p274 = pneg %p147
        %p275 = pneg %p144
        %p276 = pneg %p168
        %p277 = pneg %p165
        %p278 = pneg %p194
        %p279 = pneg %p191
        %s280 = sand.u32 %s181, 1
        %s281 = scalar_lea.sflag [#allocation3], %s280
        %s282 = sand.u32 %s181, 1
        %s283 = smul.addr %s282, 32
        %s284 = scalar_lea.vmem [#allocation2], %s283
        %s285 = smul.u32 8, %s21
        %s286 = ssub.s32 9, %s285
        %p287 = scmp.lt.s32.totalorder %s286, 8
        %s288 = scalar_select %p287, %s286, 8
        %s289 = smul.u32 64, %s288
        %p290 = scmp.lt.s32.totalorder %s285, 8
        %s291 = scalar_select %p290, %s285, 8
        %s292 = smul.addr %s291, 4
        %s293 = scalar_lea.vmem %s0, %s292
        %s294 = smul.u32 8, %s21
        %s295 = ssub.s32 9, %s294
        %p296 = scmp.lt.s32.totalorder %s295, 8
        %s297 = scalar_select %p296, %s295, 8
        %s298 = smul.u32 64, %s297
        %s299 = smul.u32 8, %s21
        %s300 = ssub.s32 9, %s299
        %p301 = scmp.lt.s32.totalorder %s300, 8
        %s302 = scalar_select %p301, %s300, 8
        %s303 = smul.u32 64, %s302
        %v304 = vld [vmem:[%s1] sm:$0xff]
        %v305 = vld [vmem:[%s1 + $0x8] sm:$0xff]
        %v306 = vld [vmem:[%s1 + $0x10] sm:$0xff]
        %v307 = vld [vmem:[%s1 + $0x18] sm:$0xff]
        %v308 = vld [vmem:[%s2] sm:$0xff]
        %v309 = vld [vmem:[%s2 + $0x8] sm:$0xff]
        %v310 = vld [vmem:[%s2 + $0x10] sm:$0xff]
        %v311 = vld [vmem:[%s2 + $0x18] sm:$0xff]
        %v312 = vld [vmem:[%s3] sm:$0xff]
        %v313 = vld [vmem:[%s3 + $0x8] sm:$0xff]
        %v314 = vld [vmem:[%s3 + $0x10] sm:$0xff]
        %v315 = vld [vmem:[%s3 + $0x18] sm:$0xff]
        %v316 = vld [vmem:[%s4] sm:$0xff]
        %v317 = vld [vmem:[%s4 + $0x8] sm:$0xff]
        %v318 = vld [vmem:[%s4 + $0x10] sm:$0xff]
        %v319 = vld [vmem:[%s4 + $0x18] sm:$0xff]
        %v320 = vld [vmem:[%s5] sm:$0x7]
        %v321 = vld [vmem:[%s6] sm:$0x7]
        %v322 = vld [vmem:[%s293] sm:$0xff]
        %v323 = vld [vmem:[%s293 + $0x8] sm:$0xff]
        %325 = vset.pattern.permute.xlu0 0
        %326 = vperm.xlu0 %325, %v308
        %v327 = vpop.permute.xlu0 %326
        %330 = vset.pattern.permute.xlu0 0
        %331 = vperm.xlu0 %330, %v309
        %v332 = vpop.permute.xlu0 %331
        %335 = vset.pattern.permute.xlu0 0
        %336 = vperm.xlu0 %335, %v310
        %v337 = vpop.permute.xlu0 %336
        %340 = vset.pattern.permute.xlu0 0
        %341 = vperm.xlu0 %340, %v311
        %v342 = vpop.permute.xlu0 %341
        %v346 = vcombine.high %v322, %v322
        %v347 = vcombine.high %v323, %v323
        %vm348 = vcmask 31744
        %v350 = vsel %vm348, %v304, 0
        %v353 = vsel %vm348, %v305, 0
        %v356 = vsel %vm348, %v306, 0
        %v359 = vsel %vm348, %v307, 0
        %vm361 = vcmask 1043456
        %v362 = vsel %vm361, %v322, 0
        %v364 = vsel %vm361, %v346, 0
        %v366 = vsel %vm361, %v323, 0
        %v368 = vsel %vm361, %v347, 0
        %370 = vmatprep.subr.mxu0 0.0
        %371 = vmatpush1.msra.mxu0 0.0
        %372 = vmatprep.subr.mxu0 0.0
        %373 = vmatpush1.msra.mxu0 0.0
        %374 = vmatprep.subr.mxu0 0.0
        %375 = vmatpush1.msra.mxu0 0.0
        %376 = vmatprep.subr.mxu0 0.0
        %377 = vmatpush1.msra.mxu0 0.0
        %378 = vmatprep.subr.mxu0 0.0
        %379 = vmatpush1.msra.mxu0 0.0
        %380 = vmatprep.subr.mxu0 0.0
        %381 = vmatpush1.msra.mxu0 0.0
        %382 = vmatprep.subr.mxu0 0.0
        %383 = vmatpush1.msra.mxu0 0.0
        %384 = vmatprep.subr.mxu0 0.0
        %385 = vmatpush1.msra.mxu0 0.0
        %386 = vmatprep.subr.mxu0 0.0
        %387 = vmatpush1.msra.mxu0 0.0
        %388 = vmatprep.subr.mxu0 0.0
        %389 = vmatpush1.msra.mxu0 0.0
        %390 = vmatprep.subr.mxu0 0.0
        %391 = vmatpush1.msra.mxu0 0.0
        %392 = vmatprep.subr.mxu0 0.0
        %393 = vmatpush1.msra.mxu0 0.0
        %394 = vmatprep.subr.mxu0 0.0
        %395 = vmatpush1.msra.mxu0 0.0
        %396 = vmatprep.subr.mxu0 0.0
        %397 = vmatpush1.msra.mxu0 0.0
        %398 = vmatprep.subr.mxu0 0.0
        %399 = vmatpush1.msra.mxu0 0.0
        %v400 = vand.u32 %v364, 4294901760
        %401 = vmatprep.subr.mxu0 %v400
        %v402 = vand.u32 %v362, 4294901760
        %403 = vmatpush1.msra.mxu0 %v402
        %404 = vmatprep.subr.mxu0 0.0
        %405 = vmatpush2.msra.mxu0 0.0
        %406 = vmatprep.subr.mxu0 0.0
        %407 = vmatpush2.msra.mxu0 0.0
        %408 = vmatprep.subr.mxu0 0.0
        %409 = vmatpush2.msra.mxu0 0.0
        %410 = vmatprep.subr.mxu0 0.0
        %411 = vmatpush2.msra.mxu0 0.0
        %412 = vmatprep.subr.mxu0 0.0
        %413 = vmatpush2.msra.mxu0 0.0
        %414 = vmatprep.subr.mxu0 0.0
        %415 = vmatpush2.msra.mxu0 0.0
        %416 = vmatprep.subr.mxu0 0.0
        %417 = vmatpush2.msra.mxu0 0.0
        %418 = vmatprep.subr.mxu0 0.0
        %419 = vmatpush2.msra.mxu0 0.0
        %420 = vmatprep.subr.mxu0 0.0
        %421 = vmatpush2.msra.mxu0 0.0
        %422 = vmatprep.subr.mxu0 0.0
        %423 = vmatpush2.msra.mxu0 0.0
        %424 = vmatprep.subr.mxu0 0.0
        %425 = vmatpush2.msra.mxu0 0.0
        %426 = vmatprep.subr.mxu0 0.0
        %427 = vmatpush2.msra.mxu0 0.0
        %428 = vmatprep.subr.mxu0 0.0
        %429 = vmatpush2.msra.mxu0 0.0
        %430 = vmatprep.subr.mxu0 0.0
        %431 = vmatpush2.msra.mxu0 0.0
        %432 = vmatprep.subr.mxu0 0.0
        %433 = vmatpush2.msra.mxu0 0.0
        %434 = vmatprep.subr.mxu0 0.0
        %435 = vmatpush2.msra.mxu0 0.0
        %436 = vmatprep.mubr.f32.mxu0 0.0
        %v437 = vand.u32 %v350, 4294901760
        %v438 = vsub.f32 %v350, %v437
        %v439 = vand.u32 %v438, 4294901760
        %v440 = vsub.f32 %v438, %v439
        %v441 = vand.u32 %v440, 4294901760
        %442 = vmatmul.mubr.f32.gmra.mxu0 %v441
        %v443 = vpop.f32.mrf.mxu0
        %v444 = vadd.f32 %v327, %v443
        %v445 = vpop.f32.mrf.mxu0
        %v446 = vadd.f32 %v327, %v445
        %447 = vmatprep.mubr.f32.mxu0 0.0
        %v448 = vand.u32 %v353, 4294901760
        %v449 = vsub.f32 %v353, %v448
        %v450 = vand.u32 %v449, 4294901760
        %v451 = vsub.f32 %v449, %v450
        %v452 = vand.u32 %v451, 4294901760
        %453 = vmatmul.mubr.f32.gmra.mxu0 %v452
        %v454 = vpop.f32.mrf.mxu0
        %v455 = vadd.f32 %v332, %v454
        %v456 = vpop.f32.mrf.mxu0
        %v457 = vadd.f32 %v332, %v456
        %458 = vmatprep.mubr.f32.mxu0 0.0
        %v459 = vand.u32 %v356, 4294901760
        %v460 = vsub.f32 %v356, %v459
        %v461 = vand.u32 %v460, 4294901760
        %v462 = vsub.f32 %v460, %v461
        %v463 = vand.u32 %v462, 4294901760
        %464 = vmatmul.mubr.f32.gmra.mxu0 %v463
        %v465 = vpop.f32.mrf.mxu0
        %v466 = vadd.f32 %v337, %v465
        %v467 = vpop.f32.mrf.mxu0
        %v468 = vadd.f32 %v337, %v467
        %469 = vmatprep.mubr.f32.mxu0 0.0
        %v470 = vand.u32 %v359, 4294901760
        %v471 = vsub.f32 %v359, %v470
        %v472 = vand.u32 %v471, 4294901760
        %v473 = vsub.f32 %v471, %v472
        %v474 = vand.u32 %v473, 4294901760
        %475 = vmatmul.mubr.f32.gmra.mxu0 %v474
        %v476 = vpop.f32.mrf.mxu0
        %v477 = vadd.f32 %v342, %v476
        %v478 = vpop.f32.mrf.mxu0
        %v479 = vadd.f32 %v342, %v478
        %480 = vdwg.mxu0
        %481 = vmatprep.subr.mxu0 0.0
        %482 = vmatpush1.msra.mxu0 0.0
        %483 = vmatprep.subr.mxu0 0.0
        %484 = vmatpush1.msra.mxu0 0.0
        %485 = vmatprep.subr.mxu0 0.0
        %486 = vmatpush1.msra.mxu0 0.0
        %487 = vmatprep.subr.mxu0 0.0
        %488 = vmatpush1.msra.mxu0 0.0
        %489 = vmatprep.subr.mxu0 0.0
        %490 = vmatpush1.msra.mxu0 0.0
        %491 = vmatprep.subr.mxu0 0.0
        %492 = vmatpush1.msra.mxu0 0.0
        %493 = vmatprep.subr.mxu0 0.0
        %494 = vmatpush1.msra.mxu0 0.0
        %495 = vmatprep.subr.mxu0 0.0
        %496 = vmatpush1.msra.mxu0 0.0
        %497 = vmatprep.subr.mxu0 0.0
        %498 = vmatpush1.msra.mxu0 0.0
        %499 = vmatprep.subr.mxu0 0.0
        %500 = vmatpush1.msra.mxu0 0.0
        %501 = vmatprep.subr.mxu0 0.0
        %502 = vmatpush1.msra.mxu0 0.0
        %503 = vmatprep.subr.mxu0 0.0
        %504 = vmatpush1.msra.mxu0 0.0
        %505 = vmatprep.subr.mxu0 0.0
        %506 = vmatpush1.msra.mxu0 0.0
        %507 = vmatprep.subr.mxu0 0.0
        %508 = vmatpush1.msra.mxu0 0.0
        %509 = vmatprep.subr.mxu0 0.0
        %510 = vmatpush1.msra.mxu0 0.0
        %v511 = vand.u32 %v364, 4294901760
        %v512 = vsub.f32 %v364, %v511
        %v513 = vand.u32 %v512, 4294901760
        %v514 = vsub.f32 %v512, %v513
        %v515 = vand.u32 %v514, 4294901760
        %516 = vmatprep.subr.mxu0 %v515
        %v517 = vand.u32 %v362, 4294901760
        %v518 = vsub.f32 %v362, %v517
        %v519 = vand.u32 %v518, 4294901760
        %v520 = vsub.f32 %v518, %v519
        %v521 = vand.u32 %v520, 4294901760
        %522 = vmatpush1.msra.mxu0 %v521
        %523 = vmatprep.subr.mxu0 0.0
        %524 = vmatpush2.msra.mxu0 0.0
        %525 = vmatprep.subr.mxu0 0.0
        %526 = vmatpush2.msra.mxu0 0.0
        %527 = vmatprep.subr.mxu0 0.0
        %528 = vmatpush2.msra.mxu0 0.0
        %529 = vmatprep.subr.mxu0 0.0
        %530 = vmatpush2.msra.mxu0 0.0
        %531 = vmatprep.subr.mxu0 0.0
        %532 = vmatpush2.msra.mxu0 0.0
        %533 = vmatprep.subr.mxu0 0.0
        %534 = vmatpush2.msra.mxu0 0.0
        %535 = vmatprep.subr.mxu0 0.0
        %536 = vmatpush2.msra.mxu0 0.0
        %537 = vmatprep.subr.mxu0 0.0
        %538 = vmatpush2.msra.mxu0 0.0
        %539 = vmatprep.subr.mxu0 0.0
        %540 = vmatpush2.msra.mxu0 0.0
        %541 = vmatprep.subr.mxu0 0.0
        %542 = vmatpush2.msra.mxu0 0.0
        %543 = vmatprep.subr.mxu0 0.0
        %544 = vmatpush2.msra.mxu0 0.0
        %545 = vmatprep.subr.mxu0 0.0
        %546 = vmatpush2.msra.mxu0 0.0
        %547 = vmatprep.subr.mxu0 0.0
        %548 = vmatpush2.msra.mxu0 0.0
        %549 = vmatprep.subr.mxu0 0.0
        %550 = vmatpush2.msra.mxu0 0.0
        %551 = vmatprep.subr.mxu0 0.0
        %552 = vmatpush2.msra.mxu0 0.0
        %553 = vmatprep.subr.mxu0 0.0
        %554 = vmatpush2.msra.mxu0 0.0
        %555 = vmatprep.mubr.f32.mxu0 0.0
        %v556 = vand.u32 %v350, 4294901760
        %557 = vmatmul.mubr.f32.gmra.mxu0 %v556
        %v558 = vpop.f32.mrf.mxu0
        %v559 = vadd.f32 %v444, %v558
        %v560 = vpop.f32.mrf.mxu0
        %v561 = vadd.f32 %v446, %v560
        %562 = vmatprep.mubr.f32.mxu0 0.0
        %v563 = vand.u32 %v353, 4294901760
        %564 = vmatmul.mubr.f32.gmra.mxu0 %v563
        %v565 = vpop.f32.mrf.mxu0
        %v566 = vadd.f32 %v455, %v565
        %v567 = vpop.f32.mrf.mxu0
        %v568 = vadd.f32 %v457, %v567
        %569 = vmatprep.mubr.f32.mxu0 0.0
        %v570 = vand.u32 %v356, 4294901760
        %571 = vmatmul.mubr.f32.gmra.mxu0 %v570
        %v572 = vpop.f32.mrf.mxu0
        %v573 = vadd.f32 %v466, %v572
        %v574 = vpop.f32.mrf.mxu0
        %v575 = vadd.f32 %v468, %v574
        %576 = vmatprep.mubr.f32.mxu0 0.0
        %v577 = vand.u32 %v359, 4294901760
        %578 = vmatmul.mubr.f32.gmra.mxu0 %v577
        %v579 = vpop.f32.mrf.mxu0
        %v580 = vadd.f32 %v477, %v579
        %v581 = vpop.f32.mrf.mxu0
        %v582 = vadd.f32 %v479, %v581
        %583 = vdwg.mxu0
        %584 = vmatprep.subr.mxu0 0.0
        %585 = vmatpush1.msra.mxu0 0.0
        %586 = vmatprep.subr.mxu0 0.0
        %587 = vmatpush1.msra.mxu0 0.0
        %588 = vmatprep.subr.mxu0 0.0
        %589 = vmatpush1.msra.mxu0 0.0
        %590 = vmatprep.subr.mxu0 0.0
        %591 = vmatpush1.msra.mxu0 0.0
        %592 = vmatprep.subr.mxu0 0.0
        %593 = vmatpush1.msra.mxu0 0.0
        %594 = vmatprep.subr.mxu0 0.0
        %595 = vmatpush1.msra.mxu0 0.0
        %596 = vmatprep.subr.mxu0 0.0
        %597 = vmatpush1.msra.mxu0 0.0
        %598 = vmatprep.subr.mxu0 0.0
        %599 = vmatpush1.msra.mxu0 0.0
        %600 = vmatprep.subr.mxu0 0.0
        %601 = vmatpush1.msra.mxu0 0.0
        %602 = vmatprep.subr.mxu0 0.0
        %603 = vmatpush1.msra.mxu0 0.0
        %604 = vmatprep.subr.mxu0 0.0
        %605 = vmatpush1.msra.mxu0 0.0
        %606 = vmatprep.subr.mxu0 0.0
        %607 = vmatpush1.msra.mxu0 0.0
        %608 = vmatprep.subr.mxu0 0.0
        %609 = vmatpush1.msra.mxu0 0.0
        %610 = vmatprep.subr.mxu0 0.0
        %611 = vmatpush1.msra.mxu0 0.0
        %612 = vmatprep.subr.mxu0 0.0
        %613 = vmatpush1.msra.mxu0 0.0
        %v614 = vand.u32 %v364, 4294901760
        %v615 = vsub.f32 %v364, %v614
        %616 = vmatprep.subr.mxu0 %v615
        %v617 = vand.u32 %v362, 4294901760
        %v618 = vsub.f32 %v362, %v617
        %619 = vmatpush1.msra.mxu0 %v618
        %620 = vmatprep.subr.mxu0 0.0
        %621 = vmatpush2.msra.mxu0 0.0
        %622 = vmatprep.subr.mxu0 0.0
        %623 = vmatpush2.msra.mxu0 0.0
        %624 = vmatprep.subr.mxu0 0.0
        %625 = vmatpush2.msra.mxu0 0.0
        %626 = vmatprep.subr.mxu0 0.0
        %627 = vmatpush2.msra.mxu0 0.0
        %628 = vmatprep.subr.mxu0 0.0
        %629 = vmatpush2.msra.mxu0 0.0
        %630 = vmatprep.subr.mxu0 0.0
        %631 = vmatpush2.msra.mxu0 0.0
        %632 = vmatprep.subr.mxu0 0.0
        %633 = vmatpush2.msra.mxu0 0.0
        %634 = vmatprep.subr.mxu0 0.0
        %635 = vmatpush2.msra.mxu0 0.0
        %636 = vmatprep.subr.mxu0 0.0
        %637 = vmatpush2.msra.mxu0 0.0
        %638 = vmatprep.subr.mxu0 0.0
        %639 = vmatpush2.msra.mxu0 0.0
        %640 = vmatprep.subr.mxu0 0.0
        %641 = vmatpush2.msra.mxu0 0.0
        %642 = vmatprep.subr.mxu0 0.0
        %643 = vmatpush2.msra.mxu0 0.0
        %644 = vmatprep.subr.mxu0 0.0
        %645 = vmatpush2.msra.mxu0 0.0
        %646 = vmatprep.subr.mxu0 0.0
        %647 = vmatpush2.msra.mxu0 0.0
        %648 = vmatprep.subr.mxu0 0.0
        %649 = vmatpush2.msra.mxu0 0.0
        %650 = vmatprep.subr.mxu0 0.0
        %651 = vmatpush2.msra.mxu0 0.0
        %652 = vmatprep.mubr.f32.mxu0 0.0
        %v653 = vand.u32 %v350, 4294901760
        %v654 = vsub.f32 %v350, %v653
        %655 = vmatmul.mubr.f32.gmra.mxu0 %v654
        %v656 = vpop.f32.mrf.mxu0
        %v657 = vadd.f32 %v559, %v656
        %v658 = vpop.f32.mrf.mxu0
        %v659 = vadd.f32 %v561, %v658
        %660 = vmatprep.mubr.f32.mxu0 0.0
        %v661 = vand.u32 %v353, 4294901760
        %v662 = vsub.f32 %v353, %v661
        %663 = vmatmul.mubr.f32.gmra.mxu0 %v662
        %v664 = vpop.f32.mrf.mxu0
        %v665 = vadd.f32 %v566, %v664
        %v666 = vpop.f32.mrf.mxu0
        %v667 = vadd.f32 %v568, %v666
        %668 = vmatprep.mubr.f32.mxu0 0.0
        %v669 = vand.u32 %v356, 4294901760
        %v670 = vsub.f32 %v356, %v669
        %671 = vmatmul.mubr.f32.gmra.mxu0 %v670
        %v672 = vpop.f32.mrf.mxu0
        %v673 = vadd.f32 %v573, %v672
        %v674 = vpop.f32.mrf.mxu0
        %v675 = vadd.f32 %v575, %v674
        %676 = vmatprep.mubr.f32.mxu0 0.0
        %v677 = vand.u32 %v359, 4294901760
        %v678 = vsub.f32 %v359, %v677
        %679 = vmatmul.mubr.f32.gmra.mxu0 %v678
        %v680 = vpop.f32.mrf.mxu0
        %v681 = vadd.f32 %v580, %v680
        %v682 = vpop.f32.mrf.mxu0
        %v683 = vadd.f32 %v582, %v682
        %684 = vdwg.mxu0
        %685 = vmatprep.subr.mxu0 0.0
        %686 = vmatpush1.msra.mxu0 0.0
        %687 = vmatprep.subr.mxu0 0.0
        %688 = vmatpush1.msra.mxu0 0.0
        %689 = vmatprep.subr.mxu0 0.0
        %690 = vmatpush1.msra.mxu0 0.0
        %691 = vmatprep.subr.mxu0 0.0
        %692 = vmatpush1.msra.mxu0 0.0
        %693 = vmatprep.subr.mxu0 0.0
        %694 = vmatpush1.msra.mxu0 0.0
        %695 = vmatprep.subr.mxu0 0.0
        %696 = vmatpush1.msra.mxu0 0.0
        %697 = vmatprep.subr.mxu0 0.0
        %698 = vmatpush1.msra.mxu0 0.0
        %699 = vmatprep.subr.mxu0 0.0
        %700 = vmatpush1.msra.mxu0 0.0
        %701 = vmatprep.subr.mxu0 0.0
        %702 = vmatpush1.msra.mxu0 0.0
        %703 = vmatprep.subr.mxu0 0.0
        %704 = vmatpush1.msra.mxu0 0.0
        %705 = vmatprep.subr.mxu0 0.0
        %706 = vmatpush1.msra.mxu0 0.0
        %707 = vmatprep.subr.mxu0 0.0
        %708 = vmatpush1.msra.mxu0 0.0
        %709 = vmatprep.subr.mxu0 0.0
        %710 = vmatpush1.msra.mxu0 0.0
        %711 = vmatprep.subr.mxu0 0.0
        %712 = vmatpush1.msra.mxu0 0.0
        %713 = vmatprep.subr.mxu0 0.0
        %714 = vmatpush1.msra.mxu0 0.0
        %v715 = vand.u32 %v364, 4294901760
        %716 = vmatprep.subr.mxu0 %v715
        %v717 = vand.u32 %v362, 4294901760
        %718 = vmatpush1.msra.mxu0 %v717
        %719 = vmatprep.subr.mxu0 0.0
        %720 = vmatpush2.msra.mxu0 0.0
        %721 = vmatprep.subr.mxu0 0.0
        %722 = vmatpush2.msra.mxu0 0.0
        %723 = vmatprep.subr.mxu0 0.0
        %724 = vmatpush2.msra.mxu0 0.0
        %725 = vmatprep.subr.mxu0 0.0
        %726 = vmatpush2.msra.mxu0 0.0
        %727 = vmatprep.subr.mxu0 0.0
        %728 = vmatpush2.msra.mxu0 0.0
        %729 = vmatprep.subr.mxu0 0.0
        %730 = vmatpush2.msra.mxu0 0.0
        %731 = vmatprep.subr.mxu0 0.0
        %732 = vmatpush2.msra.mxu0 0.0
        %733 = vmatprep.subr.mxu0 0.0
        %734 = vmatpush2.msra.mxu0 0.0
        %735 = vmatprep.subr.mxu0 0.0
        %736 = vmatpush2.msra.mxu0 0.0
        %737 = vmatprep.subr.mxu0 0.0
        %738 = vmatpush2.msra.mxu0 0.0
        %739 = vmatprep.subr.mxu0 0.0
        %740 = vmatpush2.msra.mxu0 0.0
        %741 = vmatprep.subr.mxu0 0.0
        %742 = vmatpush2.msra.mxu0 0.0
        %743 = vmatprep.subr.mxu0 0.0
        %744 = vmatpush2.msra.mxu0 0.0
        %745 = vmatprep.subr.mxu0 0.0
        %746 = vmatpush2.msra.mxu0 0.0
        %747 = vmatprep.subr.mxu0 0.0
        %748 = vmatpush2.msra.mxu0 0.0
        %749 = vmatprep.subr.mxu0 0.0
        %750 = vmatpush2.msra.mxu0 0.0
        %751 = vmatprep.mubr.f32.mxu0 0.0
        %v752 = vand.u32 %v350, 4294901760
        %v753 = vsub.f32 %v350, %v752
        %v754 = vand.u32 %v753, 4294901760
        %755 = vmatmul.mubr.f32.gmra.mxu0 %v754
        %v756 = vpop.f32.mrf.mxu0
        %v757 = vadd.f32 %v657, %v756
        %v758 = vpop.f32.mrf.mxu0
        %v759 = vadd.f32 %v659, %v758
        %760 = vmatprep.mubr.f32.mxu0 0.0
        %v761 = vand.u32 %v353, 4294901760
        %v762 = vsub.f32 %v353, %v761
        %v763 = vand.u32 %v762, 4294901760
        %764 = vmatmul.mubr.f32.gmra.mxu0 %v763
        %v765 = vpop.f32.mrf.mxu0
        %v766 = vadd.f32 %v665, %v765
        %v767 = vpop.f32.mrf.mxu0
        %v768 = vadd.f32 %v667, %v767
        %769 = vmatprep.mubr.f32.mxu0 0.0
        %v770 = vand.u32 %v356, 4294901760
        %v771 = vsub.f32 %v356, %v770
        %v772 = vand.u32 %v771, 4294901760
        %773 = vmatmul.mubr.f32.gmra.mxu0 %v772
        %v774 = vpop.f32.mrf.mxu0
        %v775 = vadd.f32 %v673, %v774
        %v776 = vpop.f32.mrf.mxu0
        %v777 = vadd.f32 %v675, %v776
        %778 = vmatprep.mubr.f32.mxu0 0.0
        %v779 = vand.u32 %v359, 4294901760
        %v780 = vsub.f32 %v359, %v779
        %v781 = vand.u32 %v780, 4294901760
        %782 = vmatmul.mubr.f32.gmra.mxu0 %v781
        %v783 = vpop.f32.mrf.mxu0
        %v784 = vadd.f32 %v681, %v783
        %v785 = vpop.f32.mrf.mxu0
        %v786 = vadd.f32 %v683, %v785
        %787 = vdwg.mxu0
        %788 = vmatprep.subr.mxu0 0.0
        %789 = vmatpush1.msra.mxu0 0.0
        %790 = vmatprep.subr.mxu0 0.0
        %791 = vmatpush1.msra.mxu0 0.0
        %792 = vmatprep.subr.mxu0 0.0
        %793 = vmatpush1.msra.mxu0 0.0
        %794 = vmatprep.subr.mxu0 0.0
        %795 = vmatpush1.msra.mxu0 0.0
        %796 = vmatprep.subr.mxu0 0.0
        %797 = vmatpush1.msra.mxu0 0.0
        %798 = vmatprep.subr.mxu0 0.0
        %799 = vmatpush1.msra.mxu0 0.0
        %800 = vmatprep.subr.mxu0 0.0
        %801 = vmatpush1.msra.mxu0 0.0
        %802 = vmatprep.subr.mxu0 0.0
        %803 = vmatpush1.msra.mxu0 0.0
        %804 = vmatprep.subr.mxu0 0.0
        %805 = vmatpush1.msra.mxu0 0.0
        %806 = vmatprep.subr.mxu0 0.0
        %807 = vmatpush1.msra.mxu0 0.0
        %808 = vmatprep.subr.mxu0 0.0
        %809 = vmatpush1.msra.mxu0 0.0
        %810 = vmatprep.subr.mxu0 0.0
        %811 = vmatpush1.msra.mxu0 0.0
        %812 = vmatprep.subr.mxu0 0.0
        %813 = vmatpush1.msra.mxu0 0.0
        %814 = vmatprep.subr.mxu0 0.0
        %815 = vmatpush1.msra.mxu0 0.0
        %816 = vmatprep.subr.mxu0 0.0
        %817 = vmatpush1.msra.mxu0 0.0
        %v818 = vand.u32 %v364, 4294901760
        %v819 = vsub.f32 %v364, %v818
        %v820 = vand.u32 %v819, 4294901760
        %821 = vmatprep.subr.mxu0 %v820
        %v822 = vand.u32 %v362, 4294901760
        %v823 = vsub.f32 %v362, %v822
        %v824 = vand.u32 %v823, 4294901760
        %825 = vmatpush1.msra.mxu0 %v824
        %826 = vmatprep.subr.mxu0 0.0
        %827 = vmatpush2.msra.mxu0 0.0
        %828 = vmatprep.subr.mxu0 0.0
        %829 = vmatpush2.msra.mxu0 0.0
        %830 = vmatprep.subr.mxu0 0.0
        %831 = vmatpush2.msra.mxu0 0.0
        %832 = vmatprep.subr.mxu0 0.0
        %833 = vmatpush2.msra.mxu0 0.0
        %834 = vmatprep.subr.mxu0 0.0
        %835 = vmatpush2.msra.mxu0 0.0
        %836 = vmatprep.subr.mxu0 0.0
        %837 = vmatpush2.msra.mxu0 0.0
        %838 = vmatprep.subr.mxu0 0.0
        %839 = vmatpush2.msra.mxu0 0.0
        %840 = vmatprep.subr.mxu0 0.0
        %841 = vmatpush2.msra.mxu0 0.0
        %842 = vmatprep.subr.mxu0 0.0
        %843 = vmatpush2.msra.mxu0 0.0
        %844 = vmatprep.subr.mxu0 0.0
        %845 = vmatpush2.msra.mxu0 0.0
        %846 = vmatprep.subr.mxu0 0.0
        %847 = vmatpush2.msra.mxu0 0.0
        %848 = vmatprep.subr.mxu0 0.0
        %849 = vmatpush2.msra.mxu0 0.0
        %850 = vmatprep.subr.mxu0 0.0
        %851 = vmatpush2.msra.mxu0 0.0
        %852 = vmatprep.subr.mxu0 0.0
        %853 = vmatpush2.msra.mxu0 0.0
        %854 = vmatprep.subr.mxu0 0.0
        %855 = vmatpush2.msra.mxu0 0.0
        %856 = vmatprep.subr.mxu0 0.0
        %857 = vmatpush2.msra.mxu0 0.0
        %858 = vmatprep.mubr.f32.mxu0 0.0
        %v859 = vand.u32 %v350, 4294901760
        %860 = vmatmul.mubr.f32.gmra.mxu0 %v859
        %v861 = vpop.f32.mrf.mxu0
        %v862 = vadd.f32 %v757, %v861
        %v863 = vpop.f32.mrf.mxu0
        %v864 = vadd.f32 %v759, %v863
        %865 = vmatprep.mubr.f32.mxu0 0.0
        %v866 = vand.u32 %v353, 4294901760
        %867 = vmatmul.mubr.f32.gmra.mxu0 %v866
        %v868 = vpop.f32.mrf.mxu0
        %v869 = vadd.f32 %v766, %v868
        %v870 = vpop.f32.mrf.mxu0
        %v871 = vadd.f32 %v768, %v870
        %872 = vmatprep.mubr.f32.mxu0 0.0
        %v873 = vand.u32 %v356, 4294901760
        %874 = vmatmul.mubr.f32.gmra.mxu0 %v873
        %v875 = vpop.f32.mrf.mxu0
        %v876 = vadd.f32 %v775, %v875
        %v877 = vpop.f32.mrf.mxu0
        %v878 = vadd.f32 %v777, %v877
        %879 = vmatprep.mubr.f32.mxu0 0.0
        %v880 = vand.u32 %v359, 4294901760
        %881 = vmatmul.mubr.f32.gmra.mxu0 %v880
        %v882 = vpop.f32.mrf.mxu0
        %v883 = vadd.f32 %v784, %v882
        %v884 = vpop.f32.mrf.mxu0
        %v885 = vadd.f32 %v786, %v884
        %886 = vdwg.mxu0
        %887 = vmatprep.subr.mxu0 0.0
        %888 = vmatpush1.msra.mxu0 0.0
        %889 = vmatprep.subr.mxu0 0.0
        %890 = vmatpush1.msra.mxu0 0.0
        %891 = vmatprep.subr.mxu0 0.0
        %892 = vmatpush1.msra.mxu0 0.0
        %893 = vmatprep.subr.mxu0 0.0
        %894 = vmatpush1.msra.mxu0 0.0
        %895 = vmatprep.subr.mxu0 0.0
        %896 = vmatpush1.msra.mxu0 0.0
        %897 = vmatprep.subr.mxu0 0.0
        %898 = vmatpush1.msra.mxu0 0.0
        %899 = vmatprep.subr.mxu0 0.0
        %900 = vmatpush1.msra.mxu0 0.0
        %901 = vmatprep.subr.mxu0 0.0
        %902 = vmatpush1.msra.mxu0 0.0
        %903 = vmatprep.subr.mxu0 0.0
        %904 = vmatpush1.msra.mxu0 0.0
        %905 = vmatprep.subr.mxu0 0.0
        %906 = vmatpush1.msra.mxu0 0.0
        %907 = vmatprep.subr.mxu0 0.0
        %908 = vmatpush1.msra.mxu0 0.0
        %909 = vmatprep.subr.mxu0 0.0
        %910 = vmatpush1.msra.mxu0 0.0
        %911 = vmatprep.subr.mxu0 0.0
        %912 = vmatpush1.msra.mxu0 0.0
        %913 = vmatprep.subr.mxu0 0.0
        %914 = vmatpush1.msra.mxu0 0.0
        %915 = vmatprep.subr.mxu0 0.0
        %916 = vmatpush1.msra.mxu0 0.0
        %v917 = vand.u32 %v364, 4294901760
        %918 = vmatprep.subr.mxu0 %v917
        %v919 = vand.u32 %v362, 4294901760
        %920 = vmatpush1.msra.mxu0 %v919
        %921 = vmatprep.subr.mxu0 0.0
        %922 = vmatpush2.msra.mxu0 0.0
        %923 = vmatprep.subr.mxu0 0.0
        %924 = vmatpush2.msra.mxu0 0.0
        %925 = vmatprep.subr.mxu0 0.0
        %926 = vmatpush2.msra.mxu0 0.0
        %927 = vmatprep.subr.mxu0 0.0
        %928 = vmatpush2.msra.mxu0 0.0
        %929 = vmatprep.subr.mxu0 0.0
        %930 = vmatpush2.msra.mxu0 0.0
        %931 = vmatprep.subr.mxu0 0.0
        %932 = vmatpush2.msra.mxu0 0.0
        %933 = vmatprep.subr.mxu0 0.0
        %934 = vmatpush2.msra.mxu0 0.0
        %935 = vmatprep.subr.mxu0 0.0
        %936 = vmatpush2.msra.mxu0 0.0
        %937 = vmatprep.subr.mxu0 0.0
        %938 = vmatpush2.msra.mxu0 0.0
        %939 = vmatprep.subr.mxu0 0.0
        %940 = vmatpush2.msra.mxu0 0.0
        %941 = vmatprep.subr.mxu0 0.0
        %942 = vmatpush2.msra.mxu0 0.0
        %943 = vmatprep.subr.mxu0 0.0
        %944 = vmatpush2.msra.mxu0 0.0
        %945 = vmatprep.subr.mxu0 0.0
        %946 = vmatpush2.msra.mxu0 0.0
        %947 = vmatprep.subr.mxu0 0.0
        %948 = vmatpush2.msra.mxu0 0.0
        %949 = vmatprep.subr.mxu0 0.0
        %950 = vmatpush2.msra.mxu0 0.0
        %951 = vmatprep.subr.mxu0 0.0
        %952 = vmatpush2.msra.mxu0 0.0
        %953 = vmatprep.mubr.f32.mxu0 0.0
        %v954 = vand.u32 %v350, 4294901760
        %955 = vmatmul.mubr.f32.gmra.mxu0 %v954
        %v956 = vpop.f32.mrf.mxu0
        %v957 = vadd.f32 %v862, %v956
        %v958 = vpop.f32.mrf.mxu0
        %v959 = vadd.f32 %v864, %v958
        %960 = vmatprep.mubr.f32.mxu0 0.0
        %v961 = vand.u32 %v353, 4294901760
        %962 = vmatmul.mubr.f32.gmra.mxu0 %v961
        %v963 = vpop.f32.mrf.mxu0
        %v964 = vadd.f32 %v869, %v963
        %v965 = vpop.f32.mrf.mxu0
        %v966 = vadd.f32 %v871, %v965
        %967 = vmatprep.mubr.f32.mxu0 0.0
        %v968 = vand.u32 %v356, 4294901760
        %969 = vmatmul.mubr.f32.gmra.mxu0 %v968
        %v970 = vpop.f32.mrf.mxu0
        %v971 = vadd.f32 %v876, %v970
        %v972 = vpop.f32.mrf.mxu0
        %v973 = vadd.f32 %v878, %v972
        %974 = vmatprep.mubr.f32.mxu0 0.0
        %v975 = vand.u32 %v359, 4294901760
        %976 = vmatmul.mubr.f32.gmra.mxu0 %v975
        %v977 = vpop.f32.mrf.mxu0
        %v978 = vadd.f32 %v883, %v977
        %v979 = vpop.f32.mrf.mxu0
        %v980 = vadd.f32 %v885, %v979
        %981 = vdwg.mxu0
        %982 = vmatprep.subr.mxu0 0.0
        %983 = vmatpush1.msra.mxu0 0.0
        %984 = vmatprep.subr.mxu0 0.0
        %985 = vmatpush1.msra.mxu0 0.0
        %986 = vmatprep.subr.mxu0 0.0
        %987 = vmatpush1.msra.mxu0 0.0
        %988 = vmatprep.subr.mxu0 0.0
        %989 = vmatpush1.msra.mxu0 0.0
        %990 = vmatprep.subr.mxu0 0.0
        %991 = vmatpush1.msra.mxu0 0.0
        %992 = vmatprep.subr.mxu0 0.0
        %993 = vmatpush1.msra.mxu0 0.0
        %994 = vmatprep.subr.mxu0 0.0
        %995 = vmatpush1.msra.mxu0 0.0
        %996 = vmatprep.subr.mxu0 0.0
        %997 = vmatpush1.msra.mxu0 0.0
        %998 = vmatprep.subr.mxu0 0.0
        %999 = vmatpush1.msra.mxu0 0.0
        %1000 = vmatprep.subr.mxu0 0.0
        %1001 = vmatpush1.msra.mxu0 0.0
        %1002 = vmatprep.subr.mxu0 0.0
        %1003 = vmatpush1.msra.mxu0 0.0
        %1004 = vmatprep.subr.mxu0 0.0
        %1005 = vmatpush1.msra.mxu0 0.0
        %1006 = vmatprep.subr.mxu0 0.0
        %1007 = vmatpush1.msra.mxu0 0.0
        %1008 = vmatprep.subr.mxu0 0.0
        %1009 = vmatpush1.msra.mxu0 0.0
        %1010 = vmatprep.subr.mxu0 0.0
        %1011 = vmatpush1.msra.mxu0 0.0
        %v1012 = vand.u32 %v368, 4294901760
        %1013 = vmatprep.subr.mxu0 %v1012
        %v1014 = vand.u32 %v366, 4294901760
        %1015 = vmatpush1.msra.mxu0 %v1014
        %1016 = vmatprep.subr.mxu0 0.0
        %1017 = vmatpush2.msra.mxu0 0.0
        %1018 = vmatprep.subr.mxu0 0.0
        %1019 = vmatpush2.msra.mxu0 0.0
        %1020 = vmatprep.subr.mxu0 0.0
        %1021 = vmatpush2.msra.mxu0 0.0
        %1022 = vmatprep.subr.mxu0 0.0
        %1023 = vmatpush2.msra.mxu0 0.0
        %1024 = vmatprep.subr.mxu0 0.0
        %1025 = vmatpush2.msra.mxu0 0.0
        %1026 = vmatprep.subr.mxu0 0.0
        %1027 = vmatpush2.msra.mxu0 0.0
        %1028 = vmatprep.subr.mxu0 0.0
        %1029 = vmatpush2.msra.mxu0 0.0
        %1030 = vmatprep.subr.mxu0 0.0
        %1031 = vmatpush2.msra.mxu0 0.0
        %1032 = vmatprep.subr.mxu0 0.0
        %1033 = vmatpush2.msra.mxu0 0.0
        %1034 = vmatprep.subr.mxu0 0.0
        %1035 = vmatpush2.msra.mxu0 0.0
        %1036 = vmatprep.subr.mxu0 0.0
        %1037 = vmatpush2.msra.mxu0 0.0
        %1038 = vmatprep.subr.mxu0 0.0
        %1039 = vmatpush2.msra.mxu0 0.0
        %1040 = vmatprep.subr.mxu0 0.0
        %1041 = vmatpush2.msra.mxu0 0.0
        %1042 = vmatprep.subr.mxu0 0.0
        %1043 = vmatpush2.msra.mxu0 0.0
        %1044 = vmatprep.subr.mxu0 0.0
        %1045 = vmatpush2.msra.mxu0 0.0
        %1046 = vmatprep.subr.mxu0 0.0
        %1047 = vmatpush2.msra.mxu0 0.0
        %1048 = vmatprep.mubr.f32.mxu0 0.0
        %v1049 = vand.u32 %v350, 4294901760
        %v1050 = vsub.f32 %v350, %v1049
        %v1051 = vand.u32 %v1050, 4294901760
        %v1052 = vsub.f32 %v1050, %v1051
        %v1053 = vand.u32 %v1052, 4294901760
        %1054 = vmatmul.mubr.f32.gmra.mxu0 %v1053
        %v1055 = vpop.f32.mrf.mxu0
        %v1056 = vadd.f32 %v327, %v1055
        %v1057 = vpop.f32.mrf.mxu0
        %v1058 = vadd.f32 %v327, %v1057
        %1059 = vmatprep.mubr.f32.mxu0 0.0
        %v1060 = vand.u32 %v353, 4294901760
        %v1061 = vsub.f32 %v353, %v1060
        %v1062 = vand.u32 %v1061, 4294901760
        %v1063 = vsub.f32 %v1061, %v1062
        %v1064 = vand.u32 %v1063, 4294901760
        %1065 = vmatmul.mubr.f32.gmra.mxu0 %v1064
        %v1066 = vpop.f32.mrf.mxu0
        %v1067 = vadd.f32 %v332, %v1066
        %v1068 = vpop.f32.mrf.mxu0
        %v1069 = vadd.f32 %v332, %v1068
        %1070 = vmatprep.mubr.f32.mxu0 0.0
        %v1071 = vand.u32 %v356, 4294901760
        %v1072 = vsub.f32 %v356, %v1071
        %v1073 = vand.u32 %v1072, 4294901760
        %v1074 = vsub.f32 %v1072, %v1073
        %v1075 = vand.u32 %v1074, 4294901760
        %1076 = vmatmul.mubr.f32.gmra.mxu0 %v1075
        %v1077 = vpop.f32.mrf.mxu0
        %v1078 = vadd.f32 %v337, %v1077
        %v1079 = vpop.f32.mrf.mxu0
        %v1080 = vadd.f32 %v337, %v1079
        %1081 = vmatprep.mubr.f32.mxu0 0.0
        %v1082 = vand.u32 %v359, 4294901760
        %v1083 = vsub.f32 %v359, %v1082
        %v1084 = vand.u32 %v1083, 4294901760
        %v1085 = vsub.f32 %v1083, %v1084
        %v1086 = vand.u32 %v1085, 4294901760
        %1087 = vmatmul.mubr.f32.gmra.mxu0 %v1086
        %v1088 = vpop.f32.mrf.mxu0
        %v1089 = vadd.f32 %v342, %v1088
        %v1090 = vpop.f32.mrf.mxu0
        %v1091 = vadd.f32 %v342, %v1090
        %1092 = vdwg.mxu0
        %1093 = vmatprep.subr.mxu0 0.0
        %1094 = vmatpush1.msra.mxu0 0.0
        %1095 = vmatprep.subr.mxu0 0.0
        %1096 = vmatpush1.msra.mxu0 0.0
        %1097 = vmatprep.subr.mxu0 0.0
        %1098 = vmatpush1.msra.mxu0 0.0
        %1099 = vmatprep.subr.mxu0 0.0
        %1100 = vmatpush1.msra.mxu0 0.0
        %1101 = vmatprep.subr.mxu0 0.0
        %1102 = vmatpush1.msra.mxu0 0.0
        %1103 = vmatprep.subr.mxu0 0.0
        %1104 = vmatpush1.msra.mxu0 0.0
        %1105 = vmatprep.subr.mxu0 0.0
        %1106 = vmatpush1.msra.mxu0 0.0
        %1107 = vmatprep.subr.mxu0 0.0
        %1108 = vmatpush1.msra.mxu0 0.0
        %1109 = vmatprep.subr.mxu0 0.0
        %1110 = vmatpush1.msra.mxu0 0.0
        %1111 = vmatprep.subr.mxu0 0.0
        %1112 = vmatpush1.msra.mxu0 0.0
        %1113 = vmatprep.subr.mxu0 0.0
        %1114 = vmatpush1.msra.mxu0 0.0
        %1115 = vmatprep.subr.mxu0 0.0
        %1116 = vmatpush1.msra.mxu0 0.0
        %1117 = vmatprep.subr.mxu0 0.0
        %1118 = vmatpush1.msra.mxu0 0.0
        %1119 = vmatprep.subr.mxu0 0.0
        %1120 = vmatpush1.msra.mxu0 0.0
        %1121 = vmatprep.subr.mxu0 0.0
        %1122 = vmatpush1.msra.mxu0 0.0
        %v1123 = vand.u32 %v368, 4294901760
        %v1124 = vsub.f32 %v368, %v1123
        %v1125 = vand.u32 %v1124, 4294901760
        %v1126 = vsub.f32 %v1124, %v1125
        %v1127 = vand.u32 %v1126, 4294901760
        %1128 = vmatprep.subr.mxu0 %v1127
        %v1129 = vand.u32 %v366, 4294901760
        %v1130 = vsub.f32 %v366, %v1129
        %v1131 = vand.u32 %v1130, 4294901760
        %v1132 = vsub.f32 %v1130, %v1131
        %v1133 = vand.u32 %v1132, 4294901760
        %1134 = vmatpush1.msra.mxu0 %v1133
        %1135 = vmatprep.subr.mxu0 0.0
        %1136 = vmatpush2.msra.mxu0 0.0
        %1137 = vmatprep.subr.mxu0 0.0
        %1138 = vmatpush2.msra.mxu0 0.0
        %1139 = vmatprep.subr.mxu0 0.0
        %1140 = vmatpush2.msra.mxu0 0.0
        %1141 = vmatprep.subr.mxu0 0.0
        %1142 = vmatpush2.msra.mxu0 0.0
        %1143 = vmatprep.subr.mxu0 0.0
        %1144 = vmatpush2.msra.mxu0 0.0
        %1145 = vmatprep.subr.mxu0 0.0
        %1146 = vmatpush2.msra.mxu0 0.0
        %1147 = vmatprep.subr.mxu0 0.0
        %1148 = vmatpush2.msra.mxu0 0.0
        %1149 = vmatprep.subr.mxu0 0.0
        %1150 = vmatpush2.msra.mxu0 0.0
        %1151 = vmatprep.subr.mxu0 0.0
        %1152 = vmatpush2.msra.mxu0 0.0
        %1153 = vmatprep.subr.mxu0 0.0
        %1154 = vmatpush2.msra.mxu0 0.0
        %1155 = vmatprep.subr.mxu0 0.0
        %1156 = vmatpush2.msra.mxu0 0.0
        %1157 = vmatprep.subr.mxu0 0.0
        %1158 = vmatpush2.msra.mxu0 0.0
        %1159 = vmatprep.subr.mxu0 0.0
        %1160 = vmatpush2.msra.mxu0 0.0
        %1161 = vmatprep.subr.mxu0 0.0
        %1162 = vmatpush2.msra.mxu0 0.0
        %1163 = vmatprep.subr.mxu0 0.0
        %1164 = vmatpush2.msra.mxu0 0.0
        %1165 = vmatprep.subr.mxu0 0.0
        %1166 = vmatpush2.msra.mxu0 0.0
        %1167 = vmatprep.mubr.f32.mxu0 0.0
        %v1168 = vand.u32 %v350, 4294901760
        %1169 = vmatmul.mubr.f32.gmra.mxu0 %v1168
        %v1170 = vpop.f32.mrf.mxu0
        %v1171 = vadd.f32 %v1056, %v1170
        %v1172 = vpop.f32.mrf.mxu0
        %v1173 = vadd.f32 %v1058, %v1172
        %1174 = vmatprep.mubr.f32.mxu0 0.0
        %v1175 = vand.u32 %v353, 4294901760
        %1176 = vmatmul.mubr.f32.gmra.mxu0 %v1175
        %v1177 = vpop.f32.mrf.mxu0
        %v1178 = vadd.f32 %v1067, %v1177
        %v1179 = vpop.f32.mrf.mxu0
        %v1180 = vadd.f32 %v1069, %v1179
        %1181 = vmatprep.mubr.f32.mxu0 0.0
        %v1182 = vand.u32 %v356, 4294901760
        %1183 = vmatmul.mubr.f32.gmra.mxu0 %v1182
        %v1184 = vpop.f32.mrf.mxu0
        %v1185 = vadd.f32 %v1078, %v1184
        %v1186 = vpop.f32.mrf.mxu0
        %v1187 = vadd.f32 %v1080, %v1186
        %1188 = vmatprep.mubr.f32.mxu0 0.0
        %v1189 = vand.u32 %v359, 4294901760
        %1190 = vmatmul.mubr.f32.gmra.mxu0 %v1189
        %v1191 = vpop.f32.mrf.mxu0
        %v1192 = vadd.f32 %v1089, %v1191
        %v1193 = vpop.f32.mrf.mxu0
        %v1194 = vadd.f32 %v1091, %v1193
        %1195 = vdwg.mxu0
        %1196 = vmatprep.subr.mxu0 0.0
        %1197 = vmatpush1.msra.mxu0 0.0
        %1198 = vmatprep.subr.mxu0 0.0
        %1199 = vmatpush1.msra.mxu0 0.0
        %1200 = vmatprep.subr.mxu0 0.0
        %1201 = vmatpush1.msra.mxu0 0.0
        %1202 = vmatprep.subr.mxu0 0.0
        %1203 = vmatpush1.msra.mxu0 0.0
        %1204 = vmatprep.subr.mxu0 0.0
        %1205 = vmatpush1.msra.mxu0 0.0
        %1206 = vmatprep.subr.mxu0 0.0
        %1207 = vmatpush1.msra.mxu0 0.0
        %1208 = vmatprep.subr.mxu0 0.0
        %1209 = vmatpush1.msra.mxu0 0.0
        %1210 = vmatprep.subr.mxu0 0.0
        %1211 = vmatpush1.msra.mxu0 0.0
        %1212 = vmatprep.subr.mxu0 0.0
        %1213 = vmatpush1.msra.mxu0 0.0
        %1214 = vmatprep.subr.mxu0 0.0
        %1215 = vmatpush1.msra.mxu0 0.0
        %1216 = vmatprep.subr.mxu0 0.0
        %1217 = vmatpush1.msra.mxu0 0.0
        %1218 = vmatprep.subr.mxu0 0.0
        %1219 = vmatpush1.msra.mxu0 0.0
        %1220 = vmatprep.subr.mxu0 0.0
        %1221 = vmatpush1.msra.mxu0 0.0
        %1222 = vmatprep.subr.mxu0 0.0
        %1223 = vmatpush1.msra.mxu0 0.0
        %1224 = vmatprep.subr.mxu0 0.0
        %1225 = vmatpush1.msra.mxu0 0.0
        %v1226 = vand.u32 %v368, 4294901760
        %v1227 = vsub.f32 %v368, %v1226
        %1228 = vmatprep.subr.mxu0 %v1227
        %v1229 = vand.u32 %v366, 4294901760
        %v1230 = vsub.f32 %v366, %v1229
        %1231 = vmatpush1.msra.mxu0 %v1230
        %1232 = vmatprep.subr.mxu0 0.0
        %1233 = vmatpush2.msra.mxu0 0.0
        %1234 = vmatprep.subr.mxu0 0.0
        %1235 = vmatpush2.msra.mxu0 0.0
        %1236 = vmatprep.subr.mxu0 0.0
        %1237 = vmatpush2.msra.mxu0 0.0
        %1238 = vmatprep.subr.mxu0 0.0
        %1239 = vmatpush2.msra.mxu0 0.0
        %1240 = vmatprep.subr.mxu0 0.0
        %1241 = vmatpush2.msra.mxu0 0.0
        %1242 = vmatprep.subr.mxu0 0.0
        %1243 = vmatpush2.msra.mxu0 0.0
        %1244 = vmatprep.subr.mxu0 0.0
        %1245 = vmatpush2.msra.mxu0 0.0
        %1246 = vmatprep.subr.mxu0 0.0
        %1247 = vmatpush2.msra.mxu0 0.0
        %1248 = vmatprep.subr.mxu0 0.0
        %1249 = vmatpush2.msra.mxu0 0.0
        %1250 = vmatprep.subr.mxu0 0.0
        %1251 = vmatpush2.msra.mxu0 0.0
        %1252 = vmatprep.subr.mxu0 0.0
        %1253 = vmatpush2.msra.mxu0 0.0
        %1254 = vmatprep.subr.mxu0 0.0
        %1255 = vmatpush2.msra.mxu0 0.0
        %1256 = vmatprep.subr.mxu0 0.0
        %1257 = vmatpush2.msra.mxu0 0.0
        %1258 = vmatprep.subr.mxu0 0.0
        %1259 = vmatpush2.msra.mxu0 0.0
        %1260 = vmatprep.subr.mxu0 0.0
        %1261 = vmatpush2.msra.mxu0 0.0
        %1262 = vmatprep.subr.mxu0 0.0
        %1263 = vmatpush2.msra.mxu0 0.0
        %1264 = vmatprep.mubr.f32.mxu0 0.0
        %v1265 = vand.u32 %v350, 4294901760
        %v1266 = vsub.f32 %v350, %v1265
        %1267 = vmatmul.mubr.f32.gmra.mxu0 %v1266
        %v1268 = vpop.f32.mrf.mxu0
        %v1269 = vadd.f32 %v1171, %v1268
        %v1270 = vpop.f32.mrf.mxu0
        %v1271 = vadd.f32 %v1173, %v1270
        %1272 = vmatprep.mubr.f32.mxu0 0.0
        %v1273 = vand.u32 %v353, 4294901760
        %v1274 = vsub.f32 %v353, %v1273
        %1275 = vmatmul.mubr.f32.gmra.mxu0 %v1274
        %v1276 = vpop.f32.mrf.mxu0
        %v1277 = vadd.f32 %v1178, %v1276
        %v1278 = vpop.f32.mrf.mxu0
        %v1279 = vadd.f32 %v1180, %v1278
        %1280 = vmatprep.mubr.f32.mxu0 0.0
        %v1281 = vand.u32 %v356, 4294901760
        %v1282 = vsub.f32 %v356, %v1281
        %1283 = vmatmul.mubr.f32.gmra.mxu0 %v1282
        %v1284 = vpop.f32.mrf.mxu0
        %v1285 = vadd.f32 %v1185, %v1284
        %v1286 = vpop.f32.mrf.mxu0
        %v1287 = vadd.f32 %v1187, %v1286
        %1288 = vmatprep.mubr.f32.mxu0 0.0
        %v1289 = vand.u32 %v359, 4294901760
        %v1290 = vsub.f32 %v359, %v1289
        %1291 = vmatmul.mubr.f32.gmra.mxu0 %v1290
        %v1292 = vpop.f32.mrf.mxu0
        %v1293 = vadd.f32 %v1192, %v1292
        %v1294 = vpop.f32.mrf.mxu0
        %v1295 = vadd.f32 %v1194, %v1294
        %1296 = vdwg.mxu0
        %1297 = vmatprep.subr.mxu0 0.0
        %1298 = vmatpush1.msra.mxu0 0.0
        %1299 = vmatprep.subr.mxu0 0.0
        %1300 = vmatpush1.msra.mxu0 0.0
        %1301 = vmatprep.subr.mxu0 0.0
        %1302 = vmatpush1.msra.mxu0 0.0
        %1303 = vmatprep.subr.mxu0 0.0
        %1304 = vmatpush1.msra.mxu0 0.0
        %1305 = vmatprep.subr.mxu0 0.0
        %1306 = vmatpush1.msra.mxu0 0.0
        %1307 = vmatprep.subr.mxu0 0.0
        %1308 = vmatpush1.msra.mxu0 0.0
        %1309 = vmatprep.subr.mxu0 0.0
        %1310 = vmatpush1.msra.mxu0 0.0
        %1311 = vmatprep.subr.mxu0 0.0
        %1312 = vmatpush1.msra.mxu0 0.0
        %1313 = vmatprep.subr.mxu0 0.0
        %1314 = vmatpush1.msra.mxu0 0.0
        %1315 = vmatprep.subr.mxu0 0.0
        %1316 = vmatpush1.msra.mxu0 0.0
        %1317 = vmatprep.subr.mxu0 0.0
        %1318 = vmatpush1.msra.mxu0 0.0
        %1319 = vmatprep.subr.mxu0 0.0
        %1320 = vmatpush1.msra.mxu0 0.0
        %1321 = vmatprep.subr.mxu0 0.0
        %1322 = vmatpush1.msra.mxu0 0.0
        %1323 = vmatprep.subr.mxu0 0.0
        %1324 = vmatpush1.msra.mxu0 0.0
        %1325 = vmatprep.subr.mxu0 0.0
        %1326 = vmatpush1.msra.mxu0 0.0
        %v1327 = vand.u32 %v368, 4294901760
        %1328 = vmatprep.subr.mxu0 %v1327
        %v1329 = vand.u32 %v366, 4294901760
        %1330 = vmatpush1.msra.mxu0 %v1329
        %1331 = vmatprep.subr.mxu0 0.0
        %1332 = vmatpush2.msra.mxu0 0.0
        %1333 = vmatprep.subr.mxu0 0.0
        %1334 = vmatpush2.msra.mxu0 0.0
        %1335 = vmatprep.subr.mxu0 0.0
        %1336 = vmatpush2.msra.mxu0 0.0
        %1337 = vmatprep.subr.mxu0 0.0
        %1338 = vmatpush2.msra.mxu0 0.0
        %1339 = vmatprep.subr.mxu0 0.0
        %1340 = vmatpush2.msra.mxu0 0.0
        %1341 = vmatprep.subr.mxu0 0.0
        %1342 = vmatpush2.msra.mxu0 0.0
        %1343 = vmatprep.subr.mxu0 0.0
        %1344 = vmatpush2.msra.mxu0 0.0
        %1345 = vmatprep.subr.mxu0 0.0
        %1346 = vmatpush2.msra.mxu0 0.0
        %1347 = vmatprep.subr.mxu0 0.0
        %1348 = vmatpush2.msra.mxu0 0.0
        %1349 = vmatprep.subr.mxu0 0.0
        %1350 = vmatpush2.msra.mxu0 0.0
        %1351 = vmatprep.subr.mxu0 0.0
        %1352 = vmatpush2.msra.mxu0 0.0
        %1353 = vmatprep.subr.mxu0 0.0
        %1354 = vmatpush2.msra.mxu0 0.0
        %1355 = vmatprep.subr.mxu0 0.0
        %1356 = vmatpush2.msra.mxu0 0.0
        %1357 = vmatprep.subr.mxu0 0.0
        %1358 = vmatpush2.msra.mxu0 0.0
        %1359 = vmatprep.subr.mxu0 0.0
        %1360 = vmatpush2.msra.mxu0 0.0
        %1361 = vmatprep.subr.mxu0 0.0
        %1362 = vmatpush2.msra.mxu0 0.0
        %1363 = vmatprep.mubr.f32.mxu0 0.0
        %v1364 = vand.u32 %v350, 4294901760
        %v1365 = vsub.f32 %v350, %v1364
        %v1366 = vand.u32 %v1365, 4294901760
        %1367 = vmatmul.mubr.f32.gmra.mxu0 %v1366
        %v1368 = vpop.f32.mrf.mxu0
        %v1369 = vadd.f32 %v1269, %v1368
        %v1370 = vpop.f32.mrf.mxu0
        %v1371 = vadd.f32 %v1271, %v1370
        %1372 = vmatprep.mubr.f32.mxu0 0.0
        %v1373 = vand.u32 %v353, 4294901760
        %v1374 = vsub.f32 %v353, %v1373
        %v1375 = vand.u32 %v1374, 4294901760
        %1376 = vmatmul.mubr.f32.gmra.mxu0 %v1375
        %v1377 = vpop.f32.mrf.mxu0
        %v1378 = vadd.f32 %v1277, %v1377
        %v1379 = vpop.f32.mrf.mxu0
        %v1380 = vadd.f32 %v1279, %v1379
        %1381 = vmatprep.mubr.f32.mxu0 0.0
        %v1382 = vand.u32 %v356, 4294901760
        %v1383 = vsub.f32 %v356, %v1382
        %v1384 = vand.u32 %v1383, 4294901760
        %1385 = vmatmul.mubr.f32.gmra.mxu0 %v1384
        %v1386 = vpop.f32.mrf.mxu0
        %v1387 = vadd.f32 %v1285, %v1386
        %v1388 = vpop.f32.mrf.mxu0
        %v1389 = vadd.f32 %v1287, %v1388
        %1390 = vmatprep.mubr.f32.mxu0 0.0
        %v1391 = vand.u32 %v359, 4294901760
        %v1392 = vsub.f32 %v359, %v1391
        %v1393 = vand.u32 %v1392, 4294901760
        %1394 = vmatmul.mubr.f32.gmra.mxu0 %v1393
        %v1395 = vpop.f32.mrf.mxu0
        %v1396 = vadd.f32 %v1293, %v1395
        %v1397 = vpop.f32.mrf.mxu0
        %v1398 = vadd.f32 %v1295, %v1397
        %1399 = vdwg.mxu0
        %1400 = vmatprep.subr.mxu0 0.0
        %1401 = vmatpush1.msra.mxu0 0.0
        %1402 = vmatprep.subr.mxu0 0.0
        %1403 = vmatpush1.msra.mxu0 0.0
        %1404 = vmatprep.subr.mxu0 0.0
        %1405 = vmatpush1.msra.mxu0 0.0
        %1406 = vmatprep.subr.mxu0 0.0
        %1407 = vmatpush1.msra.mxu0 0.0
        %1408 = vmatprep.subr.mxu0 0.0
        %1409 = vmatpush1.msra.mxu0 0.0
        %1410 = vmatprep.subr.mxu0 0.0
        %1411 = vmatpush1.msra.mxu0 0.0
        %1412 = vmatprep.subr.mxu0 0.0
        %1413 = vmatpush1.msra.mxu0 0.0
        %1414 = vmatprep.subr.mxu0 0.0
        %1415 = vmatpush1.msra.mxu0 0.0
        %1416 = vmatprep.subr.mxu0 0.0
        %1417 = vmatpush1.msra.mxu0 0.0
        %1418 = vmatprep.subr.mxu0 0.0
        %1419 = vmatpush1.msra.mxu0 0.0
        %1420 = vmatprep.subr.mxu0 0.0
        %1421 = vmatpush1.msra.mxu0 0.0
        %1422 = vmatprep.subr.mxu0 0.0
        %1423 = vmatpush1.msra.mxu0 0.0
        %1424 = vmatprep.subr.mxu0 0.0
        %1425 = vmatpush1.msra.mxu0 0.0
        %1426 = vmatprep.subr.mxu0 0.0
        %1427 = vmatpush1.msra.mxu0 0.0
        %1428 = vmatprep.subr.mxu0 0.0
        %1429 = vmatpush1.msra.mxu0 0.0
        %v1430 = vand.u32 %v368, 4294901760
        %v1431 = vsub.f32 %v368, %v1430
        %v1432 = vand.u32 %v1431, 4294901760
        %1433 = vmatprep.subr.mxu0 %v1432
        %v1434 = vand.u32 %v366, 4294901760
        %v1435 = vsub.f32 %v366, %v1434
        %v1436 = vand.u32 %v1435, 4294901760
        %1437 = vmatpush1.msra.mxu0 %v1436
        %1438 = vmatprep.subr.mxu0 0.0
        %1439 = vmatpush2.msra.mxu0 0.0
        %1440 = vmatprep.subr.mxu0 0.0
        %1441 = vmatpush2.msra.mxu0 0.0
        %1442 = vmatprep.subr.mxu0 0.0
        %1443 = vmatpush2.msra.mxu0 0.0
        %1444 = vmatprep.subr.mxu0 0.0
        %1445 = vmatpush2.msra.mxu0 0.0
        %1446 = vmatprep.subr.mxu0 0.0
        %1447 = vmatpush2.msra.mxu0 0.0
        %1448 = vmatprep.subr.mxu0 0.0
        %1449 = vmatpush2.msra.mxu0 0.0
        %1450 = vmatprep.subr.mxu0 0.0
        %1451 = vmatpush2.msra.mxu0 0.0
        %1452 = vmatprep.subr.mxu0 0.0
        %1453 = vmatpush2.msra.mxu0 0.0
        %1454 = vmatprep.subr.mxu0 0.0
        %1455 = vmatpush2.msra.mxu0 0.0
        %1456 = vmatprep.subr.mxu0 0.0
        %1457 = vmatpush2.msra.mxu0 0.0
        %1458 = vmatprep.subr.mxu0 0.0
        %1459 = vmatpush2.msra.mxu0 0.0
        %1460 = vmatprep.subr.mxu0 0.0
        %1461 = vmatpush2.msra.mxu0 0.0
        %1462 = vmatprep.subr.mxu0 0.0
        %1463 = vmatpush2.msra.mxu0 0.0
        %1464 = vmatprep.subr.mxu0 0.0
        %1465 = vmatpush2.msra.mxu0 0.0
        %1466 = vmatprep.subr.mxu0 0.0
        %1467 = vmatpush2.msra.mxu0 0.0
        %1468 = vmatprep.subr.mxu0 0.0
        %1469 = vmatpush2.msra.mxu0 0.0
        %1470 = vmatprep.mubr.f32.mxu0 0.0
        %v1471 = vand.u32 %v350, 4294901760
        %1472 = vmatmul.mubr.f32.gmra.mxu0 %v1471
        %v1473 = vpop.f32.mrf.mxu0
        %v1474 = vadd.f32 %v1369, %v1473
        %v1475 = vpop.f32.mrf.mxu0
        %v1476 = vadd.f32 %v1371, %v1475
        %1477 = vmatprep.mubr.f32.mxu0 0.0
        %v1478 = vand.u32 %v353, 4294901760
        %1479 = vmatmul.mubr.f32.gmra.mxu0 %v1478
        %v1480 = vpop.f32.mrf.mxu0
        %v1481 = vadd.f32 %v1378, %v1480
        %v1482 = vpop.f32.mrf.mxu0
        %v1483 = vadd.f32 %v1380, %v1482
        %1484 = vmatprep.mubr.f32.mxu0 0.0
        %v1485 = vand.u32 %v356, 4294901760
        %1486 = vmatmul.mubr.f32.gmra.mxu0 %v1485
        %v1487 = vpop.f32.mrf.mxu0
        %v1488 = vadd.f32 %v1387, %v1487
        %v1489 = vpop.f32.mrf.mxu0
        %v1490 = vadd.f32 %v1389, %v1489
        %1491 = vmatprep.mubr.f32.mxu0 0.0
        %v1492 = vand.u32 %v359, 4294901760
        %1493 = vmatmul.mubr.f32.gmra.mxu0 %v1492
        %v1494 = vpop.f32.mrf.mxu0
        %v1495 = vadd.f32 %v1396, %v1494
        %v1496 = vpop.f32.mrf.mxu0
        %v1497 = vadd.f32 %v1398, %v1496
        %1498 = vdwg.mxu0
        %1499 = vmatprep.subr.mxu0 0.0
        %1500 = vmatpush1.msra.mxu0 0.0
        %1501 = vmatprep.subr.mxu0 0.0
        %1502 = vmatpush1.msra.mxu0 0.0
        %1503 = vmatprep.subr.mxu0 0.0
        %1504 = vmatpush1.msra.mxu0 0.0
        %1505 = vmatprep.subr.mxu0 0.0
        %1506 = vmatpush1.msra.mxu0 0.0
        %1507 = vmatprep.subr.mxu0 0.0
        %1508 = vmatpush1.msra.mxu0 0.0
        %1509 = vmatprep.subr.mxu0 0.0
        %1510 = vmatpush1.msra.mxu0 0.0
        %1511 = vmatprep.subr.mxu0 0.0
        %1512 = vmatpush1.msra.mxu0 0.0
        %1513 = vmatprep.subr.mxu0 0.0
        %1514 = vmatpush1.msra.mxu0 0.0
        %1515 = vmatprep.subr.mxu0 0.0
        %1516 = vmatpush1.msra.mxu0 0.0
        %1517 = vmatprep.subr.mxu0 0.0
        %1518 = vmatpush1.msra.mxu0 0.0
        %1519 = vmatprep.subr.mxu0 0.0
        %1520 = vmatpush1.msra.mxu0 0.0
        %1521 = vmatprep.subr.mxu0 0.0
        %1522 = vmatpush1.msra.mxu0 0.0
        %1523 = vmatprep.subr.mxu0 0.0
        %1524 = vmatpush1.msra.mxu0 0.0
        %1525 = vmatprep.subr.mxu0 0.0
        %1526 = vmatpush1.msra.mxu0 0.0
        %1527 = vmatprep.subr.mxu0 0.0
        %1528 = vmatpush1.msra.mxu0 0.0
        %v1529 = vand.u32 %v368, 4294901760
        %1530 = vmatprep.subr.mxu0 %v1529
        %v1531 = vand.u32 %v366, 4294901760
        %1532 = vmatpush1.msra.mxu0 %v1531
        %1533 = vmatprep.subr.mxu0 0.0
        %1534 = vmatpush2.msra.mxu0 0.0
        %1535 = vmatprep.subr.mxu0 0.0
        %1536 = vmatpush2.msra.mxu0 0.0
        %1537 = vmatprep.subr.mxu0 0.0
        %1538 = vmatpush2.msra.mxu0 0.0
        %1539 = vmatprep.subr.mxu0 0.0
        %1540 = vmatpush2.msra.mxu0 0.0
        %1541 = vmatprep.subr.mxu0 0.0
        %1542 = vmatpush2.msra.mxu0 0.0
        %1543 = vmatprep.subr.mxu0 0.0
        %1544 = vmatpush2.msra.mxu0 0.0
        %1545 = vmatprep.subr.mxu0 0.0
        %1546 = vmatpush2.msra.mxu0 0.0
        %1547 = vmatprep.subr.mxu0 0.0
        %1548 = vmatpush2.msra.mxu0 0.0
        %1549 = vmatprep.subr.mxu0 0.0
        %1550 = vmatpush2.msra.mxu0 0.0
        %1551 = vmatprep.subr.mxu0 0.0
        %1552 = vmatpush2.msra.mxu0 0.0
        %1553 = vmatprep.subr.mxu0 0.0
        %1554 = vmatpush2.msra.mxu0 0.0
        %1555 = vmatprep.subr.mxu0 0.0
        %1556 = vmatpush2.msra.mxu0 0.0
        %1557 = vmatprep.subr.mxu0 0.0
        %1558 = vmatpush2.msra.mxu0 0.0
        %1559 = vmatprep.subr.mxu0 0.0
        %1560 = vmatpush2.msra.mxu0 0.0
        %1561 = vmatprep.subr.mxu0 0.0
        %1562 = vmatpush2.msra.mxu0 0.0
        %1563 = vmatprep.subr.mxu0 0.0
        %1564 = vmatpush2.msra.mxu0 0.0
        %1565 = vmatprep.mubr.f32.mxu0 0.0
        %v1566 = vand.u32 %v350, 4294901760
        %1567 = vmatmul.mubr.f32.gmra.mxu0 %v1566
        %v1568 = vpop.f32.mrf.mxu0
        %v1569 = vadd.f32 %v1474, %v1568
        %v1570 = vpop.f32.mrf.mxu0
        %v1571 = vadd.f32 %v1476, %v1570
        %1572 = vmatprep.mubr.f32.mxu0 0.0
        %v1573 = vand.u32 %v353, 4294901760
        %1574 = vmatmul.mubr.f32.gmra.mxu0 %v1573
        %v1575 = vpop.f32.mrf.mxu0
        %v1576 = vadd.f32 %v1481, %v1575
        %v1577 = vpop.f32.mrf.mxu0
        %v1578 = vadd.f32 %v1483, %v1577
        %1579 = vmatprep.mubr.f32.mxu0 0.0
        %v1580 = vand.u32 %v356, 4294901760
        %1581 = vmatmul.mubr.f32.gmra.mxu0 %v1580
        %v1582 = vpop.f32.mrf.mxu0
        %v1583 = vadd.f32 %v1488, %v1582
        %v1584 = vpop.f32.mrf.mxu0
        %v1585 = vadd.f32 %v1490, %v1584
        %1586 = vmatprep.mubr.f32.mxu0 0.0
        %v1587 = vand.u32 %v359, 4294901760
        %1588 = vmatmul.mubr.f32.gmra.mxu0 %v1587
        %v1589 = vpop.f32.mrf.mxu0
        %v1590 = vadd.f32 %v1495, %v1589
        %v1591 = vpop.f32.mrf.mxu0
        %v1592 = vadd.f32 %v1497, %v1591
        %1593 = vdwg.mxu0
        %v1594 = vtanh.pop %v957
        %v1595 = vtanh.pop %v959
        %v1596 = vtanh.pop %v1569
        %v1597 = vtanh.pop %v1571
        %v1598 = vtanh.pop %v964
        %v1599 = vtanh.pop %v966
        %v1600 = vtanh.pop %v1576
        %v1601 = vtanh.pop %v1578
        %v1602 = vtanh.pop %v971
        %v1603 = vtanh.pop %v973
        %v1604 = vtanh.pop %v1583
        %v1605 = vtanh.pop %v1585
        %v1606 = vtanh.pop %v978
        %v1607 = vtanh.pop %v980
        %v1608 = vtanh.pop %v1590
        %v1609 = vtanh.pop %v1592
        %1611 = vset.pattern.permute.xlu0 0
        %1612 = vperm.xlu0 %1611, %v316
        %v1613 = vpop.permute.xlu0 %1612
        %1616 = vset.pattern.permute.xlu0 0
        %1617 = vperm.xlu0 %1616, %v317
        %v1618 = vpop.permute.xlu0 %1617
        %1621 = vset.pattern.permute.xlu0 0
        %1622 = vperm.xlu0 %1621, %v318
        %v1623 = vpop.permute.xlu0 %1622
        %1626 = vset.pattern.permute.xlu0 0
        %1627 = vperm.xlu0 %1626, %v319
        %v1628 = vpop.permute.xlu0 %1627
        %vm1630 = vcmask 261120
        %v1632 = vsel %vm1630, %v312, 0
        %v1635 = vsel %vm1630, %v313, 0
        %v1638 = vsel %vm1630, %v314, 0
        %v1641 = vsel %vm1630, %v315, 0
        %1643 = vmatprep.subr.mxu0 0.0
        %1644 = vmatpush1.msra.mxu0 0.0
        %1645 = vmatprep.subr.mxu0 0.0
        %1646 = vmatpush1.msra.mxu0 0.0
        %1647 = vmatprep.subr.mxu0 0.0
        %1648 = vmatpush1.msra.mxu0 0.0
        %1649 = vmatprep.subr.mxu0 0.0
        %1650 = vmatpush1.msra.mxu0 0.0
        %1651 = vmatprep.subr.mxu0 0.0
        %1652 = vmatpush1.msra.mxu0 0.0
        %1653 = vmatprep.subr.mxu0 0.0
        %1654 = vmatpush1.msra.mxu0 0.0
        %1655 = vmatprep.subr.mxu0 0.0
        %1656 = vmatpush1.msra.mxu0 0.0
        %1657 = vmatprep.subr.mxu0 0.0
        %1658 = vmatpush1.msra.mxu0 0.0
        %1659 = vmatprep.subr.mxu0 0.0
        %1660 = vmatpush1.msra.mxu0 0.0
        %1661 = vmatprep.subr.mxu0 0.0
        %1662 = vmatpush1.msra.mxu0 0.0
        %1663 = vmatprep.subr.mxu0 0.0
        %1664 = vmatpush1.msra.mxu0 0.0
        %1665 = vmatprep.subr.mxu0 0.0
        %1666 = vmatpush1.msra.mxu0 0.0
        %v1667 = vand.u32 %v1607, 4294901760
        %1668 = vmatprep.subr.mxu0 %v1667
        %v1669 = vand.u32 %v1606, 4294901760
        %1670 = vmatpush1.msra.mxu0 %v1669
        %v1671 = vand.u32 %v1603, 4294901760
        %1672 = vmatprep.subr.mxu0 %v1671
        %v1673 = vand.u32 %v1602, 4294901760
        %1674 = vmatpush1.msra.mxu0 %v1673
        %v1675 = vand.u32 %v1599, 4294901760
        %1676 = vmatprep.subr.mxu0 %v1675
        %v1677 = vand.u32 %v1598, 4294901760
        %1678 = vmatpush1.msra.mxu0 %v1677
        %v1679 = vand.u32 %v1595, 4294901760
        %1680 = vmatprep.subr.mxu0 %v1679
        %v1681 = vand.u32 %v1594, 4294901760
        %1682 = vmatpush1.msra.mxu0 %v1681
        %1683 = vmatprep.subr.mxu0 0.0
        %1684 = vmatpush2.msra.mxu0 0.0
        %1685 = vmatprep.subr.mxu0 0.0
        %1686 = vmatpush2.msra.mxu0 0.0
        %1687 = vmatprep.subr.mxu0 0.0
        %1688 = vmatpush2.msra.mxu0 0.0
        %1689 = vmatprep.subr.mxu0 0.0
        %1690 = vmatpush2.msra.mxu0 0.0
        %1691 = vmatprep.subr.mxu0 0.0
        %1692 = vmatpush2.msra.mxu0 0.0
        %1693 = vmatprep.subr.mxu0 0.0
        %1694 = vmatpush2.msra.mxu0 0.0
        %1695 = vmatprep.subr.mxu0 0.0
        %1696 = vmatpush2.msra.mxu0 0.0
        %1697 = vmatprep.subr.mxu0 0.0
        %1698 = vmatpush2.msra.mxu0 0.0
        %1699 = vmatprep.subr.mxu0 0.0
        %1700 = vmatpush2.msra.mxu0 0.0
        %1701 = vmatprep.subr.mxu0 0.0
        %1702 = vmatpush2.msra.mxu0 0.0
        %1703 = vmatprep.subr.mxu0 0.0
        %1704 = vmatpush2.msra.mxu0 0.0
        %1705 = vmatprep.subr.mxu0 0.0
        %1706 = vmatpush2.msra.mxu0 0.0
        %1707 = vmatprep.subr.mxu0 0.0
        %1708 = vmatpush2.msra.mxu0 0.0
        %1709 = vmatprep.subr.mxu0 0.0
        %1710 = vmatpush2.msra.mxu0 0.0
        %1711 = vmatprep.subr.mxu0 0.0
        %1712 = vmatpush2.msra.mxu0 0.0
        %1713 = vmatprep.subr.mxu0 0.0
        %1714 = vmatpush2.msra.mxu0 0.0
        %1715 = vmatprep.mubr.f32.mxu0 0.0
        %v1716 = vand.u32 %v1632, 4294901760
        %v1717 = vsub.f32 %v1632, %v1716
        %v1718 = vand.u32 %v1717, 4294901760
        %v1719 = vsub.f32 %v1717, %v1718
        %v1720 = vand.u32 %v1719, 4294901760
        %1721 = vmatmul.mubr.f32.gmra.mxu0 %v1720
        %v1722 = vpop.f32.mrf.mxu0
        %v1723 = vadd.f32 %v1613, %v1722
        %v1724 = vpop.f32.mrf.mxu0
        %v1725 = vadd.f32 %v1613, %v1724
        %1726 = vmatprep.mubr.f32.mxu0 0.0
        %v1727 = vand.u32 %v1635, 4294901760
        %v1728 = vsub.f32 %v1635, %v1727
        %v1729 = vand.u32 %v1728, 4294901760
        %v1730 = vsub.f32 %v1728, %v1729
        %v1731 = vand.u32 %v1730, 4294901760
        %1732 = vmatmul.mubr.f32.gmra.mxu0 %v1731
        %v1733 = vpop.f32.mrf.mxu0
        %v1734 = vadd.f32 %v1618, %v1733
        %v1735 = vpop.f32.mrf.mxu0
        %v1736 = vadd.f32 %v1618, %v1735
        %1737 = vmatprep.mubr.f32.mxu0 0.0
        %v1738 = vand.u32 %v1638, 4294901760
        %v1739 = vsub.f32 %v1638, %v1738
        %v1740 = vand.u32 %v1739, 4294901760
        %v1741 = vsub.f32 %v1739, %v1740
        %v1742 = vand.u32 %v1741, 4294901760
        %1743 = vmatmul.mubr.f32.gmra.mxu0 %v1742
        %v1744 = vpop.f32.mrf.mxu0
        %v1745 = vadd.f32 %v1623, %v1744
        %v1746 = vpop.f32.mrf.mxu0
        %v1747 = vadd.f32 %v1623, %v1746
        %1748 = vmatprep.mubr.f32.mxu0 0.0
        %v1749 = vand.u32 %v1641, 4294901760
        %v1750 = vsub.f32 %v1641, %v1749
        %v1751 = vand.u32 %v1750, 4294901760
        %v1752 = vsub.f32 %v1750, %v1751
        %v1753 = vand.u32 %v1752, 4294901760
        %1754 = vmatmul.mubr.f32.gmra.mxu0 %v1753
        %v1755 = vpop.f32.mrf.mxu0
        %v1756 = vadd.f32 %v1628, %v1755
        %v1757 = vpop.f32.mrf.mxu0
        %v1758 = vadd.f32 %v1628, %v1757
        %1759 = vdwg.mxu0
        %1760 = vmatprep.subr.mxu0 0.0
        %1761 = vmatpush1.msra.mxu0 0.0
        %1762 = vmatprep.subr.mxu0 0.0
        %1763 = vmatpush1.msra.mxu0 0.0
        %1764 = vmatprep.subr.mxu0 0.0
        %1765 = vmatpush1.msra.mxu0 0.0
        %1766 = vmatprep.subr.mxu0 0.0
        %1767 = vmatpush1.msra.mxu0 0.0
        %1768 = vmatprep.subr.mxu0 0.0
        %1769 = vmatpush1.msra.mxu0 0.0
        %1770 = vmatprep.subr.mxu0 0.0
        %1771 = vmatpush1.msra.mxu0 0.0
        %1772 = vmatprep.subr.mxu0 0.0
        %1773 = vmatpush1.msra.mxu0 0.0
        %1774 = vmatprep.subr.mxu0 0.0
        %1775 = vmatpush1.msra.mxu0 0.0
        %1776 = vmatprep.subr.mxu0 0.0
        %1777 = vmatpush1.msra.mxu0 0.0
        %1778 = vmatprep.subr.mxu0 0.0
        %1779 = vmatpush1.msra.mxu0 0.0
        %1780 = vmatprep.subr.mxu0 0.0
        %1781 = vmatpush1.msra.mxu0 0.0
        %1782 = vmatprep.subr.mxu0 0.0
        %1783 = vmatpush1.msra.mxu0 0.0
        %v1784 = vand.u32 %v1607, 4294901760
        %v1785 = vsub.f32 %v1607, %v1784
        %v1786 = vand.u32 %v1785, 4294901760
        %v1787 = vsub.f32 %v1785, %v1786
        %v1788 = vand.u32 %v1787, 4294901760
        %1789 = vmatprep.subr.mxu0 %v1788
        %v1790 = vand.u32 %v1606, 4294901760
        %v1791 = vsub.f32 %v1606, %v1790
        %v1792 = vand.u32 %v1791, 4294901760
        %v1793 = vsub.f32 %v1791, %v1792
        %v1794 = vand.u32 %v1793, 4294901760
        %1795 = vmatpush1.msra.mxu0 %v1794
        %v1796 = vand.u32 %v1603, 4294901760
        %v1797 = vsub.f32 %v1603, %v1796
        %v1798 = vand.u32 %v1797, 4294901760
        %v1799 = vsub.f32 %v1797, %v1798
        %v1800 = vand.u32 %v1799, 4294901760
        %1801 = vmatprep.subr.mxu0 %v1800
        %v1802 = vand.u32 %v1602, 4294901760
        %v1803 = vsub.f32 %v1602, %v1802
        %v1804 = vand.u32 %v1803, 4294901760
        %v1805 = vsub.f32 %v1803, %v1804
        %v1806 = vand.u32 %v1805, 4294901760
        %1807 = vmatpush1.msra.mxu0 %v1806
        %v1808 = vand.u32 %v1599, 4294901760
        %v1809 = vsub.f32 %v1599, %v1808
        %v1810 = vand.u32 %v1809, 4294901760
        %v1811 = vsub.f32 %v1809, %v1810
        %v1812 = vand.u32 %v1811, 4294901760
        %1813 = vmatprep.subr.mxu0 %v1812
        %v1814 = vand.u32 %v1598, 4294901760
        %v1815 = vsub.f32 %v1598, %v1814
        %v1816 = vand.u32 %v1815, 4294901760
        %v1817 = vsub.f32 %v1815, %v1816
        %v1818 = vand.u32 %v1817, 4294901760
        %1819 = vmatpush1.msra.mxu0 %v1818
        %v1820 = vand.u32 %v1595, 4294901760
        %v1821 = vsub.f32 %v1595, %v1820
        %v1822 = vand.u32 %v1821, 4294901760
        %v1823 = vsub.f32 %v1821, %v1822
        %v1824 = vand.u32 %v1823, 4294901760
        %1825 = vmatprep.subr.mxu0 %v1824
        %v1826 = vand.u32 %v1594, 4294901760
        %v1827 = vsub.f32 %v1594, %v1826
        %v1828 = vand.u32 %v1827, 4294901760
        %v1829 = vsub.f32 %v1827, %v1828
        %v1830 = vand.u32 %v1829, 4294901760
        %1831 = vmatpush1.msra.mxu0 %v1830
        %1832 = vmatprep.subr.mxu0 0.0
        %1833 = vmatpush2.msra.mxu0 0.0
        %1834 = vmatprep.subr.mxu0 0.0
        %1835 = vmatpush2.msra.mxu0 0.0
        %1836 = vmatprep.subr.mxu0 0.0
        %1837 = vmatpush2.msra.mxu0 0.0
        %1838 = vmatprep.subr.mxu0 0.0
        %1839 = vmatpush2.msra.mxu0 0.0
        %1840 = vmatprep.subr.mxu0 0.0
        %1841 = vmatpush2.msra.mxu0 0.0
        %1842 = vmatprep.subr.mxu0 0.0
        %1843 = vmatpush2.msra.mxu0 0.0
        %1844 = vmatprep.subr.mxu0 0.0
        %1845 = vmatpush2.msra.mxu0 0.0
        %1846 = vmatprep.subr.mxu0 0.0
        %1847 = vmatpush2.msra.mxu0 0.0
        %1848 = vmatprep.subr.mxu0 0.0
        %1849 = vmatpush2.msra.mxu0 0.0
        %1850 = vmatprep.subr.mxu0 0.0
        %1851 = vmatpush2.msra.mxu0 0.0
        %1852 = vmatprep.subr.mxu0 0.0
        %1853 = vmatpush2.msra.mxu0 0.0
        %1854 = vmatprep.subr.mxu0 0.0
        %1855 = vmatpush2.msra.mxu0 0.0
        %1856 = vmatprep.subr.mxu0 0.0
        %1857 = vmatpush2.msra.mxu0 0.0
        %1858 = vmatprep.subr.mxu0 0.0
        %1859 = vmatpush2.msra.mxu0 0.0
        %1860 = vmatprep.subr.mxu0 0.0
        %1861 = vmatpush2.msra.mxu0 0.0
        %1862 = vmatprep.subr.mxu0 0.0
        %1863 = vmatpush2.msra.mxu0 0.0
        %1864 = vmatprep.mubr.f32.mxu0 0.0
        %v1865 = vand.u32 %v1632, 4294901760
        %1866 = vmatmul.mubr.f32.gmra.mxu0 %v1865
        %v1867 = vpop.f32.mrf.mxu0
        %v1868 = vadd.f32 %v1723, %v1867
        %v1869 = vpop.f32.mrf.mxu0
        %v1870 = vadd.f32 %v1725, %v1869
        %1871 = vmatprep.mubr.f32.mxu0 0.0
        %v1872 = vand.u32 %v1635, 4294901760
        %1873 = vmatmul.mubr.f32.gmra.mxu0 %v1872
        %v1874 = vpop.f32.mrf.mxu0
        %v1875 = vadd.f32 %v1734, %v1874
        %v1876 = vpop.f32.mrf.mxu0
        %v1877 = vadd.f32 %v1736, %v1876
        %1878 = vmatprep.mubr.f32.mxu0 0.0
        %v1879 = vand.u32 %v1638, 4294901760
        %1880 = vmatmul.mubr.f32.gmra.mxu0 %v1879
        %v1881 = vpop.f32.mrf.mxu0
        %v1882 = vadd.f32 %v1745, %v1881
        %v1883 = vpop.f32.mrf.mxu0
        %v1884 = vadd.f32 %v1747, %v1883
        %1885 = vmatprep.mubr.f32.mxu0 0.0
        %v1886 = vand.u32 %v1641, 4294901760
        %1887 = vmatmul.mubr.f32.gmra.mxu0 %v1886
        %v1888 = vpop.f32.mrf.mxu0
        %v1889 = vadd.f32 %v1756, %v1888
        %v1890 = vpop.f32.mrf.mxu0
        %v1891 = vadd.f32 %v1758, %v1890
        %1892 = vdwg.mxu0
        %1893 = vmatprep.subr.mxu0 0.0
        %1894 = vmatpush1.msra.mxu0 0.0
        %1895 = vmatprep.subr.mxu0 0.0
        %1896 = vmatpush1.msra.mxu0 0.0
        %1897 = vmatprep.subr.mxu0 0.0
        %1898 = vmatpush1.msra.mxu0 0.0
        %1899 = vmatprep.subr.mxu0 0.0
        %1900 = vmatpush1.msra.mxu0 0.0
        %1901 = vmatprep.subr.mxu0 0.0
        %1902 = vmatpush1.msra.mxu0 0.0
        %1903 = vmatprep.subr.mxu0 0.0
        %1904 = vmatpush1.msra.mxu0 0.0
        %1905 = vmatprep.subr.mxu0 0.0
        %1906 = vmatpush1.msra.mxu0 0.0
        %1907 = vmatprep.subr.mxu0 0.0
        %1908 = vmatpush1.msra.mxu0 0.0
        %1909 = vmatprep.subr.mxu0 0.0
        %1910 = vmatpush1.msra.mxu0 0.0
        %1911 = vmatprep.subr.mxu0 0.0
        %1912 = vmatpush1.msra.mxu0 0.0
        %1913 = vmatprep.subr.mxu0 0.0
        %1914 = vmatpush1.msra.mxu0 0.0
        %1915 = vmatprep.subr.mxu0 0.0
        %1916 = vmatpush1.msra.mxu0 0.0
        %v1917 = vand.u32 %v1607, 4294901760
        %v1918 = vsub.f32 %v1607, %v1917
        %1919 = vmatprep.subr.mxu0 %v1918
        %v1920 = vand.u32 %v1606, 4294901760
        %v1921 = vsub.f32 %v1606, %v1920
        %1922 = vmatpush1.msra.mxu0 %v1921
        %v1923 = vand.u32 %v1603, 4294901760
        %v1924 = vsub.f32 %v1603, %v1923
        %1925 = vmatprep.subr.mxu0 %v1924
        %v1926 = vand.u32 %v1602, 4294901760
        %v1927 = vsub.f32 %v1602, %v1926
        %1928 = vmatpush1.msra.mxu0 %v1927
        %v1929 = vand.u32 %v1599, 4294901760
        %v1930 = vsub.f32 %v1599, %v1929
        %1931 = vmatprep.subr.mxu0 %v1930
        %v1932 = vand.u32 %v1598, 4294901760
        %v1933 = vsub.f32 %v1598, %v1932
        %1934 = vmatpush1.msra.mxu0 %v1933
        %v1935 = vand.u32 %v1595, 4294901760
        %v1936 = vsub.f32 %v1595, %v1935
        %1937 = vmatprep.subr.mxu0 %v1936
        %v1938 = vand.u32 %v1594, 4294901760
        %v1939 = vsub.f32 %v1594, %v1938
        %1940 = vmatpush1.msra.mxu0 %v1939
        %1941 = vmatprep.subr.mxu0 0.0
        %1942 = vmatpush2.msra.mxu0 0.0
        %1943 = vmatprep.subr.mxu0 0.0
        %1944 = vmatpush2.msra.mxu0 0.0
        %1945 = vmatprep.subr.mxu0 0.0
        %1946 = vmatpush2.msra.mxu0 0.0
        %1947 = vmatprep.subr.mxu0 0.0
        %1948 = vmatpush2.msra.mxu0 0.0
        %1949 = vmatprep.subr.mxu0 0.0
        %1950 = vmatpush2.msra.mxu0 0.0
        %1951 = vmatprep.subr.mxu0 0.0
        %1952 = vmatpush2.msra.mxu0 0.0
        %1953 = vmatprep.subr.mxu0 0.0
        %1954 = vmatpush2.msra.mxu0 0.0
        %1955 = vmatprep.subr.mxu0 0.0
        %1956 = vmatpush2.msra.mxu0 0.0
        %1957 = vmatprep.subr.mxu0 0.0
        %1958 = vmatpush2.msra.mxu0 0.0
        %1959 = vmatprep.subr.mxu0 0.0
        %1960 = vmatpush2.msra.mxu0 0.0
        %1961 = vmatprep.subr.mxu0 0.0
        %1962 = vmatpush2.msra.mxu0 0.0
        %1963 = vmatprep.subr.mxu0 0.0
        %1964 = vmatpush2.msra.mxu0 0.0
        %1965 = vmatprep.subr.mxu0 0.0
        %1966 = vmatpush2.msra.mxu0 0.0
        %1967 = vmatprep.subr.mxu0 0.0
        %1968 = vmatpush2.msra.mxu0 0.0
        %1969 = vmatprep.subr.mxu0 0.0
        %1970 = vmatpush2.msra.mxu0 0.0
        %1971 = vmatprep.subr.mxu0 0.0
        %1972 = vmatpush2.msra.mxu0 0.0
        %1973 = vmatprep.mubr.f32.mxu0 0.0
        %v1974 = vand.u32 %v1632, 4294901760
        %v1975 = vsub.f32 %v1632, %v1974
        %1976 = vmatmul.mubr.f32.gmra.mxu0 %v1975
        %v1977 = vpop.f32.mrf.mxu0
        %v1978 = vadd.f32 %v1868, %v1977
        %v1979 = vpop.f32.mrf.mxu0
        %v1980 = vadd.f32 %v1870, %v1979
        %1981 = vmatprep.mubr.f32.mxu0 0.0
        %v1982 = vand.u32 %v1635, 4294901760
        %v1983 = vsub.f32 %v1635, %v1982
        %1984 = vmatmul.mubr.f32.gmra.mxu0 %v1983
        %v1985 = vpop.f32.mrf.mxu0
        %v1986 = vadd.f32 %v1875, %v1985
        %v1987 = vpop.f32.mrf.mxu0
        %v1988 = vadd.f32 %v1877, %v1987
        %1989 = vmatprep.mubr.f32.mxu0 0.0
        %v1990 = vand.u32 %v1638, 4294901760
        %v1991 = vsub.f32 %v1638, %v1990
        %1992 = vmatmul.mubr.f32.gmra.mxu0 %v1991
        %v1993 = vpop.f32.mrf.mxu0
        %v1994 = vadd.f32 %v1882, %v1993
        %v1995 = vpop.f32.mrf.mxu0
        %v1996 = vadd.f32 %v1884, %v1995
        %1997 = vmatprep.mubr.f32.mxu0 0.0
        %v1998 = vand.u32 %v1641, 4294901760
        %v1999 = vsub.f32 %v1641, %v1998
        %2000 = vmatmul.mubr.f32.gmra.mxu0 %v1999
        %v2001 = vpop.f32.mrf.mxu0
        %v2002 = vadd.f32 %v1889, %v2001
        %v2003 = vpop.f32.mrf.mxu0
        %v2004 = vadd.f32 %v1891, %v2003
        %2005 = vdwg.mxu0
        %2006 = vmatprep.subr.mxu0 0.0
        %2007 = vmatpush1.msra.mxu0 0.0
        %2008 = vmatprep.subr.mxu0 0.0
        %2009 = vmatpush1.msra.mxu0 0.0
        %2010 = vmatprep.subr.mxu0 0.0
        %2011 = vmatpush1.msra.mxu0 0.0
        %2012 = vmatprep.subr.mxu0 0.0
        %2013 = vmatpush1.msra.mxu0 0.0
        %2014 = vmatprep.subr.mxu0 0.0
        %2015 = vmatpush1.msra.mxu0 0.0
        %2016 = vmatprep.subr.mxu0 0.0
        %2017 = vmatpush1.msra.mxu0 0.0
        %2018 = vmatprep.subr.mxu0 0.0
        %2019 = vmatpush1.msra.mxu0 0.0
        %2020 = vmatprep.subr.mxu0 0.0
        %2021 = vmatpush1.msra.mxu0 0.0
        %2022 = vmatprep.subr.mxu0 0.0
        %2023 = vmatpush1.msra.mxu0 0.0
        %2024 = vmatprep.subr.mxu0 0.0
        %2025 = vmatpush1.msra.mxu0 0.0
        %2026 = vmatprep.subr.mxu0 0.0
        %2027 = vmatpush1.msra.mxu0 0.0
        %2028 = vmatprep.subr.mxu0 0.0
        %2029 = vmatpush1.msra.mxu0 0.0
        %v2030 = vand.u32 %v1607, 4294901760
        %2031 = vmatprep.subr.mxu0 %v2030
        %v2032 = vand.u32 %v1606, 4294901760
        %2033 = vmatpush1.msra.mxu0 %v2032
        %v2034 = vand.u32 %v1603, 4294901760
        %2035 = vmatprep.subr.mxu0 %v2034
        %v2036 = vand.u32 %v1602, 4294901760
        %2037 = vmatpush1.msra.mxu0 %v2036
        %v2038 = vand.u32 %v1599, 4294901760
        %2039 = vmatprep.subr.mxu0 %v2038
        %v2040 = vand.u32 %v1598, 4294901760
        %2041 = vmatpush1.msra.mxu0 %v2040
        %v2042 = vand.u32 %v1595, 4294901760
        %2043 = vmatprep.subr.mxu0 %v2042
        %v2044 = vand.u32 %v1594, 4294901760
        %2045 = vmatpush1.msra.mxu0 %v2044
        %2046 = vmatprep.subr.mxu0 0.0
        %2047 = vmatpush2.msra.mxu0 0.0
        %2048 = vmatprep.subr.mxu0 0.0
        %2049 = vmatpush2.msra.mxu0 0.0
        %2050 = vmatprep.subr.mxu0 0.0
        %2051 = vmatpush2.msra.mxu0 0.0
        %2052 = vmatprep.subr.mxu0 0.0
        %2053 = vmatpush2.msra.mxu0 0.0
        %2054 = vmatprep.subr.mxu0 0.0
        %2055 = vmatpush2.msra.mxu0 0.0
        %2056 = vmatprep.subr.mxu0 0.0
        %2057 = vmatpush2.msra.mxu0 0.0
        %2058 = vmatprep.subr.mxu0 0.0
        %2059 = vmatpush2.msra.mxu0 0.0
        %2060 = vmatprep.subr.mxu0 0.0
        %2061 = vmatpush2.msra.mxu0 0.0
        %2062 = vmatprep.subr.mxu0 0.0
        %2063 = vmatpush2.msra.mxu0 0.0
        %2064 = vmatprep.subr.mxu0 0.0
        %2065 = vmatpush2.msra.mxu0 0.0
        %2066 = vmatprep.subr.mxu0 0.0
        %2067 = vmatpush2.msra.mxu0 0.0
        %2068 = vmatprep.subr.mxu0 0.0
        %2069 = vmatpush2.msra.mxu0 0.0
        %2070 = vmatprep.subr.mxu0 0.0
        %2071 = vmatpush2.msra.mxu0 0.0
        %2072 = vmatprep.subr.mxu0 0.0
        %2073 = vmatpush2.msra.mxu0 0.0
        %2074 = vmatprep.subr.mxu0 0.0
        %2075 = vmatpush2.msra.mxu0 0.0
        %2076 = vmatprep.subr.mxu0 0.0
        %2077 = vmatpush2.msra.mxu0 0.0
        %2078 = vmatprep.mubr.f32.mxu0 0.0
        %v2079 = vand.u32 %v1632, 4294901760
        %v2080 = vsub.f32 %v1632, %v2079
        %v2081 = vand.u32 %v2080, 4294901760
        %2082 = vmatmul.mubr.f32.gmra.mxu0 %v2081
        %v2083 = vpop.f32.mrf.mxu0
        %v2084 = vadd.f32 %v1978, %v2083
        %v2085 = vpop.f32.mrf.mxu0
        %v2086 = vadd.f32 %v1980, %v2085
        %2087 = vmatprep.mubr.f32.mxu0 0.0
        %v2088 = vand.u32 %v1635, 4294901760
        %v2089 = vsub.f32 %v1635, %v2088
        %v2090 = vand.u32 %v2089, 4294901760
        %2091 = vmatmul.mubr.f32.gmra.mxu0 %v2090
        %v2092 = vpop.f32.mrf.mxu0
        %v2093 = vadd.f32 %v1986, %v2092
        %v2094 = vpop.f32.mrf.mxu0
        %v2095 = vadd.f32 %v1988, %v2094
        %2096 = vmatprep.mubr.f32.mxu0 0.0
        %v2097 = vand.u32 %v1638, 4294901760
        %v2098 = vsub.f32 %v1638, %v2097
        %v2099 = vand.u32 %v2098, 4294901760
        %2100 = vmatmul.mubr.f32.gmra.mxu0 %v2099
        %v2101 = vpop.f32.mrf.mxu0
        %v2102 = vadd.f32 %v1994, %v2101
        %v2103 = vpop.f32.mrf.mxu0
        %v2104 = vadd.f32 %v1996, %v2103
        %2105 = vmatprep.mubr.f32.mxu0 0.0
        %v2106 = vand.u32 %v1641, 4294901760
        %v2107 = vsub.f32 %v1641, %v2106
        %v2108 = vand.u32 %v2107, 4294901760
        %2109 = vmatmul.mubr.f32.gmra.mxu0 %v2108
        %v2110 = vpop.f32.mrf.mxu0
        %v2111 = vadd.f32 %v2002, %v2110
        %v2112 = vpop.f32.mrf.mxu0
        %v2113 = vadd.f32 %v2004, %v2112
        %2114 = vdwg.mxu0
        %2115 = vmatprep.subr.mxu0 0.0
        %2116 = vmatpush1.msra.mxu0 0.0
        %2117 = vmatprep.subr.mxu0 0.0
        %2118 = vmatpush1.msra.mxu0 0.0
        %2119 = vmatprep.subr.mxu0 0.0
        %2120 = vmatpush1.msra.mxu0 0.0
        %2121 = vmatprep.subr.mxu0 0.0
        %2122 = vmatpush1.msra.mxu0 0.0
        %2123 = vmatprep.subr.mxu0 0.0
        %2124 = vmatpush1.msra.mxu0 0.0
        %2125 = vmatprep.subr.mxu0 0.0
        %2126 = vmatpush1.msra.mxu0 0.0
        %2127 = vmatprep.subr.mxu0 0.0
        %2128 = vmatpush1.msra.mxu0 0.0
        %2129 = vmatprep.subr.mxu0 0.0
        %2130 = vmatpush1.msra.mxu0 0.0
        %2131 = vmatprep.subr.mxu0 0.0
        %2132 = vmatpush1.msra.mxu0 0.0
        %2133 = vmatprep.subr.mxu0 0.0
        %2134 = vmatpush1.msra.mxu0 0.0
        %2135 = vmatprep.subr.mxu0 0.0
        %2136 = vmatpush1.msra.mxu0 0.0
        %2137 = vmatprep.subr.mxu0 0.0
        %2138 = vmatpush1.msra.mxu0 0.0
        %v2139 = vand.u32 %v1607, 4294901760
        %v2140 = vsub.f32 %v1607, %v2139
        %v2141 = vand.u32 %v2140, 4294901760
        %2142 = vmatprep.subr.mxu0 %v2141
        %v2143 = vand.u32 %v1606, 4294901760
        %v2144 = vsub.f32 %v1606, %v2143
        %v2145 = vand.u32 %v2144, 4294901760
        %2146 = vmatpush1.msra.mxu0 %v2145
        %v2147 = vand.u32 %v1603, 4294901760
        %v2148 = vsub.f32 %v1603, %v2147
        %v2149 = vand.u32 %v2148, 4294901760
        %2150 = vmatprep.subr.mxu0 %v2149
        %v2151 = vand.u32 %v1602, 4294901760
        %v2152 = vsub.f32 %v1602, %v2151
        %v2153 = vand.u32 %v2152, 4294901760
        %2154 = vmatpush1.msra.mxu0 %v2153
        %v2155 = vand.u32 %v1599, 4294901760
        %v2156 = vsub.f32 %v1599, %v2155
        %v2157 = vand.u32 %v2156, 4294901760
        %2158 = vmatprep.subr.mxu0 %v2157
        %v2159 = vand.u32 %v1598, 4294901760
        %v2160 = vsub.f32 %v1598, %v2159
        %v2161 = vand.u32 %v2160, 4294901760
        %2162 = vmatpush1.msra.mxu0 %v2161
        %v2163 = vand.u32 %v1595, 4294901760
        %v2164 = vsub.f32 %v1595, %v2163
        %v2165 = vand.u32 %v2164, 4294901760
        %2166 = vmatprep.subr.mxu0 %v2165
        %v2167 = vand.u32 %v1594, 4294901760
        %v2168 = vsub.f32 %v1594, %v2167
        %v2169 = vand.u32 %v2168, 4294901760
        %2170 = vmatpush1.msra.mxu0 %v2169
        %2171 = vmatprep.subr.mxu0 0.0
        %2172 = vmatpush2.msra.mxu0 0.0
        %2173 = vmatprep.subr.mxu0 0.0
        %2174 = vmatpush2.msra.mxu0 0.0
        %2175 = vmatprep.subr.mxu0 0.0
        %2176 = vmatpush2.msra.mxu0 0.0
        %2177 = vmatprep.subr.mxu0 0.0
        %2178 = vmatpush2.msra.mxu0 0.0
        %2179 = vmatprep.subr.mxu0 0.0
        %2180 = vmatpush2.msra.mxu0 0.0
        %2181 = vmatprep.subr.mxu0 0.0
        %2182 = vmatpush2.msra.mxu0 0.0
        %2183 = vmatprep.subr.mxu0 0.0
        %2184 = vmatpush2.msra.mxu0 0.0
        %2185 = vmatprep.subr.mxu0 0.0
        %2186 = vmatpush2.msra.mxu0 0.0
        %2187 = vmatprep.subr.mxu0 0.0
        %2188 = vmatpush2.msra.mxu0 0.0
        %2189 = vmatprep.subr.mxu0 0.0
        %2190 = vmatpush2.msra.mxu0 0.0
        %2191 = vmatprep.subr.mxu0 0.0
        %2192 = vmatpush2.msra.mxu0 0.0
        %2193 = vmatprep.subr.mxu0 0.0
        %2194 = vmatpush2.msra.mxu0 0.0
        %2195 = vmatprep.subr.mxu0 0.0
        %2196 = vmatpush2.msra.mxu0 0.0
        %2197 = vmatprep.subr.mxu0 0.0
        %2198 = vmatpush2.msra.mxu0 0.0
        %2199 = vmatprep.subr.mxu0 0.0
        %2200 = vmatpush2.msra.mxu0 0.0
        %2201 = vmatprep.subr.mxu0 0.0
        %2202 = vmatpush2.msra.mxu0 0.0
        %2203 = vmatprep.mubr.f32.mxu0 0.0
        %v2204 = vand.u32 %v1632, 4294901760
        %2205 = vmatmul.mubr.f32.gmra.mxu0 %v2204
        %v2206 = vpop.f32.mrf.mxu0
        %v2207 = vadd.f32 %v2084, %v2206
        %v2208 = vpop.f32.mrf.mxu0
        %v2209 = vadd.f32 %v2086, %v2208
        %2210 = vmatprep.mubr.f32.mxu0 0.0
        %v2211 = vand.u32 %v1635, 4294901760
        %2212 = vmatmul.mubr.f32.gmra.mxu0 %v2211
        %v2213 = vpop.f32.mrf.mxu0
        %v2214 = vadd.f32 %v2093, %v2213
        %v2215 = vpop.f32.mrf.mxu0
        %v2216 = vadd.f32 %v2095, %v2215
        %2217 = vmatprep.mubr.f32.mxu0 0.0
        %v2218 = vand.u32 %v1638, 4294901760
        %2219 = vmatmul.mubr.f32.gmra.mxu0 %v2218
        %v2220 = vpop.f32.mrf.mxu0
        %v2221 = vadd.f32 %v2102, %v2220
        %v2222 = vpop.f32.mrf.mxu0
        %v2223 = vadd.f32 %v2104, %v2222
        %2224 = vmatprep.mubr.f32.mxu0 0.0
        %v2225 = vand.u32 %v1641, 4294901760
        %2226 = vmatmul.mubr.f32.gmra.mxu0 %v2225
        %v2227 = vpop.f32.mrf.mxu0
        %v2228 = vadd.f32 %v2111, %v2227
        %v2229 = vpop.f32.mrf.mxu0
        %v2230 = vadd.f32 %v2113, %v2229
        %2231 = vdwg.mxu0
        %2232 = vmatprep.subr.mxu0 0.0
        %2233 = vmatpush1.msra.mxu0 0.0
        %2234 = vmatprep.subr.mxu0 0.0
        %2235 = vmatpush1.msra.mxu0 0.0
        %2236 = vmatprep.subr.mxu0 0.0
        %2237 = vmatpush1.msra.mxu0 0.0
        %2238 = vmatprep.subr.mxu0 0.0
        %2239 = vmatpush1.msra.mxu0 0.0
        %2240 = vmatprep.subr.mxu0 0.0
        %2241 = vmatpush1.msra.mxu0 0.0
        %2242 = vmatprep.subr.mxu0 0.0
        %2243 = vmatpush1.msra.mxu0 0.0
        %2244 = vmatprep.subr.mxu0 0.0
        %2245 = vmatpush1.msra.mxu0 0.0
        %2246 = vmatprep.subr.mxu0 0.0
        %2247 = vmatpush1.msra.mxu0 0.0
        %2248 = vmatprep.subr.mxu0 0.0
        %2249 = vmatpush1.msra.mxu0 0.0
        %2250 = vmatprep.subr.mxu0 0.0
        %2251 = vmatpush1.msra.mxu0 0.0
        %2252 = vmatprep.subr.mxu0 0.0
        %2253 = vmatpush1.msra.mxu0 0.0
        %2254 = vmatprep.subr.mxu0 0.0
        %2255 = vmatpush1.msra.mxu0 0.0
        %v2256 = vand.u32 %v1607, 4294901760
        %2257 = vmatprep.subr.mxu0 %v2256
        %v2258 = vand.u32 %v1606, 4294901760
        %2259 = vmatpush1.msra.mxu0 %v2258
        %v2260 = vand.u32 %v1603, 4294901760
        %2261 = vmatprep.subr.mxu0 %v2260
        %v2262 = vand.u32 %v1602, 4294901760
        %2263 = vmatpush1.msra.mxu0 %v2262
        %v2264 = vand.u32 %v1599, 4294901760
        %2265 = vmatprep.subr.mxu0 %v2264
        %v2266 = vand.u32 %v1598, 4294901760
        %2267 = vmatpush1.msra.mxu0 %v2266
        %v2268 = vand.u32 %v1595, 4294901760
        %2269 = vmatprep.subr.mxu0 %v2268
        %v2270 = vand.u32 %v1594, 4294901760
        %2271 = vmatpush1.msra.mxu0 %v2270
        %2272 = vmatprep.subr.mxu0 0.0
        %2273 = vmatpush2.msra.mxu0 0.0
        %2274 = vmatprep.subr.mxu0 0.0
        %2275 = vmatpush2.msra.mxu0 0.0
        %2276 = vmatprep.subr.mxu0 0.0
        %2277 = vmatpush2.msra.mxu0 0.0
        %2278 = vmatprep.subr.mxu0 0.0
        %2279 = vmatpush2.msra.mxu0 0.0
        %2280 = vmatprep.subr.mxu0 0.0
        %2281 = vmatpush2.msra.mxu0 0.0
        %2282 = vmatprep.subr.mxu0 0.0
        %2283 = vmatpush2.msra.mxu0 0.0
        %2284 = vmatprep.subr.mxu0 0.0
        %2285 = vmatpush2.msra.mxu0 0.0
        %2286 = vmatprep.subr.mxu0 0.0
        %2287 = vmatpush2.msra.mxu0 0.0
        %2288 = vmatprep.subr.mxu0 0.0
        %2289 = vmatpush2.msra.mxu0 0.0
        %2290 = vmatprep.subr.mxu0 0.0
        %2291 = vmatpush2.msra.mxu0 0.0
        %2292 = vmatprep.subr.mxu0 0.0
        %2293 = vmatpush2.msra.mxu0 0.0
        %2294 = vmatprep.subr.mxu0 0.0
        %2295 = vmatpush2.msra.mxu0 0.0
        %2296 = vmatprep.subr.mxu0 0.0
        %2297 = vmatpush2.msra.mxu0 0.0
        %2298 = vmatprep.subr.mxu0 0.0
        %2299 = vmatpush2.msra.mxu0 0.0
        %2300 = vmatprep.subr.mxu0 0.0
        %2301 = vmatpush2.msra.mxu0 0.0
        %2302 = vmatprep.subr.mxu0 0.0
        %2303 = vmatpush2.msra.mxu0 0.0
        %2304 = vmatprep.mubr.f32.mxu0 0.0
        %v2305 = vand.u32 %v1632, 4294901760
        %2306 = vmatmul.mubr.f32.gmra.mxu0 %v2305
        %v2307 = vpop.f32.mrf.mxu0
        %v2308 = vadd.f32 %v2207, %v2307
        %v2309 = vpop.f32.mrf.mxu0
        %v2310 = vadd.f32 %v2209, %v2309
        %2311 = vmatprep.mubr.f32.mxu0 0.0
        %v2312 = vand.u32 %v1635, 4294901760
        %2313 = vmatmul.mubr.f32.gmra.mxu0 %v2312
        %v2314 = vpop.f32.mrf.mxu0
        %v2315 = vadd.f32 %v2214, %v2314
        %v2316 = vpop.f32.mrf.mxu0
        %v2317 = vadd.f32 %v2216, %v2316
        %2318 = vmatprep.mubr.f32.mxu0 0.0
        %v2319 = vand.u32 %v1638, 4294901760
        %2320 = vmatmul.mubr.f32.gmra.mxu0 %v2319
        %v2321 = vpop.f32.mrf.mxu0
        %v2322 = vadd.f32 %v2221, %v2321
        %v2323 = vpop.f32.mrf.mxu0
        %v2324 = vadd.f32 %v2223, %v2323
        %2325 = vmatprep.mubr.f32.mxu0 0.0
        %v2326 = vand.u32 %v1641, 4294901760
        %2327 = vmatmul.mubr.f32.gmra.mxu0 %v2326
        %v2328 = vpop.f32.mrf.mxu0
        %v2329 = vadd.f32 %v2228, %v2328
        %v2330 = vpop.f32.mrf.mxu0
        %v2331 = vadd.f32 %v2230, %v2330
        %2332 = vdwg.mxu0
        %2333 = vmatprep.subr.mxu0 0.0
        %2334 = vmatpush1.msra.mxu0 0.0
        %2335 = vmatprep.subr.mxu0 0.0
        %2336 = vmatpush1.msra.mxu0 0.0
        %2337 = vmatprep.subr.mxu0 0.0
        %2338 = vmatpush1.msra.mxu0 0.0
        %2339 = vmatprep.subr.mxu0 0.0
        %2340 = vmatpush1.msra.mxu0 0.0
        %2341 = vmatprep.subr.mxu0 0.0
        %2342 = vmatpush1.msra.mxu0 0.0
        %2343 = vmatprep.subr.mxu0 0.0
        %2344 = vmatpush1.msra.mxu0 0.0
        %2345 = vmatprep.subr.mxu0 0.0
        %2346 = vmatpush1.msra.mxu0 0.0
        %2347 = vmatprep.subr.mxu0 0.0
        %2348 = vmatpush1.msra.mxu0 0.0
        %2349 = vmatprep.subr.mxu0 0.0
        %2350 = vmatpush1.msra.mxu0 0.0
        %2351 = vmatprep.subr.mxu0 0.0
        %2352 = vmatpush1.msra.mxu0 0.0
        %2353 = vmatprep.subr.mxu0 0.0
        %2354 = vmatpush1.msra.mxu0 0.0
        %2355 = vmatprep.subr.mxu0 0.0
        %2356 = vmatpush1.msra.mxu0 0.0
        %v2357 = vand.u32 %v1609, 4294901760
        %2358 = vmatprep.subr.mxu0 %v2357
        %v2359 = vand.u32 %v1608, 4294901760
        %2360 = vmatpush1.msra.mxu0 %v2359
        %v2361 = vand.u32 %v1605, 4294901760
        %2362 = vmatprep.subr.mxu0 %v2361
        %v2363 = vand.u32 %v1604, 4294901760
        %2364 = vmatpush1.msra.mxu0 %v2363
        %v2365 = vand.u32 %v1601, 4294901760
        %2366 = vmatprep.subr.mxu0 %v2365
        %v2367 = vand.u32 %v1600, 4294901760
        %2368 = vmatpush1.msra.mxu0 %v2367
        %v2369 = vand.u32 %v1597, 4294901760
        %2370 = vmatprep.subr.mxu0 %v2369
        %v2371 = vand.u32 %v1596, 4294901760
        %2372 = vmatpush1.msra.mxu0 %v2371
        %2373 = vmatprep.subr.mxu0 0.0
        %2374 = vmatpush2.msra.mxu0 0.0
        %2375 = vmatprep.subr.mxu0 0.0
        %2376 = vmatpush2.msra.mxu0 0.0
        %2377 = vmatprep.subr.mxu0 0.0
        %2378 = vmatpush2.msra.mxu0 0.0
        %2379 = vmatprep.subr.mxu0 0.0
        %2380 = vmatpush2.msra.mxu0 0.0
        %2381 = vmatprep.subr.mxu0 0.0
        %2382 = vmatpush2.msra.mxu0 0.0
        %2383 = vmatprep.subr.mxu0 0.0
        %2384 = vmatpush2.msra.mxu0 0.0
        %2385 = vmatprep.subr.mxu0 0.0
        %2386 = vmatpush2.msra.mxu0 0.0
        %2387 = vmatprep.subr.mxu0 0.0
        %2388 = vmatpush2.msra.mxu0 0.0
        %2389 = vmatprep.subr.mxu0 0.0
        %2390 = vmatpush2.msra.mxu0 0.0
        %2391 = vmatprep.subr.mxu0 0.0
        %2392 = vmatpush2.msra.mxu0 0.0
        %2393 = vmatprep.subr.mxu0 0.0
        %2394 = vmatpush2.msra.mxu0 0.0
        %2395 = vmatprep.subr.mxu0 0.0
        %2396 = vmatpush2.msra.mxu0 0.0
        %2397 = vmatprep.subr.mxu0 0.0
        %2398 = vmatpush2.msra.mxu0 0.0
        %2399 = vmatprep.subr.mxu0 0.0
        %2400 = vmatpush2.msra.mxu0 0.0
        %2401 = vmatprep.subr.mxu0 0.0
        %2402 = vmatpush2.msra.mxu0 0.0
        %2403 = vmatprep.subr.mxu0 0.0
        %2404 = vmatpush2.msra.mxu0 0.0
        %2405 = vmatprep.mubr.f32.mxu0 0.0
        %v2406 = vand.u32 %v1632, 4294901760
        %v2407 = vsub.f32 %v1632, %v2406
        %v2408 = vand.u32 %v2407, 4294901760
        %v2409 = vsub.f32 %v2407, %v2408
        %v2410 = vand.u32 %v2409, 4294901760
        %2411 = vmatmul.mubr.f32.gmra.mxu0 %v2410
        %v2412 = vpop.f32.mrf.mxu0
        %v2413 = vadd.f32 %v1613, %v2412
        %v2414 = vpop.f32.mrf.mxu0
        %v2415 = vadd.f32 %v1613, %v2414
        %2416 = vmatprep.mubr.f32.mxu0 0.0
        %v2417 = vand.u32 %v1635, 4294901760
        %v2418 = vsub.f32 %v1635, %v2417
        %v2419 = vand.u32 %v2418, 4294901760
        %v2420 = vsub.f32 %v2418, %v2419
        %v2421 = vand.u32 %v2420, 4294901760
        %2422 = vmatmul.mubr.f32.gmra.mxu0 %v2421
        %v2423 = vpop.f32.mrf.mxu0
        %v2424 = vadd.f32 %v1618, %v2423
        %v2425 = vpop.f32.mrf.mxu0
        %v2426 = vadd.f32 %v1618, %v2425
        %2427 = vmatprep.mubr.f32.mxu0 0.0
        %v2428 = vand.u32 %v1638, 4294901760
        %v2429 = vsub.f32 %v1638, %v2428
        %v2430 = vand.u32 %v2429, 4294901760
        %v2431 = vsub.f32 %v2429, %v2430
        %v2432 = vand.u32 %v2431, 4294901760
        %2433 = vmatmul.mubr.f32.gmra.mxu0 %v2432
        %v2434 = vpop.f32.mrf.mxu0
        %v2435 = vadd.f32 %v1623, %v2434
        %v2436 = vpop.f32.mrf.mxu0
        %v2437 = vadd.f32 %v1623, %v2436
        %2438 = vmatprep.mubr.f32.mxu0 0.0
        %v2439 = vand.u32 %v1641, 4294901760
        %v2440 = vsub.f32 %v1641, %v2439
        %v2441 = vand.u32 %v2440, 4294901760
        %v2442 = vsub.f32 %v2440, %v2441
        %v2443 = vand.u32 %v2442, 4294901760
        %2444 = vmatmul.mubr.f32.gmra.mxu0 %v2443
        %v2445 = vpop.f32.mrf.mxu0
        %v2446 = vadd.f32 %v1628, %v2445
        %v2447 = vpop.f32.mrf.mxu0
        %v2448 = vadd.f32 %v1628, %v2447
        %2449 = vdwg.mxu0
        %2450 = vmatprep.subr.mxu0 0.0
        %2451 = vmatpush1.msra.mxu0 0.0
        %2452 = vmatprep.subr.mxu0 0.0
        %2453 = vmatpush1.msra.mxu0 0.0
        %2454 = vmatprep.subr.mxu0 0.0
        %2455 = vmatpush1.msra.mxu0 0.0
        %2456 = vmatprep.subr.mxu0 0.0
        %2457 = vmatpush1.msra.mxu0 0.0
        %2458 = vmatprep.subr.mxu0 0.0
        %2459 = vmatpush1.msra.mxu0 0.0
        %2460 = vmatprep.subr.mxu0 0.0
        %2461 = vmatpush1.msra.mxu0 0.0
        %2462 = vmatprep.subr.mxu0 0.0
        %2463 = vmatpush1.msra.mxu0 0.0
        %2464 = vmatprep.subr.mxu0 0.0
        %2465 = vmatpush1.msra.mxu0 0.0
        %2466 = vmatprep.subr.mxu0 0.0
        %2467 = vmatpush1.msra.mxu0 0.0
        %2468 = vmatprep.subr.mxu0 0.0
        %2469 = vmatpush1.msra.mxu0 0.0
        %2470 = vmatprep.subr.mxu0 0.0
        %2471 = vmatpush1.msra.mxu0 0.0
        %2472 = vmatprep.subr.mxu0 0.0
        %2473 = vmatpush1.msra.mxu0 0.0
        %v2474 = vand.u32 %v1609, 4294901760
        %v2475 = vsub.f32 %v1609, %v2474
        %v2476 = vand.u32 %v2475, 4294901760
        %v2477 = vsub.f32 %v2475, %v2476
        %v2478 = vand.u32 %v2477, 4294901760
        %2479 = vmatprep.subr.mxu0 %v2478
        %v2480 = vand.u32 %v1608, 4294901760
        %v2481 = vsub.f32 %v1608, %v2480
        %v2482 = vand.u32 %v2481, 4294901760
        %v2483 = vsub.f32 %v2481, %v2482
        %v2484 = vand.u32 %v2483, 4294901760
        %2485 = vmatpush1.msra.mxu0 %v2484
        %v2486 = vand.u32 %v1605, 4294901760
        %v2487 = vsub.f32 %v1605, %v2486
        %v2488 = vand.u32 %v2487, 4294901760
        %v2489 = vsub.f32 %v2487, %v2488
        %v2490 = vand.u32 %v2489, 4294901760
        %2491 = vmatprep.subr.mxu0 %v2490
        %v2492 = vand.u32 %v1604, 4294901760
        %v2493 = vsub.f32 %v1604, %v2492
        %v2494 = vand.u32 %v2493, 4294901760
        %v2495 = vsub.f32 %v2493, %v2494
        %v2496 = vand.u32 %v2495, 4294901760
        %2497 = vmatpush1.msra.mxu0 %v2496
        %v2498 = vand.u32 %v1601, 4294901760
        %v2499 = vsub.f32 %v1601, %v2498
        %v2500 = vand.u32 %v2499, 4294901760
        %v2501 = vsub.f32 %v2499, %v2500
        %v2502 = vand.u32 %v2501, 4294901760
        %2503 = vmatprep.subr.mxu0 %v2502
        %v2504 = vand.u32 %v1600, 4294901760
        %v2505 = vsub.f32 %v1600, %v2504
        %v2506 = vand.u32 %v2505, 4294901760
        %v2507 = vsub.f32 %v2505, %v2506
        %v2508 = vand.u32 %v2507, 4294901760
        %2509 = vmatpush1.msra.mxu0 %v2508
        %v2510 = vand.u32 %v1597, 4294901760
        %v2511 = vsub.f32 %v1597, %v2510
        %v2512 = vand.u32 %v2511, 4294901760
        %v2513 = vsub.f32 %v2511, %v2512
        %v2514 = vand.u32 %v2513, 4294901760
        %2515 = vmatprep.subr.mxu0 %v2514
        %v2516 = vand.u32 %v1596, 4294901760
        %v2517 = vsub.f32 %v1596, %v2516
        %v2518 = vand.u32 %v2517, 4294901760
        %v2519 = vsub.f32 %v2517, %v2518
        %v2520 = vand.u32 %v2519, 4294901760
        %2521 = vmatpush1.msra.mxu0 %v2520
        %2522 = vmatprep.subr.mxu0 0.0
        %2523 = vmatpush2.msra.mxu0 0.0
        %2524 = vmatprep.subr.mxu0 0.0
        %2525 = vmatpush2.msra.mxu0 0.0
        %2526 = vmatprep.subr.mxu0 0.0
        %2527 = vmatpush2.msra.mxu0 0.0
        %2528 = vmatprep.subr.mxu0 0.0
        %2529 = vmatpush2.msra.mxu0 0.0
        %2530 = vmatprep.subr.mxu0 0.0
        %2531 = vmatpush2.msra.mxu0 0.0
        %2532 = vmatprep.subr.mxu0 0.0
        %2533 = vmatpush2.msra.mxu0 0.0
        %2534 = vmatprep.subr.mxu0 0.0
        %2535 = vmatpush2.msra.mxu0 0.0
        %2536 = vmatprep.subr.mxu0 0.0
        %2537 = vmatpush2.msra.mxu0 0.0
        %2538 = vmatprep.subr.mxu0 0.0
        %2539 = vmatpush2.msra.mxu0 0.0
        %2540 = vmatprep.subr.mxu0 0.0
        %2541 = vmatpush2.msra.mxu0 0.0
        %2542 = vmatprep.subr.mxu0 0.0
        %2543 = vmatpush2.msra.mxu0 0.0
        %2544 = vmatprep.subr.mxu0 0.0
        %2545 = vmatpush2.msra.mxu0 0.0
        %2546 = vmatprep.subr.mxu0 0.0
        %2547 = vmatpush2.msra.mxu0 0.0
        %2548 = vmatprep.subr.mxu0 0.0
        %2549 = vmatpush2.msra.mxu0 0.0
        %2550 = vmatprep.subr.mxu0 0.0
        %2551 = vmatpush2.msra.mxu0 0.0
        %2552 = vmatprep.subr.mxu0 0.0
        %2553 = vmatpush2.msra.mxu0 0.0
        %2554 = vmatprep.mubr.f32.mxu0 0.0
        %v2555 = vand.u32 %v1632, 4294901760
        %2556 = vmatmul.mubr.f32.gmra.mxu0 %v2555
        %v2557 = vpop.f32.mrf.mxu0
        %v2558 = vadd.f32 %v2413, %v2557
        %v2559 = vpop.f32.mrf.mxu0
        %v2560 = vadd.f32 %v2415, %v2559
        %2561 = vmatprep.mubr.f32.mxu0 0.0
        %v2562 = vand.u32 %v1635, 4294901760
        %2563 = vmatmul.mubr.f32.gmra.mxu0 %v2562
        %v2564 = vpop.f32.mrf.mxu0
        %v2565 = vadd.f32 %v2424, %v2564
        %v2566 = vpop.f32.mrf.mxu0
        %v2567 = vadd.f32 %v2426, %v2566
        %2568 = vmatprep.mubr.f32.mxu0 0.0
        %v2569 = vand.u32 %v1638, 4294901760
        %2570 = vmatmul.mubr.f32.gmra.mxu0 %v2569
        %v2571 = vpop.f32.mrf.mxu0
        %v2572 = vadd.f32 %v2435, %v2571
        %v2573 = vpop.f32.mrf.mxu0
        %v2574 = vadd.f32 %v2437, %v2573
        %2575 = vmatprep.mubr.f32.mxu0 0.0
        %v2576 = vand.u32 %v1641, 4294901760
        %2577 = vmatmul.mubr.f32.gmra.mxu0 %v2576
        %v2578 = vpop.f32.mrf.mxu0
        %v2579 = vadd.f32 %v2446, %v2578
        %v2580 = vpop.f32.mrf.mxu0
        %v2581 = vadd.f32 %v2448, %v2580
        %2582 = vdwg.mxu0
        %2583 = vmatprep.subr.mxu0 0.0
        %2584 = vmatpush1.msra.mxu0 0.0
        %2585 = vmatprep.subr.mxu0 0.0
        %2586 = vmatpush1.msra.mxu0 0.0
        %2587 = vmatprep.subr.mxu0 0.0
        %2588 = vmatpush1.msra.mxu0 0.0
        %2589 = vmatprep.subr.mxu0 0.0
        %2590 = vmatpush1.msra.mxu0 0.0
        %2591 = vmatprep.subr.mxu0 0.0
        %2592 = vmatpush1.msra.mxu0 0.0
        %2593 = vmatprep.subr.mxu0 0.0
        %2594 = vmatpush1.msra.mxu0 0.0
        %2595 = vmatprep.subr.mxu0 0.0
        %2596 = vmatpush1.msra.mxu0 0.0
        %2597 = vmatprep.subr.mxu0 0.0
        %2598 = vmatpush1.msra.mxu0 0.0
        %2599 = vmatprep.subr.mxu0 0.0
        %2600 = vmatpush1.msra.mxu0 0.0
        %2601 = vmatprep.subr.mxu0 0.0
        %2602 = vmatpush1.msra.mxu0 0.0
        %2603 = vmatprep.subr.mxu0 0.0
        %2604 = vmatpush1.msra.mxu0 0.0
        %2605 = vmatprep.subr.mxu0 0.0
        %2606 = vmatpush1.msra.mxu0 0.0
        %v2607 = vand.u32 %v1609, 4294901760
        %v2608 = vsub.f32 %v1609, %v2607
        %2609 = vmatprep.subr.mxu0 %v2608
        %v2610 = vand.u32 %v1608, 4294901760
        %v2611 = vsub.f32 %v1608, %v2610
        %2612 = vmatpush1.msra.mxu0 %v2611
        %v2613 = vand.u32 %v1605, 4294901760
        %v2614 = vsub.f32 %v1605, %v2613
        %2615 = vmatprep.subr.mxu0 %v2614
        %v2616 = vand.u32 %v1604, 4294901760
        %v2617 = vsub.f32 %v1604, %v2616
        %2618 = vmatpush1.msra.mxu0 %v2617
        %v2619 = vand.u32 %v1601, 4294901760
        %v2620 = vsub.f32 %v1601, %v2619
        %2621 = vmatprep.subr.mxu0 %v2620
        %v2622 = vand.u32 %v1600, 4294901760
        %v2623 = vsub.f32 %v1600, %v2622
        %2624 = vmatpush1.msra.mxu0 %v2623
        %v2625 = vand.u32 %v1597, 4294901760
        %v2626 = vsub.f32 %v1597, %v2625
        %2627 = vmatprep.subr.mxu0 %v2626
        %v2628 = vand.u32 %v1596, 4294901760
        %v2629 = vsub.f32 %v1596, %v2628
        %2630 = vmatpush1.msra.mxu0 %v2629
        %2631 = vmatprep.subr.mxu0 0.0
        %2632 = vmatpush2.msra.mxu0 0.0
        %2633 = vmatprep.subr.mxu0 0.0
        %2634 = vmatpush2.msra.mxu0 0.0
        %2635 = vmatprep.subr.mxu0 0.0
        %2636 = vmatpush2.msra.mxu0 0.0
        %2637 = vmatprep.subr.mxu0 0.0
        %2638 = vmatpush2.msra.mxu0 0.0
        %2639 = vmatprep.subr.mxu0 0.0
        %2640 = vmatpush2.msra.mxu0 0.0
        %2641 = vmatprep.subr.mxu0 0.0
        %2642 = vmatpush2.msra.mxu0 0.0
        %2643 = vmatprep.subr.mxu0 0.0
        %2644 = vmatpush2.msra.mxu0 0.0
        %2645 = vmatprep.subr.mxu0 0.0
        %2646 = vmatpush2.msra.mxu0 0.0
        %2647 = vmatprep.subr.mxu0 0.0
        %2648 = vmatpush2.msra.mxu0 0.0
        %2649 = vmatprep.subr.mxu0 0.0
        %2650 = vmatpush2.msra.mxu0 0.0
        %2651 = vmatprep.subr.mxu0 0.0
        %2652 = vmatpush2.msra.mxu0 0.0
        %2653 = vmatprep.subr.mxu0 0.0
        %2654 = vmatpush2.msra.mxu0 0.0
        %2655 = vmatprep.subr.mxu0 0.0
        %2656 = vmatpush2.msra.mxu0 0.0
        %2657 = vmatprep.subr.mxu0 0.0
        %2658 = vmatpush2.msra.mxu0 0.0
        %2659 = vmatprep.subr.mxu0 0.0
        %2660 = vmatpush2.msra.mxu0 0.0
        %2661 = vmatprep.subr.mxu0 0.0
        %2662 = vmatpush2.msra.mxu0 0.0
        %2663 = vmatprep.mubr.f32.mxu0 0.0
        %v2664 = vand.u32 %v1632, 4294901760
        %v2665 = vsub.f32 %v1632, %v2664
        %2666 = vmatmul.mubr.f32.gmra.mxu0 %v2665
        %v2667 = vpop.f32.mrf.mxu0
        %v2668 = vadd.f32 %v2558, %v2667
        %v2669 = vpop.f32.mrf.mxu0
        %v2670 = vadd.f32 %v2560, %v2669
        %2671 = vmatprep.mubr.f32.mxu0 0.0
        %v2672 = vand.u32 %v1635, 4294901760
        %v2673 = vsub.f32 %v1635, %v2672
        %2674 = vmatmul.mubr.f32.gmra.mxu0 %v2673
        %v2675 = vpop.f32.mrf.mxu0
        %v2676 = vadd.f32 %v2565, %v2675
        %v2677 = vpop.f32.mrf.mxu0
        %v2678 = vadd.f32 %v2567, %v2677
        %2679 = vmatprep.mubr.f32.mxu0 0.0
        %v2680 = vand.u32 %v1638, 4294901760
        %v2681 = vsub.f32 %v1638, %v2680
        %2682 = vmatmul.mubr.f32.gmra.mxu0 %v2681
        %v2683 = vpop.f32.mrf.mxu0
        %v2684 = vadd.f32 %v2572, %v2683
        %v2685 = vpop.f32.mrf.mxu0
        %v2686 = vadd.f32 %v2574, %v2685
        %2687 = vmatprep.mubr.f32.mxu0 0.0
        %v2688 = vand.u32 %v1641, 4294901760
        %v2689 = vsub.f32 %v1641, %v2688
        %2690 = vmatmul.mubr.f32.gmra.mxu0 %v2689
        %v2691 = vpop.f32.mrf.mxu0
        %v2692 = vadd.f32 %v2579, %v2691
        %v2693 = vpop.f32.mrf.mxu0
        %v2694 = vadd.f32 %v2581, %v2693
        %2695 = vdwg.mxu0
        %2696 = vmatprep.subr.mxu0 0.0
        %2697 = vmatpush1.msra.mxu0 0.0
        %2698 = vmatprep.subr.mxu0 0.0
        %2699 = vmatpush1.msra.mxu0 0.0
        %2700 = vmatprep.subr.mxu0 0.0
        %2701 = vmatpush1.msra.mxu0 0.0
        %2702 = vmatprep.subr.mxu0 0.0
        %2703 = vmatpush1.msra.mxu0 0.0
        %2704 = vmatprep.subr.mxu0 0.0
        %2705 = vmatpush1.msra.mxu0 0.0
        %2706 = vmatprep.subr.mxu0 0.0
        %2707 = vmatpush1.msra.mxu0 0.0
        %2708 = vmatprep.subr.mxu0 0.0
        %2709 = vmatpush1.msra.mxu0 0.0
        %2710 = vmatprep.subr.mxu0 0.0
        %2711 = vmatpush1.msra.mxu0 0.0
        %2712 = vmatprep.subr.mxu0 0.0
        %2713 = vmatpush1.msra.mxu0 0.0
        %2714 = vmatprep.subr.mxu0 0.0
        %2715 = vmatpush1.msra.mxu0 0.0
        %2716 = vmatprep.subr.mxu0 0.0
        %2717 = vmatpush1.msra.mxu0 0.0
        %2718 = vmatprep.subr.mxu0 0.0
        %2719 = vmatpush1.msra.mxu0 0.0
        %v2720 = vand.u32 %v1609, 4294901760
        %2721 = vmatprep.subr.mxu0 %v2720
        %v2722 = vand.u32 %v1608, 4294901760
        %2723 = vmatpush1.msra.mxu0 %v2722
        %v2724 = vand.u32 %v1605, 4294901760
        %2725 = vmatprep.subr.mxu0 %v2724
        %v2726 = vand.u32 %v1604, 4294901760
        %2727 = vmatpush1.msra.mxu0 %v2726
        %v2728 = vand.u32 %v1601, 4294901760
        %2729 = vmatprep.subr.mxu0 %v2728
        %v2730 = vand.u32 %v1600, 4294901760
        %2731 = vmatpush1.msra.mxu0 %v2730
        %v2732 = vand.u32 %v1597, 4294901760
        %2733 = vmatprep.subr.mxu0 %v2732
        %v2734 = vand.u32 %v1596, 4294901760
        %2735 = vmatpush1.msra.mxu0 %v2734
        %2736 = vmatprep.subr.mxu0 0.0
        %2737 = vmatpush2.msra.mxu0 0.0
        %2738 = vmatprep.subr.mxu0 0.0
        %2739 = vmatpush2.msra.mxu0 0.0
        %2740 = vmatprep.subr.mxu0 0.0
        %2741 = vmatpush2.msra.mxu0 0.0
        %2742 = vmatprep.subr.mxu0 0.0
        %2743 = vmatpush2.msra.mxu0 0.0
        %2744 = vmatprep.subr.mxu0 0.0
        %2745 = vmatpush2.msra.mxu0 0.0
        %2746 = vmatprep.subr.mxu0 0.0
        %2747 = vmatpush2.msra.mxu0 0.0
        %2748 = vmatprep.subr.mxu0 0.0
        %2749 = vmatpush2.msra.mxu0 0.0
        %2750 = vmatprep.subr.mxu0 0.0
        %2751 = vmatpush2.msra.mxu0 0.0
        %2752 = vmatprep.subr.mxu0 0.0
        %2753 = vmatpush2.msra.mxu0 0.0
        %2754 = vmatprep.subr.mxu0 0.0
        %2755 = vmatpush2.msra.mxu0 0.0
        %2756 = vmatprep.subr.mxu0 0.0
        %2757 = vmatpush2.msra.mxu0 0.0
        %2758 = vmatprep.subr.mxu0 0.0
        %2759 = vmatpush2.msra.mxu0 0.0
        %2760 = vmatprep.subr.mxu0 0.0
        %2761 = vmatpush2.msra.mxu0 0.0
        %2762 = vmatprep.subr.mxu0 0.0
        %2763 = vmatpush2.msra.mxu0 0.0
        %2764 = vmatprep.subr.mxu0 0.0
        %2765 = vmatpush2.msra.mxu0 0.0
        %2766 = vmatprep.subr.mxu0 0.0
        %2767 = vmatpush2.msra.mxu0 0.0
        %2768 = vmatprep.mubr.f32.mxu0 0.0
        %v2769 = vand.u32 %v1632, 4294901760
        %v2770 = vsub.f32 %v1632, %v2769
        %v2771 = vand.u32 %v2770, 4294901760
        %2772 = vmatmul.mubr.f32.gmra.mxu0 %v2771
        %v2773 = vpop.f32.mrf.mxu0
        %v2774 = vadd.f32 %v2668, %v2773
        %v2775 = vpop.f32.mrf.mxu0
        %v2776 = vadd.f32 %v2670, %v2775
        %2777 = vmatprep.mubr.f32.mxu0 0.0
        %v2778 = vand.u32 %v1635, 4294901760
        %v2779 = vsub.f32 %v1635, %v2778
        %v2780 = vand.u32 %v2779, 4294901760
        %2781 = vmatmul.mubr.f32.gmra.mxu0 %v2780
        %v2782 = vpop.f32.mrf.mxu0
        %v2783 = vadd.f32 %v2676, %v2782
        %v2784 = vpop.f32.mrf.mxu0
        %v2785 = vadd.f32 %v2678, %v2784
        %2786 = vmatprep.mubr.f32.mxu0 0.0
        %v2787 = vand.u32 %v1638, 4294901760
        %v2788 = vsub.f32 %v1638, %v2787
        %v2789 = vand.u32 %v2788, 4294901760
        %2790 = vmatmul.mubr.f32.gmra.mxu0 %v2789
        %v2791 = vpop.f32.mrf.mxu0
        %v2792 = vadd.f32 %v2684, %v2791
        %v2793 = vpop.f32.mrf.mxu0
        %v2794 = vadd.f32 %v2686, %v2793
        %2795 = vmatprep.mubr.f32.mxu0 0.0
        %v2796 = vand.u32 %v1641, 4294901760
        %v2797 = vsub.f32 %v1641, %v2796
        %v2798 = vand.u32 %v2797, 4294901760
        %2799 = vmatmul.mubr.f32.gmra.mxu0 %v2798
        %v2800 = vpop.f32.mrf.mxu0
        %v2801 = vadd.f32 %v2692, %v2800
        %v2802 = vpop.f32.mrf.mxu0
        %v2803 = vadd.f32 %v2694, %v2802
        %2804 = vdwg.mxu0
        %2805 = vmatprep.subr.mxu0 0.0
        %2806 = vmatpush1.msra.mxu0 0.0
        %2807 = vmatprep.subr.mxu0 0.0
        %2808 = vmatpush1.msra.mxu0 0.0
        %2809 = vmatprep.subr.mxu0 0.0
        %2810 = vmatpush1.msra.mxu0 0.0
        %2811 = vmatprep.subr.mxu0 0.0
        %2812 = vmatpush1.msra.mxu0 0.0
        %2813 = vmatprep.subr.mxu0 0.0
        %2814 = vmatpush1.msra.mxu0 0.0
        %2815 = vmatprep.subr.mxu0 0.0
        %2816 = vmatpush1.msra.mxu0 0.0
        %2817 = vmatprep.subr.mxu0 0.0
        %2818 = vmatpush1.msra.mxu0 0.0
        %2819 = vmatprep.subr.mxu0 0.0
        %2820 = vmatpush1.msra.mxu0 0.0
        %2821 = vmatprep.subr.mxu0 0.0
        %2822 = vmatpush1.msra.mxu0 0.0
        %2823 = vmatprep.subr.mxu0 0.0
        %2824 = vmatpush1.msra.mxu0 0.0
        %2825 = vmatprep.subr.mxu0 0.0
        %2826 = vmatpush1.msra.mxu0 0.0
        %2827 = vmatprep.subr.mxu0 0.0
        %2828 = vmatpush1.msra.mxu0 0.0
        %v2829 = vand.u32 %v1609, 4294901760
        %v2830 = vsub.f32 %v1609, %v2829
        %v2831 = vand.u32 %v2830, 4294901760
        %2832 = vmatprep.subr.mxu0 %v2831
        %v2833 = vand.u32 %v1608, 4294901760
        %v2834 = vsub.f32 %v1608, %v2833
        %v2835 = vand.u32 %v2834, 4294901760
        %2836 = vmatpush1.msra.mxu0 %v2835
        %v2837 = vand.u32 %v1605, 4294901760
        %v2838 = vsub.f32 %v1605, %v2837
        %v2839 = vand.u32 %v2838, 4294901760
        %2840 = vmatprep.subr.mxu0 %v2839
        %v2841 = vand.u32 %v1604, 4294901760
        %v2842 = vsub.f32 %v1604, %v2841
        %v2843 = vand.u32 %v2842, 4294901760
        %2844 = vmatpush1.msra.mxu0 %v2843
        %v2845 = vand.u32 %v1601, 4294901760
        %v2846 = vsub.f32 %v1601, %v2845
        %v2847 = vand.u32 %v2846, 4294901760
        %2848 = vmatprep.subr.mxu0 %v2847
        %v2849 = vand.u32 %v1600, 4294901760
        %v2850 = vsub.f32 %v1600, %v2849
        %v2851 = vand.u32 %v2850, 4294901760
        %2852 = vmatpush1.msra.mxu0 %v2851
        %v2853 = vand.u32 %v1597, 4294901760
        %v2854 = vsub.f32 %v1597, %v2853
        %v2855 = vand.u32 %v2854, 4294901760
        %2856 = vmatprep.subr.mxu0 %v2855
        %v2857 = vand.u32 %v1596, 4294901760
        %v2858 = vsub.f32 %v1596, %v2857
        %v2859 = vand.u32 %v2858, 4294901760
        %2860 = vmatpush1.msra.mxu0 %v2859
        %2861 = vmatprep.subr.mxu0 0.0
        %2862 = vmatpush2.msra.mxu0 0.0
        %2863 = vmatprep.subr.mxu0 0.0
        %2864 = vmatpush2.msra.mxu0 0.0
        %2865 = vmatprep.subr.mxu0 0.0
        %2866 = vmatpush2.msra.mxu0 0.0
        %2867 = vmatprep.subr.mxu0 0.0
        %2868 = vmatpush2.msra.mxu0 0.0
        %2869 = vmatprep.subr.mxu0 0.0
        %2870 = vmatpush2.msra.mxu0 0.0
        %2871 = vmatprep.subr.mxu0 0.0
        %2872 = vmatpush2.msra.mxu0 0.0
        %2873 = vmatprep.subr.mxu0 0.0
        %2874 = vmatpush2.msra.mxu0 0.0
        %2875 = vmatprep.subr.mxu0 0.0
        %2876 = vmatpush2.msra.mxu0 0.0
        %2877 = vmatprep.subr.mxu0 0.0
        %2878 = vmatpush2.msra.mxu0 0.0
        %2879 = vmatprep.subr.mxu0 0.0
        %2880 = vmatpush2.msra.mxu0 0.0
        %2881 = vmatprep.subr.mxu0 0.0
        %2882 = vmatpush2.msra.mxu0 0.0
        %2883 = vmatprep.subr.mxu0 0.0
        %2884 = vmatpush2.msra.mxu0 0.0
        %2885 = vmatprep.subr.mxu0 0.0
        %2886 = vmatpush2.msra.mxu0 0.0
        %2887 = vmatprep.subr.mxu0 0.0
        %2888 = vmatpush2.msra.mxu0 0.0
        %2889 = vmatprep.subr.mxu0 0.0
        %2890 = vmatpush2.msra.mxu0 0.0
        %2891 = vmatprep.subr.mxu0 0.0
        %2892 = vmatpush2.msra.mxu0 0.0
        %2893 = vmatprep.mubr.f32.mxu0 0.0
        %v2894 = vand.u32 %v1632, 4294901760
        %2895 = vmatmul.mubr.f32.gmra.mxu0 %v2894
        %v2896 = vpop.f32.mrf.mxu0
        %v2897 = vadd.f32 %v2774, %v2896
        %v2898 = vpop.f32.mrf.mxu0
        %v2899 = vadd.f32 %v2776, %v2898
        %2900 = vmatprep.mubr.f32.mxu0 0.0
        %v2901 = vand.u32 %v1635, 4294901760
        %2902 = vmatmul.mubr.f32.gmra.mxu0 %v2901
        %v2903 = vpop.f32.mrf.mxu0
        %v2904 = vadd.f32 %v2783, %v2903
        %v2905 = vpop.f32.mrf.mxu0
        %v2906 = vadd.f32 %v2785, %v2905
        %2907 = vmatprep.mubr.f32.mxu0 0.0
        %v2908 = vand.u32 %v1638, 4294901760
        %2909 = vmatmul.mubr.f32.gmra.mxu0 %v2908
        %v2910 = vpop.f32.mrf.mxu0
        %v2911 = vadd.f32 %v2792, %v2910
        %v2912 = vpop.f32.mrf.mxu0
        %v2913 = vadd.f32 %v2794, %v2912
        %2914 = vmatprep.mubr.f32.mxu0 0.0
        %v2915 = vand.u32 %v1641, 4294901760
        %2916 = vmatmul.mubr.f32.gmra.mxu0 %v2915
        %v2917 = vpop.f32.mrf.mxu0
        %v2918 = vadd.f32 %v2801, %v2917
        %v2919 = vpop.f32.mrf.mxu0
        %v2920 = vadd.f32 %v2803, %v2919
        %2921 = vdwg.mxu0
        %2922 = vmatprep.subr.mxu0 0.0
        %2923 = vmatpush1.msra.mxu0 0.0
        %2924 = vmatprep.subr.mxu0 0.0
        %2925 = vmatpush1.msra.mxu0 0.0
        %2926 = vmatprep.subr.mxu0 0.0
        %2927 = vmatpush1.msra.mxu0 0.0
        %2928 = vmatprep.subr.mxu0 0.0
        %2929 = vmatpush1.msra.mxu0 0.0
        %2930 = vmatprep.subr.mxu0 0.0
        %2931 = vmatpush1.msra.mxu0 0.0
        %2932 = vmatprep.subr.mxu0 0.0
        %2933 = vmatpush1.msra.mxu0 0.0
        %2934 = vmatprep.subr.mxu0 0.0
        %2935 = vmatpush1.msra.mxu0 0.0
        %2936 = vmatprep.subr.mxu0 0.0
        %2937 = vmatpush1.msra.mxu0 0.0
        %2938 = vmatprep.subr.mxu0 0.0
        %2939 = vmatpush1.msra.mxu0 0.0
        %2940 = vmatprep.subr.mxu0 0.0
        %2941 = vmatpush1.msra.mxu0 0.0
        %2942 = vmatprep.subr.mxu0 0.0
        %2943 = vmatpush1.msra.mxu0 0.0
        %2944 = vmatprep.subr.mxu0 0.0
        %2945 = vmatpush1.msra.mxu0 0.0
        %v2946 = vand.u32 %v1609, 4294901760
        %2947 = vmatprep.subr.mxu0 %v2946
        %v2948 = vand.u32 %v1608, 4294901760
        %2949 = vmatpush1.msra.mxu0 %v2948
        %v2950 = vand.u32 %v1605, 4294901760
        %2951 = vmatprep.subr.mxu0 %v2950
        %v2952 = vand.u32 %v1604, 4294901760
        %2953 = vmatpush1.msra.mxu0 %v2952
        %v2954 = vand.u32 %v1601, 4294901760
        %2955 = vmatprep.subr.mxu0 %v2954
        %v2956 = vand.u32 %v1600, 4294901760
        %2957 = vmatpush1.msra.mxu0 %v2956
        %v2958 = vand.u32 %v1597, 4294901760
        %2959 = vmatprep.subr.mxu0 %v2958
        %v2960 = vand.u32 %v1596, 4294901760
        %2961 = vmatpush1.msra.mxu0 %v2960
        %2962 = vmatprep.subr.mxu0 0.0
        %2963 = vmatpush2.msra.mxu0 0.0
        %2964 = vmatprep.subr.mxu0 0.0
        %2965 = vmatpush2.msra.mxu0 0.0
        %2966 = vmatprep.subr.mxu0 0.0
        %2967 = vmatpush2.msra.mxu0 0.0
        %2968 = vmatprep.subr.mxu0 0.0
        %2969 = vmatpush2.msra.mxu0 0.0
        %2970 = vmatprep.subr.mxu0 0.0
        %2971 = vmatpush2.msra.mxu0 0.0
        %2972 = vmatprep.subr.mxu0 0.0
        %2973 = vmatpush2.msra.mxu0 0.0
        %2974 = vmatprep.subr.mxu0 0.0
        %2975 = vmatpush2.msra.mxu0 0.0
        %2976 = vmatprep.subr.mxu0 0.0
        %2977 = vmatpush2.msra.mxu0 0.0
        %2978 = vmatprep.subr.mxu0 0.0
        %2979 = vmatpush2.msra.mxu0 0.0
        %2980 = vmatprep.subr.mxu0 0.0
        %2981 = vmatpush2.msra.mxu0 0.0
        %2982 = vmatprep.subr.mxu0 0.0
        %2983 = vmatpush2.msra.mxu0 0.0
        %2984 = vmatprep.subr.mxu0 0.0
        %2985 = vmatpush2.msra.mxu0 0.0
        %2986 = vmatprep.subr.mxu0 0.0
        %2987 = vmatpush2.msra.mxu0 0.0
        %2988 = vmatprep.subr.mxu0 0.0
        %2989 = vmatpush2.msra.mxu0 0.0
        %2990 = vmatprep.subr.mxu0 0.0
        %2991 = vmatpush2.msra.mxu0 0.0
        %2992 = vmatprep.subr.mxu0 0.0
        %2993 = vmatpush2.msra.mxu0 0.0
        %2994 = vmatprep.mubr.f32.mxu0 0.0
        %v2995 = vand.u32 %v1632, 4294901760
        %2996 = vmatmul.mubr.f32.gmra.mxu0 %v2995
        %v2997 = vpop.f32.mrf.mxu0
        %v2998 = vadd.f32 %v2897, %v2997
        %v2999 = vpop.f32.mrf.mxu0
        %v3000 = vadd.f32 %v2899, %v2999
        %3001 = vmatprep.mubr.f32.mxu0 0.0
        %v3002 = vand.u32 %v1635, 4294901760
        %3003 = vmatmul.mubr.f32.gmra.mxu0 %v3002
        %v3004 = vpop.f32.mrf.mxu0
        %v3005 = vadd.f32 %v2904, %v3004
        %v3006 = vpop.f32.mrf.mxu0
        %v3007 = vadd.f32 %v2906, %v3006
        %3008 = vmatprep.mubr.f32.mxu0 0.0
        %v3009 = vand.u32 %v1638, 4294901760
        %3010 = vmatmul.mubr.f32.gmra.mxu0 %v3009
        %v3011 = vpop.f32.mrf.mxu0
        %v3012 = vadd.f32 %v2911, %v3011
        %v3013 = vpop.f32.mrf.mxu0
        %v3014 = vadd.f32 %v2913, %v3013
        %3015 = vmatprep.mubr.f32.mxu0 0.0
        %v3016 = vand.u32 %v1641, 4294901760
        %3017 = vmatmul.mubr.f32.gmra.mxu0 %v3016
        %v3018 = vpop.f32.mrf.mxu0
        %v3019 = vadd.f32 %v2918, %v3018
        %v3020 = vpop.f32.mrf.mxu0
        %v3021 = vadd.f32 %v2920, %v3020
        %3022 = vdwg.mxu0
        %v3023 = vtanh.pop %v2308
        %v3024 = vtanh.pop %v2310
        %v3025 = vtanh.pop %v2998
        %v3026 = vtanh.pop %v3000
        %v3027 = vtanh.pop %v2315
        %v3028 = vtanh.pop %v2317
        %v3029 = vtanh.pop %v3005
        %v3030 = vtanh.pop %v3007
        %v3031 = vtanh.pop %v2322
        %v3032 = vtanh.pop %v2324
        %v3033 = vtanh.pop %v3012
        %v3034 = vtanh.pop %v3014
        %v3035 = vtanh.pop %v2329
        %v3036 = vtanh.pop %v2331
        %v3037 = vtanh.pop %v3019
        %v3038 = vtanh.pop %v3021
        %3040 = vset.pattern.permute.xlu0 0
        %3041 = vperm.xlu0 %3040, %v321
        %v3042 = vpop.permute.xlu0 %3041
        %v3045 = vsel %vm1630, %v320, 0
        %3047 = vmatprep.subr.mxu0 0.0
        %3048 = vmatpush1.msra.mxu0 0.0
        %3049 = vmatprep.subr.mxu0 0.0
        %3050 = vmatpush1.msra.mxu0 0.0
        %3051 = vmatprep.subr.mxu0 0.0
        %3052 = vmatpush1.msra.mxu0 0.0
        %3053 = vmatprep.subr.mxu0 0.0
        %3054 = vmatpush1.msra.mxu0 0.0
        %3055 = vmatprep.subr.mxu0 0.0
        %3056 = vmatpush1.msra.mxu0 0.0
        %3057 = vmatprep.subr.mxu0 0.0
        %3058 = vmatpush1.msra.mxu0 0.0
        %3059 = vmatprep.subr.mxu0 0.0
        %3060 = vmatpush1.msra.mxu0 0.0
        %3061 = vmatprep.subr.mxu0 0.0
        %3062 = vmatpush1.msra.mxu0 0.0
        %3063 = vmatprep.subr.mxu0 0.0
        %3064 = vmatpush1.msra.mxu0 0.0
        %3065 = vmatprep.subr.mxu0 0.0
        %3066 = vmatpush1.msra.mxu0 0.0
        %3067 = vmatprep.subr.mxu0 0.0
        %3068 = vmatpush1.msra.mxu0 0.0
        %3069 = vmatprep.subr.mxu0 0.0
        %3070 = vmatpush1.msra.mxu0 0.0
        %v3071 = vand.u32 %v3036, 4294901760
        %3072 = vmatprep.subr.mxu0 %v3071
        %v3073 = vand.u32 %v3035, 4294901760
        %3074 = vmatpush1.msra.mxu0 %v3073
        %v3075 = vand.u32 %v3032, 4294901760
        %3076 = vmatprep.subr.mxu0 %v3075
        %v3077 = vand.u32 %v3031, 4294901760
        %3078 = vmatpush1.msra.mxu0 %v3077
        %v3079 = vand.u32 %v3028, 4294901760
        %3080 = vmatprep.subr.mxu0 %v3079
        %v3081 = vand.u32 %v3027, 4294901760
        %3082 = vmatpush1.msra.mxu0 %v3081
        %v3083 = vand.u32 %v3024, 4294901760
        %3084 = vmatprep.subr.mxu0 %v3083
        %v3085 = vand.u32 %v3023, 4294901760
        %3086 = vmatpush1.msra.mxu0 %v3085
        %3087 = vmatprep.subr.mxu0 0.0
        %3088 = vmatpush2.msra.mxu0 0.0
        %3089 = vmatprep.subr.mxu0 0.0
        %3090 = vmatpush2.msra.mxu0 0.0
        %3091 = vmatprep.subr.mxu0 0.0
        %3092 = vmatpush2.msra.mxu0 0.0
        %3093 = vmatprep.subr.mxu0 0.0
        %3094 = vmatpush2.msra.mxu0 0.0
        %3095 = vmatprep.subr.mxu0 0.0
        %3096 = vmatpush2.msra.mxu0 0.0
        %3097 = vmatprep.subr.mxu0 0.0
        %3098 = vmatpush2.msra.mxu0 0.0
        %3099 = vmatprep.subr.mxu0 0.0
        %3100 = vmatpush2.msra.mxu0 0.0
        %3101 = vmatprep.subr.mxu0 0.0
        %3102 = vmatpush2.msra.mxu0 0.0
        %3103 = vmatprep.subr.mxu0 0.0
        %3104 = vmatpush2.msra.mxu0 0.0
        %3105 = vmatprep.subr.mxu0 0.0
        %3106 = vmatpush2.msra.mxu0 0.0
        %3107 = vmatprep.subr.mxu0 0.0
        %3108 = vmatpush2.msra.mxu0 0.0
        %3109 = vmatprep.subr.mxu0 0.0
        %3110 = vmatpush2.msra.mxu0 0.0
        %3111 = vmatprep.subr.mxu0 0.0
        %3112 = vmatpush2.msra.mxu0 0.0
        %3113 = vmatprep.subr.mxu0 0.0
        %3114 = vmatpush2.msra.mxu0 0.0
        %3115 = vmatprep.subr.mxu0 0.0
        %3116 = vmatpush2.msra.mxu0 0.0
        %3117 = vmatprep.subr.mxu0 0.0
        %3118 = vmatpush2.msra.mxu0 0.0
        %3119 = vmatprep.mubr.f32.mxu0 0.0
        %v3120 = vand.u32 %v3045, 4294901760
        %v3121 = vsub.f32 %v3045, %v3120
        %v3122 = vand.u32 %v3121, 4294901760
        %v3123 = vsub.f32 %v3121, %v3122
        %v3124 = vand.u32 %v3123, 4294901760
        %3125 = vmatmul.mubr.f32.gmra.mxu0 %v3124
        %v3126 = vpop.f32.mrf.mxu0
        %v3127 = vadd.f32 %v3042, %v3126
        %v3128 = vpop.f32.mrf.mxu0
        %v3129 = vadd.f32 %v3042, %v3128
        %3130 = vdwg.mxu0
        %3131 = vmatprep.subr.mxu0 0.0
        %3132 = vmatpush1.msra.mxu0 0.0
        %3133 = vmatprep.subr.mxu0 0.0
        %3134 = vmatpush1.msra.mxu0 0.0
        %3135 = vmatprep.subr.mxu0 0.0
        %3136 = vmatpush1.msra.mxu0 0.0
        %3137 = vmatprep.subr.mxu0 0.0
        %3138 = vmatpush1.msra.mxu0 0.0
        %3139 = vmatprep.subr.mxu0 0.0
        %3140 = vmatpush1.msra.mxu0 0.0
        %3141 = vmatprep.subr.mxu0 0.0
        %3142 = vmatpush1.msra.mxu0 0.0
        %3143 = vmatprep.subr.mxu0 0.0
        %3144 = vmatpush1.msra.mxu0 0.0
        %3145 = vmatprep.subr.mxu0 0.0
        %3146 = vmatpush1.msra.mxu0 0.0
        %3147 = vmatprep.subr.mxu0 0.0
        %3148 = vmatpush1.msra.mxu0 0.0
        %3149 = vmatprep.subr.mxu0 0.0
        %3150 = vmatpush1.msra.mxu0 0.0
        %3151 = vmatprep.subr.mxu0 0.0
        %3152 = vmatpush1.msra.mxu0 0.0
        %3153 = vmatprep.subr.mxu0 0.0
        %3154 = vmatpush1.msra.mxu0 0.0
        %v3155 = vand.u32 %v3036, 4294901760
        %v3156 = vsub.f32 %v3036, %v3155
        %v3157 = vand.u32 %v3156, 4294901760
        %v3158 = vsub.f32 %v3156, %v3157
        %v3159 = vand.u32 %v3158, 4294901760
        %3160 = vmatprep.subr.mxu0 %v3159
        %v3161 = vand.u32 %v3035, 4294901760
        %v3162 = vsub.f32 %v3035, %v3161
        %v3163 = vand.u32 %v3162, 4294901760
        %v3164 = vsub.f32 %v3162, %v3163
        %v3165 = vand.u32 %v3164, 4294901760
        %3166 = vmatpush1.msra.mxu0 %v3165
        %v3167 = vand.u32 %v3032, 4294901760
        %v3168 = vsub.f32 %v3032, %v3167
        %v3169 = vand.u32 %v3168, 4294901760
        %v3170 = vsub.f32 %v3168, %v3169
        %v3171 = vand.u32 %v3170, 4294901760
        %3172 = vmatprep.subr.mxu0 %v3171
        %v3173 = vand.u32 %v3031, 4294901760
        %v3174 = vsub.f32 %v3031, %v3173
        %v3175 = vand.u32 %v3174, 4294901760
        %v3176 = vsub.f32 %v3174, %v3175
        %v3177 = vand.u32 %v3176, 4294901760
        %3178 = vmatpush1.msra.mxu0 %v3177
        %v3179 = vand.u32 %v3028, 4294901760
        %v3180 = vsub.f32 %v3028, %v3179
        %v3181 = vand.u32 %v3180, 4294901760
        %v3182 = vsub.f32 %v3180, %v3181
        %v3183 = vand.u32 %v3182, 4294901760
        %3184 = vmatprep.subr.mxu0 %v3183
        %v3185 = vand.u32 %v3027, 4294901760
        %v3186 = vsub.f32 %v3027, %v3185
        %v3187 = vand.u32 %v3186, 4294901760
        %v3188 = vsub.f32 %v3186, %v3187
        %v3189 = vand.u32 %v3188, 4294901760
        %3190 = vmatpush1.msra.mxu0 %v3189
        %v3191 = vand.u32 %v3024, 4294901760
        %v3192 = vsub.f32 %v3024, %v3191
        %v3193 = vand.u32 %v3192, 4294901760
        %v3194 = vsub.f32 %v3192, %v3193
        %v3195 = vand.u32 %v3194, 4294901760
        %3196 = vmatprep.subr.mxu0 %v3195
        %v3197 = vand.u32 %v3023, 4294901760
        %v3198 = vsub.f32 %v3023, %v3197
        %v3199 = vand.u32 %v3198, 4294901760
        %v3200 = vsub.f32 %v3198, %v3199
        %v3201 = vand.u32 %v3200, 4294901760
        %3202 = vmatpush1.msra.mxu0 %v3201
        %3203 = vmatprep.subr.mxu0 0.0
        %3204 = vmatpush2.msra.mxu0 0.0
        %3205 = vmatprep.subr.mxu0 0.0
        %3206 = vmatpush2.msra.mxu0 0.0
        %3207 = vmatprep.subr.mxu0 0.0
        %3208 = vmatpush2.msra.mxu0 0.0
        %3209 = vmatprep.subr.mxu0 0.0
        %3210 = vmatpush2.msra.mxu0 0.0
        %3211 = vmatprep.subr.mxu0 0.0
        %3212 = vmatpush2.msra.mxu0 0.0
        %3213 = vmatprep.subr.mxu0 0.0
        %3214 = vmatpush2.msra.mxu0 0.0
        %3215 = vmatprep.subr.mxu0 0.0
        %3216 = vmatpush2.msra.mxu0 0.0
        %3217 = vmatprep.subr.mxu0 0.0
        %3218 = vmatpush2.msra.mxu0 0.0
        %3219 = vmatprep.subr.mxu0 0.0
        %3220 = vmatpush2.msra.mxu0 0.0
        %3221 = vmatprep.subr.mxu0 0.0
        %3222 = vmatpush2.msra.mxu0 0.0
        %3223 = vmatprep.subr.mxu0 0.0
        %3224 = vmatpush2.msra.mxu0 0.0
        %3225 = vmatprep.subr.mxu0 0.0
        %3226 = vmatpush2.msra.mxu0 0.0
        %3227 = vmatprep.subr.mxu0 0.0
        %3228 = vmatpush2.msra.mxu0 0.0
        %3229 = vmatprep.subr.mxu0 0.0
        %3230 = vmatpush2.msra.mxu0 0.0
        %3231 = vmatprep.subr.mxu0 0.0
        %3232 = vmatpush2.msra.mxu0 0.0
        %3233 = vmatprep.subr.mxu0 0.0
        %3234 = vmatpush2.msra.mxu0 0.0
        %3235 = vmatprep.mubr.f32.mxu0 0.0
        %v3236 = vand.u32 %v3045, 4294901760
        %3237 = vmatmul.mubr.f32.gmra.mxu0 %v3236
        %v3238 = vpop.f32.mrf.mxu0
        %v3239 = vadd.f32 %v3127, %v3238
        %v3240 = vpop.f32.mrf.mxu0
        %v3241 = vadd.f32 %v3129, %v3240
        %3242 = vdwg.mxu0
        %3243 = vmatprep.subr.mxu0 0.0
        %3244 = vmatpush1.msra.mxu0 0.0
        %3245 = vmatprep.subr.mxu0 0.0
        %3246 = vmatpush1.msra.mxu0 0.0
        %3247 = vmatprep.subr.mxu0 0.0
        %3248 = vmatpush1.msra.mxu0 0.0
        %3249 = vmatprep.subr.mxu0 0.0
        %3250 = vmatpush1.msra.mxu0 0.0
        %3251 = vmatprep.subr.mxu0 0.0
        %3252 = vmatpush1.msra.mxu0 0.0
        %3253 = vmatprep.subr.mxu0 0.0
        %3254 = vmatpush1.msra.mxu0 0.0
        %3255 = vmatprep.subr.mxu0 0.0
        %3256 = vmatpush1.msra.mxu0 0.0
        %3257 = vmatprep.subr.mxu0 0.0
        %3258 = vmatpush1.msra.mxu0 0.0
        %3259 = vmatprep.subr.mxu0 0.0
        %3260 = vmatpush1.msra.mxu0 0.0
        %3261 = vmatprep.subr.mxu0 0.0
        %3262 = vmatpush1.msra.mxu0 0.0
        %3263 = vmatprep.subr.mxu0 0.0
        %3264 = vmatpush1.msra.mxu0 0.0
        %3265 = vmatprep.subr.mxu0 0.0
        %3266 = vmatpush1.msra.mxu0 0.0
        %v3267 = vand.u32 %v3036, 4294901760
        %v3268 = vsub.f32 %v3036, %v3267
        %3269 = vmatprep.subr.mxu0 %v3268
        %v3270 = vand.u32 %v3035, 4294901760
        %v3271 = vsub.f32 %v3035, %v3270
        %3272 = vmatpush1.msra.mxu0 %v3271
        %v3273 = vand.u32 %v3032, 4294901760
        %v3274 = vsub.f32 %v3032, %v3273
        %3275 = vmatprep.subr.mxu0 %v3274
        %v3276 = vand.u32 %v3031, 4294901760
        %v3277 = vsub.f32 %v3031, %v3276
        %3278 = vmatpush1.msra.mxu0 %v3277
        %v3279 = vand.u32 %v3028, 4294901760
        %v3280 = vsub.f32 %v3028, %v3279
        %3281 = vmatprep.subr.mxu0 %v3280
        %v3282 = vand.u32 %v3027, 4294901760
        %v3283 = vsub.f32 %v3027, %v3282
        %3284 = vmatpush1.msra.mxu0 %v3283
        %v3285 = vand.u32 %v3024, 4294901760
        %v3286 = vsub.f32 %v3024, %v3285
        %3287 = vmatprep.subr.mxu0 %v3286
        %v3288 = vand.u32 %v3023, 4294901760
        %v3289 = vsub.f32 %v3023, %v3288
        %3290 = vmatpush1.msra.mxu0 %v3289
        %3291 = vmatprep.subr.mxu0 0.0
        %3292 = vmatpush2.msra.mxu0 0.0
        %3293 = vmatprep.subr.mxu0 0.0
        %3294 = vmatpush2.msra.mxu0 0.0
        %3295 = vmatprep.subr.mxu0 0.0
        %3296 = vmatpush2.msra.mxu0 0.0
        %3297 = vmatprep.subr.mxu0 0.0
        %3298 = vmatpush2.msra.mxu0 0.0
        %3299 = vmatprep.subr.mxu0 0.0
        %3300 = vmatpush2.msra.mxu0 0.0
        %3301 = vmatprep.subr.mxu0 0.0
        %3302 = vmatpush2.msra.mxu0 0.0
        %3303 = vmatprep.subr.mxu0 0.0
        %3304 = vmatpush2.msra.mxu0 0.0
        %3305 = vmatprep.subr.mxu0 0.0
        %3306 = vmatpush2.msra.mxu0 0.0
        %3307 = vmatprep.subr.mxu0 0.0
        %3308 = vmatpush2.msra.mxu0 0.0
        %3309 = vmatprep.subr.mxu0 0.0
        %3310 = vmatpush2.msra.mxu0 0.0
        %3311 = vmatprep.subr.mxu0 0.0
        %3312 = vmatpush2.msra.mxu0 0.0
        %3313 = vmatprep.subr.mxu0 0.0
        %3314 = vmatpush2.msra.mxu0 0.0
        %3315 = vmatprep.subr.mxu0 0.0
        %3316 = vmatpush2.msra.mxu0 0.0
        %3317 = vmatprep.subr.mxu0 0.0
        %3318 = vmatpush2.msra.mxu0 0.0
        %3319 = vmatprep.subr.mxu0 0.0
        %3320 = vmatpush2.msra.mxu0 0.0
        %3321 = vmatprep.subr.mxu0 0.0
        %3322 = vmatpush2.msra.mxu0 0.0
        %3323 = vmatprep.mubr.f32.mxu0 0.0
        %v3324 = vand.u32 %v3045, 4294901760
        %v3325 = vsub.f32 %v3045, %v3324
        %3326 = vmatmul.mubr.f32.gmra.mxu0 %v3325
        %v3327 = vpop.f32.mrf.mxu0
        %v3328 = vadd.f32 %v3239, %v3327
        %v3329 = vpop.f32.mrf.mxu0
        %v3330 = vadd.f32 %v3241, %v3329
        %3331 = vdwg.mxu0
        %3332 = vmatprep.subr.mxu0 0.0
        %3333 = vmatpush1.msra.mxu0 0.0
        %3334 = vmatprep.subr.mxu0 0.0
        %3335 = vmatpush1.msra.mxu0 0.0
        %3336 = vmatprep.subr.mxu0 0.0
        %3337 = vmatpush1.msra.mxu0 0.0
        %3338 = vmatprep.subr.mxu0 0.0
        %3339 = vmatpush1.msra.mxu0 0.0
        %3340 = vmatprep.subr.mxu0 0.0
        %3341 = vmatpush1.msra.mxu0 0.0
        %3342 = vmatprep.subr.mxu0 0.0
        %3343 = vmatpush1.msra.mxu0 0.0
        %3344 = vmatprep.subr.mxu0 0.0
        %3345 = vmatpush1.msra.mxu0 0.0
        %3346 = vmatprep.subr.mxu0 0.0
        %3347 = vmatpush1.msra.mxu0 0.0
        %3348 = vmatprep.subr.mxu0 0.0
        %3349 = vmatpush1.msra.mxu0 0.0
        %3350 = vmatprep.subr.mxu0 0.0
        %3351 = vmatpush1.msra.mxu0 0.0
        %3352 = vmatprep.subr.mxu0 0.0
        %3353 = vmatpush1.msra.mxu0 0.0
        %3354 = vmatprep.subr.mxu0 0.0
        %3355 = vmatpush1.msra.mxu0 0.0
        %v3356 = vand.u32 %v3036, 4294901760
        %3357 = vmatprep.subr.mxu0 %v3356
        %v3358 = vand.u32 %v3035, 4294901760
        %3359 = vmatpush1.msra.mxu0 %v3358
        %v3360 = vand.u32 %v3032, 4294901760
        %3361 = vmatprep.subr.mxu0 %v3360
        %v3362 = vand.u32 %v3031, 4294901760
        %3363 = vmatpush1.msra.mxu0 %v3362
        %v3364 = vand.u32 %v3028, 4294901760
        %3365 = vmatprep.subr.mxu0 %v3364
        %v3366 = vand.u32 %v3027, 4294901760
        %3367 = vmatpush1.msra.mxu0 %v3366
        %v3368 = vand.u32 %v3024, 4294901760
        %3369 = vmatprep.subr.mxu0 %v3368
        %v3370 = vand.u32 %v3023, 4294901760
        %3371 = vmatpush1.msra.mxu0 %v3370
        %3372 = vmatprep.subr.mxu0 0.0
        %3373 = vmatpush2.msra.mxu0 0.0
        %3374 = vmatprep.subr.mxu0 0.0
        %3375 = vmatpush2.msra.mxu0 0.0
        %3376 = vmatprep.subr.mxu0 0.0
        %3377 = vmatpush2.msra.mxu0 0.0
        %3378 = vmatprep.subr.mxu0 0.0
        %3379 = vmatpush2.msra.mxu0 0.0
        %3380 = vmatprep.subr.mxu0 0.0
        %3381 = vmatpush2.msra.mxu0 0.0
        %3382 = vmatprep.subr.mxu0 0.0
        %3383 = vmatpush2.msra.mxu0 0.0
        %3384 = vmatprep.subr.mxu0 0.0
        %3385 = vmatpush2.msra.mxu0 0.0
        %3386 = vmatprep.subr.mxu0 0.0
        %3387 = vmatpush2.msra.mxu0 0.0
        %3388 = vmatprep.subr.mxu0 0.0
        %3389 = vmatpush2.msra.mxu0 0.0
        %3390 = vmatprep.subr.mxu0 0.0
        %3391 = vmatpush2.msra.mxu0 0.0
        %3392 = vmatprep.subr.mxu0 0.0
        %3393 = vmatpush2.msra.mxu0 0.0
        %3394 = vmatprep.subr.mxu0 0.0
        %3395 = vmatpush2.msra.mxu0 0.0
        %3396 = vmatprep.subr.mxu0 0.0
        %3397 = vmatpush2.msra.mxu0 0.0
        %3398 = vmatprep.subr.mxu0 0.0
        %3399 = vmatpush2.msra.mxu0 0.0
        %3400 = vmatprep.subr.mxu0 0.0
        %3401 = vmatpush2.msra.mxu0 0.0
        %3402 = vmatprep.subr.mxu0 0.0
        %3403 = vmatpush2.msra.mxu0 0.0
        %3404 = vmatprep.mubr.f32.mxu0 0.0
        %v3405 = vand.u32 %v3045, 4294901760
        %v3406 = vsub.f32 %v3045, %v3405
        %v3407 = vand.u32 %v3406, 4294901760
        %3408 = vmatmul.mubr.f32.gmra.mxu0 %v3407
        %v3409 = vpop.f32.mrf.mxu0
        %v3410 = vadd.f32 %v3328, %v3409
        %v3411 = vpop.f32.mrf.mxu0
        %v3412 = vadd.f32 %v3330, %v3411
        %3413 = vdwg.mxu0
        %3414 = vmatprep.subr.mxu0 0.0
        %3415 = vmatpush1.msra.mxu0 0.0
        %3416 = vmatprep.subr.mxu0 0.0
        %3417 = vmatpush1.msra.mxu0 0.0
        %3418 = vmatprep.subr.mxu0 0.0
        %3419 = vmatpush1.msra.mxu0 0.0
        %3420 = vmatprep.subr.mxu0 0.0
        %3421 = vmatpush1.msra.mxu0 0.0
        %3422 = vmatprep.subr.mxu0 0.0
        %3423 = vmatpush1.msra.mxu0 0.0
        %3424 = vmatprep.subr.mxu0 0.0
        %3425 = vmatpush1.msra.mxu0 0.0
        %3426 = vmatprep.subr.mxu0 0.0
        %3427 = vmatpush1.msra.mxu0 0.0
        %3428 = vmatprep.subr.mxu0 0.0
        %3429 = vmatpush1.msra.mxu0 0.0
        %3430 = vmatprep.subr.mxu0 0.0
        %3431 = vmatpush1.msra.mxu0 0.0
        %3432 = vmatprep.subr.mxu0 0.0
        %3433 = vmatpush1.msra.mxu0 0.0
        %3434 = vmatprep.subr.mxu0 0.0
        %3435 = vmatpush1.msra.mxu0 0.0
        %3436 = vmatprep.subr.mxu0 0.0
        %3437 = vmatpush1.msra.mxu0 0.0
        %v3438 = vand.u32 %v3036, 4294901760
        %v3439 = vsub.f32 %v3036, %v3438
        %v3440 = vand.u32 %v3439, 4294901760
        %3441 = vmatprep.subr.mxu0 %v3440
        %v3442 = vand.u32 %v3035, 4294901760
        %v3443 = vsub.f32 %v3035, %v3442
        %v3444 = vand.u32 %v3443, 4294901760
        %3445 = vmatpush1.msra.mxu0 %v3444
        %v3446 = vand.u32 %v3032, 4294901760
        %v3447 = vsub.f32 %v3032, %v3446
        %v3448 = vand.u32 %v3447, 4294901760
        %3449 = vmatprep.subr.mxu0 %v3448
        %v3450 = vand.u32 %v3031, 4294901760
        %v3451 = vsub.f32 %v3031, %v3450
        %v3452 = vand.u32 %v3451, 4294901760
        %3453 = vmatpush1.msra.mxu0 %v3452
        %v3454 = vand.u32 %v3028, 4294901760
        %v3455 = vsub.f32 %v3028, %v3454
        %v3456 = vand.u32 %v3455, 4294901760
        %3457 = vmatprep.subr.mxu0 %v3456
        %v3458 = vand.u32 %v3027, 4294901760
        %v3459 = vsub.f32 %v3027, %v3458
        %v3460 = vand.u32 %v3459, 4294901760
        %3461 = vmatpush1.msra.mxu0 %v3460
        %v3462 = vand.u32 %v3024, 4294901760
        %v3463 = vsub.f32 %v3024, %v3462
        %v3464 = vand.u32 %v3463, 4294901760
        %3465 = vmatprep.subr.mxu0 %v3464
        %v3466 = vand.u32 %v3023, 4294901760
        %v3467 = vsub.f32 %v3023, %v3466
        %v3468 = vand.u32 %v3467, 4294901760
        %3469 = vmatpush1.msra.mxu0 %v3468
        %3470 = vmatprep.subr.mxu0 0.0
        %3471 = vmatpush2.msra.mxu0 0.0
        %3472 = vmatprep.subr.mxu0 0.0
        %3473 = vmatpush2.msra.mxu0 0.0
        %3474 = vmatprep.subr.mxu0 0.0
        %3475 = vmatpush2.msra.mxu0 0.0
        %3476 = vmatprep.subr.mxu0 0.0
        %3477 = vmatpush2.msra.mxu0 0.0
        %3478 = vmatprep.subr.mxu0 0.0
        %3479 = vmatpush2.msra.mxu0 0.0
        %3480 = vmatprep.subr.mxu0 0.0
        %3481 = vmatpush2.msra.mxu0 0.0
        %3482 = vmatprep.subr.mxu0 0.0
        %3483 = vmatpush2.msra.mxu0 0.0
        %3484 = vmatprep.subr.mxu0 0.0
        %3485 = vmatpush2.msra.mxu0 0.0
        %3486 = vmatprep.subr.mxu0 0.0
        %3487 = vmatpush2.msra.mxu0 0.0
        %3488 = vmatprep.subr.mxu0 0.0
        %3489 = vmatpush2.msra.mxu0 0.0
        %3490 = vmatprep.subr.mxu0 0.0
        %3491 = vmatpush2.msra.mxu0 0.0
        %3492 = vmatprep.subr.mxu0 0.0
        %3493 = vmatpush2.msra.mxu0 0.0
        %3494 = vmatprep.subr.mxu0 0.0
        %3495 = vmatpush2.msra.mxu0 0.0
        %3496 = vmatprep.subr.mxu0 0.0
        %3497 = vmatpush2.msra.mxu0 0.0
        %3498 = vmatprep.subr.mxu0 0.0
        %3499 = vmatpush2.msra.mxu0 0.0
        %3500 = vmatprep.subr.mxu0 0.0
        %3501 = vmatpush2.msra.mxu0 0.0
        %3502 = vmatprep.mubr.f32.mxu0 0.0
        %v3503 = vand.u32 %v3045, 4294901760
        %3504 = vmatmul.mubr.f32.gmra.mxu0 %v3503
        %v3505 = vpop.f32.mrf.mxu0
        %v3506 = vadd.f32 %v3410, %v3505
        %v3507 = vpop.f32.mrf.mxu0
        %v3508 = vadd.f32 %v3412, %v3507
        %3509 = vdwg.mxu0
        %3510 = vmatprep.subr.mxu0 0.0
        %3511 = vmatpush1.msra.mxu0 0.0
        %3512 = vmatprep.subr.mxu0 0.0
        %3513 = vmatpush1.msra.mxu0 0.0
        %3514 = vmatprep.subr.mxu0 0.0
        %3515 = vmatpush1.msra.mxu0 0.0
        %3516 = vmatprep.subr.mxu0 0.0
        %3517 = vmatpush1.msra.mxu0 0.0
        %3518 = vmatprep.subr.mxu0 0.0
        %3519 = vmatpush1.msra.mxu0 0.0
        %3520 = vmatprep.subr.mxu0 0.0
        %3521 = vmatpush1.msra.mxu0 0.0
        %3522 = vmatprep.subr.mxu0 0.0
        %3523 = vmatpush1.msra.mxu0 0.0
        %3524 = vmatprep.subr.mxu0 0.0
        %3525 = vmatpush1.msra.mxu0 0.0
        %3526 = vmatprep.subr.mxu0 0.0
        %3527 = vmatpush1.msra.mxu0 0.0
        %3528 = vmatprep.subr.mxu0 0.0
        %3529 = vmatpush1.msra.mxu0 0.0
        %3530 = vmatprep.subr.mxu0 0.0
        %3531 = vmatpush1.msra.mxu0 0.0
        %3532 = vmatprep.subr.mxu0 0.0
        %3533 = vmatpush1.msra.mxu0 0.0
        %v3534 = vand.u32 %v3036, 4294901760
        %3535 = vmatprep.subr.mxu0 %v3534
        %v3536 = vand.u32 %v3035, 4294901760
        %3537 = vmatpush1.msra.mxu0 %v3536
        %v3538 = vand.u32 %v3032, 4294901760
        %3539 = vmatprep.subr.mxu0 %v3538
        %v3540 = vand.u32 %v3031, 4294901760
        %3541 = vmatpush1.msra.mxu0 %v3540
        %v3542 = vand.u32 %v3028, 4294901760
        %3543 = vmatprep.subr.mxu0 %v3542
        %v3544 = vand.u32 %v3027, 4294901760
        %3545 = vmatpush1.msra.mxu0 %v3544
        %v3546 = vand.u32 %v3024, 4294901760
        %3547 = vmatprep.subr.mxu0 %v3546
        %v3548 = vand.u32 %v3023, 4294901760
        %3549 = vmatpush1.msra.mxu0 %v3548
        %3550 = vmatprep.subr.mxu0 0.0
        %3551 = vmatpush2.msra.mxu0 0.0
        %3552 = vmatprep.subr.mxu0 0.0
        %3553 = vmatpush2.msra.mxu0 0.0
        %3554 = vmatprep.subr.mxu0 0.0
        %3555 = vmatpush2.msra.mxu0 0.0
        %3556 = vmatprep.subr.mxu0 0.0
        %3557 = vmatpush2.msra.mxu0 0.0
        %3558 = vmatprep.subr.mxu0 0.0
        %3559 = vmatpush2.msra.mxu0 0.0
        %3560 = vmatprep.subr.mxu0 0.0
        %3561 = vmatpush2.msra.mxu0 0.0
        %3562 = vmatprep.subr.mxu0 0.0
        %3563 = vmatpush2.msra.mxu0 0.0
        %3564 = vmatprep.subr.mxu0 0.0
        %3565 = vmatpush2.msra.mxu0 0.0
        %3566 = vmatprep.subr.mxu0 0.0
        %3567 = vmatpush2.msra.mxu0 0.0
        %3568 = vmatprep.subr.mxu0 0.0
        %3569 = vmatpush2.msra.mxu0 0.0
        %3570 = vmatprep.subr.mxu0 0.0
        %3571 = vmatpush2.msra.mxu0 0.0
        %3572 = vmatprep.subr.mxu0 0.0
        %3573 = vmatpush2.msra.mxu0 0.0
        %3574 = vmatprep.subr.mxu0 0.0
        %3575 = vmatpush2.msra.mxu0 0.0
        %3576 = vmatprep.subr.mxu0 0.0
        %3577 = vmatpush2.msra.mxu0 0.0
        %3578 = vmatprep.subr.mxu0 0.0
        %3579 = vmatpush2.msra.mxu0 0.0
        %3580 = vmatprep.subr.mxu0 0.0
        %3581 = vmatpush2.msra.mxu0 0.0
        %3582 = vmatprep.mubr.f32.mxu0 0.0
        %v3583 = vand.u32 %v3045, 4294901760
        %3584 = vmatmul.mubr.f32.gmra.mxu0 %v3583
        %v3585 = vpop.f32.mrf.mxu0
        %v3586 = vadd.f32 %v3506, %v3585
        %v3587 = vpop.f32.mrf.mxu0
        %v3588 = vadd.f32 %v3508, %v3587
        %3589 = vdwg.mxu0
        %3590 = vmatprep.subr.mxu0 0.0
        %3591 = vmatpush1.msra.mxu0 0.0
        %3592 = vmatprep.subr.mxu0 0.0
        %3593 = vmatpush1.msra.mxu0 0.0
        %3594 = vmatprep.subr.mxu0 0.0
        %3595 = vmatpush1.msra.mxu0 0.0
        %3596 = vmatprep.subr.mxu0 0.0
        %3597 = vmatpush1.msra.mxu0 0.0
        %3598 = vmatprep.subr.mxu0 0.0
        %3599 = vmatpush1.msra.mxu0 0.0
        %3600 = vmatprep.subr.mxu0 0.0
        %3601 = vmatpush1.msra.mxu0 0.0
        %3602 = vmatprep.subr.mxu0 0.0
        %3603 = vmatpush1.msra.mxu0 0.0
        %3604 = vmatprep.subr.mxu0 0.0
        %3605 = vmatpush1.msra.mxu0 0.0
        %3606 = vmatprep.subr.mxu0 0.0
        %3607 = vmatpush1.msra.mxu0 0.0
        %3608 = vmatprep.subr.mxu0 0.0
        %3609 = vmatpush1.msra.mxu0 0.0
        %3610 = vmatprep.subr.mxu0 0.0
        %3611 = vmatpush1.msra.mxu0 0.0
        %3612 = vmatprep.subr.mxu0 0.0
        %3613 = vmatpush1.msra.mxu0 0.0
        %v3614 = vand.u32 %v3038, 4294901760
        %3615 = vmatprep.subr.mxu0 %v3614
        %v3616 = vand.u32 %v3037, 4294901760
        %3617 = vmatpush1.msra.mxu0 %v3616
        %v3618 = vand.u32 %v3034, 4294901760
        %3619 = vmatprep.subr.mxu0 %v3618
        %v3620 = vand.u32 %v3033, 4294901760
        %3621 = vmatpush1.msra.mxu0 %v3620
        %v3622 = vand.u32 %v3030, 4294901760
        %3623 = vmatprep.subr.mxu0 %v3622
        %v3624 = vand.u32 %v3029, 4294901760
        %3625 = vmatpush1.msra.mxu0 %v3624
        %v3626 = vand.u32 %v3026, 4294901760
        %3627 = vmatprep.subr.mxu0 %v3626
        %v3628 = vand.u32 %v3025, 4294901760
        %3629 = vmatpush1.msra.mxu0 %v3628
        %3630 = vmatprep.subr.mxu0 0.0
        %3631 = vmatpush2.msra.mxu0 0.0
        %3632 = vmatprep.subr.mxu0 0.0
        %3633 = vmatpush2.msra.mxu0 0.0
        %3634 = vmatprep.subr.mxu0 0.0
        %3635 = vmatpush2.msra.mxu0 0.0
        %3636 = vmatprep.subr.mxu0 0.0
        %3637 = vmatpush2.msra.mxu0 0.0
        %3638 = vmatprep.subr.mxu0 0.0
        %3639 = vmatpush2.msra.mxu0 0.0
        %3640 = vmatprep.subr.mxu0 0.0
        %3641 = vmatpush2.msra.mxu0 0.0
        %3642 = vmatprep.subr.mxu0 0.0
        %3643 = vmatpush2.msra.mxu0 0.0
        %3644 = vmatprep.subr.mxu0 0.0
        %3645 = vmatpush2.msra.mxu0 0.0
        %3646 = vmatprep.subr.mxu0 0.0
        %3647 = vmatpush2.msra.mxu0 0.0
        %3648 = vmatprep.subr.mxu0 0.0
        %3649 = vmatpush2.msra.mxu0 0.0
        %3650 = vmatprep.subr.mxu0 0.0
        %3651 = vmatpush2.msra.mxu0 0.0
        %3652 = vmatprep.subr.mxu0 0.0
        %3653 = vmatpush2.msra.mxu0 0.0
        %3654 = vmatprep.subr.mxu0 0.0
        %3655 = vmatpush2.msra.mxu0 0.0
        %3656 = vmatprep.subr.mxu0 0.0
        %3657 = vmatpush2.msra.mxu0 0.0
        %3658 = vmatprep.subr.mxu0 0.0
        %3659 = vmatpush2.msra.mxu0 0.0
        %3660 = vmatprep.subr.mxu0 0.0
        %3661 = vmatpush2.msra.mxu0 0.0
        %3662 = vmatprep.mubr.f32.mxu0 0.0
        %v3663 = vand.u32 %v3045, 4294901760
        %v3664 = vsub.f32 %v3045, %v3663
        %v3665 = vand.u32 %v3664, 4294901760
        %v3666 = vsub.f32 %v3664, %v3665
        %v3667 = vand.u32 %v3666, 4294901760
        %3668 = vmatmul.mubr.f32.gmra.mxu0 %v3667
        %v3669 = vpop.f32.mrf.mxu0
        %v3670 = vadd.f32 %v3042, %v3669
        %v3671 = vpop.f32.mrf.mxu0
        %v3672 = vadd.f32 %v3042, %v3671
        %3673 = vdwg.mxu0
        %3674 = vmatprep.subr.mxu0 0.0
        %3675 = vmatpush1.msra.mxu0 0.0
        %3676 = vmatprep.subr.mxu0 0.0
        %3677 = vmatpush1.msra.mxu0 0.0
        %3678 = vmatprep.subr.mxu0 0.0
        %3679 = vmatpush1.msra.mxu0 0.0
        %3680 = vmatprep.subr.mxu0 0.0
        %3681 = vmatpush1.msra.mxu0 0.0
        %3682 = vmatprep.subr.mxu0 0.0
        %3683 = vmatpush1.msra.mxu0 0.0
        %3684 = vmatprep.subr.mxu0 0.0
        %3685 = vmatpush1.msra.mxu0 0.0
        %3686 = vmatprep.subr.mxu0 0.0
        %3687 = vmatpush1.msra.mxu0 0.0
        %3688 = vmatprep.subr.mxu0 0.0
        %3689 = vmatpush1.msra.mxu0 0.0
        %3690 = vmatprep.subr.mxu0 0.0
        %3691 = vmatpush1.msra.mxu0 0.0
        %3692 = vmatprep.subr.mxu0 0.0
        %3693 = vmatpush1.msra.mxu0 0.0
        %3694 = vmatprep.subr.mxu0 0.0
        %3695 = vmatpush1.msra.mxu0 0.0
        %3696 = vmatprep.subr.mxu0 0.0
        %3697 = vmatpush1.msra.mxu0 0.0
        %v3698 = vand.u32 %v3038, 4294901760
        %v3699 = vsub.f32 %v3038, %v3698
        %v3700 = vand.u32 %v3699, 4294901760
        %v3701 = vsub.f32 %v3699, %v3700
        %v3702 = vand.u32 %v3701, 4294901760
        %3703 = vmatprep.subr.mxu0 %v3702
        %v3704 = vand.u32 %v3037, 4294901760
        %v3705 = vsub.f32 %v3037, %v3704
        %v3706 = vand.u32 %v3705, 4294901760
        %v3707 = vsub.f32 %v3705, %v3706
        %v3708 = vand.u32 %v3707, 4294901760
        %3709 = vmatpush1.msra.mxu0 %v3708
        %v3710 = vand.u32 %v3034, 4294901760
        %v3711 = vsub.f32 %v3034, %v3710
        %v3712 = vand.u32 %v3711, 4294901760
        %v3713 = vsub.f32 %v3711, %v3712
        %v3714 = vand.u32 %v3713, 4294901760
        %3715 = vmatprep.subr.mxu0 %v3714
        %v3716 = vand.u32 %v3033, 4294901760
        %v3717 = vsub.f32 %v3033, %v3716
        %v3718 = vand.u32 %v3717, 4294901760
        %v3719 = vsub.f32 %v3717, %v3718
        %v3720 = vand.u32 %v3719, 4294901760
        %3721 = vmatpush1.msra.mxu0 %v3720
        %v3722 = vand.u32 %v3030, 4294901760
        %v3723 = vsub.f32 %v3030, %v3722
        %v3724 = vand.u32 %v3723, 4294901760
        %v3725 = vsub.f32 %v3723, %v3724
        %v3726 = vand.u32 %v3725, 4294901760
        %3727 = vmatprep.subr.mxu0 %v3726
        %v3728 = vand.u32 %v3029, 4294901760
        %v3729 = vsub.f32 %v3029, %v3728
        %v3730 = vand.u32 %v3729, 4294901760
        %v3731 = vsub.f32 %v3729, %v3730
        %v3732 = vand.u32 %v3731, 4294901760
        %3733 = vmatpush1.msra.mxu0 %v3732
        %v3734 = vand.u32 %v3026, 4294901760
        %v3735 = vsub.f32 %v3026, %v3734
        %v3736 = vand.u32 %v3735, 4294901760
        %v3737 = vsub.f32 %v3735, %v3736
        %v3738 = vand.u32 %v3737, 4294901760
        %3739 = vmatprep.subr.mxu0 %v3738
        %v3740 = vand.u32 %v3025, 4294901760
        %v3741 = vsub.f32 %v3025, %v3740
        %v3742 = vand.u32 %v3741, 4294901760
        %v3743 = vsub.f32 %v3741, %v3742
        %v3744 = vand.u32 %v3743, 4294901760
        %3745 = vmatpush1.msra.mxu0 %v3744
        %3746 = vmatprep.subr.mxu0 0.0
        %3747 = vmatpush2.msra.mxu0 0.0
        %3748 = vmatprep.subr.mxu0 0.0
        %3749 = vmatpush2.msra.mxu0 0.0
        %3750 = vmatprep.subr.mxu0 0.0
        %3751 = vmatpush2.msra.mxu0 0.0
        %3752 = vmatprep.subr.mxu0 0.0
        %3753 = vmatpush2.msra.mxu0 0.0
        %3754 = vmatprep.subr.mxu0 0.0
        %3755 = vmatpush2.msra.mxu0 0.0
        %3756 = vmatprep.subr.mxu0 0.0
        %3757 = vmatpush2.msra.mxu0 0.0
        %3758 = vmatprep.subr.mxu0 0.0
        %3759 = vmatpush2.msra.mxu0 0.0
        %3760 = vmatprep.subr.mxu0 0.0
        %3761 = vmatpush2.msra.mxu0 0.0
        %3762 = vmatprep.subr.mxu0 0.0
        %3763 = vmatpush2.msra.mxu0 0.0
        %3764 = vmatprep.subr.mxu0 0.0
        %3765 = vmatpush2.msra.mxu0 0.0
        %3766 = vmatprep.subr.mxu0 0.0
        %3767 = vmatpush2.msra.mxu0 0.0
        %3768 = vmatprep.subr.mxu0 0.0
        %3769 = vmatpush2.msra.mxu0 0.0
        %3770 = vmatprep.subr.mxu0 0.0
        %3771 = vmatpush2.msra.mxu0 0.0
        %3772 = vmatprep.subr.mxu0 0.0
        %3773 = vmatpush2.msra.mxu0 0.0
        %3774 = vmatprep.subr.mxu0 0.0
        %3775 = vmatpush2.msra.mxu0 0.0
        %3776 = vmatprep.subr.mxu0 0.0
        %3777 = vmatpush2.msra.mxu0 0.0
        %3778 = vmatprep.mubr.f32.mxu0 0.0
        %v3779 = vand.u32 %v3045, 4294901760
        %3780 = vmatmul.mubr.f32.gmra.mxu0 %v3779
        %v3781 = vpop.f32.mrf.mxu0
        %v3782 = vadd.f32 %v3670, %v3781
        %v3783 = vpop.f32.mrf.mxu0
        %v3784 = vadd.f32 %v3672, %v3783
        %3785 = vdwg.mxu0
        %3786 = vmatprep.subr.mxu0 0.0
        %3787 = vmatpush1.msra.mxu0 0.0
        %3788 = vmatprep.subr.mxu0 0.0
        %3789 = vmatpush1.msra.mxu0 0.0
        %3790 = vmatprep.subr.mxu0 0.0
        %3791 = vmatpush1.msra.mxu0 0.0
        %3792 = vmatprep.subr.mxu0 0.0
        %3793 = vmatpush1.msra.mxu0 0.0
        %3794 = vmatprep.subr.mxu0 0.0
        %3795 = vmatpush1.msra.mxu0 0.0
        %3796 = vmatprep.subr.mxu0 0.0
        %3797 = vmatpush1.msra.mxu0 0.0
        %3798 = vmatprep.subr.mxu0 0.0
        %3799 = vmatpush1.msra.mxu0 0.0
        %3800 = vmatprep.subr.mxu0 0.0
        %3801 = vmatpush1.msra.mxu0 0.0
        %3802 = vmatprep.subr.mxu0 0.0
        %3803 = vmatpush1.msra.mxu0 0.0
        %3804 = vmatprep.subr.mxu0 0.0
        %3805 = vmatpush1.msra.mxu0 0.0
        %3806 = vmatprep.subr.mxu0 0.0
        %3807 = vmatpush1.msra.mxu0 0.0
        %3808 = vmatprep.subr.mxu0 0.0
        %3809 = vmatpush1.msra.mxu0 0.0
        %v3810 = vand.u32 %v3038, 4294901760
        %v3811 = vsub.f32 %v3038, %v3810
        %3812 = vmatprep.subr.mxu0 %v3811
        %v3813 = vand.u32 %v3037, 4294901760
        %v3814 = vsub.f32 %v3037, %v3813
        %3815 = vmatpush1.msra.mxu0 %v3814
        %v3816 = vand.u32 %v3034, 4294901760
        %v3817 = vsub.f32 %v3034, %v3816
        %3818 = vmatprep.subr.mxu0 %v3817
        %v3819 = vand.u32 %v3033, 4294901760
        %v3820 = vsub.f32 %v3033, %v3819
        %3821 = vmatpush1.msra.mxu0 %v3820
        %v3822 = vand.u32 %v3030, 4294901760
        %v3823 = vsub.f32 %v3030, %v3822
        %3824 = vmatprep.subr.mxu0 %v3823
        %v3825 = vand.u32 %v3029, 4294901760
        %v3826 = vsub.f32 %v3029, %v3825
        %3827 = vmatpush1.msra.mxu0 %v3826
        %v3828 = vand.u32 %v3026, 4294901760
        %v3829 = vsub.f32 %v3026, %v3828
        %3830 = vmatprep.subr.mxu0 %v3829
        %v3831 = vand.u32 %v3025, 4294901760
        %v3832 = vsub.f32 %v3025, %v3831
        %3833 = vmatpush1.msra.mxu0 %v3832
        %3834 = vmatprep.subr.mxu0 0.0
        %3835 = vmatpush2.msra.mxu0 0.0
        %3836 = vmatprep.subr.mxu0 0.0
        %3837 = vmatpush2.msra.mxu0 0.0
        %3838 = vmatprep.subr.mxu0 0.0
        %3839 = vmatpush2.msra.mxu0 0.0
        %3840 = vmatprep.subr.mxu0 0.0
        %3841 = vmatpush2.msra.mxu0 0.0
        %3842 = vmatprep.subr.mxu0 0.0
        %3843 = vmatpush2.msra.mxu0 0.0
        %3844 = vmatprep.subr.mxu0 0.0
        %3845 = vmatpush2.msra.mxu0 0.0
        %3846 = vmatprep.subr.mxu0 0.0
        %3847 = vmatpush2.msra.mxu0 0.0
        %3848 = vmatprep.subr.mxu0 0.0
        %3849 = vmatpush2.msra.mxu0 0.0
        %3850 = vmatprep.subr.mxu0 0.0
        %3851 = vmatpush2.msra.mxu0 0.0
        %3852 = vmatprep.subr.mxu0 0.0
        %3853 = vmatpush2.msra.mxu0 0.0
        %3854 = vmatprep.subr.mxu0 0.0
        %3855 = vmatpush2.msra.mxu0 0.0
        %3856 = vmatprep.subr.mxu0 0.0
        %3857 = vmatpush2.msra.mxu0 0.0
        %3858 = vmatprep.subr.mxu0 0.0
        %3859 = vmatpush2.msra.mxu0 0.0
        %3860 = vmatprep.subr.mxu0 0.0
        %3861 = vmatpush2.msra.mxu0 0.0
        %3862 = vmatprep.subr.mxu0 0.0
        %3863 = vmatpush2.msra.mxu0 0.0
        %3864 = vmatprep.subr.mxu0 0.0
        %3865 = vmatpush2.msra.mxu0 0.0
        %3866 = vmatprep.mubr.f32.mxu0 0.0
        %v3867 = vand.u32 %v3045, 4294901760
        %v3868 = vsub.f32 %v3045, %v3867
        %3869 = vmatmul.mubr.f32.gmra.mxu0 %v3868
        %v3870 = vpop.f32.mrf.mxu0
        %v3871 = vadd.f32 %v3782, %v3870
        %v3872 = vpop.f32.mrf.mxu0
        %v3873 = vadd.f32 %v3784, %v3872
        %3874 = vdwg.mxu0
        %3875 = vmatprep.subr.mxu0 0.0
        %3876 = vmatpush1.msra.mxu0 0.0
        %3877 = vmatprep.subr.mxu0 0.0
        %3878 = vmatpush1.msra.mxu0 0.0
        %3879 = vmatprep.subr.mxu0 0.0
        %3880 = vmatpush1.msra.mxu0 0.0
        %3881 = vmatprep.subr.mxu0 0.0
        %3882 = vmatpush1.msra.mxu0 0.0
        %3883 = vmatprep.subr.mxu0 0.0
        %3884 = vmatpush1.msra.mxu0 0.0
        %3885 = vmatprep.subr.mxu0 0.0
        %3886 = vmatpush1.msra.mxu0 0.0
        %3887 = vmatprep.subr.mxu0 0.0
        %3888 = vmatpush1.msra.mxu0 0.0
        %3889 = vmatprep.subr.mxu0 0.0
        %3890 = vmatpush1.msra.mxu0 0.0
        %3891 = vmatprep.subr.mxu0 0.0
        %3892 = vmatpush1.msra.mxu0 0.0
        %3893 = vmatprep.subr.mxu0 0.0
        %3894 = vmatpush1.msra.mxu0 0.0
        %3895 = vmatprep.subr.mxu0 0.0
        %3896 = vmatpush1.msra.mxu0 0.0
        %3897 = vmatprep.subr.mxu0 0.0
        %3898 = vmatpush1.msra.mxu0 0.0
        %v3899 = vand.u32 %v3038, 4294901760
        %3900 = vmatprep.subr.mxu0 %v3899
        %v3901 = vand.u32 %v3037, 4294901760
        %3902 = vmatpush1.msra.mxu0 %v3901
        %v3903 = vand.u32 %v3034, 4294901760
        %3904 = vmatprep.subr.mxu0 %v3903
        %v3905 = vand.u32 %v3033, 4294901760
        %3906 = vmatpush1.msra.mxu0 %v3905
        %v3907 = vand.u32 %v3030, 4294901760
        %3908 = vmatprep.subr.mxu0 %v3907
        %v3909 = vand.u32 %v3029, 4294901760
        %3910 = vmatpush1.msra.mxu0 %v3909
        %v3911 = vand.u32 %v3026, 4294901760
        %3912 = vmatprep.subr.mxu0 %v3911
        %v3913 = vand.u32 %v3025, 4294901760
        %3914 = vmatpush1.msra.mxu0 %v3913
        %3915 = vmatprep.subr.mxu0 0.0
        %3916 = vmatpush2.msra.mxu0 0.0
        %3917 = vmatprep.subr.mxu0 0.0
        %3918 = vmatpush2.msra.mxu0 0.0
        %3919 = vmatprep.subr.mxu0 0.0
        %3920 = vmatpush2.msra.mxu0 0.0
        %3921 = vmatprep.subr.mxu0 0.0
        %3922 = vmatpush2.msra.mxu0 0.0
        %3923 = vmatprep.subr.mxu0 0.0
        %3924 = vmatpush2.msra.mxu0 0.0
        %3925 = vmatprep.subr.mxu0 0.0
        %3926 = vmatpush2.msra.mxu0 0.0
        %3927 = vmatprep.subr.mxu0 0.0
        %3928 = vmatpush2.msra.mxu0 0.0
        %3929 = vmatprep.subr.mxu0 0.0
        %3930 = vmatpush2.msra.mxu0 0.0
        %3931 = vmatprep.subr.mxu0 0.0
        %3932 = vmatpush2.msra.mxu0 0.0
        %3933 = vmatprep.subr.mxu0 0.0
        %3934 = vmatpush2.msra.mxu0 0.0
        %3935 = vmatprep.subr.mxu0 0.0
        %3936 = vmatpush2.msra.mxu0 0.0
        %3937 = vmatprep.subr.mxu0 0.0
        %3938 = vmatpush2.msra.mxu0 0.0
        %3939 = vmatprep.subr.mxu0 0.0
        %3940 = vmatpush2.msra.mxu0 0.0
        %3941 = vmatprep.subr.mxu0 0.0
        %3942 = vmatpush2.msra.mxu0 0.0
        %3943 = vmatprep.subr.mxu0 0.0
        %3944 = vmatpush2.msra.mxu0 0.0
        %3945 = vmatprep.subr.mxu0 0.0
        %3946 = vmatpush2.msra.mxu0 0.0
        %3947 = vmatprep.mubr.f32.mxu0 0.0
        %v3948 = vand.u32 %v3045, 4294901760
        %v3949 = vsub.f32 %v3045, %v3948
        %v3950 = vand.u32 %v3949, 4294901760
        %3951 = vmatmul.mubr.f32.gmra.mxu0 %v3950
        %v3952 = vpop.f32.mrf.mxu0
        %v3953 = vadd.f32 %v3871, %v3952
        %v3954 = vpop.f32.mrf.mxu0
        %v3955 = vadd.f32 %v3873, %v3954
        %3956 = vdwg.mxu0
        %3957 = vmatprep.subr.mxu0 0.0
        %3958 = vmatpush1.msra.mxu0 0.0
        %3959 = vmatprep.subr.mxu0 0.0
        %3960 = vmatpush1.msra.mxu0 0.0
        %3961 = vmatprep.subr.mxu0 0.0
        %3962 = vmatpush1.msra.mxu0 0.0
        %3963 = vmatprep.subr.mxu0 0.0
        %3964 = vmatpush1.msra.mxu0 0.0
        %3965 = vmatprep.subr.mxu0 0.0
        %3966 = vmatpush1.msra.mxu0 0.0
        %3967 = vmatprep.subr.mxu0 0.0
        %3968 = vmatpush1.msra.mxu0 0.0
        %3969 = vmatprep.subr.mxu0 0.0
        %3970 = vmatpush1.msra.mxu0 0.0
        %3971 = vmatprep.subr.mxu0 0.0
        %3972 = vmatpush1.msra.mxu0 0.0
        %3973 = vmatprep.subr.mxu0 0.0
        %3974 = vmatpush1.msra.mxu0 0.0
        %3975 = vmatprep.subr.mxu0 0.0
        %3976 = vmatpush1.msra.mxu0 0.0
        %3977 = vmatprep.subr.mxu0 0.0
        %3978 = vmatpush1.msra.mxu0 0.0
        %3979 = vmatprep.subr.mxu0 0.0
        %3980 = vmatpush1.msra.mxu0 0.0
        %v3981 = vand.u32 %v3038, 4294901760
        %v3982 = vsub.f32 %v3038, %v3981
        %v3983 = vand.u32 %v3982, 4294901760
        %3984 = vmatprep.subr.mxu0 %v3983
        %v3985 = vand.u32 %v3037, 4294901760
        %v3986 = vsub.f32 %v3037, %v3985
        %v3987 = vand.u32 %v3986, 4294901760
        %3988 = vmatpush1.msra.mxu0 %v3987
        %v3989 = vand.u32 %v3034, 4294901760
        %v3990 = vsub.f32 %v3034, %v3989
        %v3991 = vand.u32 %v3990, 4294901760
        %3992 = vmatprep.subr.mxu0 %v3991
        %v3993 = vand.u32 %v3033, 4294901760
        %v3994 = vsub.f32 %v3033, %v3993
        %v3995 = vand.u32 %v3994, 4294901760
        %3996 = vmatpush1.msra.mxu0 %v3995
        %v3997 = vand.u32 %v3030, 4294901760
        %v3998 = vsub.f32 %v3030, %v3997
        %v3999 = vand.u32 %v3998, 4294901760
        %4000 = vmatprep.subr.mxu0 %v3999
        %v4001 = vand.u32 %v3029, 4294901760
        %v4002 = vsub.f32 %v3029, %v4001
        %v4003 = vand.u32 %v4002, 4294901760
        %4004 = vmatpush1.msra.mxu0 %v4003
        %v4005 = vand.u32 %v3026, 4294901760
        %v4006 = vsub.f32 %v3026, %v4005
        %v4007 = vand.u32 %v4006, 4294901760
        %4008 = vmatprep.subr.mxu0 %v4007
        %v4009 = vand.u32 %v3025, 4294901760
        %v4010 = vsub.f32 %v3025, %v4009
        %v4011 = vand.u32 %v4010, 4294901760
        %4012 = vmatpush1.msra.mxu0 %v4011
        %4013 = vmatprep.subr.mxu0 0.0
        %4014 = vmatpush2.msra.mxu0 0.0
        %4015 = vmatprep.subr.mxu0 0.0
        %4016 = vmatpush2.msra.mxu0 0.0
        %4017 = vmatprep.subr.mxu0 0.0
        %4018 = vmatpush2.msra.mxu0 0.0
        %4019 = vmatprep.subr.mxu0 0.0
        %4020 = vmatpush2.msra.mxu0 0.0
        %4021 = vmatprep.subr.mxu0 0.0
        %4022 = vmatpush2.msra.mxu0 0.0
        %4023 = vmatprep.subr.mxu0 0.0
        %4024 = vmatpush2.msra.mxu0 0.0
        %4025 = vmatprep.subr.mxu0 0.0
        %4026 = vmatpush2.msra.mxu0 0.0
        %4027 = vmatprep.subr.mxu0 0.0
        %4028 = vmatpush2.msra.mxu0 0.0
        %4029 = vmatprep.subr.mxu0 0.0
        %4030 = vmatpush2.msra.mxu0 0.0
        %4031 = vmatprep.subr.mxu0 0.0
        %4032 = vmatpush2.msra.mxu0 0.0
        %4033 = vmatprep.subr.mxu0 0.0
        %4034 = vmatpush2.msra.mxu0 0.0
        %4035 = vmatprep.subr.mxu0 0.0
        %4036 = vmatpush2.msra.mxu0 0.0
        %4037 = vmatprep.subr.mxu0 0.0
        %4038 = vmatpush2.msra.mxu0 0.0
        %4039 = vmatprep.subr.mxu0 0.0
        %4040 = vmatpush2.msra.mxu0 0.0
        %4041 = vmatprep.subr.mxu0 0.0
        %4042 = vmatpush2.msra.mxu0 0.0
        %4043 = vmatprep.subr.mxu0 0.0
        %4044 = vmatpush2.msra.mxu0 0.0
        %4045 = vmatprep.mubr.f32.mxu0 0.0
        %v4046 = vand.u32 %v3045, 4294901760
        %4047 = vmatmul.mubr.f32.gmra.mxu0 %v4046
        %v4048 = vpop.f32.mrf.mxu0
        %v4049 = vadd.f32 %v3953, %v4048
        %v4050 = vpop.f32.mrf.mxu0
        %v4051 = vadd.f32 %v3955, %v4050
        %4052 = vdwg.mxu0
        %4053 = vmatprep.subr.mxu0 0.0
        %4054 = vmatpush1.msra.mxu0 0.0
        %4055 = vmatprep.subr.mxu0 0.0
        %4056 = vmatpush1.msra.mxu0 0.0
        %4057 = vmatprep.subr.mxu0 0.0
        %4058 = vmatpush1.msra.mxu0 0.0
        %4059 = vmatprep.subr.mxu0 0.0
        %4060 = vmatpush1.msra.mxu0 0.0
        %4061 = vmatprep.subr.mxu0 0.0
        %4062 = vmatpush1.msra.mxu0 0.0
        %4063 = vmatprep.subr.mxu0 0.0
        %4064 = vmatpush1.msra.mxu0 0.0
        %4065 = vmatprep.subr.mxu0 0.0
        %4066 = vmatpush1.msra.mxu0 0.0
        %4067 = vmatprep.subr.mxu0 0.0
        %4068 = vmatpush1.msra.mxu0 0.0
        %4069 = vmatprep.subr.mxu0 0.0
        %4070 = vmatpush1.msra.mxu0 0.0
        %4071 = vmatprep.subr.mxu0 0.0
        %4072 = vmatpush1.msra.mxu0 0.0
        %4073 = vmatprep.subr.mxu0 0.0
        %4074 = vmatpush1.msra.mxu0 0.0
        %4075 = vmatprep.subr.mxu0 0.0
        %4076 = vmatpush1.msra.mxu0 0.0
        %v4077 = vand.u32 %v3038, 4294901760
        %4078 = vmatprep.subr.mxu0 %v4077
        %v4079 = vand.u32 %v3037, 4294901760
        %4080 = vmatpush1.msra.mxu0 %v4079
        %v4081 = vand.u32 %v3034, 4294901760
        %4082 = vmatprep.subr.mxu0 %v4081
        %v4083 = vand.u32 %v3033, 4294901760
        %4084 = vmatpush1.msra.mxu0 %v4083
        %v4085 = vand.u32 %v3030, 4294901760
        %4086 = vmatprep.subr.mxu0 %v4085
        %v4087 = vand.u32 %v3029, 4294901760
        %4088 = vmatpush1.msra.mxu0 %v4087
        %v4089 = vand.u32 %v3026, 4294901760
        %4090 = vmatprep.subr.mxu0 %v4089
        %v4091 = vand.u32 %v3025, 4294901760
        %4092 = vmatpush1.msra.mxu0 %v4091
        %4093 = vmatprep.subr.mxu0 0.0
        %4094 = vmatpush2.msra.mxu0 0.0
        %4095 = vmatprep.subr.mxu0 0.0
        %4096 = vmatpush2.msra.mxu0 0.0
        %4097 = vmatprep.subr.mxu0 0.0
        %4098 = vmatpush2.msra.mxu0 0.0
        %4099 = vmatprep.subr.mxu0 0.0
        %4100 = vmatpush2.msra.mxu0 0.0
        %4101 = vmatprep.subr.mxu0 0.0
        %4102 = vmatpush2.msra.mxu0 0.0
        %4103 = vmatprep.subr.mxu0 0.0
        %4104 = vmatpush2.msra.mxu0 0.0
        %4105 = vmatprep.subr.mxu0 0.0
        %4106 = vmatpush2.msra.mxu0 0.0
        %4107 = vmatprep.subr.mxu0 0.0
        %4108 = vmatpush2.msra.mxu0 0.0
        %4109 = vmatprep.subr.mxu0 0.0
        %4110 = vmatpush2.msra.mxu0 0.0
        %4111 = vmatprep.subr.mxu0 0.0
        %4112 = vmatpush2.msra.mxu0 0.0
        %4113 = vmatprep.subr.mxu0 0.0
        %4114 = vmatpush2.msra.mxu0 0.0
        %4115 = vmatprep.subr.mxu0 0.0
        %4116 = vmatpush2.msra.mxu0 0.0
        %4117 = vmatprep.subr.mxu0 0.0
        %4118 = vmatpush2.msra.mxu0 0.0
        %4119 = vmatprep.subr.mxu0 0.0
        %4120 = vmatpush2.msra.mxu0 0.0
        %4121 = vmatprep.subr.mxu0 0.0
        %4122 = vmatpush2.msra.mxu0 0.0
        %4123 = vmatprep.subr.mxu0 0.0
        %4124 = vmatpush2.msra.mxu0 0.0
        %4125 = vmatprep.mubr.f32.mxu0 0.0
        %v4126 = vand.u32 %v3045, 4294901760
        %4127 = vmatmul.mubr.f32.gmra.mxu0 %v4126
        %v4128 = vpop.f32.mrf.mxu0
        %v4129 = vadd.f32 %v4049, %v4128
        %v4130 = vpop.f32.mrf.mxu0
        %v4131 = vadd.f32 %v4051, %v4130
        %4132 = vdwg.mxu0
        %v4137 = vcombine.low %v3586, %v3588
        %v4138 = vcombine.low %v4129, %v4131
        %4141 = vst [vmem:[%s284] sm:$0x77] %v4137
        %4142 = vst [vmem:[%s284 + $0x8] sm:$0x77] %v4138
        %v4143 = vld [vmem:[%s293 + $0x10] sm:$0xff]
        %v4144 = vld [vmem:[%s293 + $0x18] sm:$0xff]
        %v4147 = vcombine.high %v4143, %v4143
        %v4148 = vcombine.high %v4144, %v4144
        %v4149 = vsel %vm361, %v4143, 0
        %v4151 = vsel %vm361, %v4147, 0
        %v4153 = vsel %vm361, %v4144, 0
        %v4155 = vsel %vm361, %v4148, 0
        %4157 = vmatprep.subr.mxu0 0.0
        %4158 = vmatpush1.msra.mxu0 0.0
        %4159 = vmatprep.subr.mxu0 0.0
        %4160 = vmatpush1.msra.mxu0 0.0
        %4161 = vmatprep.subr.mxu0 0.0
        %4162 = vmatpush1.msra.mxu0 0.0
        %4163 = vmatprep.subr.mxu0 0.0
        %4164 = vmatpush1.msra.mxu0 0.0
        %4165 = vmatprep.subr.mxu0 0.0
        %4166 = vmatpush1.msra.mxu0 0.0
        %4167 = vmatprep.subr.mxu0 0.0
        %4168 = vmatpush1.msra.mxu0 0.0
        %4169 = vmatprep.subr.mxu0 0.0
        %4170 = vmatpush1.msra.mxu0 0.0
        %4171 = vmatprep.subr.mxu0 0.0
        %4172 = vmatpush1.msra.mxu0 0.0
        %4173 = vmatprep.subr.mxu0 0.0
        %4174 = vmatpush1.msra.mxu0 0.0
        %4175 = vmatprep.subr.mxu0 0.0
        %4176 = vmatpush1.msra.mxu0 0.0
        %4177 = vmatprep.subr.mxu0 0.0
        %4178 = vmatpush1.msra.mxu0 0.0
        %4179 = vmatprep.subr.mxu0 0.0
        %4180 = vmatpush1.msra.mxu0 0.0
        %4181 = vmatprep.subr.mxu0 0.0
        %4182 = vmatpush1.msra.mxu0 0.0
        %4183 = vmatprep.subr.mxu0 0.0
        %4184 = vmatpush1.msra.mxu0 0.0
        %4185 = vmatprep.subr.mxu0 0.0
        %4186 = vmatpush1.msra.mxu0 0.0
        %v4187 = vand.u32 %v4151, 4294901760
        %4188 = vmatprep.subr.mxu0 %v4187
        %v4189 = vand.u32 %v4149, 4294901760
        %4190 = vmatpush1.msra.mxu0 %v4189
        %4191 = vmatprep.subr.mxu0 0.0
        %4192 = vmatpush2.msra.mxu0 0.0
        %4193 = vmatprep.subr.mxu0 0.0
        %4194 = vmatpush2.msra.mxu0 0.0
        %4195 = vmatprep.subr.mxu0 0.0
        %4196 = vmatpush2.msra.mxu0 0.0
        %4197 = vmatprep.subr.mxu0 0.0
        %4198 = vmatpush2.msra.mxu0 0.0
        %4199 = vmatprep.subr.mxu0 0.0
        %4200 = vmatpush2.msra.mxu0 0.0
        %4201 = vmatprep.subr.mxu0 0.0
        %4202 = vmatpush2.msra.mxu0 0.0
        %4203 = vmatprep.subr.mxu0 0.0
        %4204 = vmatpush2.msra.mxu0 0.0
        %4205 = vmatprep.subr.mxu0 0.0
        %4206 = vmatpush2.msra.mxu0 0.0
        %4207 = vmatprep.subr.mxu0 0.0
        %4208 = vmatpush2.msra.mxu0 0.0
        %4209 = vmatprep.subr.mxu0 0.0
        %4210 = vmatpush2.msra.mxu0 0.0
        %4211 = vmatprep.subr.mxu0 0.0
        %4212 = vmatpush2.msra.mxu0 0.0
        %4213 = vmatprep.subr.mxu0 0.0
        %4214 = vmatpush2.msra.mxu0 0.0
        %4215 = vmatprep.subr.mxu0 0.0
        %4216 = vmatpush2.msra.mxu0 0.0
        %4217 = vmatprep.subr.mxu0 0.0
        %4218 = vmatpush2.msra.mxu0 0.0
        %4219 = vmatprep.subr.mxu0 0.0
        %4220 = vmatpush2.msra.mxu0 0.0
        %4221 = vmatprep.subr.mxu0 0.0
        %4222 = vmatpush2.msra.mxu0 0.0
        %4223 = vmatprep.mubr.f32.mxu0 0.0
        %v4224 = vand.u32 %v350, 4294901760
        %v4225 = vsub.f32 %v350, %v4224
        %v4226 = vand.u32 %v4225, 4294901760
        %v4227 = vsub.f32 %v4225, %v4226
        %v4228 = vand.u32 %v4227, 4294901760
        %4229 = vmatmul.mubr.f32.gmra.mxu0 %v4228
        %v4230 = vpop.f32.mrf.mxu0
        %v4231 = vadd.f32 %v327, %v4230
        %v4232 = vpop.f32.mrf.mxu0
        %v4233 = vadd.f32 %v327, %v4232
        %4234 = vmatprep.mubr.f32.mxu0 0.0
        %v4235 = vand.u32 %v353, 4294901760
        %v4236 = vsub.f32 %v353, %v4235
        %v4237 = vand.u32 %v4236, 4294901760
        %v4238 = vsub.f32 %v4236, %v4237
        %v4239 = vand.u32 %v4238, 4294901760
        %4240 = vmatmul.mubr.f32.gmra.mxu0 %v4239
        %v4241 = vpop.f32.mrf.mxu0
        %v4242 = vadd.f32 %v332, %v4241
        %v4243 = vpop.f32.mrf.mxu0
        %v4244 = vadd.f32 %v332, %v4243
        %4245 = vmatprep.mubr.f32.mxu0 0.0
        %v4246 = vand.u32 %v356, 4294901760
        %v4247 = vsub.f32 %v356, %v4246
        %v4248 = vand.u32 %v4247, 4294901760
        %v4249 = vsub.f32 %v4247, %v4248
        %v4250 = vand.u32 %v4249, 4294901760
        %4251 = vmatmul.mubr.f32.gmra.mxu0 %v4250
        %v4252 = vpop.f32.mrf.mxu0
        %v4253 = vadd.f32 %v337, %v4252
        %v4254 = vpop.f32.mrf.mxu0
        %v4255 = vadd.f32 %v337, %v4254
        %4256 = vmatprep.mubr.f32.mxu0 0.0
        %v4257 = vand.u32 %v359, 4294901760
        %v4258 = vsub.f32 %v359, %v4257
        %v4259 = vand.u32 %v4258, 4294901760
        %v4260 = vsub.f32 %v4258, %v4259
        %v4261 = vand.u32 %v4260, 4294901760
        %4262 = vmatmul.mubr.f32.gmra.mxu0 %v4261
        %v4263 = vpop.f32.mrf.mxu0
        %v4264 = vadd.f32 %v342, %v4263
        %v4265 = vpop.f32.mrf.mxu0
        %v4266 = vadd.f32 %v342, %v4265
        %4267 = vdwg.mxu0
        %4268 = vmatprep.subr.mxu0 0.0
        %4269 = vmatpush1.msra.mxu0 0.0
        %4270 = vmatprep.subr.mxu0 0.0
        %4271 = vmatpush1.msra.mxu0 0.0
        %4272 = vmatprep.subr.mxu0 0.0
        %4273 = vmatpush1.msra.mxu0 0.0
        %4274 = vmatprep.subr.mxu0 0.0
        %4275 = vmatpush1.msra.mxu0 0.0
        %4276 = vmatprep.subr.mxu0 0.0
        %4277 = vmatpush1.msra.mxu0 0.0
        %4278 = vmatprep.subr.mxu0 0.0
        %4279 = vmatpush1.msra.mxu0 0.0
        %4280 = vmatprep.subr.mxu0 0.0
        %4281 = vmatpush1.msra.mxu0 0.0
        %4282 = vmatprep.subr.mxu0 0.0
        %4283 = vmatpush1.msra.mxu0 0.0
        %4284 = vmatprep.subr.mxu0 0.0
        %4285 = vmatpush1.msra.mxu0 0.0
        %4286 = vmatprep.subr.mxu0 0.0
        %4287 = vmatpush1.msra.mxu0 0.0
        %4288 = vmatprep.subr.mxu0 0.0
        %4289 = vmatpush1.msra.mxu0 0.0
        %4290 = vmatprep.subr.mxu0 0.0
        %4291 = vmatpush1.msra.mxu0 0.0
        %4292 = vmatprep.subr.mxu0 0.0
        %4293 = vmatpush1.msra.mxu0 0.0
        %4294 = vmatprep.subr.mxu0 0.0
        %4295 = vmatpush1.msra.mxu0 0.0
        %4296 = vmatprep.subr.mxu0 0.0
        %4297 = vmatpush1.msra.mxu0 0.0
        %v4298 = vand.u32 %v4151, 4294901760
        %v4299 = vsub.f32 %v4151, %v4298
        %v4300 = vand.u32 %v4299, 4294901760
        %v4301 = vsub.f32 %v4299, %v4300
        %v4302 = vand.u32 %v4301, 4294901760
        %4303 = vmatprep.subr.mxu0 %v4302
        %v4304 = vand.u32 %v4149, 4294901760
        %v4305 = vsub.f32 %v4149, %v4304
        %v4306 = vand.u32 %v4305, 4294901760
        %v4307 = vsub.f32 %v4305, %v4306
        %v4308 = vand.u32 %v4307, 4294901760
        %4309 = vmatpush1.msra.mxu0 %v4308
        %4310 = vmatprep.subr.mxu0 0.0
        %4311 = vmatpush2.msra.mxu0 0.0
        %4312 = vmatprep.subr.mxu0 0.0
        %4313 = vmatpush2.msra.mxu0 0.0
        %4314 = vmatprep.subr.mxu0 0.0
        %4315 = vmatpush2.msra.mxu0 0.0
        %4316 = vmatprep.subr.mxu0 0.0
        %4317 = vmatpush2.msra.mxu0 0.0
        %4318 = vmatprep.subr.mxu0 0.0
        %4319 = vmatpush2.msra.mxu0 0.0
        %4320 = vmatprep.subr.mxu0 0.0
        %4321 = vmatpush2.msra.mxu0 0.0
        %4322 = vmatprep.subr.mxu0 0.0
        %4323 = vmatpush2.msra.mxu0 0.0
        %4324 = vmatprep.subr.mxu0 0.0
        %4325 = vmatpush2.msra.mxu0 0.0
        %4326 = vmatprep.subr.mxu0 0.0
        %4327 = vmatpush2.msra.mxu0 0.0
        %4328 = vmatprep.subr.mxu0 0.0
        %4329 = vmatpush2.msra.mxu0 0.0
        %4330 = vmatprep.subr.mxu0 0.0
        %4331 = vmatpush2.msra.mxu0 0.0
        %4332 = vmatprep.subr.mxu0 0.0
        %4333 = vmatpush2.msra.mxu0 0.0
        %4334 = vmatprep.subr.mxu0 0.0
        %4335 = vmatpush2.msra.mxu0 0.0
        %4336 = vmatprep.subr.mxu0 0.0
        %4337 = vmatpush2.msra.mxu0 0.0
        %4338 = vmatprep.subr.mxu0 0.0
        %4339 = vmatpush2.msra.mxu0 0.0
        %4340 = vmatprep.subr.mxu0 0.0
        %4341 = vmatpush2.msra.mxu0 0.0
        %4342 = vmatprep.mubr.f32.mxu0 0.0
        %v4343 = vand.u32 %v350, 4294901760
        %4344 = vmatmul.mubr.f32.gmra.mxu0 %v4343
        %v4345 = vpop.f32.mrf.mxu0
        %v4346 = vadd.f32 %v4231, %v4345
        %v4347 = vpop.f32.mrf.mxu0
        %v4348 = vadd.f32 %v4233, %v4347
        %4349 = vmatprep.mubr.f32.mxu0 0.0
        %v4350 = vand.u32 %v353, 4294901760
        %4351 = vmatmul.mubr.f32.gmra.mxu0 %v4350
        %v4352 = vpop.f32.mrf.mxu0
        %v4353 = vadd.f32 %v4242, %v4352
        %v4354 = vpop.f32.mrf.mxu0
        %v4355 = vadd.f32 %v4244, %v4354
        %4356 = vmatprep.mubr.f32.mxu0 0.0
        %v4357 = vand.u32 %v356, 4294901760
        %4358 = vmatmul.mubr.f32.gmra.mxu0 %v4357
        %v4359 = vpop.f32.mrf.mxu0
        %v4360 = vadd.f32 %v4253, %v4359
        %v4361 = vpop.f32.mrf.mxu0
        %v4362 = vadd.f32 %v4255, %v4361
        %4363 = vmatprep.mubr.f32.mxu0 0.0
        %v4364 = vand.u32 %v359, 4294901760
        %4365 = vmatmul.mubr.f32.gmra.mxu0 %v4364
        %v4366 = vpop.f32.mrf.mxu0
        %v4367 = vadd.f32 %v4264, %v4366
        %v4368 = vpop.f32.mrf.mxu0
        %v4369 = vadd.f32 %v4266, %v4368
        %4370 = vdwg.mxu0
        %4371 = vmatprep.subr.mxu0 0.0
        %4372 = vmatpush1.msra.mxu0 0.0
        %4373 = vmatprep.subr.mxu0 0.0
        %4374 = vmatpush1.msra.mxu0 0.0
        %4375 = vmatprep.subr.mxu0 0.0
        %4376 = vmatpush1.msra.mxu0 0.0
        %4377 = vmatprep.subr.mxu0 0.0
        %4378 = vmatpush1.msra.mxu0 0.0
        %4379 = vmatprep.subr.mxu0 0.0
        %4380 = vmatpush1.msra.mxu0 0.0
        %4381 = vmatprep.subr.mxu0 0.0
        %4382 = vmatpush1.msra.mxu0 0.0
        %4383 = vmatprep.subr.mxu0 0.0
        %4384 = vmatpush1.msra.mxu0 0.0
        %4385 = vmatprep.subr.mxu0 0.0
        %4386 = vmatpush1.msra.mxu0 0.0
        %4387 = vmatprep.subr.mxu0 0.0
        %4388 = vmatpush1.msra.mxu0 0.0
        %4389 = vmatprep.subr.mxu0 0.0
        %4390 = vmatpush1.msra.mxu0 0.0
        %4391 = vmatprep.subr.mxu0 0.0
        %4392 = vmatpush1.msra.mxu0 0.0
        %4393 = vmatprep.subr.mxu0 0.0
        %4394 = vmatpush1.msra.mxu0 0.0
        %4395 = vmatprep.subr.mxu0 0.0
        %4396 = vmatpush1.msra.mxu0 0.0
        %4397 = vmatprep.subr.mxu0 0.0
        %4398 = vmatpush1.msra.mxu0 0.0
        %4399 = vmatprep.subr.mxu0 0.0
        %4400 = vmatpush1.msra.mxu0 0.0
        %v4401 = vand.u32 %v4151, 4294901760
        %v4402 = vsub.f32 %v4151, %v4401
        %4403 = vmatprep.subr.mxu0 %v4402
        %v4404 = vand.u32 %v4149, 4294901760
        %v4405 = vsub.f32 %v4149, %v4404
        %4406 = vmatpush1.msra.mxu0 %v4405
        %4407 = vmatprep.subr.mxu0 0.0
        %4408 = vmatpush2.msra.mxu0 0.0
        %4409 = vmatprep.subr.mxu0 0.0
        %4410 = vmatpush2.msra.mxu0 0.0
        %4411 = vmatprep.subr.mxu0 0.0
        %4412 = vmatpush2.msra.mxu0 0.0
        %4413 = vmatprep.subr.mxu0 0.0
        %4414 = vmatpush2.msra.mxu0 0.0
        %4415 = vmatprep.subr.mxu0 0.0
        %4416 = vmatpush2.msra.mxu0 0.0
        %4417 = vmatprep.subr.mxu0 0.0
        %4418 = vmatpush2.msra.mxu0 0.0
        %4419 = vmatprep.subr.mxu0 0.0
        %4420 = vmatpush2.msra.mxu0 0.0
        %4421 = vmatprep.subr.mxu0 0.0
        %4422 = vmatpush2.msra.mxu0 0.0
        %4423 = vmatprep.subr.mxu0 0.0
        %4424 = vmatpush2.msra.mxu0 0.0
        %4425 = vmatprep.subr.mxu0 0.0
        %4426 = vmatpush2.msra.mxu0 0.0
        %4427 = vmatprep.subr.mxu0 0.0
        %4428 = vmatpush2.msra.mxu0 0.0
        %4429 = vmatprep.subr.mxu0 0.0
        %4430 = vmatpush2.msra.mxu0 0.0
        %4431 = vmatprep.subr.mxu0 0.0
        %4432 = vmatpush2.msra.mxu0 0.0
        %4433 = vmatprep.subr.mxu0 0.0
        %4434 = vmatpush2.msra.mxu0 0.0
        %4435 = vmatprep.subr.mxu0 0.0
        %4436 = vmatpush2.msra.mxu0 0.0
        %4437 = vmatprep.subr.mxu0 0.0
        %4438 = vmatpush2.msra.mxu0 0.0
        %4439 = vmatprep.mubr.f32.mxu0 0.0
        %v4440 = vand.u32 %v350, 4294901760
        %v4441 = vsub.f32 %v350, %v4440
        %4442 = vmatmul.mubr.f32.gmra.mxu0 %v4441
        %v4443 = vpop.f32.mrf.mxu0
        %v4444 = vadd.f32 %v4346, %v4443
        %v4445 = vpop.f32.mrf.mxu0
        %v4446 = vadd.f32 %v4348, %v4445
        %4447 = vmatprep.mubr.f32.mxu0 0.0
        %v4448 = vand.u32 %v353, 4294901760
        %v4449 = vsub.f32 %v353, %v4448
        %4450 = vmatmul.mubr.f32.gmra.mxu0 %v4449
        %v4451 = vpop.f32.mrf.mxu0
        %v4452 = vadd.f32 %v4353, %v4451
        %v4453 = vpop.f32.mrf.mxu0
        %v4454 = vadd.f32 %v4355, %v4453
        %4455 = vmatprep.mubr.f32.mxu0 0.0
        %v4456 = vand.u32 %v356, 4294901760
        %v4457 = vsub.f32 %v356, %v4456
        %4458 = vmatmul.mubr.f32.gmra.mxu0 %v4457
        %v4459 = vpop.f32.mrf.mxu0
        %v4460 = vadd.f32 %v4360, %v4459
        %v4461 = vpop.f32.mrf.mxu0
        %v4462 = vadd.f32 %v4362, %v4461
        %4463 = vmatprep.mubr.f32.mxu0 0.0
        %v4464 = vand.u32 %v359, 4294901760
        %v4465 = vsub.f32 %v359, %v4464
        %4466 = vmatmul.mubr.f32.gmra.mxu0 %v4465
        %v4467 = vpop.f32.mrf.mxu0
        %v4468 = vadd.f32 %v4367, %v4467
        %v4469 = vpop.f32.mrf.mxu0
        %v4470 = vadd.f32 %v4369, %v4469
        %4471 = vdwg.mxu0
        %4472 = vmatprep.subr.mxu0 0.0
        %4473 = vmatpush1.msra.mxu0 0.0
        %4474 = vmatprep.subr.mxu0 0.0
        %4475 = vmatpush1.msra.mxu0 0.0
        %4476 = vmatprep.subr.mxu0 0.0
        %4477 = vmatpush1.msra.mxu0 0.0
        %4478 = vmatprep.subr.mxu0 0.0
        %4479 = vmatpush1.msra.mxu0 0.0
        %4480 = vmatprep.subr.mxu0 0.0
        %4481 = vmatpush1.msra.mxu0 0.0
        %4482 = vmatprep.subr.mxu0 0.0
        %4483 = vmatpush1.msra.mxu0 0.0
        %4484 = vmatprep.subr.mxu0 0.0
        %4485 = vmatpush1.msra.mxu0 0.0
        %4486 = vmatprep.subr.mxu0 0.0
        %4487 = vmatpush1.msra.mxu0 0.0
        %4488 = vmatprep.subr.mxu0 0.0
        %4489 = vmatpush1.msra.mxu0 0.0
        %4490 = vmatprep.subr.mxu0 0.0
        %4491 = vmatpush1.msra.mxu0 0.0
        %4492 = vmatprep.subr.mxu0 0.0
        %4493 = vmatpush1.msra.mxu0 0.0
        %4494 = vmatprep.subr.mxu0 0.0
        %4495 = vmatpush1.msra.mxu0 0.0
        %4496 = vmatprep.subr.mxu0 0.0
        %4497 = vmatpush1.msra.mxu0 0.0
        %4498 = vmatprep.subr.mxu0 0.0
        %4499 = vmatpush1.msra.mxu0 0.0
        %4500 = vmatprep.subr.mxu0 0.0
        %4501 = vmatpush1.msra.mxu0 0.0
        %v4502 = vand.u32 %v4151, 4294901760
        %4503 = vmatprep.subr.mxu0 %v4502
        %v4504 = vand.u32 %v4149, 4294901760
        %4505 = vmatpush1.msra.mxu0 %v4504
        %4506 = vmatprep.subr.mxu0 0.0
        %4507 = vmatpush2.msra.mxu0 0.0
        %4508 = vmatprep.subr.mxu0 0.0
        %4509 = vmatpush2.msra.mxu0 0.0
        %4510 = vmatprep.subr.mxu0 0.0
        %4511 = vmatpush2.msra.mxu0 0.0
        %4512 = vmatprep.subr.mxu0 0.0
        %4513 = vmatpush2.msra.mxu0 0.0
        %4514 = vmatprep.subr.mxu0 0.0
        %4515 = vmatpush2.msra.mxu0 0.0
        %4516 = vmatprep.subr.mxu0 0.0
        %4517 = vmatpush2.msra.mxu0 0.0
        %4518 = vmatprep.subr.mxu0 0.0
        %4519 = vmatpush2.msra.mxu0 0.0
        %4520 = vmatprep.subr.mxu0 0.0
        %4521 = vmatpush2.msra.mxu0 0.0
        %4522 = vmatprep.subr.mxu0 0.0
        %4523 = vmatpush2.msra.mxu0 0.0
        %4524 = vmatprep.subr.mxu0 0.0
        %4525 = vmatpush2.msra.mxu0 0.0
        %4526 = vmatprep.subr.mxu0 0.0
        %4527 = vmatpush2.msra.mxu0 0.0
        %4528 = vmatprep.subr.mxu0 0.0
        %4529 = vmatpush2.msra.mxu0 0.0
        %4530 = vmatprep.subr.mxu0 0.0
        %4531 = vmatpush2.msra.mxu0 0.0
        %4532 = vmatprep.subr.mxu0 0.0
        %4533 = vmatpush2.msra.mxu0 0.0
        %4534 = vmatprep.subr.mxu0 0.0
        %4535 = vmatpush2.msra.mxu0 0.0
        %4536 = vmatprep.subr.mxu0 0.0
        %4537 = vmatpush2.msra.mxu0 0.0
        %4538 = vmatprep.mubr.f32.mxu0 0.0
        %v4539 = vand.u32 %v350, 4294901760
        %v4540 = vsub.f32 %v350, %v4539
        %v4541 = vand.u32 %v4540, 4294901760
        %4542 = vmatmul.mubr.f32.gmra.mxu0 %v4541
        %v4543 = vpop.f32.mrf.mxu0
        %v4544 = vadd.f32 %v4444, %v4543
        %v4545 = vpop.f32.mrf.mxu0
        %v4546 = vadd.f32 %v4446, %v4545
        %4547 = vmatprep.mubr.f32.mxu0 0.0
        %v4548 = vand.u32 %v353, 4294901760
        %v4549 = vsub.f32 %v353, %v4548
        %v4550 = vand.u32 %v4549, 4294901760
        %4551 = vmatmul.mubr.f32.gmra.mxu0 %v4550
        %v4552 = vpop.f32.mrf.mxu0
        %v4553 = vadd.f32 %v4452, %v4552
        %v4554 = vpop.f32.mrf.mxu0
        %v4555 = vadd.f32 %v4454, %v4554
        %4556 = vmatprep.mubr.f32.mxu0 0.0
        %v4557 = vand.u32 %v356, 4294901760
        %v4558 = vsub.f32 %v356, %v4557
        %v4559 = vand.u32 %v4558, 4294901760
        %4560 = vmatmul.mubr.f32.gmra.mxu0 %v4559
        %v4561 = vpop.f32.mrf.mxu0
        %v4562 = vadd.f32 %v4460, %v4561
        %v4563 = vpop.f32.mrf.mxu0
        %v4564 = vadd.f32 %v4462, %v4563
        %4565 = vmatprep.mubr.f32.mxu0 0.0
        %v4566 = vand.u32 %v359, 4294901760
        %v4567 = vsub.f32 %v359, %v4566
        %v4568 = vand.u32 %v4567, 4294901760
        %4569 = vmatmul.mubr.f32.gmra.mxu0 %v4568
        %v4570 = vpop.f32.mrf.mxu0
        %v4571 = vadd.f32 %v4468, %v4570
        %v4572 = vpop.f32.mrf.mxu0
        %v4573 = vadd.f32 %v4470, %v4572
        %4574 = vdwg.mxu0
        %4575 = vmatprep.subr.mxu0 0.0
        %4576 = vmatpush1.msra.mxu0 0.0
        %4577 = vmatprep.subr.mxu0 0.0
        %4578 = vmatpush1.msra.mxu0 0.0
        %4579 = vmatprep.subr.mxu0 0.0
        %4580 = vmatpush1.msra.mxu0 0.0
        %4581 = vmatprep.subr.mxu0 0.0
        %4582 = vmatpush1.msra.mxu0 0.0
        %4583 = vmatprep.subr.mxu0 0.0
        %4584 = vmatpush1.msra.mxu0 0.0
        %4585 = vmatprep.subr.mxu0 0.0
        %4586 = vmatpush1.msra.mxu0 0.0
        %4587 = vmatprep.subr.mxu0 0.0
        %4588 = vmatpush1.msra.mxu0 0.0
        %4589 = vmatprep.subr.mxu0 0.0
        %4590 = vmatpush1.msra.mxu0 0.0
        %4591 = vmatprep.subr.mxu0 0.0
        %4592 = vmatpush1.msra.mxu0 0.0
        %4593 = vmatprep.subr.mxu0 0.0
        %4594 = vmatpush1.msra.mxu0 0.0
        %4595 = vmatprep.subr.mxu0 0.0
        %4596 = vmatpush1.msra.mxu0 0.0
        %4597 = vmatprep.subr.mxu0 0.0
        %4598 = vmatpush1.msra.mxu0 0.0
        %4599 = vmatprep.subr.mxu0 0.0
        %4600 = vmatpush1.msra.mxu0 0.0
        %4601 = vmatprep.subr.mxu0 0.0
        %4602 = vmatpush1.msra.mxu0 0.0
        %4603 = vmatprep.subr.mxu0 0.0
        %4604 = vmatpush1.msra.mxu0 0.0
        %v4605 = vand.u32 %v4151, 4294901760
        %v4606 = vsub.f32 %v4151, %v4605
        %v4607 = vand.u32 %v4606, 4294901760
        %4608 = vmatprep.subr.mxu0 %v4607
        %v4609 = vand.u32 %v4149, 4294901760
        %v4610 = vsub.f32 %v4149, %v4609
        %v4611 = vand.u32 %v4610, 4294901760
        %4612 = vmatpush1.msra.mxu0 %v4611
        %4613 = vmatprep.subr.mxu0 0.0
        %4614 = vmatpush2.msra.mxu0 0.0
        %4615 = vmatprep.subr.mxu0 0.0
        %4616 = vmatpush2.msra.mxu0 0.0
        %4617 = vmatprep.subr.mxu0 0.0
        %4618 = vmatpush2.msra.mxu0 0.0
        %4619 = vmatprep.subr.mxu0 0.0
        %4620 = vmatpush2.msra.mxu0 0.0
        %4621 = vmatprep.subr.mxu0 0.0
        %4622 = vmatpush2.msra.mxu0 0.0
        %4623 = vmatprep.subr.mxu0 0.0
        %4624 = vmatpush2.msra.mxu0 0.0
        %4625 = vmatprep.subr.mxu0 0.0
        %4626 = vmatpush2.msra.mxu0 0.0
        %4627 = vmatprep.subr.mxu0 0.0
        %4628 = vmatpush2.msra.mxu0 0.0
        %4629 = vmatprep.subr.mxu0 0.0
        %4630 = vmatpush2.msra.mxu0 0.0
        %4631 = vmatprep.subr.mxu0 0.0
        %4632 = vmatpush2.msra.mxu0 0.0
        %4633 = vmatprep.subr.mxu0 0.0
        %4634 = vmatpush2.msra.mxu0 0.0
        %4635 = vmatprep.subr.mxu0 0.0
        %4636 = vmatpush2.msra.mxu0 0.0
        %4637 = vmatprep.subr.mxu0 0.0
        %4638 = vmatpush2.msra.mxu0 0.0
        %4639 = vmatprep.subr.mxu0 0.0
        %4640 = vmatpush2.msra.mxu0 0.0
        %4641 = vmatprep.subr.mxu0 0.0
        %4642 = vmatpush2.msra.mxu0 0.0
        %4643 = vmatprep.subr.mxu0 0.0
        %4644 = vmatpush2.msra.mxu0 0.0
        %4645 = vmatprep.mubr.f32.mxu0 0.0
        %v4646 = vand.u32 %v350, 4294901760
        %4647 = vmatmul.mubr.f32.gmra.mxu0 %v4646
        %v4648 = vpop.f32.mrf.mxu0
        %v4649 = vadd.f32 %v4544, %v4648
        %v4650 = vpop.f32.mrf.mxu0
        %v4651 = vadd.f32 %v4546, %v4650
        %4652 = vmatprep.mubr.f32.mxu0 0.0
        %v4653 = vand.u32 %v353, 4294901760
        %4654 = vmatmul.mubr.f32.gmra.mxu0 %v4653
        %v4655 = vpop.f32.mrf.mxu0
        %v4656 = vadd.f32 %v4553, %v4655
        %v4657 = vpop.f32.mrf.mxu0
        %v4658 = vadd.f32 %v4555, %v4657
        %4659 = vmatprep.mubr.f32.mxu0 0.0
        %v4660 = vand.u32 %v356, 4294901760
        %4661 = vmatmul.mubr.f32.gmra.mxu0 %v4660
        %v4662 = vpop.f32.mrf.mxu0
        %v4663 = vadd.f32 %v4562, %v4662
        %v4664 = vpop.f32.mrf.mxu0
        %v4665 = vadd.f32 %v4564, %v4664
        %4666 = vmatprep.mubr.f32.mxu0 0.0
        %v4667 = vand.u32 %v359, 4294901760
        %4668 = vmatmul.mubr.f32.gmra.mxu0 %v4667
        %v4669 = vpop.f32.mrf.mxu0
        %v4670 = vadd.f32 %v4571, %v4669
        %v4671 = vpop.f32.mrf.mxu0
        %v4672 = vadd.f32 %v4573, %v4671
        %4673 = vdwg.mxu0
        %4674 = vmatprep.subr.mxu0 0.0
        %4675 = vmatpush1.msra.mxu0 0.0
        %4676 = vmatprep.subr.mxu0 0.0
        %4677 = vmatpush1.msra.mxu0 0.0
        %4678 = vmatprep.subr.mxu0 0.0
        %4679 = vmatpush1.msra.mxu0 0.0
        %4680 = vmatprep.subr.mxu0 0.0
        %4681 = vmatpush1.msra.mxu0 0.0
        %4682 = vmatprep.subr.mxu0 0.0
        %4683 = vmatpush1.msra.mxu0 0.0
        %4684 = vmatprep.subr.mxu0 0.0
        %4685 = vmatpush1.msra.mxu0 0.0
        %4686 = vmatprep.subr.mxu0 0.0
        %4687 = vmatpush1.msra.mxu0 0.0
        %4688 = vmatprep.subr.mxu0 0.0
        %4689 = vmatpush1.msra.mxu0 0.0
        %4690 = vmatprep.subr.mxu0 0.0
        %4691 = vmatpush1.msra.mxu0 0.0
        %4692 = vmatprep.subr.mxu0 0.0
        %4693 = vmatpush1.msra.mxu0 0.0
        %4694 = vmatprep.subr.mxu0 0.0
        %4695 = vmatpush1.msra.mxu0 0.0
        %4696 = vmatprep.subr.mxu0 0.0
        %4697 = vmatpush1.msra.mxu0 0.0
        %4698 = vmatprep.subr.mxu0 0.0
        %4699 = vmatpush1.msra.mxu0 0.0
        %4700 = vmatprep.subr.mxu0 0.0
        %4701 = vmatpush1.msra.mxu0 0.0
        %4702 = vmatprep.subr.mxu0 0.0
        %4703 = vmatpush1.msra.mxu0 0.0
        %v4704 = vand.u32 %v4151, 4294901760
        %4705 = vmatprep.subr.mxu0 %v4704
        %v4706 = vand.u32 %v4149, 4294901760
        %4707 = vmatpush1.msra.mxu0 %v4706
        %4708 = vmatprep.subr.mxu0 0.0
        %4709 = vmatpush2.msra.mxu0 0.0
        %4710 = vmatprep.subr.mxu0 0.0
        %4711 = vmatpush2.msra.mxu0 0.0
        %4712 = vmatprep.subr.mxu0 0.0
        %4713 = vmatpush2.msra.mxu0 0.0
        %4714 = vmatprep.subr.mxu0 0.0
        %4715 = vmatpush2.msra.mxu0 0.0
        %4716 = vmatprep.subr.mxu0 0.0
        %4717 = vmatpush2.msra.mxu0 0.0
        %4718 = vmatprep.subr.mxu0 0.0
        %4719 = vmatpush2.msra.mxu0 0.0
        %4720 = vmatprep.subr.mxu0 0.0
        %4721 = vmatpush2.msra.mxu0 0.0
        %4722 = vmatprep.subr.mxu0 0.0
        %4723 = vmatpush2.msra.mxu0 0.0
        %4724 = vmatprep.subr.mxu0 0.0
        %4725 = vmatpush2.msra.mxu0 0.0
        %4726 = vmatprep.subr.mxu0 0.0
        %4727 = vmatpush2.msra.mxu0 0.0
        %4728 = vmatprep.subr.mxu0 0.0
        %4729 = vmatpush2.msra.mxu0 0.0
        %4730 = vmatprep.subr.mxu0 0.0
        %4731 = vmatpush2.msra.mxu0 0.0
        %4732 = vmatprep.subr.mxu0 0.0
        %4733 = vmatpush2.msra.mxu0 0.0
        %4734 = vmatprep.subr.mxu0 0.0
        %4735 = vmatpush2.msra.mxu0 0.0
        %4736 = vmatprep.subr.mxu0 0.0
        %4737 = vmatpush2.msra.mxu0 0.0
        %4738 = vmatprep.subr.mxu0 0.0
        %4739 = vmatpush2.msra.mxu0 0.0
        %4740 = vmatprep.mubr.f32.mxu0 0.0
        %v4741 = vand.u32 %v350, 4294901760
        %4742 = vmatmul.mubr.f32.gmra.mxu0 %v4741
        %v4743 = vpop.f32.mrf.mxu0
        %v4744 = vadd.f32 %v4649, %v4743
        %v4745 = vpop.f32.mrf.mxu0
        %v4746 = vadd.f32 %v4651, %v4745
        %4747 = vmatprep.mubr.f32.mxu0 0.0
        %v4748 = vand.u32 %v353, 4294901760
        %4749 = vmatmul.mubr.f32.gmra.mxu0 %v4748
        %v4750 = vpop.f32.mrf.mxu0
        %v4751 = vadd.f32 %v4656, %v4750
        %v4752 = vpop.f32.mrf.mxu0
        %v4753 = vadd.f32 %v4658, %v4752
        %4754 = vmatprep.mubr.f32.mxu0 0.0
        %v4755 = vand.u32 %v356, 4294901760
        %4756 = vmatmul.mubr.f32.gmra.mxu0 %v4755
        %v4757 = vpop.f32.mrf.mxu0
        %v4758 = vadd.f32 %v4663, %v4757
        %v4759 = vpop.f32.mrf.mxu0
        %v4760 = vadd.f32 %v4665, %v4759
        %4761 = vmatprep.mubr.f32.mxu0 0.0
        %v4762 = vand.u32 %v359, 4294901760
        %4763 = vmatmul.mubr.f32.gmra.mxu0 %v4762
        %v4764 = vpop.f32.mrf.mxu0
        %v4765 = vadd.f32 %v4670, %v4764
        %v4766 = vpop.f32.mrf.mxu0
        %v4767 = vadd.f32 %v4672, %v4766
        %4768 = vdwg.mxu0
        %4769 = vmatprep.subr.mxu0 0.0
        %4770 = vmatpush1.msra.mxu0 0.0
        %4771 = vmatprep.subr.mxu0 0.0
        %4772 = vmatpush1.msra.mxu0 0.0
        %4773 = vmatprep.subr.mxu0 0.0
        %4774 = vmatpush1.msra.mxu0 0.0
        %4775 = vmatprep.subr.mxu0 0.0
        %4776 = vmatpush1.msra.mxu0 0.0
        %4777 = vmatprep.subr.mxu0 0.0
        %4778 = vmatpush1.msra.mxu0 0.0
        %4779 = vmatprep.subr.mxu0 0.0
        %4780 = vmatpush1.msra.mxu0 0.0
        %4781 = vmatprep.subr.mxu0 0.0
        %4782 = vmatpush1.msra.mxu0 0.0
        %4783 = vmatprep.subr.mxu0 0.0
        %4784 = vmatpush1.msra.mxu0 0.0
        %4785 = vmatprep.subr.mxu0 0.0
        %4786 = vmatpush1.msra.mxu0 0.0
        %4787 = vmatprep.subr.mxu0 0.0
        %4788 = vmatpush1.msra.mxu0 0.0
        %4789 = vmatprep.subr.mxu0 0.0
        %4790 = vmatpush1.msra.mxu0 0.0
        %4791 = vmatprep.subr.mxu0 0.0
        %4792 = vmatpush1.msra.mxu0 0.0
        %4793 = vmatprep.subr.mxu0 0.0
        %4794 = vmatpush1.msra.mxu0 0.0
        %4795 = vmatprep.subr.mxu0 0.0
        %4796 = vmatpush1.msra.mxu0 0.0
        %4797 = vmatprep.subr.mxu0 0.0
        %4798 = vmatpush1.msra.mxu0 0.0
        %v4799 = vand.u32 %v4155, 4294901760
        %4800 = vmatprep.subr.mxu0 %v4799
        %v4801 = vand.u32 %v4153, 4294901760
        %4802 = vmatpush1.msra.mxu0 %v4801
        %4803 = vmatprep.subr.mxu0 0.0
        %4804 = vmatpush2.msra.mxu0 0.0
        %4805 = vmatprep.subr.mxu0 0.0
        %4806 = vmatpush2.msra.mxu0 0.0
        %4807 = vmatprep.subr.mxu0 0.0
        %4808 = vmatpush2.msra.mxu0 0.0
        %4809 = vmatprep.subr.mxu0 0.0
        %4810 = vmatpush2.msra.mxu0 0.0
        %4811 = vmatprep.subr.mxu0 0.0
        %4812 = vmatpush2.msra.mxu0 0.0
        %4813 = vmatprep.subr.mxu0 0.0
        %4814 = vmatpush2.msra.mxu0 0.0
        %4815 = vmatprep.subr.mxu0 0.0
        %4816 = vmatpush2.msra.mxu0 0.0
        %4817 = vmatprep.subr.mxu0 0.0
        %4818 = vmatpush2.msra.mxu0 0.0
        %4819 = vmatprep.subr.mxu0 0.0
        %4820 = vmatpush2.msra.mxu0 0.0
        %4821 = vmatprep.subr.mxu0 0.0
        %4822 = vmatpush2.msra.mxu0 0.0
        %4823 = vmatprep.subr.mxu0 0.0
        %4824 = vmatpush2.msra.mxu0 0.0
        %4825 = vmatprep.subr.mxu0 0.0
        %4826 = vmatpush2.msra.mxu0 0.0
        %4827 = vmatprep.subr.mxu0 0.0
        %4828 = vmatpush2.msra.mxu0 0.0
        %4829 = vmatprep.subr.mxu0 0.0
        %4830 = vmatpush2.msra.mxu0 0.0
        %4831 = vmatprep.subr.mxu0 0.0
        %4832 = vmatpush2.msra.mxu0 0.0
        %4833 = vmatprep.subr.mxu0 0.0
        %4834 = vmatpush2.msra.mxu0 0.0
        %4835 = vmatprep.mubr.f32.mxu0 0.0
        %v4836 = vand.u32 %v350, 4294901760
        %v4837 = vsub.f32 %v350, %v4836
        %v4838 = vand.u32 %v4837, 4294901760
        %v4839 = vsub.f32 %v4837, %v4838
        %v4840 = vand.u32 %v4839, 4294901760
        %4841 = vmatmul.mubr.f32.gmra.mxu0 %v4840
        %v4842 = vpop.f32.mrf.mxu0
        %v4843 = vadd.f32 %v327, %v4842
        %v4844 = vpop.f32.mrf.mxu0
        %v4845 = vadd.f32 %v327, %v4844
        %4846 = vmatprep.mubr.f32.mxu0 0.0
        %v4847 = vand.u32 %v353, 4294901760
        %v4848 = vsub.f32 %v353, %v4847
        %v4849 = vand.u32 %v4848, 4294901760
        %v4850 = vsub.f32 %v4848, %v4849
        %v4851 = vand.u32 %v4850, 4294901760
        %4852 = vmatmul.mubr.f32.gmra.mxu0 %v4851
        %v4853 = vpop.f32.mrf.mxu0
        %v4854 = vadd.f32 %v332, %v4853
        %v4855 = vpop.f32.mrf.mxu0
        %v4856 = vadd.f32 %v332, %v4855
        %4857 = vmatprep.mubr.f32.mxu0 0.0
        %v4858 = vand.u32 %v356, 4294901760
        %v4859 = vsub.f32 %v356, %v4858
        %v4860 = vand.u32 %v4859, 4294901760
        %v4861 = vsub.f32 %v4859, %v4860
        %v4862 = vand.u32 %v4861, 4294901760
        %4863 = vmatmul.mubr.f32.gmra.mxu0 %v4862
        %v4864 = vpop.f32.mrf.mxu0
        %v4865 = vadd.f32 %v337, %v4864
        %v4866 = vpop.f32.mrf.mxu0
        %v4867 = vadd.f32 %v337, %v4866
        %4868 = vmatprep.mubr.f32.mxu0 0.0
        %v4869 = vand.u32 %v359, 4294901760
        %v4870 = vsub.f32 %v359, %v4869
        %v4871 = vand.u32 %v4870, 4294901760
        %v4872 = vsub.f32 %v4870, %v4871
        %v4873 = vand.u32 %v4872, 4294901760
        %4874 = vmatmul.mubr.f32.gmra.mxu0 %v4873
        %v4875 = vpop.f32.mrf.mxu0
        %v4876 = vadd.f32 %v342, %v4875
        %v4877 = vpop.f32.mrf.mxu0
        %v4878 = vadd.f32 %v342, %v4877
        %4879 = vdwg.mxu0
        %4880 = vmatprep.subr.mxu0 0.0
        %4881 = vmatpush1.msra.mxu0 0.0
        %4882 = vmatprep.subr.mxu0 0.0
        %4883 = vmatpush1.msra.mxu0 0.0
        %4884 = vmatprep.subr.mxu0 0.0
        %4885 = vmatpush1.msra.mxu0 0.0
        %4886 = vmatprep.subr.mxu0 0.0
        %4887 = vmatpush1.msra.mxu0 0.0
        %4888 = vmatprep.subr.mxu0 0.0
        %4889 = vmatpush1.msra.mxu0 0.0
        %4890 = vmatprep.subr.mxu0 0.0
        %4891 = vmatpush1.msra.mxu0 0.0
        %4892 = vmatprep.subr.mxu0 0.0
        %4893 = vmatpush1.msra.mxu0 0.0
        %4894 = vmatprep.subr.mxu0 0.0
        %4895 = vmatpush1.msra.mxu0 0.0
        %4896 = vmatprep.subr.mxu0 0.0
        %4897 = vmatpush1.msra.mxu0 0.0
        %4898 = vmatprep.subr.mxu0 0.0
        %4899 = vmatpush1.msra.mxu0 0.0
        %4900 = vmatprep.subr.mxu0 0.0
        %4901 = vmatpush1.msra.mxu0 0.0
        %4902 = vmatprep.subr.mxu0 0.0
        %4903 = vmatpush1.msra.mxu0 0.0
        %4904 = vmatprep.subr.mxu0 0.0
        %4905 = vmatpush1.msra.mxu0 0.0
        %4906 = vmatprep.subr.mxu0 0.0
        %4907 = vmatpush1.msra.mxu0 0.0
        %4908 = vmatprep.subr.mxu0 0.0
        %4909 = vmatpush1.msra.mxu0 0.0
        %v4910 = vand.u32 %v4155, 4294901760
        %v4911 = vsub.f32 %v4155, %v4910
        %v4912 = vand.u32 %v4911, 4294901760
        %v4913 = vsub.f32 %v4911, %v4912
        %v4914 = vand.u32 %v4913, 4294901760
        %4915 = vmatprep.subr.mxu0 %v4914
        %v4916 = vand.u32 %v4153, 4294901760
        %v4917 = vsub.f32 %v4153, %v4916
        %v4918 = vand.u32 %v4917, 4294901760
        %v4919 = vsub.f32 %v4917, %v4918
        %v4920 = vand.u32 %v4919, 4294901760
        %4921 = vmatpush1.msra.mxu0 %v4920
        %4922 = vmatprep.subr.mxu0 0.0
        %4923 = vmatpush2.msra.mxu0 0.0
        %4924 = vmatprep.subr.mxu0 0.0
        %4925 = vmatpush2.msra.mxu0 0.0
        %4926 = vmatprep.subr.mxu0 0.0
        %4927 = vmatpush2.msra.mxu0 0.0
        %4928 = vmatprep.subr.mxu0 0.0
        %4929 = vmatpush2.msra.mxu0 0.0
        %4930 = vmatprep.subr.mxu0 0.0
        %4931 = vmatpush2.msra.mxu0 0.0
        %4932 = vmatprep.subr.mxu0 0.0
        %4933 = vmatpush2.msra.mxu0 0.0
        %4934 = vmatprep.subr.mxu0 0.0
        %4935 = vmatpush2.msra.mxu0 0.0
        %4936 = vmatprep.subr.mxu0 0.0
        %4937 = vmatpush2.msra.mxu0 0.0
        %4938 = vmatprep.subr.mxu0 0.0
        %4939 = vmatpush2.msra.mxu0 0.0
        %4940 = vmatprep.subr.mxu0 0.0
        %4941 = vmatpush2.msra.mxu0 0.0
        %4942 = vmatprep.subr.mxu0 0.0
        %4943 = vmatpush2.msra.mxu0 0.0
        %4944 = vmatprep.subr.mxu0 0.0
        %4945 = vmatpush2.msra.mxu0 0.0
        %4946 = vmatprep.subr.mxu0 0.0
        %4947 = vmatpush2.msra.mxu0 0.0
        %4948 = vmatprep.subr.mxu0 0.0
        %4949 = vmatpush2.msra.mxu0 0.0
        %4950 = vmatprep.subr.mxu0 0.0
        %4951 = vmatpush2.msra.mxu0 0.0
        %4952 = vmatprep.subr.mxu0 0.0
        %4953 = vmatpush2.msra.mxu0 0.0
        %4954 = vmatprep.mubr.f32.mxu0 0.0
        %v4955 = vand.u32 %v350, 4294901760
        %4956 = vmatmul.mubr.f32.gmra.mxu0 %v4955
        %v4957 = vpop.f32.mrf.mxu0
        %v4958 = vadd.f32 %v4843, %v4957
        %v4959 = vpop.f32.mrf.mxu0
        %v4960 = vadd.f32 %v4845, %v4959
        %4961 = vmatprep.mubr.f32.mxu0 0.0
        %v4962 = vand.u32 %v353, 4294901760
        %4963 = vmatmul.mubr.f32.gmra.mxu0 %v4962
        %v4964 = vpop.f32.mrf.mxu0
        %v4965 = vadd.f32 %v4854, %v4964
        %v4966 = vpop.f32.mrf.mxu0
        %v4967 = vadd.f32 %v4856, %v4966
        %4968 = vmatprep.mubr.f32.mxu0 0.0
        %v4969 = vand.u32 %v356, 4294901760
        %4970 = vmatmul.mubr.f32.gmra.mxu0 %v4969
        %v4971 = vpop.f32.mrf.mxu0
        %v4972 = vadd.f32 %v4865, %v4971
        %v4973 = vpop.f32.mrf.mxu0
        %v4974 = vadd.f32 %v4867, %v4973
        %4975 = vmatprep.mubr.f32.mxu0 0.0
        %v4976 = vand.u32 %v359, 4294901760
        %4977 = vmatmul.mubr.f32.gmra.mxu0 %v4976
        %v4978 = vpop.f32.mrf.mxu0
        %v4979 = vadd.f32 %v4876, %v4978
        %v4980 = vpop.f32.mrf.mxu0
        %v4981 = vadd.f32 %v4878, %v4980
        %4982 = vdwg.mxu0
        %4983 = vmatprep.subr.mxu0 0.0
        %4984 = vmatpush1.msra.mxu0 0.0
        %4985 = vmatprep.subr.mxu0 0.0
        %4986 = vmatpush1.msra.mxu0 0.0
        %4987 = vmatprep.subr.mxu0 0.0
        %4988 = vmatpush1.msra.mxu0 0.0
        %4989 = vmatprep.subr.mxu0 0.0
        %4990 = vmatpush1.msra.mxu0 0.0
        %4991 = vmatprep.subr.mxu0 0.0
        %4992 = vmatpush1.msra.mxu0 0.0
        %4993 = vmatprep.subr.mxu0 0.0
        %4994 = vmatpush1.msra.mxu0 0.0
        %4995 = vmatprep.subr.mxu0 0.0
        %4996 = vmatpush1.msra.mxu0 0.0
        %4997 = vmatprep.subr.mxu0 0.0
        %4998 = vmatpush1.msra.mxu0 0.0
        %4999 = vmatprep.subr.mxu0 0.0
        %5000 = vmatpush1.msra.mxu0 0.0
        %5001 = vmatprep.subr.mxu0 0.0
        %5002 = vmatpush1.msra.mxu0 0.0
        %5003 = vmatprep.subr.mxu0 0.0
        %5004 = vmatpush1.msra.mxu0 0.0
        %5005 = vmatprep.subr.mxu0 0.0
        %5006 = vmatpush1.msra.mxu0 0.0
        %5007 = vmatprep.subr.mxu0 0.0
        %5008 = vmatpush1.msra.mxu0 0.0
        %5009 = vmatprep.subr.mxu0 0.0
        %5010 = vmatpush1.msra.mxu0 0.0
        %5011 = vmatprep.subr.mxu0 0.0
        %5012 = vmatpush1.msra.mxu0 0.0
        %v5013 = vand.u32 %v4155, 4294901760
        %v5014 = vsub.f32 %v4155, %v5013
        %5015 = vmatprep.subr.mxu0 %v5014
        %v5016 = vand.u32 %v4153, 4294901760
        %v5017 = vsub.f32 %v4153, %v5016
        %5018 = vmatpush1.msra.mxu0 %v5017
        %5019 = vmatprep.subr.mxu0 0.0
        %5020 = vmatpush2.msra.mxu0 0.0
        %5021 = vmatprep.subr.mxu0 0.0
        %5022 = vmatpush2.msra.mxu0 0.0
        %5023 = vmatprep.subr.mxu0 0.0
        %5024 = vmatpush2.msra.mxu0 0.0
        %5025 = vmatprep.subr.mxu0 0.0
        %5026 = vmatpush2.msra.mxu0 0.0
        %5027 = vmatprep.subr.mxu0 0.0
        %5028 = vmatpush2.msra.mxu0 0.0
        %5029 = vmatprep.subr.mxu0 0.0
        %5030 = vmatpush2.msra.mxu0 0.0
        %5031 = vmatprep.subr.mxu0 0.0
        %5032 = vmatpush2.msra.mxu0 0.0
        %5033 = vmatprep.subr.mxu0 0.0
        %5034 = vmatpush2.msra.mxu0 0.0
        %5035 = vmatprep.subr.mxu0 0.0
        %5036 = vmatpush2.msra.mxu0 0.0
        %5037 = vmatprep.subr.mxu0 0.0
        %5038 = vmatpush2.msra.mxu0 0.0
        %5039 = vmatprep.subr.mxu0 0.0
        %5040 = vmatpush2.msra.mxu0 0.0
        %5041 = vmatprep.subr.mxu0 0.0
        %5042 = vmatpush2.msra.mxu0 0.0
        %5043 = vmatprep.subr.mxu0 0.0
        %5044 = vmatpush2.msra.mxu0 0.0
        %5045 = vmatprep.subr.mxu0 0.0
        %5046 = vmatpush2.msra.mxu0 0.0
        %5047 = vmatprep.subr.mxu0 0.0
        %5048 = vmatpush2.msra.mxu0 0.0
        %5049 = vmatprep.subr.mxu0 0.0
        %5050 = vmatpush2.msra.mxu0 0.0
        %5051 = vmatprep.mubr.f32.mxu0 0.0
        %v5052 = vand.u32 %v350, 4294901760
        %v5053 = vsub.f32 %v350, %v5052
        %5054 = vmatmul.mubr.f32.gmra.mxu0 %v5053
        %v5055 = vpop.f32.mrf.mxu0
        %v5056 = vadd.f32 %v4958, %v5055
        %v5057 = vpop.f32.mrf.mxu0
        %v5058 = vadd.f32 %v4960, %v5057
        %5059 = vmatprep.mubr.f32.mxu0 0.0
        %v5060 = vand.u32 %v353, 4294901760
        %v5061 = vsub.f32 %v353, %v5060
        %5062 = vmatmul.mubr.f32.gmra.mxu0 %v5061
        %v5063 = vpop.f32.mrf.mxu0
        %v5064 = vadd.f32 %v4965, %v5063
        %v5065 = vpop.f32.mrf.mxu0
        %v5066 = vadd.f32 %v4967, %v5065
        %5067 = vmatprep.mubr.f32.mxu0 0.0
        %v5068 = vand.u32 %v356, 4294901760
        %v5069 = vsub.f32 %v356, %v5068
        %5070 = vmatmul.mubr.f32.gmra.mxu0 %v5069
        %v5071 = vpop.f32.mrf.mxu0
        %v5072 = vadd.f32 %v4972, %v5071
        %v5073 = vpop.f32.mrf.mxu0
        %v5074 = vadd.f32 %v4974, %v5073
        %5075 = vmatprep.mubr.f32.mxu0 0.0
        %v5076 = vand.u32 %v359, 4294901760
        %v5077 = vsub.f32 %v359, %v5076
        %5078 = vmatmul.mubr.f32.gmra.mxu0 %v5077
        %v5079 = vpop.f32.mrf.mxu0
        %v5080 = vadd.f32 %v4979, %v5079
        %v5081 = vpop.f32.mrf.mxu0
        %v5082 = vadd.f32 %v4981, %v5081
        %5083 = vdwg.mxu0
        %5084 = vmatprep.subr.mxu0 0.0
        %5085 = vmatpush1.msra.mxu0 0.0
        %5086 = vmatprep.subr.mxu0 0.0
        %5087 = vmatpush1.msra.mxu0 0.0
        %5088 = vmatprep.subr.mxu0 0.0
        %5089 = vmatpush1.msra.mxu0 0.0
        %5090 = vmatprep.subr.mxu0 0.0
        %5091 = vmatpush1.msra.mxu0 0.0
        %5092 = vmatprep.subr.mxu0 0.0
        %5093 = vmatpush1.msra.mxu0 0.0
        %5094 = vmatprep.subr.mxu0 0.0
        %5095 = vmatpush1.msra.mxu0 0.0
        %5096 = vmatprep.subr.mxu0 0.0
        %5097 = vmatpush1.msra.mxu0 0.0
        %5098 = vmatprep.subr.mxu0 0.0
        %5099 = vmatpush1.msra.mxu0 0.0
        %5100 = vmatprep.subr.mxu0 0.0
        %5101 = vmatpush1.msra.mxu0 0.0
        %5102 = vmatprep.subr.mxu0 0.0
        %5103 = vmatpush1.msra.mxu0 0.0
        %5104 = vmatprep.subr.mxu0 0.0
        %5105 = vmatpush1.msra.mxu0 0.0
        %5106 = vmatprep.subr.mxu0 0.0
        %5107 = vmatpush1.msra.mxu0 0.0
        %5108 = vmatprep.subr.mxu0 0.0
        %5109 = vmatpush1.msra.mxu0 0.0
        %5110 = vmatprep.subr.mxu0 0.0
        %5111 = vmatpush1.msra.mxu0 0.0
        %5112 = vmatprep.subr.mxu0 0.0
        %5113 = vmatpush1.msra.mxu0 0.0
        %v5114 = vand.u32 %v4155, 4294901760
        %5115 = vmatprep.subr.mxu0 %v5114
        %v5116 = vand.u32 %v4153, 4294901760
        %5117 = vmatpush1.msra.mxu0 %v5116
        %5118 = vmatprep.subr.mxu0 0.0
        %5119 = vmatpush2.msra.mxu0 0.0
        %5120 = vmatprep.subr.mxu0 0.0
        %5121 = vmatpush2.msra.mxu0 0.0
        %5122 = vmatprep.subr.mxu0 0.0
        %5123 = vmatpush2.msra.mxu0 0.0
        %5124 = vmatprep.subr.mxu0 0.0
        %5125 = vmatpush2.msra.mxu0 0.0
        %5126 = vmatprep.subr.mxu0 0.0
        %5127 = vmatpush2.msra.mxu0 0.0
        %5128 = vmatprep.subr.mxu0 0.0
        %5129 = vmatpush2.msra.mxu0 0.0
        %5130 = vmatprep.subr.mxu0 0.0
        %5131 = vmatpush2.msra.mxu0 0.0
        %5132 = vmatprep.subr.mxu0 0.0
        %5133 = vmatpush2.msra.mxu0 0.0
        %5134 = vmatprep.subr.mxu0 0.0
        %5135 = vmatpush2.msra.mxu0 0.0
        %5136 = vmatprep.subr.mxu0 0.0
        %5137 = vmatpush2.msra.mxu0 0.0
        %5138 = vmatprep.subr.mxu0 0.0
        %5139 = vmatpush2.msra.mxu0 0.0
        %5140 = vmatprep.subr.mxu0 0.0
        %5141 = vmatpush2.msra.mxu0 0.0
        %5142 = vmatprep.subr.mxu0 0.0
        %5143 = vmatpush2.msra.mxu0 0.0
        %5144 = vmatprep.subr.mxu0 0.0
        %5145 = vmatpush2.msra.mxu0 0.0
        %5146 = vmatprep.subr.mxu0 0.0
        %5147 = vmatpush2.msra.mxu0 0.0
        %5148 = vmatprep.subr.mxu0 0.0
        %5149 = vmatpush2.msra.mxu0 0.0
        %5150 = vmatprep.mubr.f32.mxu0 0.0
        %v5151 = vand.u32 %v350, 4294901760
        %v5152 = vsub.f32 %v350, %v5151
        %v5153 = vand.u32 %v5152, 4294901760
        %5154 = vmatmul.mubr.f32.gmra.mxu0 %v5153
        %v5155 = vpop.f32.mrf.mxu0
        %v5156 = vadd.f32 %v5056, %v5155
        %v5157 = vpop.f32.mrf.mxu0
        %v5158 = vadd.f32 %v5058, %v5157
        %5159 = vmatprep.mubr.f32.mxu0 0.0
        %v5160 = vand.u32 %v353, 4294901760
        %v5161 = vsub.f32 %v353, %v5160
        %v5162 = vand.u32 %v5161, 4294901760
        %5163 = vmatmul.mubr.f32.gmra.mxu0 %v5162
        %v5164 = vpop.f32.mrf.mxu0
        %v5165 = vadd.f32 %v5064, %v5164
        %v5166 = vpop.f32.mrf.mxu0
        %v5167 = vadd.f32 %v5066, %v5166
        %5168 = vmatprep.mubr.f32.mxu0 0.0
        %v5169 = vand.u32 %v356, 4294901760
        %v5170 = vsub.f32 %v356, %v5169
        %v5171 = vand.u32 %v5170, 4294901760
        %5172 = vmatmul.mubr.f32.gmra.mxu0 %v5171
        %v5173 = vpop.f32.mrf.mxu0
        %v5174 = vadd.f32 %v5072, %v5173
        %v5175 = vpop.f32.mrf.mxu0
        %v5176 = vadd.f32 %v5074, %v5175
        %5177 = vmatprep.mubr.f32.mxu0 0.0
        %v5178 = vand.u32 %v359, 4294901760
        %v5179 = vsub.f32 %v359, %v5178
        %v5180 = vand.u32 %v5179, 4294901760
        %5181 = vmatmul.mubr.f32.gmra.mxu0 %v5180
        %v5182 = vpop.f32.mrf.mxu0
        %v5183 = vadd.f32 %v5080, %v5182
        %v5184 = vpop.f32.mrf.mxu0
        %v5185 = vadd.f32 %v5082, %v5184
        %5186 = vdwg.mxu0
        %5187 = vmatprep.subr.mxu0 0.0
        %5188 = vmatpush1.msra.mxu0 0.0
        %5189 = vmatprep.subr.mxu0 0.0
        %5190 = vmatpush1.msra.mxu0 0.0
        %5191 = vmatprep.subr.mxu0 0.0
        %5192 = vmatpush1.msra.mxu0 0.0
        %5193 = vmatprep.subr.mxu0 0.0
        %5194 = vmatpush1.msra.mxu0 0.0
        %5195 = vmatprep.subr.mxu0 0.0
        %5196 = vmatpush1.msra.mxu0 0.0
        %5197 = vmatprep.subr.mxu0 0.0
        %5198 = vmatpush1.msra.mxu0 0.0
        %5199 = vmatprep.subr.mxu0 0.0
        %5200 = vmatpush1.msra.mxu0 0.0
        %5201 = vmatprep.subr.mxu0 0.0
        %5202 = vmatpush1.msra.mxu0 0.0
        %5203 = vmatprep.subr.mxu0 0.0
        %5204 = vmatpush1.msra.mxu0 0.0
        %5205 = vmatprep.subr.mxu0 0.0
        %5206 = vmatpush1.msra.mxu0 0.0
        %5207 = vmatprep.subr.mxu0 0.0
        %5208 = vmatpush1.msra.mxu0 0.0
        %5209 = vmatprep.subr.mxu0 0.0
        %5210 = vmatpush1.msra.mxu0 0.0
        %5211 = vmatprep.subr.mxu0 0.0
        %5212 = vmatpush1.msra.mxu0 0.0
        %5213 = vmatprep.subr.mxu0 0.0
        %5214 = vmatpush1.msra.mxu0 0.0
        %5215 = vmatprep.subr.mxu0 0.0
        %5216 = vmatpush1.msra.mxu0 0.0
        %v5217 = vand.u32 %v4155, 4294901760
        %v5218 = vsub.f32 %v4155, %v5217
        %v5219 = vand.u32 %v5218, 4294901760
        %5220 = vmatprep.subr.mxu0 %v5219
        %v5221 = vand.u32 %v4153, 4294901760
        %v5222 = vsub.f32 %v4153, %v5221
        %v5223 = vand.u32 %v5222, 4294901760
        %5224 = vmatpush1.msra.mxu0 %v5223
        %5225 = vmatprep.subr.mxu0 0.0
        %5226 = vmatpush2.msra.mxu0 0.0
        %5227 = vmatprep.subr.mxu0 0.0
        %5228 = vmatpush2.msra.mxu0 0.0
        %5229 = vmatprep.subr.mxu0 0.0
        %5230 = vmatpush2.msra.mxu0 0.0
        %5231 = vmatprep.subr.mxu0 0.0
        %5232 = vmatpush2.msra.mxu0 0.0
        %5233 = vmatprep.subr.mxu0 0.0
        %5234 = vmatpush2.msra.mxu0 0.0
        %5235 = vmatprep.subr.mxu0 0.0
        %5236 = vmatpush2.msra.mxu0 0.0
        %5237 = vmatprep.subr.mxu0 0.0
        %5238 = vmatpush2.msra.mxu0 0.0
        %5239 = vmatprep.subr.mxu0 0.0
        %5240 = vmatpush2.msra.mxu0 0.0
        %5241 = vmatprep.subr.mxu0 0.0
        %5242 = vmatpush2.msra.mxu0 0.0
        %5243 = vmatprep.subr.mxu0 0.0
        %5244 = vmatpush2.msra.mxu0 0.0
        %5245 = vmatprep.subr.mxu0 0.0
        %5246 = vmatpush2.msra.mxu0 0.0
        %5247 = vmatprep.subr.mxu0 0.0
        %5248 = vmatpush2.msra.mxu0 0.0
        %5249 = vmatprep.subr.mxu0 0.0
        %5250 = vmatpush2.msra.mxu0 0.0
        %5251 = vmatprep.subr.mxu0 0.0
        %5252 = vmatpush2.msra.mxu0 0.0
        %5253 = vmatprep.subr.mxu0 0.0
        %5254 = vmatpush2.msra.mxu0 0.0
        %5255 = vmatprep.subr.mxu0 0.0
        %5256 = vmatpush2.msra.mxu0 0.0
        %5257 = vmatprep.mubr.f32.mxu0 0.0
        %v5258 = vand.u32 %v350, 4294901760
        %5259 = vmatmul.mubr.f32.gmra.mxu0 %v5258
        %v5260 = vpop.f32.mrf.mxu0
        %v5261 = vadd.f32 %v5156, %v5260
        %v5262 = vpop.f32.mrf.mxu0
        %v5263 = vadd.f32 %v5158, %v5262
        %5264 = vmatprep.mubr.f32.mxu0 0.0
        %v5265 = vand.u32 %v353, 4294901760
        %5266 = vmatmul.mubr.f32.gmra.mxu0 %v5265
        %v5267 = vpop.f32.mrf.mxu0
        %v5268 = vadd.f32 %v5165, %v5267
        %v5269 = vpop.f32.mrf.mxu0
        %v5270 = vadd.f32 %v5167, %v5269
        %5271 = vmatprep.mubr.f32.mxu0 0.0
        %v5272 = vand.u32 %v356, 4294901760
        %5273 = vmatmul.mubr.f32.gmra.mxu0 %v5272
        %v5274 = vpop.f32.mrf.mxu0
        %v5275 = vadd.f32 %v5174, %v5274
        %v5276 = vpop.f32.mrf.mxu0
        %v5277 = vadd.f32 %v5176, %v5276
        %5278 = vmatprep.mubr.f32.mxu0 0.0
        %v5279 = vand.u32 %v359, 4294901760
        %5280 = vmatmul.mubr.f32.gmra.mxu0 %v5279
        %v5281 = vpop.f32.mrf.mxu0
        %v5282 = vadd.f32 %v5183, %v5281
        %v5283 = vpop.f32.mrf.mxu0
        %v5284 = vadd.f32 %v5185, %v5283
        %5285 = vdwg.mxu0
        %5286 = vmatprep.subr.mxu0 0.0
        %5287 = vmatpush1.msra.mxu0 0.0
        %5288 = vmatprep.subr.mxu0 0.0
        %5289 = vmatpush1.msra.mxu0 0.0
        %5290 = vmatprep.subr.mxu0 0.0
        %5291 = vmatpush1.msra.mxu0 0.0
        %5292 = vmatprep.subr.mxu0 0.0
        %5293 = vmatpush1.msra.mxu0 0.0
        %5294 = vmatprep.subr.mxu0 0.0
        %5295 = vmatpush1.msra.mxu0 0.0
        %5296 = vmatprep.subr.mxu0 0.0
        %5297 = vmatpush1.msra.mxu0 0.0
        %5298 = vmatprep.subr.mxu0 0.0
        %5299 = vmatpush1.msra.mxu0 0.0
        %5300 = vmatprep.subr.mxu0 0.0
        %5301 = vmatpush1.msra.mxu0 0.0
        %5302 = vmatprep.subr.mxu0 0.0
        %5303 = vmatpush1.msra.mxu0 0.0
        %5304 = vmatprep.subr.mxu0 0.0
        %5305 = vmatpush1.msra.mxu0 0.0
        %5306 = vmatprep.subr.mxu0 0.0
        %5307 = vmatpush1.msra.mxu0 0.0
        %5308 = vmatprep.subr.mxu0 0.0
        %5309 = vmatpush1.msra.mxu0 0.0
        %5310 = vmatprep.subr.mxu0 0.0
        %5311 = vmatpush1.msra.mxu0 0.0
        %5312 = vmatprep.subr.mxu0 0.0
        %5313 = vmatpush1.msra.mxu0 0.0
        %5314 = vmatprep.subr.mxu0 0.0
        %5315 = vmatpush1.msra.mxu0 0.0
        %v5316 = vand.u32 %v4155, 4294901760
        %5317 = vmatprep.subr.mxu0 %v5316
        %v5318 = vand.u32 %v4153, 4294901760
        %5319 = vmatpush1.msra.mxu0 %v5318
        %5320 = vmatprep.subr.mxu0 0.0
        %5321 = vmatpush2.msra.mxu0 0.0
        %5322 = vmatprep.subr.mxu0 0.0
        %5323 = vmatpush2.msra.mxu0 0.0
        %5324 = vmatprep.subr.mxu0 0.0
        %5325 = vmatpush2.msra.mxu0 0.0
        %5326 = vmatprep.subr.mxu0 0.0
        %5327 = vmatpush2.msra.mxu0 0.0
        %5328 = vmatprep.subr.mxu0 0.0
        %5329 = vmatpush2.msra.mxu0 0.0
        %5330 = vmatprep.subr.mxu0 0.0
        %5331 = vmatpush2.msra.mxu0 0.0
        %5332 = vmatprep.subr.mxu0 0.0
        %5333 = vmatpush2.msra.mxu0 0.0
        %5334 = vmatprep.subr.mxu0 0.0
        %5335 = vmatpush2.msra.mxu0 0.0
        %5336 = vmatprep.subr.mxu0 0.0
        %5337 = vmatpush2.msra.mxu0 0.0
        %5338 = vmatprep.subr.mxu0 0.0
        %5339 = vmatpush2.msra.mxu0 0.0
        %5340 = vmatprep.subr.mxu0 0.0
        %5341 = vmatpush2.msra.mxu0 0.0
        %5342 = vmatprep.subr.mxu0 0.0
        %5343 = vmatpush2.msra.mxu0 0.0
        %5344 = vmatprep.subr.mxu0 0.0
        %5345 = vmatpush2.msra.mxu0 0.0
        %5346 = vmatprep.subr.mxu0 0.0
        %5347 = vmatpush2.msra.mxu0 0.0
        %5348 = vmatprep.subr.mxu0 0.0
        %5349 = vmatpush2.msra.mxu0 0.0
        %5350 = vmatprep.subr.mxu0 0.0
        %5351 = vmatpush2.msra.mxu0 0.0
        %5352 = vmatprep.mubr.f32.mxu0 0.0
        %v5353 = vand.u32 %v350, 4294901760
        %5354 = vmatmul.mubr.f32.gmra.mxu0 %v5353
        %v5355 = vpop.f32.mrf.mxu0
        %v5356 = vadd.f32 %v5261, %v5355
        %v5357 = vpop.f32.mrf.mxu0
        %v5358 = vadd.f32 %v5263, %v5357
        %5359 = vmatprep.mubr.f32.mxu0 0.0
        %v5360 = vand.u32 %v353, 4294901760
        %5361 = vmatmul.mubr.f32.gmra.mxu0 %v5360
        %v5362 = vpop.f32.mrf.mxu0
        %v5363 = vadd.f32 %v5268, %v5362
        %v5364 = vpop.f32.mrf.mxu0
        %v5365 = vadd.f32 %v5270, %v5364
        %5366 = vmatprep.mubr.f32.mxu0 0.0
        %v5367 = vand.u32 %v356, 4294901760
        %5368 = vmatmul.mubr.f32.gmra.mxu0 %v5367
        %v5369 = vpop.f32.mrf.mxu0
        %v5370 = vadd.f32 %v5275, %v5369
        %v5371 = vpop.f32.mrf.mxu0
        %v5372 = vadd.f32 %v5277, %v5371
        %5373 = vmatprep.mubr.f32.mxu0 0.0
        %v5374 = vand.u32 %v359, 4294901760
        %5375 = vmatmul.mubr.f32.gmra.mxu0 %v5374
        %v5376 = vpop.f32.mrf.mxu0
        %v5377 = vadd.f32 %v5282, %v5376
        %v5378 = vpop.f32.mrf.mxu0
        %v5379 = vadd.f32 %v5284, %v5378
        %5380 = vdwg.mxu0
        %v5381 = vtanh.pop %v4744
        %v5382 = vtanh.pop %v4746
        %v5383 = vtanh.pop %v5356
        %v5384 = vtanh.pop %v5358
        %v5385 = vtanh.pop %v4751
        %v5386 = vtanh.pop %v4753
        %v5387 = vtanh.pop %v5363
        %v5388 = vtanh.pop %v5365
        %v5389 = vtanh.pop %v4758
        %v5390 = vtanh.pop %v4760
        %v5391 = vtanh.pop %v5370
        %v5392 = vtanh.pop %v5372
        %v5393 = vtanh.pop %v4765
        %v5394 = vtanh.pop %v4767
        %v5395 = vtanh.pop %v5377
        %v5396 = vtanh.pop %v5379
        %5397 = vmatprep.subr.mxu0 0.0
        %5398 = vmatpush1.msra.mxu0 0.0
        %5399 = vmatprep.subr.mxu0 0.0
        %5400 = vmatpush1.msra.mxu0 0.0
        %5401 = vmatprep.subr.mxu0 0.0
        %5402 = vmatpush1.msra.mxu0 0.0
        %5403 = vmatprep.subr.mxu0 0.0
        %5404 = vmatpush1.msra.mxu0 0.0
        %5405 = vmatprep.subr.mxu0 0.0
        %5406 = vmatpush1.msra.mxu0 0.0
        %5407 = vmatprep.subr.mxu0 0.0
        %5408 = vmatpush1.msra.mxu0 0.0
        %5409 = vmatprep.subr.mxu0 0.0
        %5410 = vmatpush1.msra.mxu0 0.0
        %5411 = vmatprep.subr.mxu0 0.0
        %5412 = vmatpush1.msra.mxu0 0.0
        %5413 = vmatprep.subr.mxu0 0.0
        %5414 = vmatpush1.msra.mxu0 0.0
        %5415 = vmatprep.subr.mxu0 0.0
        %5416 = vmatpush1.msra.mxu0 0.0
        %5417 = vmatprep.subr.mxu0 0.0
        %5418 = vmatpush1.msra.mxu0 0.0
        %5419 = vmatprep.subr.mxu0 0.0
        %5420 = vmatpush1.msra.mxu0 0.0
        %v5421 = vand.u32 %v5394, 4294901760
        %5422 = vmatprep.subr.mxu0 %v5421
        %v5423 = vand.u32 %v5393, 4294901760
        %5424 = vmatpush1.msra.mxu0 %v5423
        %v5425 = vand.u32 %v5390, 4294901760
        %5426 = vmatprep.subr.mxu0 %v5425
        %v5427 = vand.u32 %v5389, 4294901760
        %5428 = vmatpush1.msra.mxu0 %v5427
        %v5429 = vand.u32 %v5386, 4294901760
        %5430 = vmatprep.subr.mxu0 %v5429
        %v5431 = vand.u32 %v5385, 4294901760
        %5432 = vmatpush1.msra.mxu0 %v5431
        %v5433 = vand.u32 %v5382, 4294901760
        %5434 = vmatprep.subr.mxu0 %v5433
        %v5435 = vand.u32 %v5381, 4294901760
        %5436 = vmatpush1.msra.mxu0 %v5435
        %5437 = vmatprep.subr.mxu0 0.0
        %5438 = vmatpush2.msra.mxu0 0.0
        %5439 = vmatprep.subr.mxu0 0.0
        %5440 = vmatpush2.msra.mxu0 0.0
        %5441 = vmatprep.subr.mxu0 0.0
        %5442 = vmatpush2.msra.mxu0 0.0
        %5443 = vmatprep.subr.mxu0 0.0
        %5444 = vmatpush2.msra.mxu0 0.0
        %5445 = vmatprep.subr.mxu0 0.0
        %5446 = vmatpush2.msra.mxu0 0.0
        %5447 = vmatprep.subr.mxu0 0.0
        %5448 = vmatpush2.msra.mxu0 0.0
        %5449 = vmatprep.subr.mxu0 0.0
        %5450 = vmatpush2.msra.mxu0 0.0
        %5451 = vmatprep.subr.mxu0 0.0
        %5452 = vmatpush2.msra.mxu0 0.0
        %5453 = vmatprep.subr.mxu0 0.0
        %5454 = vmatpush2.msra.mxu0 0.0
        %5455 = vmatprep.subr.mxu0 0.0
        %5456 = vmatpush2.msra.mxu0 0.0
        %5457 = vmatprep.subr.mxu0 0.0
        %5458 = vmatpush2.msra.mxu0 0.0
        %5459 = vmatprep.subr.mxu0 0.0
        %5460 = vmatpush2.msra.mxu0 0.0
        %5461 = vmatprep.subr.mxu0 0.0
        %5462 = vmatpush2.msra.mxu0 0.0
        %5463 = vmatprep.subr.mxu0 0.0
        %5464 = vmatpush2.msra.mxu0 0.0
        %5465 = vmatprep.subr.mxu0 0.0
        %5466 = vmatpush2.msra.mxu0 0.0
        %5467 = vmatprep.subr.mxu0 0.0
        %5468 = vmatpush2.msra.mxu0 0.0
        %5469 = vmatprep.mubr.f32.mxu0 0.0
        %v5470 = vand.u32 %v1632, 4294901760
        %v5471 = vsub.f32 %v1632, %v5470
        %v5472 = vand.u32 %v5471, 4294901760
        %v5473 = vsub.f32 %v5471, %v5472
        %v5474 = vand.u32 %v5473, 4294901760
        %5475 = vmatmul.mubr.f32.gmra.mxu0 %v5474
        %v5476 = vpop.f32.mrf.mxu0
        %v5477 = vadd.f32 %v1613, %v5476
        %v5478 = vpop.f32.mrf.mxu0
        %v5479 = vadd.f32 %v1613, %v5478
        %5480 = vmatprep.mubr.f32.mxu0 0.0
        %v5481 = vand.u32 %v1635, 4294901760
        %v5482 = vsub.f32 %v1635, %v5481
        %v5483 = vand.u32 %v5482, 4294901760
        %v5484 = vsub.f32 %v5482, %v5483
        %v5485 = vand.u32 %v5484, 4294901760
        %5486 = vmatmul.mubr.f32.gmra.mxu0 %v5485
        %v5487 = vpop.f32.mrf.mxu0
        %v5488 = vadd.f32 %v1618, %v5487
        %v5489 = vpop.f32.mrf.mxu0
        %v5490 = vadd.f32 %v1618, %v5489
        %5491 = vmatprep.mubr.f32.mxu0 0.0
        %v5492 = vand.u32 %v1638, 4294901760
        %v5493 = vsub.f32 %v1638, %v5492
        %v5494 = vand.u32 %v5493, 4294901760
        %v5495 = vsub.f32 %v5493, %v5494
        %v5496 = vand.u32 %v5495, 4294901760
        %5497 = vmatmul.mubr.f32.gmra.mxu0 %v5496
        %v5498 = vpop.f32.mrf.mxu0
        %v5499 = vadd.f32 %v1623, %v5498
        %v5500 = vpop.f32.mrf.mxu0
        %v5501 = vadd.f32 %v1623, %v5500
        %5502 = vmatprep.mubr.f32.mxu0 0.0
        %v5503 = vand.u32 %v1641, 4294901760
        %v5504 = vsub.f32 %v1641, %v5503
        %v5505 = vand.u32 %v5504, 4294901760
        %v5506 = vsub.f32 %v5504, %v5505
        %v5507 = vand.u32 %v5506, 4294901760
        %5508 = vmatmul.mubr.f32.gmra.mxu0 %v5507
        %v5509 = vpop.f32.mrf.mxu0
        %v5510 = vadd.f32 %v1628, %v5509
        %v5511 = vpop.f32.mrf.mxu0
        %v5512 = vadd.f32 %v1628, %v5511
        %5513 = vdwg.mxu0
        %5514 = vmatprep.subr.mxu0 0.0
        %5515 = vmatpush1.msra.mxu0 0.0
        %5516 = vmatprep.subr.mxu0 0.0
        %5517 = vmatpush1.msra.mxu0 0.0
        %5518 = vmatprep.subr.mxu0 0.0
        %5519 = vmatpush1.msra.mxu0 0.0
        %5520 = vmatprep.subr.mxu0 0.0
        %5521 = vmatpush1.msra.mxu0 0.0
        %5522 = vmatprep.subr.mxu0 0.0
        %5523 = vmatpush1.msra.mxu0 0.0
        %5524 = vmatprep.subr.mxu0 0.0
        %5525 = vmatpush1.msra.mxu0 0.0
        %5526 = vmatprep.subr.mxu0 0.0
        %5527 = vmatpush1.msra.mxu0 0.0
        %5528 = vmatprep.subr.mxu0 0.0
        %5529 = vmatpush1.msra.mxu0 0.0
        %5530 = vmatprep.subr.mxu0 0.0
        %5531 = vmatpush1.msra.mxu0 0.0
        %5532 = vmatprep.subr.mxu0 0.0
        %5533 = vmatpush1.msra.mxu0 0.0
        %5534 = vmatprep.subr.mxu0 0.0
        %5535 = vmatpush1.msra.mxu0 0.0
        %5536 = vmatprep.subr.mxu0 0.0
        %5537 = vmatpush1.msra.mxu0 0.0
        %v5538 = vand.u32 %v5394, 4294901760
        %v5539 = vsub.f32 %v5394, %v5538
        %v5540 = vand.u32 %v5539, 4294901760
        %v5541 = vsub.f32 %v5539, %v5540
        %v5542 = vand.u32 %v5541, 4294901760
        %5543 = vmatprep.subr.mxu0 %v5542
        %v5544 = vand.u32 %v5393, 4294901760
        %v5545 = vsub.f32 %v5393, %v5544
        %v5546 = vand.u32 %v5545, 4294901760
        %v5547 = vsub.f32 %v5545, %v5546
        %v5548 = vand.u32 %v5547, 4294901760
        %5549 = vmatpush1.msra.mxu0 %v5548
        %v5550 = vand.u32 %v5390, 4294901760
        %v5551 = vsub.f32 %v5390, %v5550
        %v5552 = vand.u32 %v5551, 4294901760
        %v5553 = vsub.f32 %v5551, %v5552
        %v5554 = vand.u32 %v5553, 4294901760
        %5555 = vmatprep.subr.mxu0 %v5554
        %v5556 = vand.u32 %v5389, 4294901760
        %v5557 = vsub.f32 %v5389, %v5556
        %v5558 = vand.u32 %v5557, 4294901760
        %v5559 = vsub.f32 %v5557, %v5558
        %v5560 = vand.u32 %v5559, 4294901760
        %5561 = vmatpush1.msra.mxu0 %v5560
        %v5562 = vand.u32 %v5386, 4294901760
        %v5563 = vsub.f32 %v5386, %v5562
        %v5564 = vand.u32 %v5563, 4294901760
        %v5565 = vsub.f32 %v5563, %v5564
        %v5566 = vand.u32 %v5565, 4294901760
        %5567 = vmatprep.subr.mxu0 %v5566
        %v5568 = vand.u32 %v5385, 4294901760
        %v5569 = vsub.f32 %v5385, %v5568
        %v5570 = vand.u32 %v5569, 4294901760
        %v5571 = vsub.f32 %v5569, %v5570
        %v5572 = vand.u32 %v5571, 4294901760
        %5573 = vmatpush1.msra.mxu0 %v5572
        %v5574 = vand.u32 %v5382, 4294901760
        %v5575 = vsub.f32 %v5382, %v5574
        %v5576 = vand.u32 %v5575, 4294901760
        %v5577 = vsub.f32 %v5575, %v5576
        %v5578 = vand.u32 %v5577, 4294901760
        %5579 = vmatprep.subr.mxu0 %v5578
        %v5580 = vand.u32 %v5381, 4294901760
        %v5581 = vsub.f32 %v5381, %v5580
        %v5582 = vand.u32 %v5581, 4294901760
        %v5583 = vsub.f32 %v5581, %v5582
        %v5584 = vand.u32 %v5583, 4294901760
        %5585 = vmatpush1.msra.mxu0 %v5584
        %5586 = vmatprep.subr.mxu0 0.0
        %5587 = vmatpush2.msra.mxu0 0.0
        %5588 = vmatprep.subr.mxu0 0.0
        %5589 = vmatpush2.msra.mxu0 0.0
        %5590 = vmatprep.subr.mxu0 0.0
        %5591 = vmatpush2.msra.mxu0 0.0
        %5592 = vmatprep.subr.mxu0 0.0
        %5593 = vmatpush2.msra.mxu0 0.0
        %5594 = vmatprep.subr.mxu0 0.0
        %5595 = vmatpush2.msra.mxu0 0.0
        %5596 = vmatprep.subr.mxu0 0.0
        %5597 = vmatpush2.msra.mxu0 0.0
        %5598 = vmatprep.subr.mxu0 0.0
        %5599 = vmatpush2.msra.mxu0 0.0
        %5600 = vmatprep.subr.mxu0 0.0
        %5601 = vmatpush2.msra.mxu0 0.0
        %5602 = vmatprep.subr.mxu0 0.0
        %5603 = vmatpush2.msra.mxu0 0.0
        %5604 = vmatprep.subr.mxu0 0.0
        %5605 = vmatpush2.msra.mxu0 0.0
        %5606 = vmatprep.subr.mxu0 0.0
        %5607 = vmatpush2.msra.mxu0 0.0
        %5608 = vmatprep.subr.mxu0 0.0
        %5609 = vmatpush2.msra.mxu0 0.0
        %5610 = vmatprep.subr.mxu0 0.0
        %5611 = vmatpush2.msra.mxu0 0.0
        %5612 = vmatprep.subr.mxu0 0.0
        %5613 = vmatpush2.msra.mxu0 0.0
        %5614 = vmatprep.subr.mxu0 0.0
        %5615 = vmatpush2.msra.mxu0 0.0
        %5616 = vmatprep.subr.mxu0 0.0
        %5617 = vmatpush2.msra.mxu0 0.0
        %5618 = vmatprep.mubr.f32.mxu0 0.0
        %v5619 = vand.u32 %v1632, 4294901760
        %5620 = vmatmul.mubr.f32.gmra.mxu0 %v5619
        %v5621 = vpop.f32.mrf.mxu0
        %v5622 = vadd.f32 %v5477, %v5621
        %v5623 = vpop.f32.mrf.mxu0
        %v5624 = vadd.f32 %v5479, %v5623
        %5625 = vmatprep.mubr.f32.mxu0 0.0
        %v5626 = vand.u32 %v1635, 4294901760
        %5627 = vmatmul.mubr.f32.gmra.mxu0 %v5626
        %v5628 = vpop.f32.mrf.mxu0
        %v5629 = vadd.f32 %v5488, %v5628
        %v5630 = vpop.f32.mrf.mxu0
        %v5631 = vadd.f32 %v5490, %v5630
        %5632 = vmatprep.mubr.f32.mxu0 0.0
        %v5633 = vand.u32 %v1638, 4294901760
        %5634 = vmatmul.mubr.f32.gmra.mxu0 %v5633
        %v5635 = vpop.f32.mrf.mxu0
        %v5636 = vadd.f32 %v5499, %v5635
        %v5637 = vpop.f32.mrf.mxu0
        %v5638 = vadd.f32 %v5501, %v5637
        %5639 = vmatprep.mubr.f32.mxu0 0.0
        %v5640 = vand.u32 %v1641, 4294901760
        %5641 = vmatmul.mubr.f32.gmra.mxu0 %v5640
        %v5642 = vpop.f32.mrf.mxu0
        %v5643 = vadd.f32 %v5510, %v5642
        %v5644 = vpop.f32.mrf.mxu0
        %v5645 = vadd.f32 %v5512, %v5644
        %5646 = vdwg.mxu0
        %5647 = vmatprep.subr.mxu0 0.0
        %5648 = vmatpush1.msra.mxu0 0.0
        %5649 = vmatprep.subr.mxu0 0.0
        %5650 = vmatpush1.msra.mxu0 0.0
        %5651 = vmatprep.subr.mxu0 0.0
        %5652 = vmatpush1.msra.mxu0 0.0
        %5653 = vmatprep.subr.mxu0 0.0
        %5654 = vmatpush1.msra.mxu0 0.0
        %5655 = vmatprep.subr.mxu0 0.0
        %5656 = vmatpush1.msra.mxu0 0.0
        %5657 = vmatprep.subr.mxu0 0.0
        %5658 = vmatpush1.msra.mxu0 0.0
        %5659 = vmatprep.subr.mxu0 0.0
        %5660 = vmatpush1.msra.mxu0 0.0
        %5661 = vmatprep.subr.mxu0 0.0
        %5662 = vmatpush1.msra.mxu0 0.0
        %5663 = vmatprep.subr.mxu0 0.0
        %5664 = vmatpush1.msra.mxu0 0.0
        %5665 = vmatprep.subr.mxu0 0.0
        %5666 = vmatpush1.msra.mxu0 0.0
        %5667 = vmatprep.subr.mxu0 0.0
        %5668 = vmatpush1.msra.mxu0 0.0
        %5669 = vmatprep.subr.mxu0 0.0
        %5670 = vmatpush1.msra.mxu0 0.0
        %v5671 = vand.u32 %v5394, 4294901760
        %v5672 = vsub.f32 %v5394, %v5671
        %5673 = vmatprep.subr.mxu0 %v5672
        %v5674 = vand.u32 %v5393, 4294901760
        %v5675 = vsub.f32 %v5393, %v5674
        %5676 = vmatpush1.msra.mxu0 %v5675
        %v5677 = vand.u32 %v5390, 4294901760
        %v5678 = vsub.f32 %v5390, %v5677
        %5679 = vmatprep.subr.mxu0 %v5678
        %v5680 = vand.u32 %v5389, 4294901760
        %v5681 = vsub.f32 %v5389, %v5680
        %5682 = vmatpush1.msra.mxu0 %v5681
        %v5683 = vand.u32 %v5386, 4294901760
        %v5684 = vsub.f32 %v5386, %v5683
        %5685 = vmatprep.subr.mxu0 %v5684
        %v5686 = vand.u32 %v5385, 4294901760
        %v5687 = vsub.f32 %v5385, %v5686
        %5688 = vmatpush1.msra.mxu0 %v5687
        %v5689 = vand.u32 %v5382, 4294901760
        %v5690 = vsub.f32 %v5382, %v5689
        %5691 = vmatprep.subr.mxu0 %v5690
        %v5692 = vand.u32 %v5381, 4294901760
        %v5693 = vsub.f32 %v5381, %v5692
        %5694 = vmatpush1.msra.mxu0 %v5693
        %5695 = vmatprep.subr.mxu0 0.0
        %5696 = vmatpush2.msra.mxu0 0.0
        %5697 = vmatprep.subr.mxu0 0.0
        %5698 = vmatpush2.msra.mxu0 0.0
        %5699 = vmatprep.subr.mxu0 0.0
        %5700 = vmatpush2.msra.mxu0 0.0
        %5701 = vmatprep.subr.mxu0 0.0
        %5702 = vmatpush2.msra.mxu0 0.0
        %5703 = vmatprep.subr.mxu0 0.0
        %5704 = vmatpush2.msra.mxu0 0.0
        %5705 = vmatprep.subr.mxu0 0.0
        %5706 = vmatpush2.msra.mxu0 0.0
        %5707 = vmatprep.subr.mxu0 0.0
        %5708 = vmatpush2.msra.mxu0 0.0
        %5709 = vmatprep.subr.mxu0 0.0
        %5710 = vmatpush2.msra.mxu0 0.0
        %5711 = vmatprep.subr.mxu0 0.0
        %5712 = vmatpush2.msra.mxu0 0.0
        %5713 = vmatprep.subr.mxu0 0.0
        %5714 = vmatpush2.msra.mxu0 0.0
        %5715 = vmatprep.subr.mxu0 0.0
        %5716 = vmatpush2.msra.mxu0 0.0
        %5717 = vmatprep.subr.mxu0 0.0
        %5718 = vmatpush2.msra.mxu0 0.0
        %5719 = vmatprep.subr.mxu0 0.0
        %5720 = vmatpush2.msra.mxu0 0.0
        %5721 = vmatprep.subr.mxu0 0.0
        %5722 = vmatpush2.msra.mxu0 0.0
        %5723 = vmatprep.subr.mxu0 0.0
        %5724 = vmatpush2.msra.mxu0 0.0
        %5725 = vmatprep.subr.mxu0 0.0
        %5726 = vmatpush2.msra.mxu0 0.0
        %5727 = vmatprep.mubr.f32.mxu0 0.0
        %v5728 = vand.u32 %v1632, 4294901760
        %v5729 = vsub.f32 %v1632, %v5728
        %5730 = vmatmul.mubr.f32.gmra.mxu0 %v5729
        %v5731 = vpop.f32.mrf.mxu0
        %v5732 = vadd.f32 %v5622, %v5731
        %v5733 = vpop.f32.mrf.mxu0
        %v5734 = vadd.f32 %v5624, %v5733
        %5735 = vmatprep.mubr.f32.mxu0 0.0
        %v5736 = vand.u32 %v1635, 4294901760
        %v5737 = vsub.f32 %v1635, %v5736
        %5738 = vmatmul.mubr.f32.gmra.mxu0 %v5737
        %v5739 = vpop.f32.mrf.mxu0
        %v5740 = vadd.f32 %v5629, %v5739
        %v5741 = vpop.f32.mrf.mxu0
        %v5742 = vadd.f32 %v5631, %v5741
        %5743 = vmatprep.mubr.f32.mxu0 0.0
        %v5744 = vand.u32 %v1638, 4294901760
        %v5745 = vsub.f32 %v1638, %v5744
        %5746 = vmatmul.mubr.f32.gmra.mxu0 %v5745
        %v5747 = vpop.f32.mrf.mxu0
        %v5748 = vadd.f32 %v5636, %v5747
        %v5749 = vpop.f32.mrf.mxu0
        %v5750 = vadd.f32 %v5638, %v5749
        %5751 = vmatprep.mubr.f32.mxu0 0.0
        %v5752 = vand.u32 %v1641, 4294901760
        %v5753 = vsub.f32 %v1641, %v5752
        %5754 = vmatmul.mubr.f32.gmra.mxu0 %v5753
        %v5755 = vpop.f32.mrf.mxu0
        %v5756 = vadd.f32 %v5643, %v5755
        %v5757 = vpop.f32.mrf.mxu0
        %v5758 = vadd.f32 %v5645, %v5757
        %5759 = vdwg.mxu0
        %5760 = vmatprep.subr.mxu0 0.0
        %5761 = vmatpush1.msra.mxu0 0.0
        %5762 = vmatprep.subr.mxu0 0.0
        %5763 = vmatpush1.msra.mxu0 0.0
        %5764 = vmatprep.subr.mxu0 0.0
        %5765 = vmatpush1.msra.mxu0 0.0
        %5766 = vmatprep.subr.mxu0 0.0
        %5767 = vmatpush1.msra.mxu0 0.0
        %5768 = vmatprep.subr.mxu0 0.0
        %5769 = vmatpush1.msra.mxu0 0.0
        %5770 = vmatprep.subr.mxu0 0.0
        %5771 = vmatpush1.msra.mxu0 0.0
        %5772 = vmatprep.subr.mxu0 0.0
        %5773 = vmatpush1.msra.mxu0 0.0
        %5774 = vmatprep.subr.mxu0 0.0
        %5775 = vmatpush1.msra.mxu0 0.0
        %5776 = vmatprep.subr.mxu0 0.0
        %5777 = vmatpush1.msra.mxu0 0.0
        %5778 = vmatprep.subr.mxu0 0.0
        %5779 = vmatpush1.msra.mxu0 0.0
        %5780 = vmatprep.subr.mxu0 0.0
        %5781 = vmatpush1.msra.mxu0 0.0
        %5782 = vmatprep.subr.mxu0 0.0
        %5783 = vmatpush1.msra.mxu0 0.0
        %v5784 = vand.u32 %v5394, 4294901760
        %5785 = vmatprep.subr.mxu0 %v5784
        %v5786 = vand.u32 %v5393, 4294901760
        %5787 = vmatpush1.msra.mxu0 %v5786
        %v5788 = vand.u32 %v5390, 4294901760
        %5789 = vmatprep.subr.mxu0 %v5788
        %v5790 = vand.u32 %v5389, 4294901760
        %5791 = vmatpush1.msra.mxu0 %v5790
        %v5792 = vand.u32 %v5386, 4294901760
        %5793 = vmatprep.subr.mxu0 %v5792
        %v5794 = vand.u32 %v5385, 4294901760
        %5795 = vmatpush1.msra.mxu0 %v5794
        %v5796 = vand.u32 %v5382, 4294901760
        %5797 = vmatprep.subr.mxu0 %v5796
        %v5798 = vand.u32 %v5381, 4294901760
        %5799 = vmatpush1.msra.mxu0 %v5798
        %5800 = vmatprep.subr.mxu0 0.0
        %5801 = vmatpush2.msra.mxu0 0.0
        %5802 = vmatprep.subr.mxu0 0.0
        %5803 = vmatpush2.msra.mxu0 0.0
        %5804 = vmatprep.subr.mxu0 0.0
        %5805 = vmatpush2.msra.mxu0 0.0
        %5806 = vmatprep.subr.mxu0 0.0
        %5807 = vmatpush2.msra.mxu0 0.0
        %5808 = vmatprep.subr.mxu0 0.0
        %5809 = vmatpush2.msra.mxu0 0.0
        %5810 = vmatprep.subr.mxu0 0.0
        %5811 = vmatpush2.msra.mxu0 0.0
        %5812 = vmatprep.subr.mxu0 0.0
        %5813 = vmatpush2.msra.mxu0 0.0
        %5814 = vmatprep.subr.mxu0 0.0
        %5815 = vmatpush2.msra.mxu0 0.0
        %5816 = vmatprep.subr.mxu0 0.0
        %5817 = vmatpush2.msra.mxu0 0.0
        %5818 = vmatprep.subr.mxu0 0.0
        %5819 = vmatpush2.msra.mxu0 0.0
        %5820 = vmatprep.subr.mxu0 0.0
        %5821 = vmatpush2.msra.mxu0 0.0
        %5822 = vmatprep.subr.mxu0 0.0
        %5823 = vmatpush2.msra.mxu0 0.0
        %5824 = vmatprep.subr.mxu0 0.0
        %5825 = vmatpush2.msra.mxu0 0.0
        %5826 = vmatprep.subr.mxu0 0.0
        %5827 = vmatpush2.msra.mxu0 0.0
        %5828 = vmatprep.subr.mxu0 0.0
        %5829 = vmatpush2.msra.mxu0 0.0
        %5830 = vmatprep.subr.mxu0 0.0
        %5831 = vmatpush2.msra.mxu0 0.0
        %5832 = vmatprep.mubr.f32.mxu0 0.0
        %v5833 = vand.u32 %v1632, 4294901760
        %v5834 = vsub.f32 %v1632, %v5833
        %v5835 = vand.u32 %v5834, 4294901760
        %5836 = vmatmul.mubr.f32.gmra.mxu0 %v5835
        %v5837 = vpop.f32.mrf.mxu0
        %v5838 = vadd.f32 %v5732, %v5837
        %v5839 = vpop.f32.mrf.mxu0
        %v5840 = vadd.f32 %v5734, %v5839
        %5841 = vmatprep.mubr.f32.mxu0 0.0
        %v5842 = vand.u32 %v1635, 4294901760
        %v5843 = vsub.f32 %v1635, %v5842
        %v5844 = vand.u32 %v5843, 4294901760
        %5845 = vmatmul.mubr.f32.gmra.mxu0 %v5844
        %v5846 = vpop.f32.mrf.mxu0
        %v5847 = vadd.f32 %v5740, %v5846
        %v5848 = vpop.f32.mrf.mxu0
        %v5849 = vadd.f32 %v5742, %v5848
        %5850 = vmatprep.mubr.f32.mxu0 0.0
        %v5851 = vand.u32 %v1638, 4294901760
        %v5852 = vsub.f32 %v1638, %v5851
        %v5853 = vand.u32 %v5852, 4294901760
        %5854 = vmatmul.mubr.f32.gmra.mxu0 %v5853
        %v5855 = vpop.f32.mrf.mxu0
        %v5856 = vadd.f32 %v5748, %v5855
        %v5857 = vpop.f32.mrf.mxu0
        %v5858 = vadd.f32 %v5750, %v5857
        %5859 = vmatprep.mubr.f32.mxu0 0.0
        %v5860 = vand.u32 %v1641, 4294901760
        %v5861 = vsub.f32 %v1641, %v5860
        %v5862 = vand.u32 %v5861, 4294901760
        %5863 = vmatmul.mubr.f32.gmra.mxu0 %v5862
        %v5864 = vpop.f32.mrf.mxu0
        %v5865 = vadd.f32 %v5756, %v5864
        %v5866 = vpop.f32.mrf.mxu0
        %v5867 = vadd.f32 %v5758, %v5866
        %5868 = vdwg.mxu0
        %5869 = vmatprep.subr.mxu0 0.0
        %5870 = vmatpush1.msra.mxu0 0.0
        %5871 = vmatprep.subr.mxu0 0.0
        %5872 = vmatpush1.msra.mxu0 0.0
        %5873 = vmatprep.subr.mxu0 0.0
        %5874 = vmatpush1.msra.mxu0 0.0
        %5875 = vmatprep.subr.mxu0 0.0
        %5876 = vmatpush1.msra.mxu0 0.0
        %5877 = vmatprep.subr.mxu0 0.0
        %5878 = vmatpush1.msra.mxu0 0.0
        %5879 = vmatprep.subr.mxu0 0.0
        %5880 = vmatpush1.msra.mxu0 0.0
        %5881 = vmatprep.subr.mxu0 0.0
        %5882 = vmatpush1.msra.mxu0 0.0
        %5883 = vmatprep.subr.mxu0 0.0
        %5884 = vmatpush1.msra.mxu0 0.0
        %5885 = vmatprep.subr.mxu0 0.0
        %5886 = vmatpush1.msra.mxu0 0.0
        %5887 = vmatprep.subr.mxu0 0.0
        %5888 = vmatpush1.msra.mxu0 0.0
        %5889 = vmatprep.subr.mxu0 0.0
        %5890 = vmatpush1.msra.mxu0 0.0
        %5891 = vmatprep.subr.mxu0 0.0
        %5892 = vmatpush1.msra.mxu0 0.0
        %v5893 = vand.u32 %v5394, 4294901760
        %v5894 = vsub.f32 %v5394, %v5893
        %v5895 = vand.u32 %v5894, 4294901760
        %5896 = vmatprep.subr.mxu0 %v5895
        %v5897 = vand.u32 %v5393, 4294901760
        %v5898 = vsub.f32 %v5393, %v5897
        %v5899 = vand.u32 %v5898, 4294901760
        %5900 = vmatpush1.msra.mxu0 %v5899
        %v5901 = vand.u32 %v5390, 4294901760
        %v5902 = vsub.f32 %v5390, %v5901
        %v5903 = vand.u32 %v5902, 4294901760
        %5904 = vmatprep.subr.mxu0 %v5903
        %v5905 = vand.u32 %v5389, 4294901760
        %v5906 = vsub.f32 %v5389, %v5905
        %v5907 = vand.u32 %v5906, 4294901760
        %5908 = vmatpush1.msra.mxu0 %v5907
        %v5909 = vand.u32 %v5386, 4294901760
        %v5910 = vsub.f32 %v5386, %v5909
        %v5911 = vand.u32 %v5910, 4294901760
        %5912 = vmatprep.subr.mxu0 %v5911
        %v5913 = vand.u32 %v5385, 4294901760
        %v5914 = vsub.f32 %v5385, %v5913
        %v5915 = vand.u32 %v5914, 4294901760
        %5916 = vmatpush1.msra.mxu0 %v5915
        %v5917 = vand.u32 %v5382, 4294901760
        %v5918 = vsub.f32 %v5382, %v5917
        %v5919 = vand.u32 %v5918, 4294901760
        %5920 = vmatprep.subr.mxu0 %v5919
        %v5921 = vand.u32 %v5381, 4294901760
        %v5922 = vsub.f32 %v5381, %v5921
        %v5923 = vand.u32 %v5922, 4294901760
        %5924 = vmatpush1.msra.mxu0 %v5923
        %5925 = vmatprep.subr.mxu0 0.0
        %5926 = vmatpush2.msra.mxu0 0.0
        %5927 = vmatprep.subr.mxu0 0.0
        %5928 = vmatpush2.msra.mxu0 0.0
        %5929 = vmatprep.subr.mxu0 0.0
        %5930 = vmatpush2.msra.mxu0 0.0
        %5931 = vmatprep.subr.mxu0 0.0
        %5932 = vmatpush2.msra.mxu0 0.0
        %5933 = vmatprep.subr.mxu0 0.0
        %5934 = vmatpush2.msra.mxu0 0.0
        %5935 = vmatprep.subr.mxu0 0.0
        %5936 = vmatpush2.msra.mxu0 0.0
        %5937 = vmatprep.subr.mxu0 0.0
        %5938 = vmatpush2.msra.mxu0 0.0
        %5939 = vmatprep.subr.mxu0 0.0
        %5940 = vmatpush2.msra.mxu0 0.0
        %5941 = vmatprep.subr.mxu0 0.0
        %5942 = vmatpush2.msra.mxu0 0.0
        %5943 = vmatprep.subr.mxu0 0.0
        %5944 = vmatpush2.msra.mxu0 0.0
        %5945 = vmatprep.subr.mxu0 0.0
        %5946 = vmatpush2.msra.mxu0 0.0
        %5947 = vmatprep.subr.mxu0 0.0
        %5948 = vmatpush2.msra.mxu0 0.0
        %5949 = vmatprep.subr.mxu0 0.0
        %5950 = vmatpush2.msra.mxu0 0.0
        %5951 = vmatprep.subr.mxu0 0.0
        %5952 = vmatpush2.msra.mxu0 0.0
        %5953 = vmatprep.subr.mxu0 0.0
        %5954 = vmatpush2.msra.mxu0 0.0
        %5955 = vmatprep.subr.mxu0 0.0
        %5956 = vmatpush2.msra.mxu0 0.0
        %5957 = vmatprep.mubr.f32.mxu0 0.0
        %v5958 = vand.u32 %v1632, 4294901760
        %5959 = vmatmul.mubr.f32.gmra.mxu0 %v5958
        %v5960 = vpop.f32.mrf.mxu0
        %v5961 = vadd.f32 %v5838, %v5960
        %v5962 = vpop.f32.mrf.mxu0
        %v5963 = vadd.f32 %v5840, %v5962
        %5964 = vmatprep.mubr.f32.mxu0 0.0
        %v5965 = vand.u32 %v1635, 4294901760
        %5966 = vmatmul.mubr.f32.gmra.mxu0 %v5965
        %v5967 = vpop.f32.mrf.mxu0
        %v5968 = vadd.f32 %v5847, %v5967
        %v5969 = vpop.f32.mrf.mxu0
        %v5970 = vadd.f32 %v5849, %v5969
        %5971 = vmatprep.mubr.f32.mxu0 0.0
        %v5972 = vand.u32 %v1638, 4294901760
        %5973 = vmatmul.mubr.f32.gmra.mxu0 %v5972
        %v5974 = vpop.f32.mrf.mxu0
        %v5975 = vadd.f32 %v5856, %v5974
        %v5976 = vpop.f32.mrf.mxu0
        %v5977 = vadd.f32 %v5858, %v5976
        %5978 = vmatprep.mubr.f32.mxu0 0.0
        %v5979 = vand.u32 %v1641, 4294901760
        %5980 = vmatmul.mubr.f32.gmra.mxu0 %v5979
        %v5981 = vpop.f32.mrf.mxu0
        %v5982 = vadd.f32 %v5865, %v5981
        %v5983 = vpop.f32.mrf.mxu0
        %v5984 = vadd.f32 %v5867, %v5983
        %5985 = vdwg.mxu0
        %5986 = vmatprep.subr.mxu0 0.0
        %5987 = vmatpush1.msra.mxu0 0.0
        %5988 = vmatprep.subr.mxu0 0.0
        %5989 = vmatpush1.msra.mxu0 0.0
        %5990 = vmatprep.subr.mxu0 0.0
        %5991 = vmatpush1.msra.mxu0 0.0
        %5992 = vmatprep.subr.mxu0 0.0
        %5993 = vmatpush1.msra.mxu0 0.0
        %5994 = vmatprep.subr.mxu0 0.0
        %5995 = vmatpush1.msra.mxu0 0.0
        %5996 = vmatprep.subr.mxu0 0.0
        %5997 = vmatpush1.msra.mxu0 0.0
        %5998 = vmatprep.subr.mxu0 0.0
        %5999 = vmatpush1.msra.mxu0 0.0
        %6000 = vmatprep.subr.mxu0 0.0
        %6001 = vmatpush1.msra.mxu0 0.0
        %6002 = vmatprep.subr.mxu0 0.0
        %6003 = vmatpush1.msra.mxu0 0.0
        %6004 = vmatprep.subr.mxu0 0.0
        %6005 = vmatpush1.msra.mxu0 0.0
        %6006 = vmatprep.subr.mxu0 0.0
        %6007 = vmatpush1.msra.mxu0 0.0
        %6008 = vmatprep.subr.mxu0 0.0
        %6009 = vmatpush1.msra.mxu0 0.0
        %v6010 = vand.u32 %v5394, 4294901760
        %6011 = vmatprep.subr.mxu0 %v6010
        %v6012 = vand.u32 %v5393, 4294901760
        %6013 = vmatpush1.msra.mxu0 %v6012
        %v6014 = vand.u32 %v5390, 4294901760
        %6015 = vmatprep.subr.mxu0 %v6014
        %v6016 = vand.u32 %v5389, 4294901760
        %6017 = vmatpush1.msra.mxu0 %v6016
        %v6018 = vand.u32 %v5386, 4294901760
        %6019 = vmatprep.subr.mxu0 %v6018
        %v6020 = vand.u32 %v5385, 4294901760
        %6021 = vmatpush1.msra.mxu0 %v6020
        %v6022 = vand.u32 %v5382, 4294901760
        %6023 = vmatprep.subr.mxu0 %v6022
        %v6024 = vand.u32 %v5381, 4294901760
        %6025 = vmatpush1.msra.mxu0 %v6024
        %6026 = vmatprep.subr.mxu0 0.0
        %6027 = vmatpush2.msra.mxu0 0.0
        %6028 = vmatprep.subr.mxu0 0.0
        %6029 = vmatpush2.msra.mxu0 0.0
        %6030 = vmatprep.subr.mxu0 0.0
        %6031 = vmatpush2.msra.mxu0 0.0
        %6032 = vmatprep.subr.mxu0 0.0
        %6033 = vmatpush2.msra.mxu0 0.0
        %6034 = vmatprep.subr.mxu0 0.0
        %6035 = vmatpush2.msra.mxu0 0.0
        %6036 = vmatprep.subr.mxu0 0.0
        %6037 = vmatpush2.msra.mxu0 0.0
        %6038 = vmatprep.subr.mxu0 0.0
        %6039 = vmatpush2.msra.mxu0 0.0
        %6040 = vmatprep.subr.mxu0 0.0
        %6041 = vmatpush2.msra.mxu0 0.0
        %6042 = vmatprep.subr.mxu0 0.0
        %6043 = vmatpush2.msra.mxu0 0.0
        %6044 = vmatprep.subr.mxu0 0.0
        %6045 = vmatpush2.msra.mxu0 0.0
        %6046 = vmatprep.subr.mxu0 0.0
        %6047 = vmatpush2.msra.mxu0 0.0
        %6048 = vmatprep.subr.mxu0 0.0
        %6049 = vmatpush2.msra.mxu0 0.0
        %6050 = vmatprep.subr.mxu0 0.0
        %6051 = vmatpush2.msra.mxu0 0.0
        %6052 = vmatprep.subr.mxu0 0.0
        %6053 = vmatpush2.msra.mxu0 0.0
        %6054 = vmatprep.subr.mxu0 0.0
        %6055 = vmatpush2.msra.mxu0 0.0
        %6056 = vmatprep.subr.mxu0 0.0
        %6057 = vmatpush2.msra.mxu0 0.0
        %6058 = vmatprep.mubr.f32.mxu0 0.0
        %v6059 = vand.u32 %v1632, 4294901760
        %6060 = vmatmul.mubr.f32.gmra.mxu0 %v6059
        %v6061 = vpop.f32.mrf.mxu0
        %v6062 = vadd.f32 %v5961, %v6061
        %v6063 = vpop.f32.mrf.mxu0
        %v6064 = vadd.f32 %v5963, %v6063
        %6065 = vmatprep.mubr.f32.mxu0 0.0
        %v6066 = vand.u32 %v1635, 4294901760
        %6067 = vmatmul.mubr.f32.gmra.mxu0 %v6066
        %v6068 = vpop.f32.mrf.mxu0
        %v6069 = vadd.f32 %v5968, %v6068
        %v6070 = vpop.f32.mrf.mxu0
        %v6071 = vadd.f32 %v5970, %v6070
        %6072 = vmatprep.mubr.f32.mxu0 0.0
        %v6073 = vand.u32 %v1638, 4294901760
        %6074 = vmatmul.mubr.f32.gmra.mxu0 %v6073
        %v6075 = vpop.f32.mrf.mxu0
        %v6076 = vadd.f32 %v5975, %v6075
        %v6077 = vpop.f32.mrf.mxu0
        %v6078 = vadd.f32 %v5977, %v6077
        %6079 = vmatprep.mubr.f32.mxu0 0.0
        %v6080 = vand.u32 %v1641, 4294901760
        %6081 = vmatmul.mubr.f32.gmra.mxu0 %v6080
        %v6082 = vpop.f32.mrf.mxu0
        %v6083 = vadd.f32 %v5982, %v6082
        %v6084 = vpop.f32.mrf.mxu0
        %v6085 = vadd.f32 %v5984, %v6084
        %6086 = vdwg.mxu0
        %6087 = vmatprep.subr.mxu0 0.0
        %6088 = vmatpush1.msra.mxu0 0.0
        %6089 = vmatprep.subr.mxu0 0.0
        %6090 = vmatpush1.msra.mxu0 0.0
        %6091 = vmatprep.subr.mxu0 0.0
        %6092 = vmatpush1.msra.mxu0 0.0
        %6093 = vmatprep.subr.mxu0 0.0
        %6094 = vmatpush1.msra.mxu0 0.0
        %6095 = vmatprep.subr.mxu0 0.0
        %6096 = vmatpush1.msra.mxu0 0.0
        %6097 = vmatprep.subr.mxu0 0.0
        %6098 = vmatpush1.msra.mxu0 0.0
        %6099 = vmatprep.subr.mxu0 0.0
        %6100 = vmatpush1.msra.mxu0 0.0
        %6101 = vmatprep.subr.mxu0 0.0
        %6102 = vmatpush1.msra.mxu0 0.0
        %6103 = vmatprep.subr.mxu0 0.0
        %6104 = vmatpush1.msra.mxu0 0.0
        %6105 = vmatprep.subr.mxu0 0.0
        %6106 = vmatpush1.msra.mxu0 0.0
        %6107 = vmatprep.subr.mxu0 0.0
        %6108 = vmatpush1.msra.mxu0 0.0
        %6109 = vmatprep.subr.mxu0 0.0
        %6110 = vmatpush1.msra.mxu0 0.0
        %v6111 = vand.u32 %v5396, 4294901760
        %6112 = vmatprep.subr.mxu0 %v6111
        %v6113 = vand.u32 %v5395, 4294901760
        %6114 = vmatpush1.msra.mxu0 %v6113
        %v6115 = vand.u32 %v5392, 4294901760
        %6116 = vmatprep.subr.mxu0 %v6115
        %v6117 = vand.u32 %v5391, 4294901760
        %6118 = vmatpush1.msra.mxu0 %v6117
        %v6119 = vand.u32 %v5388, 4294901760
        %6120 = vmatprep.subr.mxu0 %v6119
        %v6121 = vand.u32 %v5387, 4294901760
        %6122 = vmatpush1.msra.mxu0 %v6121
        %v6123 = vand.u32 %v5384, 4294901760
        %6124 = vmatprep.subr.mxu0 %v6123
        %v6125 = vand.u32 %v5383, 4294901760
        %6126 = vmatpush1.msra.mxu0 %v6125
        %6127 = vmatprep.subr.mxu0 0.0
        %6128 = vmatpush2.msra.mxu0 0.0
        %6129 = vmatprep.subr.mxu0 0.0
        %6130 = vmatpush2.msra.mxu0 0.0
        %6131 = vmatprep.subr.mxu0 0.0
        %6132 = vmatpush2.msra.mxu0 0.0
        %6133 = vmatprep.subr.mxu0 0.0
        %6134 = vmatpush2.msra.mxu0 0.0
        %6135 = vmatprep.subr.mxu0 0.0
        %6136 = vmatpush2.msra.mxu0 0.0
        %6137 = vmatprep.subr.mxu0 0.0
        %6138 = vmatpush2.msra.mxu0 0.0
        %6139 = vmatprep.subr.mxu0 0.0
        %6140 = vmatpush2.msra.mxu0 0.0
        %6141 = vmatprep.subr.mxu0 0.0
        %6142 = vmatpush2.msra.mxu0 0.0
        %6143 = vmatprep.subr.mxu0 0.0
        %6144 = vmatpush2.msra.mxu0 0.0
        %6145 = vmatprep.subr.mxu0 0.0
        %6146 = vmatpush2.msra.mxu0 0.0
        %6147 = vmatprep.subr.mxu0 0.0
        %6148 = vmatpush2.msra.mxu0 0.0
        %6149 = vmatprep.subr.mxu0 0.0
        %6150 = vmatpush2.msra.mxu0 0.0
        %6151 = vmatprep.subr.mxu0 0.0
        %6152 = vmatpush2.msra.mxu0 0.0
        %6153 = vmatprep.subr.mxu0 0.0
        %6154 = vmatpush2.msra.mxu0 0.0
        %6155 = vmatprep.subr.mxu0 0.0
        %6156 = vmatpush2.msra.mxu0 0.0
        %6157 = vmatprep.subr.mxu0 0.0
        %6158 = vmatpush2.msra.mxu0 0.0
        %6159 = vmatprep.mubr.f32.mxu0 0.0
        %v6160 = vand.u32 %v1632, 4294901760
        %v6161 = vsub.f32 %v1632, %v6160
        %v6162 = vand.u32 %v6161, 4294901760
        %v6163 = vsub.f32 %v6161, %v6162
        %v6164 = vand.u32 %v6163, 4294901760
        %6165 = vmatmul.mubr.f32.gmra.mxu0 %v6164
        %v6166 = vpop.f32.mrf.mxu0
        %v6167 = vadd.f32 %v1613, %v6166
        %v6168 = vpop.f32.mrf.mxu0
        %v6169 = vadd.f32 %v1613, %v6168
        %6170 = vmatprep.mubr.f32.mxu0 0.0
        %v6171 = vand.u32 %v1635, 4294901760
        %v6172 = vsub.f32 %v1635, %v6171
        %v6173 = vand.u32 %v6172, 4294901760
        %v6174 = vsub.f32 %v6172, %v6173
        %v6175 = vand.u32 %v6174, 4294901760
        %6176 = vmatmul.mubr.f32.gmra.mxu0 %v6175
        %v6177 = vpop.f32.mrf.mxu0
        %v6178 = vadd.f32 %v1618, %v6177
        %v6179 = vpop.f32.mrf.mxu0
        %v6180 = vadd.f32 %v1618, %v6179
        %6181 = vmatprep.mubr.f32.mxu0 0.0
        %v6182 = vand.u32 %v1638, 4294901760
        %v6183 = vsub.f32 %v1638, %v6182
        %v6184 = vand.u32 %v6183, 4294901760
        %v6185 = vsub.f32 %v6183, %v6184
        %v6186 = vand.u32 %v6185, 4294901760
        %6187 = vmatmul.mubr.f32.gmra.mxu0 %v6186
        %v6188 = vpop.f32.mrf.mxu0
        %v6189 = vadd.f32 %v1623, %v6188
        %v6190 = vpop.f32.mrf.mxu0
        %v6191 = vadd.f32 %v1623, %v6190
        %6192 = vmatprep.mubr.f32.mxu0 0.0
        %v6193 = vand.u32 %v1641, 4294901760
        %v6194 = vsub.f32 %v1641, %v6193
        %v6195 = vand.u32 %v6194, 4294901760
        %v6196 = vsub.f32 %v6194, %v6195
        %v6197 = vand.u32 %v6196, 4294901760
        %6198 = vmatmul.mubr.f32.gmra.mxu0 %v6197
        %v6199 = vpop.f32.mrf.mxu0
        %v6200 = vadd.f32 %v1628, %v6199
        %v6201 = vpop.f32.mrf.mxu0
        %v6202 = vadd.f32 %v1628, %v6201
        %6203 = vdwg.mxu0
        %6204 = vmatprep.subr.mxu0 0.0
        %6205 = vmatpush1.msra.mxu0 0.0
        %6206 = vmatprep.subr.mxu0 0.0
        %6207 = vmatpush1.msra.mxu0 0.0
        %6208 = vmatprep.subr.mxu0 0.0
        %6209 = vmatpush1.msra.mxu0 0.0
        %6210 = vmatprep.subr.mxu0 0.0
        %6211 = vmatpush1.msra.mxu0 0.0
        %6212 = vmatprep.subr.mxu0 0.0
        %6213 = vmatpush1.msra.mxu0 0.0
        %6214 = vmatprep.subr.mxu0 0.0
        %6215 = vmatpush1.msra.mxu0 0.0
        %6216 = vmatprep.subr.mxu0 0.0
        %6217 = vmatpush1.msra.mxu0 0.0
        %6218 = vmatprep.subr.mxu0 0.0
        %6219 = vmatpush1.msra.mxu0 0.0
        %6220 = vmatprep.subr.mxu0 0.0
        %6221 = vmatpush1.msra.mxu0 0.0
        %6222 = vmatprep.subr.mxu0 0.0
        %6223 = vmatpush1.msra.mxu0 0.0
        %6224 = vmatprep.subr.mxu0 0.0
        %6225 = vmatpush1.msra.mxu0 0.0
        %6226 = vmatprep.subr.mxu0 0.0
        %6227 = vmatpush1.msra.mxu0 0.0
        %v6228 = vand.u32 %v5396, 4294901760
        %v6229 = vsub.f32 %v5396, %v6228
        %v6230 = vand.u32 %v6229, 4294901760
        %v6231 = vsub.f32 %v6229, %v6230
        %v6232 = vand.u32 %v6231, 4294901760
        %6233 = vmatprep.subr.mxu0 %v6232
        %v6234 = vand.u32 %v5395, 4294901760
        %v6235 = vsub.f32 %v5395, %v6234
        %v6236 = vand.u32 %v6235, 4294901760
        %v6237 = vsub.f32 %v6235, %v6236
        %v6238 = vand.u32 %v6237, 4294901760
        %6239 = vmatpush1.msra.mxu0 %v6238
        %v6240 = vand.u32 %v5392, 4294901760
        %v6241 = vsub.f32 %v5392, %v6240
        %v6242 = vand.u32 %v6241, 4294901760
        %v6243 = vsub.f32 %v6241, %v6242
        %v6244 = vand.u32 %v6243, 4294901760
        %6245 = vmatprep.subr.mxu0 %v6244
        %v6246 = vand.u32 %v5391, 4294901760
        %v6247 = vsub.f32 %v5391, %v6246
        %v6248 = vand.u32 %v6247, 4294901760
        %v6249 = vsub.f32 %v6247, %v6248
        %v6250 = vand.u32 %v6249, 4294901760
        %6251 = vmatpush1.msra.mxu0 %v6250
        %v6252 = vand.u32 %v5388, 4294901760
        %v6253 = vsub.f32 %v5388, %v6252
        %v6254 = vand.u32 %v6253, 4294901760
        %v6255 = vsub.f32 %v6253, %v6254
        %v6256 = vand.u32 %v6255, 4294901760
        %6257 = vmatprep.subr.mxu0 %v6256
        %v6258 = vand.u32 %v5387, 4294901760
        %v6259 = vsub.f32 %v5387, %v6258
        %v6260 = vand.u32 %v6259, 4294901760
        %v6261 = vsub.f32 %v6259, %v6260
        %v6262 = vand.u32 %v6261, 4294901760
        %6263 = vmatpush1.msra.mxu0 %v6262
        %v6264 = vand.u32 %v5384, 4294901760
        %v6265 = vsub.f32 %v5384, %v6264
        %v6266 = vand.u32 %v6265, 4294901760
        %v6267 = vsub.f32 %v6265, %v6266
        %v6268 = vand.u32 %v6267, 4294901760
        %6269 = vmatprep.subr.mxu0 %v6268
        %v6270 = vand.u32 %v5383, 4294901760
        %v6271 = vsub.f32 %v5383, %v6270
        %v6272 = vand.u32 %v6271, 4294901760
        %v6273 = vsub.f32 %v6271, %v6272
        %v6274 = vand.u32 %v6273, 4294901760
        %6275 = vmatpush1.msra.mxu0 %v6274
        %6276 = vmatprep.subr.mxu0 0.0
        %6277 = vmatpush2.msra.mxu0 0.0
        %6278 = vmatprep.subr.mxu0 0.0
        %6279 = vmatpush2.msra.mxu0 0.0
        %6280 = vmatprep.subr.mxu0 0.0
        %6281 = vmatpush2.msra.mxu0 0.0
        %6282 = vmatprep.subr.mxu0 0.0
        %6283 = vmatpush2.msra.mxu0 0.0
        %6284 = vmatprep.subr.mxu0 0.0
        %6285 = vmatpush2.msra.mxu0 0.0
        %6286 = vmatprep.subr.mxu0 0.0
        %6287 = vmatpush2.msra.mxu0 0.0
        %6288 = vmatprep.subr.mxu0 0.0
        %6289 = vmatpush2.msra.mxu0 0.0
        %6290 = vmatprep.subr.mxu0 0.0
        %6291 = vmatpush2.msra.mxu0 0.0
        %6292 = vmatprep.subr.mxu0 0.0
        %6293 = vmatpush2.msra.mxu0 0.0
        %6294 = vmatprep.subr.mxu0 0.0
        %6295 = vmatpush2.msra.mxu0 0.0
        %6296 = vmatprep.subr.mxu0 0.0
        %6297 = vmatpush2.msra.mxu0 0.0
        %6298 = vmatprep.subr.mxu0 0.0
        %6299 = vmatpush2.msra.mxu0 0.0
        %6300 = vmatprep.subr.mxu0 0.0
        %6301 = vmatpush2.msra.mxu0 0.0
        %6302 = vmatprep.subr.mxu0 0.0
        %6303 = vmatpush2.msra.mxu0 0.0
        %6304 = vmatprep.subr.mxu0 0.0
        %6305 = vmatpush2.msra.mxu0 0.0
        %6306 = vmatprep.subr.mxu0 0.0
        %6307 = vmatpush2.msra.mxu0 0.0
        %6308 = vmatprep.mubr.f32.mxu0 0.0
        %v6309 = vand.u32 %v1632, 4294901760
        %6310 = vmatmul.mubr.f32.gmra.mxu0 %v6309
        %v6311 = vpop.f32.mrf.mxu0
        %v6312 = vadd.f32 %v6167, %v6311
        %v6313 = vpop.f32.mrf.mxu0
        %v6314 = vadd.f32 %v6169, %v6313
        %6315 = vmatprep.mubr.f32.mxu0 0.0
        %v6316 = vand.u32 %v1635, 4294901760
        %6317 = vmatmul.mubr.f32.gmra.mxu0 %v6316
        %v6318 = vpop.f32.mrf.mxu0
        %v6319 = vadd.f32 %v6178, %v6318
        %v6320 = vpop.f32.mrf.mxu0
        %v6321 = vadd.f32 %v6180, %v6320
        %6322 = vmatprep.mubr.f32.mxu0 0.0
        %v6323 = vand.u32 %v1638, 4294901760
        %6324 = vmatmul.mubr.f32.gmra.mxu0 %v6323
        %v6325 = vpop.f32.mrf.mxu0
        %v6326 = vadd.f32 %v6189, %v6325
        %v6327 = vpop.f32.mrf.mxu0
        %v6328 = vadd.f32 %v6191, %v6327
        %6329 = vmatprep.mubr.f32.mxu0 0.0
        %v6330 = vand.u32 %v1641, 4294901760
        %6331 = vmatmul.mubr.f32.gmra.mxu0 %v6330
        %v6332 = vpop.f32.mrf.mxu0
        %v6333 = vadd.f32 %v6200, %v6332
        %v6334 = vpop.f32.mrf.mxu0
        %v6335 = vadd.f32 %v6202, %v6334
        %6336 = vdwg.mxu0
        %6337 = vmatprep.subr.mxu0 0.0
        %6338 = vmatpush1.msra.mxu0 0.0
        %6339 = vmatprep.subr.mxu0 0.0
        %6340 = vmatpush1.msra.mxu0 0.0
        %6341 = vmatprep.subr.mxu0 0.0
        %6342 = vmatpush1.msra.mxu0 0.0
        %6343 = vmatprep.subr.mxu0 0.0
        %6344 = vmatpush1.msra.mxu0 0.0
        %6345 = vmatprep.subr.mxu0 0.0
        %6346 = vmatpush1.msra.mxu0 0.0
        %6347 = vmatprep.subr.mxu0 0.0
        %6348 = vmatpush1.msra.mxu0 0.0
        %6349 = vmatprep.subr.mxu0 0.0
        %6350 = vmatpush1.msra.mxu0 0.0
        %6351 = vmatprep.subr.mxu0 0.0
        %6352 = vmatpush1.msra.mxu0 0.0
        %6353 = vmatprep.subr.mxu0 0.0
        %6354 = vmatpush1.msra.mxu0 0.0
        %6355 = vmatprep.subr.mxu0 0.0
        %6356 = vmatpush1.msra.mxu0 0.0
        %6357 = vmatprep.subr.mxu0 0.0
        %6358 = vmatpush1.msra.mxu0 0.0
        %6359 = vmatprep.subr.mxu0 0.0
        %6360 = vmatpush1.msra.mxu0 0.0
        %v6361 = vand.u32 %v5396, 4294901760
        %v6362 = vsub.f32 %v5396, %v6361
        %6363 = vmatprep.subr.mxu0 %v6362
        %v6364 = vand.u32 %v5395, 4294901760
        %v6365 = vsub.f32 %v5395, %v6364
        %6366 = vmatpush1.msra.mxu0 %v6365
        %v6367 = vand.u32 %v5392, 4294901760
        %v6368 = vsub.f32 %v5392, %v6367
        %6369 = vmatprep.subr.mxu0 %v6368
        %v6370 = vand.u32 %v5391, 4294901760
        %v6371 = vsub.f32 %v5391, %v6370
        %6372 = vmatpush1.msra.mxu0 %v6371
        %v6373 = vand.u32 %v5388, 4294901760
        %v6374 = vsub.f32 %v5388, %v6373
        %6375 = vmatprep.subr.mxu0 %v6374
        %v6376 = vand.u32 %v5387, 4294901760
        %v6377 = vsub.f32 %v5387, %v6376
        %6378 = vmatpush1.msra.mxu0 %v6377
        %v6379 = vand.u32 %v5384, 4294901760
        %v6380 = vsub.f32 %v5384, %v6379
        %6381 = vmatprep.subr.mxu0 %v6380
        %v6382 = vand.u32 %v5383, 4294901760
        %v6383 = vsub.f32 %v5383, %v6382
        %6384 = vmatpush1.msra.mxu0 %v6383
        %6385 = vmatprep.subr.mxu0 0.0
        %6386 = vmatpush2.msra.mxu0 0.0
        %6387 = vmatprep.subr.mxu0 0.0
        %6388 = vmatpush2.msra.mxu0 0.0
        %6389 = vmatprep.subr.mxu0 0.0
        %6390 = vmatpush2.msra.mxu0 0.0
        %6391 = vmatprep.subr.mxu0 0.0
        %6392 = vmatpush2.msra.mxu0 0.0
        %6393 = vmatprep.subr.mxu0 0.0
        %6394 = vmatpush2.msra.mxu0 0.0
        %6395 = vmatprep.subr.mxu0 0.0
        %6396 = vmatpush2.msra.mxu0 0.0
        %6397 = vmatprep.subr.mxu0 0.0
        %6398 = vmatpush2.msra.mxu0 0.0
        %6399 = vmatprep.subr.mxu0 0.0
        %6400 = vmatpush2.msra.mxu0 0.0
        %6401 = vmatprep.subr.mxu0 0.0
        %6402 = vmatpush2.msra.mxu0 0.0
        %6403 = vmatprep.subr.mxu0 0.0
        %6404 = vmatpush2.msra.mxu0 0.0
        %6405 = vmatprep.subr.mxu0 0.0
        %6406 = vmatpush2.msra.mxu0 0.0
        %6407 = vmatprep.subr.mxu0 0.0
        %6408 = vmatpush2.msra.mxu0 0.0
        %6409 = vmatprep.subr.mxu0 0.0
        %6410 = vmatpush2.msra.mxu0 0.0
        %6411 = vmatprep.subr.mxu0 0.0
        %6412 = vmatpush2.msra.mxu0 0.0
        %6413 = vmatprep.subr.mxu0 0.0
        %6414 = vmatpush2.msra.mxu0 0.0
        %6415 = vmatprep.subr.mxu0 0.0
        %6416 = vmatpush2.msra.mxu0 0.0
        %6417 = vmatprep.mubr.f32.mxu0 0.0
        %v6418 = vand.u32 %v1632, 4294901760
        %v6419 = vsub.f32 %v1632, %v6418
        %6420 = vmatmul.mubr.f32.gmra.mxu0 %v6419
        %v6421 = vpop.f32.mrf.mxu0
        %v6422 = vadd.f32 %v6312, %v6421
        %v6423 = vpop.f32.mrf.mxu0
        %v6424 = vadd.f32 %v6314, %v6423
        %6425 = vmatprep.mubr.f32.mxu0 0.0
        %v6426 = vand.u32 %v1635, 4294901760
        %v6427 = vsub.f32 %v1635, %v6426
        %6428 = vmatmul.mubr.f32.gmra.mxu0 %v6427
        %v6429 = vpop.f32.mrf.mxu0
        %v6430 = vadd.f32 %v6319, %v6429
        %v6431 = vpop.f32.mrf.mxu0
        %v6432 = vadd.f32 %v6321, %v6431
        %6433 = vmatprep.mubr.f32.mxu0 0.0
        %v6434 = vand.u32 %v1638, 4294901760
        %v6435 = vsub.f32 %v1638, %v6434
        %6436 = vmatmul.mubr.f32.gmra.mxu0 %v6435
        %v6437 = vpop.f32.mrf.mxu0
        %v6438 = vadd.f32 %v6326, %v6437
        %v6439 = vpop.f32.mrf.mxu0
        %v6440 = vadd.f32 %v6328, %v6439
        %6441 = vmatprep.mubr.f32.mxu0 0.0
        %v6442 = vand.u32 %v1641, 4294901760
        %v6443 = vsub.f32 %v1641, %v6442
        %6444 = vmatmul.mubr.f32.gmra.mxu0 %v6443
        %v6445 = vpop.f32.mrf.mxu0
        %v6446 = vadd.f32 %v6333, %v6445
        %v6447 = vpop.f32.mrf.mxu0
        %v6448 = vadd.f32 %v6335, %v6447
        %6449 = vdwg.mxu0
        %6450 = vmatprep.subr.mxu0 0.0
        %6451 = vmatpush1.msra.mxu0 0.0
        %6452 = vmatprep.subr.mxu0 0.0
        %6453 = vmatpush1.msra.mxu0 0.0
        %6454 = vmatprep.subr.mxu0 0.0
        %6455 = vmatpush1.msra.mxu0 0.0
        %6456 = vmatprep.subr.mxu0 0.0
        %6457 = vmatpush1.msra.mxu0 0.0
        %6458 = vmatprep.subr.mxu0 0.0
        %6459 = vmatpush1.msra.mxu0 0.0
        %6460 = vmatprep.subr.mxu0 0.0
        %6461 = vmatpush1.msra.mxu0 0.0
        %6462 = vmatprep.subr.mxu0 0.0
        %6463 = vmatpush1.msra.mxu0 0.0
        %6464 = vmatprep.subr.mxu0 0.0
        %6465 = vmatpush1.msra.mxu0 0.0
        %6466 = vmatprep.subr.mxu0 0.0
        %6467 = vmatpush1.msra.mxu0 0.0
        %6468 = vmatprep.subr.mxu0 0.0
        %6469 = vmatpush1.msra.mxu0 0.0
        %6470 = vmatprep.subr.mxu0 0.0
        %6471 = vmatpush1.msra.mxu0 0.0
        %6472 = vmatprep.subr.mxu0 0.0
        %6473 = vmatpush1.msra.mxu0 0.0
        %v6474 = vand.u32 %v5396, 4294901760
        %6475 = vmatprep.subr.mxu0 %v6474
        %v6476 = vand.u32 %v5395, 4294901760
        %6477 = vmatpush1.msra.mxu0 %v6476
        %v6478 = vand.u32 %v5392, 4294901760
        %6479 = vmatprep.subr.mxu0 %v6478
        %v6480 = vand.u32 %v5391, 4294901760
        %6481 = vmatpush1.msra.mxu0 %v6480
        %v6482 = vand.u32 %v5388, 4294901760
        %6483 = vmatprep.subr.mxu0 %v6482
        %v6484 = vand.u32 %v5387, 4294901760
        %6485 = vmatpush1.msra.mxu0 %v6484
        %v6486 = vand.u32 %v5384, 4294901760
        %6487 = vmatprep.subr.mxu0 %v6486
        %v6488 = vand.u32 %v5383, 4294901760
        %6489 = vmatpush1.msra.mxu0 %v6488
        %6490 = vmatprep.subr.mxu0 0.0
        %6491 = vmatpush2.msra.mxu0 0.0
        %6492 = vmatprep.subr.mxu0 0.0
        %6493 = vmatpush2.msra.mxu0 0.0
        %6494 = vmatprep.subr.mxu0 0.0
        %6495 = vmatpush2.msra.mxu0 0.0
        %6496 = vmatprep.subr.mxu0 0.0
        %6497 = vmatpush2.msra.mxu0 0.0
        %6498 = vmatprep.subr.mxu0 0.0
        %6499 = vmatpush2.msra.mxu0 0.0
        %6500 = vmatprep.subr.mxu0 0.0
        %6501 = vmatpush2.msra.mxu0 0.0
        %6502 = vmatprep.subr.mxu0 0.0
        %6503 = vmatpush2.msra.mxu0 0.0
        %6504 = vmatprep.subr.mxu0 0.0
        %6505 = vmatpush2.msra.mxu0 0.0
        %6506 = vmatprep.subr.mxu0 0.0
        %6507 = vmatpush2.msra.mxu0 0.0
        %6508 = vmatprep.subr.mxu0 0.0
        %6509 = vmatpush2.msra.mxu0 0.0
        %6510 = vmatprep.subr.mxu0 0.0
        %6511 = vmatpush2.msra.mxu0 0.0
        %6512 = vmatprep.subr.mxu0 0.0
        %6513 = vmatpush2.msra.mxu0 0.0
        %6514 = vmatprep.subr.mxu0 0.0
        %6515 = vmatpush2.msra.mxu0 0.0
        %6516 = vmatprep.subr.mxu0 0.0
        %6517 = vmatpush2.msra.mxu0 0.0
        %6518 = vmatprep.subr.mxu0 0.0
        %6519 = vmatpush2.msra.mxu0 0.0
        %6520 = vmatprep.subr.mxu0 0.0
        %6521 = vmatpush2.msra.mxu0 0.0
        %6522 = vmatprep.mubr.f32.mxu0 0.0
        %v6523 = vand.u32 %v1632, 4294901760
        %v6524 = vsub.f32 %v1632, %v6523
        %v6525 = vand.u32 %v6524, 4294901760
        %6526 = vmatmul.mubr.f32.gmra.mxu0 %v6525
        %v6527 = vpop.f32.mrf.mxu0
        %v6528 = vadd.f32 %v6422, %v6527
        %v6529 = vpop.f32.mrf.mxu0
        %v6530 = vadd.f32 %v6424, %v6529
        %6531 = vmatprep.mubr.f32.mxu0 0.0
        %v6532 = vand.u32 %v1635, 4294901760
        %v6533 = vsub.f32 %v1635, %v6532
        %v6534 = vand.u32 %v6533, 4294901760
        %6535 = vmatmul.mubr.f32.gmra.mxu0 %v6534
        %v6536 = vpop.f32.mrf.mxu0
        %v6537 = vadd.f32 %v6430, %v6536
        %v6538 = vpop.f32.mrf.mxu0
        %v6539 = vadd.f32 %v6432, %v6538
        %6540 = vmatprep.mubr.f32.mxu0 0.0
        %v6541 = vand.u32 %v1638, 4294901760
        %v6542 = vsub.f32 %v1638, %v6541
        %v6543 = vand.u32 %v6542, 4294901760
        %6544 = vmatmul.mubr.f32.gmra.mxu0 %v6543
        %v6545 = vpop.f32.mrf.mxu0
        %v6546 = vadd.f32 %v6438, %v6545
        %v6547 = vpop.f32.mrf.mxu0
        %v6548 = vadd.f32 %v6440, %v6547
        %6549 = vmatprep.mubr.f32.mxu0 0.0
        %v6550 = vand.u32 %v1641, 4294901760
        %v6551 = vsub.f32 %v1641, %v6550
        %v6552 = vand.u32 %v6551, 4294901760
        %6553 = vmatmul.mubr.f32.gmra.mxu0 %v6552
        %v6554 = vpop.f32.mrf.mxu0
        %v6555 = vadd.f32 %v6446, %v6554
        %v6556 = vpop.f32.mrf.mxu0
        %v6557 = vadd.f32 %v6448, %v6556
        %6558 = vdwg.mxu0
        %6559 = vmatprep.subr.mxu0 0.0
        %6560 = vmatpush1.msra.mxu0 0.0
        %6561 = vmatprep.subr.mxu0 0.0
        %6562 = vmatpush1.msra.mxu0 0.0
        %6563 = vmatprep.subr.mxu0 0.0
        %6564 = vmatpush1.msra.mxu0 0.0
        %6565 = vmatprep.subr.mxu0 0.0
        %6566 = vmatpush1.msra.mxu0 0.0
        %6567 = vmatprep.subr.mxu0 0.0
        %6568 = vmatpush1.msra.mxu0 0.0
        %6569 = vmatprep.subr.mxu0 0.0
        %6570 = vmatpush1.msra.mxu0 0.0
        %6571 = vmatprep.subr.mxu0 0.0
        %6572 = vmatpush1.msra.mxu0 0.0
        %6573 = vmatprep.subr.mxu0 0.0
        %6574 = vmatpush1.msra.mxu0 0.0
        %6575 = vmatprep.subr.mxu0 0.0
        %6576 = vmatpush1.msra.mxu0 0.0
        %6577 = vmatprep.subr.mxu0 0.0
        %6578 = vmatpush1.msra.mxu0 0.0
        %6579 = vmatprep.subr.mxu0 0.0
        %6580 = vmatpush1.msra.mxu0 0.0
        %6581 = vmatprep.subr.mxu0 0.0
        %6582 = vmatpush1.msra.mxu0 0.0
        %v6583 = vand.u32 %v5396, 4294901760
        %v6584 = vsub.f32 %v5396, %v6583
        %v6585 = vand.u32 %v6584, 4294901760
        %6586 = vmatprep.subr.mxu0 %v6585
        %v6587 = vand.u32 %v5395, 4294901760
        %v6588 = vsub.f32 %v5395, %v6587
        %v6589 = vand.u32 %v6588, 4294901760
        %6590 = vmatpush1.msra.mxu0 %v6589
        %v6591 = vand.u32 %v5392, 4294901760
        %v6592 = vsub.f32 %v5392, %v6591
        %v6593 = vand.u32 %v6592, 4294901760
        %6594 = vmatprep.subr.mxu0 %v6593
        %v6595 = vand.u32 %v5391, 4294901760
        %v6596 = vsub.f32 %v5391, %v6595
        %v6597 = vand.u32 %v6596, 4294901760
        %6598 = vmatpush1.msra.mxu0 %v6597
        %v6599 = vand.u32 %v5388, 4294901760
        %v6600 = vsub.f32 %v5388, %v6599
        %v6601 = vand.u32 %v6600, 4294901760
        %6602 = vmatprep.subr.mxu0 %v6601
        %v6603 = vand.u32 %v5387, 4294901760
        %v6604 = vsub.f32 %v5387, %v6603
        %v6605 = vand.u32 %v6604, 4294901760
        %6606 = vmatpush1.msra.mxu0 %v6605
        %v6607 = vand.u32 %v5384, 4294901760
        %v6608 = vsub.f32 %v5384, %v6607
        %v6609 = vand.u32 %v6608, 4294901760
        %6610 = vmatprep.subr.mxu0 %v6609
        %v6611 = vand.u32 %v5383, 4294901760
        %v6612 = vsub.f32 %v5383, %v6611
        %v6613 = vand.u32 %v6612, 4294901760
        %6614 = vmatpush1.msra.mxu0 %v6613
        %6615 = vmatprep.subr.mxu0 0.0
        %6616 = vmatpush2.msra.mxu0 0.0
        %6617 = vmatprep.subr.mxu0 0.0
        %6618 = vmatpush2.msra.mxu0 0.0
        %6619 = vmatprep.subr.mxu0 0.0
        %6620 = vmatpush2.msra.mxu0 0.0
        %6621 = vmatprep.subr.mxu0 0.0
        %6622 = vmatpush2.msra.mxu0 0.0
        %6623 = vmatprep.subr.mxu0 0.0
        %6624 = vmatpush2.msra.mxu0 0.0
        %6625 = vmatprep.subr.mxu0 0.0
        %6626 = vmatpush2.msra.mxu0 0.0
        %6627 = vmatprep.subr.mxu0 0.0
        %6628 = vmatpush2.msra.mxu0 0.0
        %6629 = vmatprep.subr.mxu0 0.0
        %6630 = vmatpush2.msra.mxu0 0.0
        %6631 = vmatprep.subr.mxu0 0.0
        %6632 = vmatpush2.msra.mxu0 0.0
        %6633 = vmatprep.subr.mxu0 0.0
        %6634 = vmatpush2.msra.mxu0 0.0
        %6635 = vmatprep.subr.mxu0 0.0
        %6636 = vmatpush2.msra.mxu0 0.0
        %6637 = vmatprep.subr.mxu0 0.0
        %6638 = vmatpush2.msra.mxu0 0.0
        %6639 = vmatprep.subr.mxu0 0.0
        %6640 = vmatpush2.msra.mxu0 0.0
        %6641 = vmatprep.subr.mxu0 0.0
        %6642 = vmatpush2.msra.mxu0 0.0
        %6643 = vmatprep.subr.mxu0 0.0
        %6644 = vmatpush2.msra.mxu0 0.0
        %6645 = vmatprep.subr.mxu0 0.0
        %6646 = vmatpush2.msra.mxu0 0.0
        %6647 = vmatprep.mubr.f32.mxu0 0.0
        %v6648 = vand.u32 %v1632, 4294901760
        %6649 = vmatmul.mubr.f32.gmra.mxu0 %v6648
        %v6650 = vpop.f32.mrf.mxu0
        %v6651 = vadd.f32 %v6528, %v6650
        %v6652 = vpop.f32.mrf.mxu0
        %v6653 = vadd.f32 %v6530, %v6652
        %6654 = vmatprep.mubr.f32.mxu0 0.0
        %v6655 = vand.u32 %v1635, 4294901760
        %6656 = vmatmul.mubr.f32.gmra.mxu0 %v6655
        %v6657 = vpop.f32.mrf.mxu0
        %v6658 = vadd.f32 %v6537, %v6657
        %v6659 = vpop.f32.mrf.mxu0
        %v6660 = vadd.f32 %v6539, %v6659
        %6661 = vmatprep.mubr.f32.mxu0 0.0
        %v6662 = vand.u32 %v1638, 4294901760
        %6663 = vmatmul.mubr.f32.gmra.mxu0 %v6662
        %v6664 = vpop.f32.mrf.mxu0
        %v6665 = vadd.f32 %v6546, %v6664
        %v6666 = vpop.f32.mrf.mxu0
        %v6667 = vadd.f32 %v6548, %v6666
        %6668 = vmatprep.mubr.f32.mxu0 0.0
        %v6669 = vand.u32 %v1641, 4294901760
        %6670 = vmatmul.mubr.f32.gmra.mxu0 %v6669
        %v6671 = vpop.f32.mrf.mxu0
        %v6672 = vadd.f32 %v6555, %v6671
        %v6673 = vpop.f32.mrf.mxu0
        %v6674 = vadd.f32 %v6557, %v6673
        %6675 = vdwg.mxu0
        %6676 = vmatprep.subr.mxu0 0.0
        %6677 = vmatpush1.msra.mxu0 0.0
        %6678 = vmatprep.subr.mxu0 0.0
        %6679 = vmatpush1.msra.mxu0 0.0
        %6680 = vmatprep.subr.mxu0 0.0
        %6681 = vmatpush1.msra.mxu0 0.0
        %6682 = vmatprep.subr.mxu0 0.0
        %6683 = vmatpush1.msra.mxu0 0.0
        %6684 = vmatprep.subr.mxu0 0.0
        %6685 = vmatpush1.msra.mxu0 0.0
        %6686 = vmatprep.subr.mxu0 0.0
        %6687 = vmatpush1.msra.mxu0 0.0
        %6688 = vmatprep.subr.mxu0 0.0
        %6689 = vmatpush1.msra.mxu0 0.0
        %6690 = vmatprep.subr.mxu0 0.0
        %6691 = vmatpush1.msra.mxu0 0.0
        %6692 = vmatprep.subr.mxu0 0.0
        %6693 = vmatpush1.msra.mxu0 0.0
        %6694 = vmatprep.subr.mxu0 0.0
        %6695 = vmatpush1.msra.mxu0 0.0
        %6696 = vmatprep.subr.mxu0 0.0
        %6697 = vmatpush1.msra.mxu0 0.0
        %6698 = vmatprep.subr.mxu0 0.0
        %6699 = vmatpush1.msra.mxu0 0.0
        %v6700 = vand.u32 %v5396, 4294901760
        %6701 = vmatprep.subr.mxu0 %v6700
        %v6702 = vand.u32 %v5395, 4294901760
        %6703 = vmatpush1.msra.mxu0 %v6702
        %v6704 = vand.u32 %v5392, 4294901760
        %6705 = vmatprep.subr.mxu0 %v6704
        %v6706 = vand.u32 %v5391, 4294901760
        %6707 = vmatpush1.msra.mxu0 %v6706
        %v6708 = vand.u32 %v5388, 4294901760
        %6709 = vmatprep.subr.mxu0 %v6708
        %v6710 = vand.u32 %v5387, 4294901760
        %6711 = vmatpush1.msra.mxu0 %v6710
        %v6712 = vand.u32 %v5384, 4294901760
        %6713 = vmatprep.subr.mxu0 %v6712
        %v6714 = vand.u32 %v5383, 4294901760
        %6715 = vmatpush1.msra.mxu0 %v6714
        %6716 = vmatprep.subr.mxu0 0.0
        %6717 = vmatpush2.msra.mxu0 0.0
        %6718 = vmatprep.subr.mxu0 0.0
        %6719 = vmatpush2.msra.mxu0 0.0
        %6720 = vmatprep.subr.mxu0 0.0
        %6721 = vmatpush2.msra.mxu0 0.0
        %6722 = vmatprep.subr.mxu0 0.0
        %6723 = vmatpush2.msra.mxu0 0.0
        %6724 = vmatprep.subr.mxu0 0.0
        %6725 = vmatpush2.msra.mxu0 0.0
        %6726 = vmatprep.subr.mxu0 0.0
        %6727 = vmatpush2.msra.mxu0 0.0
        %6728 = vmatprep.subr.mxu0 0.0
        %6729 = vmatpush2.msra.mxu0 0.0
        %6730 = vmatprep.subr.mxu0 0.0
        %6731 = vmatpush2.msra.mxu0 0.0
        %6732 = vmatprep.subr.mxu0 0.0
        %6733 = vmatpush2.msra.mxu0 0.0
        %6734 = vmatprep.subr.mxu0 0.0
        %6735 = vmatpush2.msra.mxu0 0.0
        %6736 = vmatprep.subr.mxu0 0.0
        %6737 = vmatpush2.msra.mxu0 0.0
        %6738 = vmatprep.subr.mxu0 0.0
        %6739 = vmatpush2.msra.mxu0 0.0
        %6740 = vmatprep.subr.mxu0 0.0
        %6741 = vmatpush2.msra.mxu0 0.0
        %6742 = vmatprep.subr.mxu0 0.0
        %6743 = vmatpush2.msra.mxu0 0.0
        %6744 = vmatprep.subr.mxu0 0.0
        %6745 = vmatpush2.msra.mxu0 0.0
        %6746 = vmatprep.subr.mxu0 0.0
        %6747 = vmatpush2.msra.mxu0 0.0
        %6748 = vmatprep.mubr.f32.mxu0 0.0
        %v6749 = vand.u32 %v1632, 4294901760
        %6750 = vmatmul.mubr.f32.gmra.mxu0 %v6749
        %v6751 = vpop.f32.mrf.mxu0
        %v6752 = vadd.f32 %v6651, %v6751
        %v6753 = vpop.f32.mrf.mxu0
        %v6754 = vadd.f32 %v6653, %v6753
        %6755 = vmatprep.mubr.f32.mxu0 0.0
        %v6756 = vand.u32 %v1635, 4294901760
        %6757 = vmatmul.mubr.f32.gmra.mxu0 %v6756
        %v6758 = vpop.f32.mrf.mxu0
        %v6759 = vadd.f32 %v6658, %v6758
        %v6760 = vpop.f32.mrf.mxu0
        %v6761 = vadd.f32 %v6660, %v6760
        %6762 = vmatprep.mubr.f32.mxu0 0.0
        %v6763 = vand.u32 %v1638, 4294901760
        %6764 = vmatmul.mubr.f32.gmra.mxu0 %v6763
        %v6765 = vpop.f32.mrf.mxu0
        %v6766 = vadd.f32 %v6665, %v6765
        %v6767 = vpop.f32.mrf.mxu0
        %v6768 = vadd.f32 %v6667, %v6767
        %6769 = vmatprep.mubr.f32.mxu0 0.0
        %v6770 = vand.u32 %v1641, 4294901760
        %6771 = vmatmul.mubr.f32.gmra.mxu0 %v6770
        %v6772 = vpop.f32.mrf.mxu0
        %v6773 = vadd.f32 %v6672, %v6772
        %v6774 = vpop.f32.mrf.mxu0
        %v6775 = vadd.f32 %v6674, %v6774
        %6776 = vdwg.mxu0
        %v6777 = vtanh.pop %v6062
        %v6778 = vtanh.pop %v6064
        %v6779 = vtanh.pop %v6752
        %v6780 = vtanh.pop %v6754
        %v6781 = vtanh.pop %v6069
        %v6782 = vtanh.pop %v6071
        %v6783 = vtanh.pop %v6759
        %v6784 = vtanh.pop %v6761
        %v6785 = vtanh.pop %v6076
        %v6786 = vtanh.pop %v6078
        %v6787 = vtanh.pop %v6766
        %v6788 = vtanh.pop %v6768
        %v6789 = vtanh.pop %v6083
        %v6790 = vtanh.pop %v6085
        %v6791 = vtanh.pop %v6773
        %v6792 = vtanh.pop %v6775
        %6793 = vmatprep.subr.mxu0 0.0
        %6794 = vmatpush1.msra.mxu0 0.0
        %6795 = vmatprep.subr.mxu0 0.0
        %6796 = vmatpush1.msra.mxu0 0.0
        %6797 = vmatprep.subr.mxu0 0.0
        %6798 = vmatpush1.msra.mxu0 0.0
        %6799 = vmatprep.subr.mxu0 0.0
        %6800 = vmatpush1.msra.mxu0 0.0
        %6801 = vmatprep.subr.mxu0 0.0
        %6802 = vmatpush1.msra.mxu0 0.0
        %6803 = vmatprep.subr.mxu0 0.0
        %6804 = vmatpush1.msra.mxu0 0.0
        %6805 = vmatprep.subr.mxu0 0.0
        %6806 = vmatpush1.msra.mxu0 0.0
        %6807 = vmatprep.subr.mxu0 0.0
        %6808 = vmatpush1.msra.mxu0 0.0
        %6809 = vmatprep.subr.mxu0 0.0
        %6810 = vmatpush1.msra.mxu0 0.0
        %6811 = vmatprep.subr.mxu0 0.0
        %6812 = vmatpush1.msra.mxu0 0.0
        %6813 = vmatprep.subr.mxu0 0.0
        %6814 = vmatpush1.msra.mxu0 0.0
        %6815 = vmatprep.subr.mxu0 0.0
        %6816 = vmatpush1.msra.mxu0 0.0
        %v6817 = vand.u32 %v6790, 4294901760
        %6818 = vmatprep.subr.mxu0 %v6817
        %v6819 = vand.u32 %v6789, 4294901760
        %6820 = vmatpush1.msra.mxu0 %v6819
        %v6821 = vand.u32 %v6786, 4294901760
        %6822 = vmatprep.subr.mxu0 %v6821
        %v6823 = vand.u32 %v6785, 4294901760
        %6824 = vmatpush1.msra.mxu0 %v6823
        %v6825 = vand.u32 %v6782, 4294901760
        %6826 = vmatprep.subr.mxu0 %v6825
        %v6827 = vand.u32 %v6781, 4294901760
        %6828 = vmatpush1.msra.mxu0 %v6827
        %v6829 = vand.u32 %v6778, 4294901760
        %6830 = vmatprep.subr.mxu0 %v6829
        %v6831 = vand.u32 %v6777, 4294901760
        %6832 = vmatpush1.msra.mxu0 %v6831
        %6833 = vmatprep.subr.mxu0 0.0
        %6834 = vmatpush2.msra.mxu0 0.0
        %6835 = vmatprep.subr.mxu0 0.0
        %6836 = vmatpush2.msra.mxu0 0.0
        %6837 = vmatprep.subr.mxu0 0.0
        %6838 = vmatpush2.msra.mxu0 0.0
        %6839 = vmatprep.subr.mxu0 0.0
        %6840 = vmatpush2.msra.mxu0 0.0
        %6841 = vmatprep.subr.mxu0 0.0
        %6842 = vmatpush2.msra.mxu0 0.0
        %6843 = vmatprep.subr.mxu0 0.0
        %6844 = vmatpush2.msra.mxu0 0.0
        %6845 = vmatprep.subr.mxu0 0.0
        %6846 = vmatpush2.msra.mxu0 0.0
        %6847 = vmatprep.subr.mxu0 0.0
        %6848 = vmatpush2.msra.mxu0 0.0
        %6849 = vmatprep.subr.mxu0 0.0
        %6850 = vmatpush2.msra.mxu0 0.0
        %6851 = vmatprep.subr.mxu0 0.0
        %6852 = vmatpush2.msra.mxu0 0.0
        %6853 = vmatprep.subr.mxu0 0.0
        %6854 = vmatpush2.msra.mxu0 0.0
        %6855 = vmatprep.subr.mxu0 0.0
        %6856 = vmatpush2.msra.mxu0 0.0
        %6857 = vmatprep.subr.mxu0 0.0
        %6858 = vmatpush2.msra.mxu0 0.0
        %6859 = vmatprep.subr.mxu0 0.0
        %6860 = vmatpush2.msra.mxu0 0.0
        %6861 = vmatprep.subr.mxu0 0.0
        %6862 = vmatpush2.msra.mxu0 0.0
        %6863 = vmatprep.subr.mxu0 0.0
        %6864 = vmatpush2.msra.mxu0 0.0
        %6865 = vmatprep.mubr.f32.mxu0 0.0
        %v6866 = vand.u32 %v3045, 4294901760
        %v6867 = vsub.f32 %v3045, %v6866
        %v6868 = vand.u32 %v6867, 4294901760
        %v6869 = vsub.f32 %v6867, %v6868
        %v6870 = vand.u32 %v6869, 4294901760
        %6871 = vmatmul.mubr.f32.gmra.mxu0 %v6870
        %v6872 = vpop.f32.mrf.mxu0
        %v6873 = vadd.f32 %v3042, %v6872
        %v6874 = vpop.f32.mrf.mxu0
        %v6875 = vadd.f32 %v3042, %v6874
        %6876 = vdwg.mxu0
        %6877 = vmatprep.subr.mxu0 0.0
        %6878 = vmatpush1.msra.mxu0 0.0
        %6879 = vmatprep.subr.mxu0 0.0
        %6880 = vmatpush1.msra.mxu0 0.0
        %6881 = vmatprep.subr.mxu0 0.0
        %6882 = vmatpush1.msra.mxu0 0.0
        %6883 = vmatprep.subr.mxu0 0.0
        %6884 = vmatpush1.msra.mxu0 0.0
        %6885 = vmatprep.subr.mxu0 0.0
        %6886 = vmatpush1.msra.mxu0 0.0
        %6887 = vmatprep.subr.mxu0 0.0
        %6888 = vmatpush1.msra.mxu0 0.0
        %6889 = vmatprep.subr.mxu0 0.0
        %6890 = vmatpush1.msra.mxu0 0.0
        %6891 = vmatprep.subr.mxu0 0.0
        %6892 = vmatpush1.msra.mxu0 0.0
        %6893 = vmatprep.subr.mxu0 0.0
        %6894 = vmatpush1.msra.mxu0 0.0
        %6895 = vmatprep.subr.mxu0 0.0
        %6896 = vmatpush1.msra.mxu0 0.0
        %6897 = vmatprep.subr.mxu0 0.0
        %6898 = vmatpush1.msra.mxu0 0.0
        %6899 = vmatprep.subr.mxu0 0.0
        %6900 = vmatpush1.msra.mxu0 0.0
        %v6901 = vand.u32 %v6790, 4294901760
        %v6902 = vsub.f32 %v6790, %v6901
        %v6903 = vand.u32 %v6902, 4294901760
        %v6904 = vsub.f32 %v6902, %v6903
        %v6905 = vand.u32 %v6904, 4294901760
        %6906 = vmatprep.subr.mxu0 %v6905
        %v6907 = vand.u32 %v6789, 4294901760
        %v6908 = vsub.f32 %v6789, %v6907
        %v6909 = vand.u32 %v6908, 4294901760
        %v6910 = vsub.f32 %v6908, %v6909
        %v6911 = vand.u32 %v6910, 4294901760
        %6912 = vmatpush1.msra.mxu0 %v6911
        %v6913 = vand.u32 %v6786, 4294901760
        %v6914 = vsub.f32 %v6786, %v6913
        %v6915 = vand.u32 %v6914, 4294901760
        %v6916 = vsub.f32 %v6914, %v6915
        %v6917 = vand.u32 %v6916, 4294901760
        %6918 = vmatprep.subr.mxu0 %v6917
        %v6919 = vand.u32 %v6785, 4294901760
        %v6920 = vsub.f32 %v6785, %v6919
        %v6921 = vand.u32 %v6920, 4294901760
        %v6922 = vsub.f32 %v6920, %v6921
        %v6923 = vand.u32 %v6922, 4294901760
        %6924 = vmatpush1.msra.mxu0 %v6923
        %v6925 = vand.u32 %v6782, 4294901760
        %v6926 = vsub.f32 %v6782, %v6925
        %v6927 = vand.u32 %v6926, 4294901760
        %v6928 = vsub.f32 %v6926, %v6927
        %v6929 = vand.u32 %v6928, 4294901760
        %6930 = vmatprep.subr.mxu0 %v6929
        %v6931 = vand.u32 %v6781, 4294901760
        %v6932 = vsub.f32 %v6781, %v6931
        %v6933 = vand.u32 %v6932, 4294901760
        %v6934 = vsub.f32 %v6932, %v6933
        %v6935 = vand.u32 %v6934, 4294901760
        %6936 = vmatpush1.msra.mxu0 %v6935
        %v6937 = vand.u32 %v6778, 4294901760
        %v6938 = vsub.f32 %v6778, %v6937
        %v6939 = vand.u32 %v6938, 4294901760
        %v6940 = vsub.f32 %v6938, %v6939
        %v6941 = vand.u32 %v6940, 4294901760
        %6942 = vmatprep.subr.mxu0 %v6941
        %v6943 = vand.u32 %v6777, 4294901760
        %v6944 = vsub.f32 %v6777, %v6943
        %v6945 = vand.u32 %v6944, 4294901760
        %v6946 = vsub.f32 %v6944, %v6945
        %v6947 = vand.u32 %v6946, 4294901760
        %6948 = vmatpush1.msra.mxu0 %v6947
        %6949 = vmatprep.subr.mxu0 0.0
        %6950 = vmatpush2.msra.mxu0 0.0
        %6951 = vmatprep.subr.mxu0 0.0
        %6952 = vmatpush2.msra.mxu0 0.0
        %6953 = vmatprep.subr.mxu0 0.0
        %6954 = vmatpush2.msra.mxu0 0.0
        %6955 = vmatprep.subr.mxu0 0.0
        %6956 = vmatpush2.msra.mxu0 0.0
        %6957 = vmatprep.subr.mxu0 0.0
        %6958 = vmatpush2.msra.mxu0 0.0
        %6959 = vmatprep.subr.mxu0 0.0
        %6960 = vmatpush2.msra.mxu0 0.0
        %6961 = vmatprep.subr.mxu0 0.0
        %6962 = vmatpush2.msra.mxu0 0.0
        %6963 = vmatprep.subr.mxu0 0.0
        %6964 = vmatpush2.msra.mxu0 0.0
        %6965 = vmatprep.subr.mxu0 0.0
        %6966 = vmatpush2.msra.mxu0 0.0
        %6967 = vmatprep.subr.mxu0 0.0
        %6968 = vmatpush2.msra.mxu0 0.0
        %6969 = vmatprep.subr.mxu0 0.0
        %6970 = vmatpush2.msra.mxu0 0.0
        %6971 = vmatprep.subr.mxu0 0.0
        %6972 = vmatpush2.msra.mxu0 0.0
        %6973 = vmatprep.subr.mxu0 0.0
        %6974 = vmatpush2.msra.mxu0 0.0
        %6975 = vmatprep.subr.mxu0 0.0
        %6976 = vmatpush2.msra.mxu0 0.0
        %6977 = vmatprep.subr.mxu0 0.0
        %6978 = vmatpush2.msra.mxu0 0.0
        %6979 = vmatprep.subr.mxu0 0.0
        %6980 = vmatpush2.msra.mxu0 0.0
        %6981 = vmatprep.mubr.f32.mxu0 0.0
        %v6982 = vand.u32 %v3045, 4294901760
        %6983 = vmatmul.mubr.f32.gmra.mxu0 %v6982
        %v6984 = vpop.f32.mrf.mxu0
        %v6985 = vadd.f32 %v6873, %v6984
        %v6986 = vpop.f32.mrf.mxu0
        %v6987 = vadd.f32 %v6875, %v6986
        %6988 = vdwg.mxu0
        %6989 = vmatprep.subr.mxu0 0.0
        %6990 = vmatpush1.msra.mxu0 0.0
        %6991 = vmatprep.subr.mxu0 0.0
        %6992 = vmatpush1.msra.mxu0 0.0
        %6993 = vmatprep.subr.mxu0 0.0
        %6994 = vmatpush1.msra.mxu0 0.0
        %6995 = vmatprep.subr.mxu0 0.0
        %6996 = vmatpush1.msra.mxu0 0.0
        %6997 = vmatprep.subr.mxu0 0.0
        %6998 = vmatpush1.msra.mxu0 0.0
        %6999 = vmatprep.subr.mxu0 0.0
        %7000 = vmatpush1.msra.mxu0 0.0
        %7001 = vmatprep.subr.mxu0 0.0
        %7002 = vmatpush1.msra.mxu0 0.0
        %7003 = vmatprep.subr.mxu0 0.0
        %7004 = vmatpush1.msra.mxu0 0.0
        %7005 = vmatprep.subr.mxu0 0.0
        %7006 = vmatpush1.msra.mxu0 0.0
        %7007 = vmatprep.subr.mxu0 0.0
        %7008 = vmatpush1.msra.mxu0 0.0
        %7009 = vmatprep.subr.mxu0 0.0
        %7010 = vmatpush1.msra.mxu0 0.0
        %7011 = vmatprep.subr.mxu0 0.0
        %7012 = vmatpush1.msra.mxu0 0.0
        %v7013 = vand.u32 %v6790, 4294901760
        %v7014 = vsub.f32 %v6790, %v7013
        %7015 = vmatprep.subr.mxu0 %v7014
        %v7016 = vand.u32 %v6789, 4294901760
        %v7017 = vsub.f32 %v6789, %v7016
        %7018 = vmatpush1.msra.mxu0 %v7017
        %v7019 = vand.u32 %v6786, 4294901760
        %v7020 = vsub.f32 %v6786, %v7019
        %7021 = vmatprep.subr.mxu0 %v7020
        %v7022 = vand.u32 %v6785, 4294901760
        %v7023 = vsub.f32 %v6785, %v7022
        %7024 = vmatpush1.msra.mxu0 %v7023
        %v7025 = vand.u32 %v6782, 4294901760
        %v7026 = vsub.f32 %v6782, %v7025
        %7027 = vmatprep.subr.mxu0 %v7026
        %v7028 = vand.u32 %v6781, 4294901760
        %v7029 = vsub.f32 %v6781, %v7028
        %7030 = vmatpush1.msra.mxu0 %v7029
        %v7031 = vand.u32 %v6778, 4294901760
        %v7032 = vsub.f32 %v6778, %v7031
        %7033 = vmatprep.subr.mxu0 %v7032
        %v7034 = vand.u32 %v6777, 4294901760
        %v7035 = vsub.f32 %v6777, %v7034
        %7036 = vmatpush1.msra.mxu0 %v7035
        %7037 = vmatprep.subr.mxu0 0.0
        %7038 = vmatpush2.msra.mxu0 0.0
        %7039 = vmatprep.subr.mxu0 0.0
        %7040 = vmatpush2.msra.mxu0 0.0
        %7041 = vmatprep.subr.mxu0 0.0
        %7042 = vmatpush2.msra.mxu0 0.0
        %7043 = vmatprep.subr.mxu0 0.0
        %7044 = vmatpush2.msra.mxu0 0.0
        %7045 = vmatprep.subr.mxu0 0.0
        %7046 = vmatpush2.msra.mxu0 0.0
        %7047 = vmatprep.subr.mxu0 0.0
        %7048 = vmatpush2.msra.mxu0 0.0
        %7049 = vmatprep.subr.mxu0 0.0
        %7050 = vmatpush2.msra.mxu0 0.0
        %7051 = vmatprep.subr.mxu0 0.0
        %7052 = vmatpush2.msra.mxu0 0.0
        %7053 = vmatprep.subr.mxu0 0.0
        %7054 = vmatpush2.msra.mxu0 0.0
        %7055 = vmatprep.subr.mxu0 0.0
        %7056 = vmatpush2.msra.mxu0 0.0
        %7057 = vmatprep.subr.mxu0 0.0
        %7058 = vmatpush2.msra.mxu0 0.0
        %7059 = vmatprep.subr.mxu0 0.0
        %7060 = vmatpush2.msra.mxu0 0.0
        %7061 = vmatprep.subr.mxu0 0.0
        %7062 = vmatpush2.msra.mxu0 0.0
        %7063 = vmatprep.subr.mxu0 0.0
        %7064 = vmatpush2.msra.mxu0 0.0
        %7065 = vmatprep.subr.mxu0 0.0
        %7066 = vmatpush2.msra.mxu0 0.0
        %7067 = vmatprep.subr.mxu0 0.0
        %7068 = vmatpush2.msra.mxu0 0.0
        %7069 = vmatprep.mubr.f32.mxu0 0.0
        %v7070 = vand.u32 %v3045, 4294901760
        %v7071 = vsub.f32 %v3045, %v7070
        %7072 = vmatmul.mubr.f32.gmra.mxu0 %v7071
        %v7073 = vpop.f32.mrf.mxu0
        %v7074 = vadd.f32 %v6985, %v7073
        %v7075 = vpop.f32.mrf.mxu0
        %v7076 = vadd.f32 %v6987, %v7075
        %7077 = vdwg.mxu0
        %7078 = vmatprep.subr.mxu0 0.0
        %7079 = vmatpush1.msra.mxu0 0.0
        %7080 = vmatprep.subr.mxu0 0.0
        %7081 = vmatpush1.msra.mxu0 0.0
        %7082 = vmatprep.subr.mxu0 0.0
        %7083 = vmatpush1.msra.mxu0 0.0
        %7084 = vmatprep.subr.mxu0 0.0
        %7085 = vmatpush1.msra.mxu0 0.0
        %7086 = vmatprep.subr.mxu0 0.0
        %7087 = vmatpush1.msra.mxu0 0.0
        %7088 = vmatprep.subr.mxu0 0.0
        %7089 = vmatpush1.msra.mxu0 0.0
        %7090 = vmatprep.subr.mxu0 0.0
        %7091 = vmatpush1.msra.mxu0 0.0
        %7092 = vmatprep.subr.mxu0 0.0
        %7093 = vmatpush1.msra.mxu0 0.0
        %7094 = vmatprep.subr.mxu0 0.0
        %7095 = vmatpush1.msra.mxu0 0.0
        %7096 = vmatprep.subr.mxu0 0.0
        %7097 = vmatpush1.msra.mxu0 0.0
        %7098 = vmatprep.subr.mxu0 0.0
        %7099 = vmatpush1.msra.mxu0 0.0
        %7100 = vmatprep.subr.mxu0 0.0
        %7101 = vmatpush1.msra.mxu0 0.0
        %v7102 = vand.u32 %v6790, 4294901760
        %7103 = vmatprep.subr.mxu0 %v7102
        %v7104 = vand.u32 %v6789, 4294901760
        %7105 = vmatpush1.msra.mxu0 %v7104
        %v7106 = vand.u32 %v6786, 4294901760
        %7107 = vmatprep.subr.mxu0 %v7106
        %v7108 = vand.u32 %v6785, 4294901760
        %7109 = vmatpush1.msra.mxu0 %v7108
        %v7110 = vand.u32 %v6782, 4294901760
        %7111 = vmatprep.subr.mxu0 %v7110
        %v7112 = vand.u32 %v6781, 4294901760
        %7113 = vmatpush1.msra.mxu0 %v7112
        %v7114 = vand.u32 %v6778, 4294901760
        %7115 = vmatprep.subr.mxu0 %v7114
        %v7116 = vand.u32 %v6777, 4294901760
        %7117 = vmatpush1.msra.mxu0 %v7116
        %7118 = vmatprep.subr.mxu0 0.0
        %7119 = vmatpush2.msra.mxu0 0.0
        %7120 = vmatprep.subr.mxu0 0.0
        %7121 = vmatpush2.msra.mxu0 0.0
        %7122 = vmatprep.subr.mxu0 0.0
        %7123 = vmatpush2.msra.mxu0 0.0
        %7124 = vmatprep.subr.mxu0 0.0
        %7125 = vmatpush2.msra.mxu0 0.0
        %7126 = vmatprep.subr.mxu0 0.0
        %7127 = vmatpush2.msra.mxu0 0.0
        %7128 = vmatprep.subr.mxu0 0.0
        %7129 = vmatpush2.msra.mxu0 0.0
        %7130 = vmatprep.subr.mxu0 0.0
        %7131 = vmatpush2.msra.mxu0 0.0
        %7132 = vmatprep.subr.mxu0 0.0
        %7133 = vmatpush2.msra.mxu0 0.0
        %7134 = vmatprep.subr.mxu0 0.0
        %7135 = vmatpush2.msra.mxu0 0.0
        %7136 = vmatprep.subr.mxu0 0.0
        %7137 = vmatpush2.msra.mxu0 0.0
        %7138 = vmatprep.subr.mxu0 0.0
        %7139 = vmatpush2.msra.mxu0 0.0
        %7140 = vmatprep.subr.mxu0 0.0
        %7141 = vmatpush2.msra.mxu0 0.0
        %7142 = vmatprep.subr.mxu0 0.0
        %7143 = vmatpush2.msra.mxu0 0.0
        %7144 = vmatprep.subr.mxu0 0.0
        %7145 = vmatpush2.msra.mxu0 0.0
        %7146 = vmatprep.subr.mxu0 0.0
        %7147 = vmatpush2.msra.mxu0 0.0
        %7148 = vmatprep.subr.mxu0 0.0
        %7149 = vmatpush2.msra.mxu0 0.0
        %7150 = vmatprep.mubr.f32.mxu0 0.0
        %v7151 = vand.u32 %v3045, 4294901760
        %v7152 = vsub.f32 %v3045, %v7151
        %v7153 = vand.u32 %v7152, 4294901760
        %7154 = vmatmul.mubr.f32.gmra.mxu0 %v7153
        %v7155 = vpop.f32.mrf.mxu0
        %v7156 = vadd.f32 %v7074, %v7155
        %v7157 = vpop.f32.mrf.mxu0
        %v7158 = vadd.f32 %v7076, %v7157
        %7159 = vdwg.mxu0
        %7160 = vmatprep.subr.mxu0 0.0
        %7161 = vmatpush1.msra.mxu0 0.0
        %7162 = vmatprep.subr.mxu0 0.0
        %7163 = vmatpush1.msra.mxu0 0.0
        %7164 = vmatprep.subr.mxu0 0.0
        %7165 = vmatpush1.msra.mxu0 0.0
        %7166 = vmatprep.subr.mxu0 0.0
        %7167 = vmatpush1.msra.mxu0 0.0
        %7168 = vmatprep.subr.mxu0 0.0
        %7169 = vmatpush1.msra.mxu0 0.0
        %7170 = vmatprep.subr.mxu0 0.0
        %7171 = vmatpush1.msra.mxu0 0.0
        %7172 = vmatprep.subr.mxu0 0.0
        %7173 = vmatpush1.msra.mxu0 0.0
        %7174 = vmatprep.subr.mxu0 0.0
        %7175 = vmatpush1.msra.mxu0 0.0
        %7176 = vmatprep.subr.mxu0 0.0
        %7177 = vmatpush1.msra.mxu0 0.0
        %7178 = vmatprep.subr.mxu0 0.0
        %7179 = vmatpush1.msra.mxu0 0.0
        %7180 = vmatprep.subr.mxu0 0.0
        %7181 = vmatpush1.msra.mxu0 0.0
        %7182 = vmatprep.subr.mxu0 0.0
        %7183 = vmatpush1.msra.mxu0 0.0
        %v7184 = vand.u32 %v6790, 4294901760
        %v7185 = vsub.f32 %v6790, %v7184
        %v7186 = vand.u32 %v7185, 4294901760
        %7187 = vmatprep.subr.mxu0 %v7186
        %v7188 = vand.u32 %v6789, 4294901760
        %v7189 = vsub.f32 %v6789, %v7188
        %v7190 = vand.u32 %v7189, 4294901760
        %7191 = vmatpush1.msra.mxu0 %v7190
        %v7192 = vand.u32 %v6786, 4294901760
        %v7193 = vsub.f32 %v6786, %v7192
        %v7194 = vand.u32 %v7193, 4294901760
        %7195 = vmatprep.subr.mxu0 %v7194
        %v7196 = vand.u32 %v6785, 4294901760
        %v7197 = vsub.f32 %v6785, %v7196
        %v7198 = vand.u32 %v7197, 4294901760
        %7199 = vmatpush1.msra.mxu0 %v7198
        %v7200 = vand.u32 %v6782, 4294901760
        %v7201 = vsub.f32 %v6782, %v7200
        %v7202 = vand.u32 %v7201, 4294901760
        %7203 = vmatprep.subr.mxu0 %v7202
        %v7204 = vand.u32 %v6781, 4294901760
        %v7205 = vsub.f32 %v6781, %v7204
        %v7206 = vand.u32 %v7205, 4294901760
        %7207 = vmatpush1.msra.mxu0 %v7206
        %v7208 = vand.u32 %v6778, 4294901760
        %v7209 = vsub.f32 %v6778, %v7208
        %v7210 = vand.u32 %v7209, 4294901760
        %7211 = vmatprep.subr.mxu0 %v7210
        %v7212 = vand.u32 %v6777, 4294901760
        %v7213 = vsub.f32 %v6777, %v7212
        %v7214 = vand.u32 %v7213, 4294901760
        %7215 = vmatpush1.msra.mxu0 %v7214
        %7216 = vmatprep.subr.mxu0 0.0
        %7217 = vmatpush2.msra.mxu0 0.0
        %7218 = vmatprep.subr.mxu0 0.0
        %7219 = vmatpush2.msra.mxu0 0.0
        %7220 = vmatprep.subr.mxu0 0.0
        %7221 = vmatpush2.msra.mxu0 0.0
        %7222 = vmatprep.subr.mxu0 0.0
        %7223 = vmatpush2.msra.mxu0 0.0
        %7224 = vmatprep.subr.mxu0 0.0
        %7225 = vmatpush2.msra.mxu0 0.0
        %7226 = vmatprep.subr.mxu0 0.0
        %7227 = vmatpush2.msra.mxu0 0.0
        %7228 = vmatprep.subr.mxu0 0.0
        %7229 = vmatpush2.msra.mxu0 0.0
        %7230 = vmatprep.subr.mxu0 0.0
        %7231 = vmatpush2.msra.mxu0 0.0
        %7232 = vmatprep.subr.mxu0 0.0
        %7233 = vmatpush2.msra.mxu0 0.0
        %7234 = vmatprep.subr.mxu0 0.0
        %7235 = vmatpush2.msra.mxu0 0.0
        %7236 = vmatprep.subr.mxu0 0.0
        %7237 = vmatpush2.msra.mxu0 0.0
        %7238 = vmatprep.subr.mxu0 0.0
        %7239 = vmatpush2.msra.mxu0 0.0
        %7240 = vmatprep.subr.mxu0 0.0
        %7241 = vmatpush2.msra.mxu0 0.0
        %7242 = vmatprep.subr.mxu0 0.0
        %7243 = vmatpush2.msra.mxu0 0.0
        %7244 = vmatprep.subr.mxu0 0.0
        %7245 = vmatpush2.msra.mxu0 0.0
        %7246 = vmatprep.subr.mxu0 0.0
        %7247 = vmatpush2.msra.mxu0 0.0
        %7248 = vmatprep.mubr.f32.mxu0 0.0
        %v7249 = vand.u32 %v3045, 4294901760
        %7250 = vmatmul.mubr.f32.gmra.mxu0 %v7249
        %v7251 = vpop.f32.mrf.mxu0
        %v7252 = vadd.f32 %v7156, %v7251
        %v7253 = vpop.f32.mrf.mxu0
        %v7254 = vadd.f32 %v7158, %v7253
        %7255 = vdwg.mxu0
        %7256 = vmatprep.subr.mxu0 0.0
        %7257 = vmatpush1.msra.mxu0 0.0
        %7258 = vmatprep.subr.mxu0 0.0
        %7259 = vmatpush1.msra.mxu0 0.0
        %7260 = vmatprep.subr.mxu0 0.0
        %7261 = vmatpush1.msra.mxu0 0.0
        %7262 = vmatprep.subr.mxu0 0.0
        %7263 = vmatpush1.msra.mxu0 0.0
        %7264 = vmatprep.subr.mxu0 0.0
        %7265 = vmatpush1.msra.mxu0 0.0
        %7266 = vmatprep.subr.mxu0 0.0
        %7267 = vmatpush1.msra.mxu0 0.0
        %7268 = vmatprep.subr.mxu0 0.0
        %7269 = vmatpush1.msra.mxu0 0.0
        %7270 = vmatprep.subr.mxu0 0.0
        %7271 = vmatpush1.msra.mxu0 0.0
        %7272 = vmatprep.subr.mxu0 0.0
        %7273 = vmatpush1.msra.mxu0 0.0
        %7274 = vmatprep.subr.mxu0 0.0
        %7275 = vmatpush1.msra.mxu0 0.0
        %7276 = vmatprep.subr.mxu0 0.0
        %7277 = vmatpush1.msra.mxu0 0.0
        %7278 = vmatprep.subr.mxu0 0.0
        %7279 = vmatpush1.msra.mxu0 0.0
        %v7280 = vand.u32 %v6790, 4294901760
        %7281 = vmatprep.subr.mxu0 %v7280
        %v7282 = vand.u32 %v6789, 4294901760
        %7283 = vmatpush1.msra.mxu0 %v7282
        %v7284 = vand.u32 %v6786, 4294901760
        %7285 = vmatprep.subr.mxu0 %v7284
        %v7286 = vand.u32 %v6785, 4294901760
        %7287 = vmatpush1.msra.mxu0 %v7286
        %v7288 = vand.u32 %v6782, 4294901760
        %7289 = vmatprep.subr.mxu0 %v7288
        %v7290 = vand.u32 %v6781, 4294901760
        %7291 = vmatpush1.msra.mxu0 %v7290
        %v7292 = vand.u32 %v6778, 4294901760
        %7293 = vmatprep.subr.mxu0 %v7292
        %v7294 = vand.u32 %v6777, 4294901760
        %7295 = vmatpush1.msra.mxu0 %v7294
        %7296 = vmatprep.subr.mxu0 0.0
        %7297 = vmatpush2.msra.mxu0 0.0
        %7298 = vmatprep.subr.mxu0 0.0
        %7299 = vmatpush2.msra.mxu0 0.0
        %7300 = vmatprep.subr.mxu0 0.0
        %7301 = vmatpush2.msra.mxu0 0.0
        %7302 = vmatprep.subr.mxu0 0.0
        %7303 = vmatpush2.msra.mxu0 0.0
        %7304 = vmatprep.subr.mxu0 0.0
        %7305 = vmatpush2.msra.mxu0 0.0
        %7306 = vmatprep.subr.mxu0 0.0
        %7307 = vmatpush2.msra.mxu0 0.0
        %7308 = vmatprep.subr.mxu0 0.0
        %7309 = vmatpush2.msra.mxu0 0.0
        %7310 = vmatprep.subr.mxu0 0.0
        %7311 = vmatpush2.msra.mxu0 0.0
        %7312 = vmatprep.subr.mxu0 0.0
        %7313 = vmatpush2.msra.mxu0 0.0
        %7314 = vmatprep.subr.mxu0 0.0
        %7315 = vmatpush2.msra.mxu0 0.0
        %7316 = vmatprep.subr.mxu0 0.0
        %7317 = vmatpush2.msra.mxu0 0.0
        %7318 = vmatprep.subr.mxu0 0.0
        %7319 = vmatpush2.msra.mxu0 0.0
        %7320 = vmatprep.subr.mxu0 0.0
        %7321 = vmatpush2.msra.mxu0 0.0
        %7322 = vmatprep.subr.mxu0 0.0
        %7323 = vmatpush2.msra.mxu0 0.0
        %7324 = vmatprep.subr.mxu0 0.0
        %7325 = vmatpush2.msra.mxu0 0.0
        %7326 = vmatprep.subr.mxu0 0.0
        %7327 = vmatpush2.msra.mxu0 0.0
        %7328 = vmatprep.mubr.f32.mxu0 0.0
        %v7329 = vand.u32 %v3045, 4294901760
        %7330 = vmatmul.mubr.f32.gmra.mxu0 %v7329
        %v7331 = vpop.f32.mrf.mxu0
        %v7332 = vadd.f32 %v7252, %v7331
        %v7333 = vpop.f32.mrf.mxu0
        %v7334 = vadd.f32 %v7254, %v7333
        %7335 = vdwg.mxu0
        %7336 = vmatprep.subr.mxu0 0.0
        %7337 = vmatpush1.msra.mxu0 0.0
        %7338 = vmatprep.subr.mxu0 0.0
        %7339 = vmatpush1.msra.mxu0 0.0
        %7340 = vmatprep.subr.mxu0 0.0
        %7341 = vmatpush1.msra.mxu0 0.0
        %7342 = vmatprep.subr.mxu0 0.0
        %7343 = vmatpush1.msra.mxu0 0.0
        %7344 = vmatprep.subr.mxu0 0.0
        %7345 = vmatpush1.msra.mxu0 0.0
        %7346 = vmatprep.subr.mxu0 0.0
        %7347 = vmatpush1.msra.mxu0 0.0
        %7348 = vmatprep.subr.mxu0 0.0
        %7349 = vmatpush1.msra.mxu0 0.0
        %7350 = vmatprep.subr.mxu0 0.0
        %7351 = vmatpush1.msra.mxu0 0.0
        %7352 = vmatprep.subr.mxu0 0.0
        %7353 = vmatpush1.msra.mxu0 0.0
        %7354 = vmatprep.subr.mxu0 0.0
        %7355 = vmatpush1.msra.mxu0 0.0
        %7356 = vmatprep.subr.mxu0 0.0
        %7357 = vmatpush1.msra.mxu0 0.0
        %7358 = vmatprep.subr.mxu0 0.0
        %7359 = vmatpush1.msra.mxu0 0.0
        %v7360 = vand.u32 %v6792, 4294901760
        %7361 = vmatprep.subr.mxu0 %v7360
        %v7362 = vand.u32 %v6791, 4294901760
        %7363 = vmatpush1.msra.mxu0 %v7362
        %v7364 = vand.u32 %v6788, 4294901760
        %7365 = vmatprep.subr.mxu0 %v7364
        %v7366 = vand.u32 %v6787, 4294901760
        %7367 = vmatpush1.msra.mxu0 %v7366
        %v7368 = vand.u32 %v6784, 4294901760
        %7369 = vmatprep.subr.mxu0 %v7368
        %v7370 = vand.u32 %v6783, 4294901760
        %7371 = vmatpush1.msra.mxu0 %v7370
        %v7372 = vand.u32 %v6780, 4294901760
        %7373 = vmatprep.subr.mxu0 %v7372
        %v7374 = vand.u32 %v6779, 4294901760
        %7375 = vmatpush1.msra.mxu0 %v7374
        %7376 = vmatprep.subr.mxu0 0.0
        %7377 = vmatpush2.msra.mxu0 0.0
        %7378 = vmatprep.subr.mxu0 0.0
        %7379 = vmatpush2.msra.mxu0 0.0
        %7380 = vmatprep.subr.mxu0 0.0
        %7381 = vmatpush2.msra.mxu0 0.0
        %7382 = vmatprep.subr.mxu0 0.0
        %7383 = vmatpush2.msra.mxu0 0.0
        %7384 = vmatprep.subr.mxu0 0.0
        %7385 = vmatpush2.msra.mxu0 0.0
        %7386 = vmatprep.subr.mxu0 0.0
        %7387 = vmatpush2.msra.mxu0 0.0
        %7388 = vmatprep.subr.mxu0 0.0
        %7389 = vmatpush2.msra.mxu0 0.0
        %7390 = vmatprep.subr.mxu0 0.0
        %7391 = vmatpush2.msra.mxu0 0.0
        %7392 = vmatprep.subr.mxu0 0.0
        %7393 = vmatpush2.msra.mxu0 0.0
        %7394 = vmatprep.subr.mxu0 0.0
        %7395 = vmatpush2.msra.mxu0 0.0
        %7396 = vmatprep.subr.mxu0 0.0
        %7397 = vmatpush2.msra.mxu0 0.0
        %7398 = vmatprep.subr.mxu0 0.0
        %7399 = vmatpush2.msra.mxu0 0.0
        %7400 = vmatprep.subr.mxu0 0.0
        %7401 = vmatpush2.msra.mxu0 0.0
        %7402 = vmatprep.subr.mxu0 0.0
        %7403 = vmatpush2.msra.mxu0 0.0
        %7404 = vmatprep.subr.mxu0 0.0
        %7405 = vmatpush2.msra.mxu0 0.0
        %7406 = vmatprep.subr.mxu0 0.0
        %7407 = vmatpush2.msra.mxu0 0.0
        %7408 = vmatprep.mubr.f32.mxu0 0.0
        %v7409 = vand.u32 %v3045, 4294901760
        %v7410 = vsub.f32 %v3045, %v7409
        %v7411 = vand.u32 %v7410, 4294901760
        %v7412 = vsub.f32 %v7410, %v7411
        %v7413 = vand.u32 %v7412, 4294901760
        %7414 = vmatmul.mubr.f32.gmra.mxu0 %v7413
        %v7415 = vpop.f32.mrf.mxu0
        %v7416 = vadd.f32 %v3042, %v7415
        %v7417 = vpop.f32.mrf.mxu0
        %v7418 = vadd.f32 %v3042, %v7417
        %7419 = vdwg.mxu0
        %7420 = vmatprep.subr.mxu0 0.0
        %7421 = vmatpush1.msra.mxu0 0.0
        %7422 = vmatprep.subr.mxu0 0.0
        %7423 = vmatpush1.msra.mxu0 0.0
        %7424 = vmatprep.subr.mxu0 0.0
        %7425 = vmatpush1.msra.mxu0 0.0
        %7426 = vmatprep.subr.mxu0 0.0
        %7427 = vmatpush1.msra.mxu0 0.0
        %7428 = vmatprep.subr.mxu0 0.0
        %7429 = vmatpush1.msra.mxu0 0.0
        %7430 = vmatprep.subr.mxu0 0.0
        %7431 = vmatpush1.msra.mxu0 0.0
        %7432 = vmatprep.subr.mxu0 0.0
        %7433 = vmatpush1.msra.mxu0 0.0
        %7434 = vmatprep.subr.mxu0 0.0
        %7435 = vmatpush1.msra.mxu0 0.0
        %7436 = vmatprep.subr.mxu0 0.0
        %7437 = vmatpush1.msra.mxu0 0.0
        %7438 = vmatprep.subr.mxu0 0.0
        %7439 = vmatpush1.msra.mxu0 0.0
        %7440 = vmatprep.subr.mxu0 0.0
        %7441 = vmatpush1.msra.mxu0 0.0
        %7442 = vmatprep.subr.mxu0 0.0
        %7443 = vmatpush1.msra.mxu0 0.0
        %v7444 = vand.u32 %v6792, 4294901760
        %v7445 = vsub.f32 %v6792, %v7444
        %v7446 = vand.u32 %v7445, 4294901760
        %v7447 = vsub.f32 %v7445, %v7446
        %v7448 = vand.u32 %v7447, 4294901760
        %7449 = vmatprep.subr.mxu0 %v7448
        %v7450 = vand.u32 %v6791, 4294901760
        %v7451 = vsub.f32 %v6791, %v7450
        %v7452 = vand.u32 %v7451, 4294901760
        %v7453 = vsub.f32 %v7451, %v7452
        %v7454 = vand.u32 %v7453, 4294901760
        %7455 = vmatpush1.msra.mxu0 %v7454
        %v7456 = vand.u32 %v6788, 4294901760
        %v7457 = vsub.f32 %v6788, %v7456
        %v7458 = vand.u32 %v7457, 4294901760
        %v7459 = vsub.f32 %v7457, %v7458
        %v7460 = vand.u32 %v7459, 4294901760
        %7461 = vmatprep.subr.mxu0 %v7460
        %v7462 = vand.u32 %v6787, 4294901760
        %v7463 = vsub.f32 %v6787, %v7462
        %v7464 = vand.u32 %v7463, 4294901760
        %v7465 = vsub.f32 %v7463, %v7464
        %v7466 = vand.u32 %v7465, 4294901760
        %7467 = vmatpush1.msra.mxu0 %v7466
        %v7468 = vand.u32 %v6784, 4294901760
        %v7469 = vsub.f32 %v6784, %v7468
        %v7470 = vand.u32 %v7469, 4294901760
        %v7471 = vsub.f32 %v7469, %v7470
        %v7472 = vand.u32 %v7471, 4294901760
        %7473 = vmatprep.subr.mxu0 %v7472
        %v7474 = vand.u32 %v6783, 4294901760
        %v7475 = vsub.f32 %v6783, %v7474
        %v7476 = vand.u32 %v7475, 4294901760
        %v7477 = vsub.f32 %v7475, %v7476
        %v7478 = vand.u32 %v7477, 4294901760
        %7479 = vmatpush1.msra.mxu0 %v7478
        %v7480 = vand.u32 %v6780, 4294901760
        %v7481 = vsub.f32 %v6780, %v7480
        %v7482 = vand.u32 %v7481, 4294901760
        %v7483 = vsub.f32 %v7481, %v7482
        %v7484 = vand.u32 %v7483, 4294901760
        %7485 = vmatprep.subr.mxu0 %v7484
        %v7486 = vand.u32 %v6779, 4294901760
        %v7487 = vsub.f32 %v6779, %v7486
        %v7488 = vand.u32 %v7487, 4294901760
        %v7489 = vsub.f32 %v7487, %v7488
        %v7490 = vand.u32 %v7489, 4294901760
        %7491 = vmatpush1.msra.mxu0 %v7490
        %7492 = vmatprep.subr.mxu0 0.0
        %7493 = vmatpush2.msra.mxu0 0.0
        %7494 = vmatprep.subr.mxu0 0.0
        %7495 = vmatpush2.msra.mxu0 0.0
        %7496 = vmatprep.subr.mxu0 0.0
        %7497 = vmatpush2.msra.mxu0 0.0
        %7498 = vmatprep.subr.mxu0 0.0
        %7499 = vmatpush2.msra.mxu0 0.0
        %7500 = vmatprep.subr.mxu0 0.0
        %7501 = vmatpush2.msra.mxu0 0.0
        %7502 = vmatprep.subr.mxu0 0.0
        %7503 = vmatpush2.msra.mxu0 0.0
        %7504 = vmatprep.subr.mxu0 0.0
        %7505 = vmatpush2.msra.mxu0 0.0
        %7506 = vmatprep.subr.mxu0 0.0
        %7507 = vmatpush2.msra.mxu0 0.0
        %7508 = vmatprep.subr.mxu0 0.0
        %7509 = vmatpush2.msra.mxu0 0.0
        %7510 = vmatprep.subr.mxu0 0.0
        %7511 = vmatpush2.msra.mxu0 0.0
        %7512 = vmatprep.subr.mxu0 0.0
        %7513 = vmatpush2.msra.mxu0 0.0
        %7514 = vmatprep.subr.mxu0 0.0
        %7515 = vmatpush2.msra.mxu0 0.0
        %7516 = vmatprep.subr.mxu0 0.0
        %7517 = vmatpush2.msra.mxu0 0.0
        %7518 = vmatprep.subr.mxu0 0.0
        %7519 = vmatpush2.msra.mxu0 0.0
        %7520 = vmatprep.subr.mxu0 0.0
        %7521 = vmatpush2.msra.mxu0 0.0
        %7522 = vmatprep.subr.mxu0 0.0
        %7523 = vmatpush2.msra.mxu0 0.0
        %7524 = vmatprep.mubr.f32.mxu0 0.0
        %v7525 = vand.u32 %v3045, 4294901760
        %7526 = vmatmul.mubr.f32.gmra.mxu0 %v7525
        %v7527 = vpop.f32.mrf.mxu0
        %v7528 = vadd.f32 %v7416, %v7527
        %v7529 = vpop.f32.mrf.mxu0
        %v7530 = vadd.f32 %v7418, %v7529
        %7531 = vdwg.mxu0
        %7532 = vmatprep.subr.mxu0 0.0
        %7533 = vmatpush1.msra.mxu0 0.0
        %7534 = vmatprep.subr.mxu0 0.0
        %7535 = vmatpush1.msra.mxu0 0.0
        %7536 = vmatprep.subr.mxu0 0.0
        %7537 = vmatpush1.msra.mxu0 0.0
        %7538 = vmatprep.subr.mxu0 0.0
        %7539 = vmatpush1.msra.mxu0 0.0
        %7540 = vmatprep.subr.mxu0 0.0
        %7541 = vmatpush1.msra.mxu0 0.0
        %7542 = vmatprep.subr.mxu0 0.0
        %7543 = vmatpush1.msra.mxu0 0.0
        %7544 = vmatprep.subr.mxu0 0.0
        %7545 = vmatpush1.msra.mxu0 0.0
        %7546 = vmatprep.subr.mxu0 0.0
        %7547 = vmatpush1.msra.mxu0 0.0
        %7548 = vmatprep.subr.mxu0 0.0
        %7549 = vmatpush1.msra.mxu0 0.0
        %7550 = vmatprep.subr.mxu0 0.0
        %7551 = vmatpush1.msra.mxu0 0.0
        %7552 = vmatprep.subr.mxu0 0.0
        %7553 = vmatpush1.msra.mxu0 0.0
        %7554 = vmatprep.subr.mxu0 0.0
        %7555 = vmatpush1.msra.mxu0 0.0
        %v7556 = vand.u32 %v6792, 4294901760
        %v7557 = vsub.f32 %v6792, %v7556
        %7558 = vmatprep.subr.mxu0 %v7557
        %v7559 = vand.u32 %v6791, 4294901760
        %v7560 = vsub.f32 %v6791, %v7559
        %7561 = vmatpush1.msra.mxu0 %v7560
        %v7562 = vand.u32 %v6788, 4294901760
        %v7563 = vsub.f32 %v6788, %v7562
        %7564 = vmatprep.subr.mxu0 %v7563
        %v7565 = vand.u32 %v6787, 4294901760
        %v7566 = vsub.f32 %v6787, %v7565
        %7567 = vmatpush1.msra.mxu0 %v7566
        %v7568 = vand.u32 %v6784, 4294901760
        %v7569 = vsub.f32 %v6784, %v7568
        %7570 = vmatprep.subr.mxu0 %v7569
        %v7571 = vand.u32 %v6783, 4294901760
        %v7572 = vsub.f32 %v6783, %v7571
        %7573 = vmatpush1.msra.mxu0 %v7572
        %v7574 = vand.u32 %v6780, 4294901760
        %v7575 = vsub.f32 %v6780, %v7574
        %7576 = vmatprep.subr.mxu0 %v7575
        %v7577 = vand.u32 %v6779, 4294901760
        %v7578 = vsub.f32 %v6779, %v7577
        %7579 = vmatpush1.msra.mxu0 %v7578
        %7580 = vmatprep.subr.mxu0 0.0
        %7581 = vmatpush2.msra.mxu0 0.0
        %7582 = vmatprep.subr.mxu0 0.0
        %7583 = vmatpush2.msra.mxu0 0.0
        %7584 = vmatprep.subr.mxu0 0.0
        %7585 = vmatpush2.msra.mxu0 0.0
        %7586 = vmatprep.subr.mxu0 0.0
        %7587 = vmatpush2.msra.mxu0 0.0
        %7588 = vmatprep.subr.mxu0 0.0
        %7589 = vmatpush2.msra.mxu0 0.0
        %7590 = vmatprep.subr.mxu0 0.0
        %7591 = vmatpush2.msra.mxu0 0.0
        %7592 = vmatprep.subr.mxu0 0.0
        %7593 = vmatpush2.msra.mxu0 0.0
        %7594 = vmatprep.subr.mxu0 0.0
        %7595 = vmatpush2.msra.mxu0 0.0
        %7596 = vmatprep.subr.mxu0 0.0
        %7597 = vmatpush2.msra.mxu0 0.0
        %7598 = vmatprep.subr.mxu0 0.0
        %7599 = vmatpush2.msra.mxu0 0.0
        %7600 = vmatprep.subr.mxu0 0.0
        %7601 = vmatpush2.msra.mxu0 0.0
        %7602 = vmatprep.subr.mxu0 0.0
        %7603 = vmatpush2.msra.mxu0 0.0
        %7604 = vmatprep.subr.mxu0 0.0
        %7605 = vmatpush2.msra.mxu0 0.0
        %7606 = vmatprep.subr.mxu0 0.0
        %7607 = vmatpush2.msra.mxu0 0.0
        %7608 = vmatprep.subr.mxu0 0.0
        %7609 = vmatpush2.msra.mxu0 0.0
        %7610 = vmatprep.subr.mxu0 0.0
        %7611 = vmatpush2.msra.mxu0 0.0
        %7612 = vmatprep.mubr.f32.mxu0 0.0
        %v7613 = vand.u32 %v3045, 4294901760
        %v7614 = vsub.f32 %v3045, %v7613
        %7615 = vmatmul.mubr.f32.gmra.mxu0 %v7614
        %v7616 = vpop.f32.mrf.mxu0
        %v7617 = vadd.f32 %v7528, %v7616
        %v7618 = vpop.f32.mrf.mxu0
        %v7619 = vadd.f32 %v7530, %v7618
        %7620 = vdwg.mxu0
        %7621 = vmatprep.subr.mxu0 0.0
        %7622 = vmatpush1.msra.mxu0 0.0
        %7623 = vmatprep.subr.mxu0 0.0
        %7624 = vmatpush1.msra.mxu0 0.0
        %7625 = vmatprep.subr.mxu0 0.0
        %7626 = vmatpush1.msra.mxu0 0.0
        %7627 = vmatprep.subr.mxu0 0.0
        %7628 = vmatpush1.msra.mxu0 0.0
        %7629 = vmatprep.subr.mxu0 0.0
        %7630 = vmatpush1.msra.mxu0 0.0
        %7631 = vmatprep.subr.mxu0 0.0
        %7632 = vmatpush1.msra.mxu0 0.0
        %7633 = vmatprep.subr.mxu0 0.0
        %7634 = vmatpush1.msra.mxu0 0.0
        %7635 = vmatprep.subr.mxu0 0.0
        %7636 = vmatpush1.msra.mxu0 0.0
        %7637 = vmatprep.subr.mxu0 0.0
        %7638 = vmatpush1.msra.mxu0 0.0
        %7639 = vmatprep.subr.mxu0 0.0
        %7640 = vmatpush1.msra.mxu0 0.0
        %7641 = vmatprep.subr.mxu0 0.0
        %7642 = vmatpush1.msra.mxu0 0.0
        %7643 = vmatprep.subr.mxu0 0.0
        %7644 = vmatpush1.msra.mxu0 0.0
        %v7645 = vand.u32 %v6792, 4294901760
        %7646 = vmatprep.subr.mxu0 %v7645
        %v7647 = vand.u32 %v6791, 4294901760
        %7648 = vmatpush1.msra.mxu0 %v7647
        %v7649 = vand.u32 %v6788, 4294901760
        %7650 = vmatprep.subr.mxu0 %v7649
        %v7651 = vand.u32 %v6787, 4294901760
        %7652 = vmatpush1.msra.mxu0 %v7651
        %v7653 = vand.u32 %v6784, 4294901760
        %7654 = vmatprep.subr.mxu0 %v7653
        %v7655 = vand.u32 %v6783, 4294901760
        %7656 = vmatpush1.msra.mxu0 %v7655
        %v7657 = vand.u32 %v6780, 4294901760
        %7658 = vmatprep.subr.mxu0 %v7657
        %v7659 = vand.u32 %v6779, 4294901760
        %7660 = vmatpush1.msra.mxu0 %v7659
        %7661 = vmatprep.subr.mxu0 0.0
        %7662 = vmatpush2.msra.mxu0 0.0
        %7663 = vmatprep.subr.mxu0 0.0
        %7664 = vmatpush2.msra.mxu0 0.0
        %7665 = vmatprep.subr.mxu0 0.0
        %7666 = vmatpush2.msra.mxu0 0.0
        %7667 = vmatprep.subr.mxu0 0.0
        %7668 = vmatpush2.msra.mxu0 0.0
        %7669 = vmatprep.subr.mxu0 0.0
        %7670 = vmatpush2.msra.mxu0 0.0
        %7671 = vmatprep.subr.mxu0 0.0
        %7672 = vmatpush2.msra.mxu0 0.0
        %7673 = vmatprep.subr.mxu0 0.0
        %7674 = vmatpush2.msra.mxu0 0.0
        %7675 = vmatprep.subr.mxu0 0.0
        %7676 = vmatpush2.msra.mxu0 0.0
        %7677 = vmatprep.subr.mxu0 0.0
        %7678 = vmatpush2.msra.mxu0 0.0
        %7679 = vmatprep.subr.mxu0 0.0
        %7680 = vmatpush2.msra.mxu0 0.0
        %7681 = vmatprep.subr.mxu0 0.0
        %7682 = vmatpush2.msra.mxu0 0.0
        %7683 = vmatprep.subr.mxu0 0.0
        %7684 = vmatpush2.msra.mxu0 0.0
        %7685 = vmatprep.subr.mxu0 0.0
        %7686 = vmatpush2.msra.mxu0 0.0
        %7687 = vmatprep.subr.mxu0 0.0
        %7688 = vmatpush2.msra.mxu0 0.0
        %7689 = vmatprep.subr.mxu0 0.0
        %7690 = vmatpush2.msra.mxu0 0.0
        %7691 = vmatprep.subr.mxu0 0.0
        %7692 = vmatpush2.msra.mxu0 0.0
        %7693 = vmatprep.mubr.f32.mxu0 0.0
        %v7694 = vand.u32 %v3045, 4294901760
        %v7695 = vsub.f32 %v3045, %v7694
        %v7696 = vand.u32 %v7695, 4294901760
        %7697 = vmatmul.mubr.f32.gmra.mxu0 %v7696
        %v7698 = vpop.f32.mrf.mxu0
        %v7699 = vadd.f32 %v7617, %v7698
        %v7700 = vpop.f32.mrf.mxu0
        %v7701 = vadd.f32 %v7619, %v7700
        %7702 = vdwg.mxu0
        %7703 = vmatprep.subr.mxu0 0.0
        %7704 = vmatpush1.msra.mxu0 0.0
        %7705 = vmatprep.subr.mxu0 0.0
        %7706 = vmatpush1.msra.mxu0 0.0
        %7707 = vmatprep.subr.mxu0 0.0
        %7708 = vmatpush1.msra.mxu0 0.0
        %7709 = vmatprep.subr.mxu0 0.0
        %7710 = vmatpush1.msra.mxu0 0.0
        %7711 = vmatprep.subr.mxu0 0.0
        %7712 = vmatpush1.msra.mxu0 0.0
        %7713 = vmatprep.subr.mxu0 0.0
        %7714 = vmatpush1.msra.mxu0 0.0
        %7715 = vmatprep.subr.mxu0 0.0
        %7716 = vmatpush1.msra.mxu0 0.0
        %7717 = vmatprep.subr.mxu0 0.0
        %7718 = vmatpush1.msra.mxu0 0.0
        %7719 = vmatprep.subr.mxu0 0.0
        %7720 = vmatpush1.msra.mxu0 0.0
        %7721 = vmatprep.subr.mxu0 0.0
        %7722 = vmatpush1.msra.mxu0 0.0
        %7723 = vmatprep.subr.mxu0 0.0
        %7724 = vmatpush1.msra.mxu0 0.0
        %7725 = vmatprep.subr.mxu0 0.0
        %7726 = vmatpush1.msra.mxu0 0.0
        %v7727 = vand.u32 %v6792, 4294901760
        %v7728 = vsub.f32 %v6792, %v7727
        %v7729 = vand.u32 %v7728, 4294901760
        %7730 = vmatprep.subr.mxu0 %v7729
        %v7731 = vand.u32 %v6791, 4294901760
        %v7732 = vsub.f32 %v6791, %v7731
        %v7733 = vand.u32 %v7732, 4294901760
        %7734 = vmatpush1.msra.mxu0 %v7733
        %v7735 = vand.u32 %v6788, 4294901760
        %v7736 = vsub.f32 %v6788, %v7735
        %v7737 = vand.u32 %v7736, 4294901760
        %7738 = vmatprep.subr.mxu0 %v7737
        %v7739 = vand.u32 %v6787, 4294901760
        %v7740 = vsub.f32 %v6787, %v7739
        %v7741 = vand.u32 %v7740, 4294901760
        %7742 = vmatpush1.msra.mxu0 %v7741
        %v7743 = vand.u32 %v6784, 4294901760
        %v7744 = vsub.f32 %v6784, %v7743
        %v7745 = vand.u32 %v7744, 4294901760
        %7746 = vmatprep.subr.mxu0 %v7745
        %v7747 = vand.u32 %v6783, 4294901760
        %v7748 = vsub.f32 %v6783, %v7747
        %v7749 = vand.u32 %v7748, 4294901760
        %7750 = vmatpush1.msra.mxu0 %v7749
        %v7751 = vand.u32 %v6780, 4294901760
        %v7752 = vsub.f32 %v6780, %v7751
        %v7753 = vand.u32 %v7752, 4294901760
        %7754 = vmatprep.subr.mxu0 %v7753
        %v7755 = vand.u32 %v6779, 4294901760
        %v7756 = vsub.f32 %v6779, %v7755
        %v7757 = vand.u32 %v7756, 4294901760
        %7758 = vmatpush1.msra.mxu0 %v7757
        %7759 = vmatprep.subr.mxu0 0.0
        %7760 = vmatpush2.msra.mxu0 0.0
        %7761 = vmatprep.subr.mxu0 0.0
        %7762 = vmatpush2.msra.mxu0 0.0
        %7763 = vmatprep.subr.mxu0 0.0
        %7764 = vmatpush2.msra.mxu0 0.0
        %7765 = vmatprep.subr.mxu0 0.0
        %7766 = vmatpush2.msra.mxu0 0.0
        %7767 = vmatprep.subr.mxu0 0.0
        %7768 = vmatpush2.msra.mxu0 0.0
        %7769 = vmatprep.subr.mxu0 0.0
        %7770 = vmatpush2.msra.mxu0 0.0
        %7771 = vmatprep.subr.mxu0 0.0
        %7772 = vmatpush2.msra.mxu0 0.0
        %7773 = vmatprep.subr.mxu0 0.0
        %7774 = vmatpush2.msra.mxu0 0.0
        %7775 = vmatprep.subr.mxu0 0.0
        %7776 = vmatpush2.msra.mxu0 0.0
        %7777 = vmatprep.subr.mxu0 0.0
        %7778 = vmatpush2.msra.mxu0 0.0
        %7779 = vmatprep.subr.mxu0 0.0
        %7780 = vmatpush2.msra.mxu0 0.0
        %7781 = vmatprep.subr.mxu0 0.0
        %7782 = vmatpush2.msra.mxu0 0.0
        %7783 = vmatprep.subr.mxu0 0.0
        %7784 = vmatpush2.msra.mxu0 0.0
        %7785 = vmatprep.subr.mxu0 0.0
        %7786 = vmatpush2.msra.mxu0 0.0
        %7787 = vmatprep.subr.mxu0 0.0
        %7788 = vmatpush2.msra.mxu0 0.0
        %7789 = vmatprep.subr.mxu0 0.0
        %7790 = vmatpush2.msra.mxu0 0.0
        %7791 = vmatprep.mubr.f32.mxu0 0.0
        %v7792 = vand.u32 %v3045, 4294901760
        %7793 = vmatmul.mubr.f32.gmra.mxu0 %v7792
        %v7794 = vpop.f32.mrf.mxu0
        %v7795 = vadd.f32 %v7699, %v7794
        %v7796 = vpop.f32.mrf.mxu0
        %v7797 = vadd.f32 %v7701, %v7796
        %7798 = vdwg.mxu0
        %7799 = vmatprep.subr.mxu0 0.0
        %7800 = vmatpush1.msra.mxu0 0.0
        %7801 = vmatprep.subr.mxu0 0.0
        %7802 = vmatpush1.msra.mxu0 0.0
        %7803 = vmatprep.subr.mxu0 0.0
        %7804 = vmatpush1.msra.mxu0 0.0
        %7805 = vmatprep.subr.mxu0 0.0
        %7806 = vmatpush1.msra.mxu0 0.0
        %7807 = vmatprep.subr.mxu0 0.0
        %7808 = vmatpush1.msra.mxu0 0.0
        %7809 = vmatprep.subr.mxu0 0.0
        %7810 = vmatpush1.msra.mxu0 0.0
        %7811 = vmatprep.subr.mxu0 0.0
        %7812 = vmatpush1.msra.mxu0 0.0
        %7813 = vmatprep.subr.mxu0 0.0
        %7814 = vmatpush1.msra.mxu0 0.0
        %7815 = vmatprep.subr.mxu0 0.0
        %7816 = vmatpush1.msra.mxu0 0.0
        %7817 = vmatprep.subr.mxu0 0.0
        %7818 = vmatpush1.msra.mxu0 0.0
        %7819 = vmatprep.subr.mxu0 0.0
        %7820 = vmatpush1.msra.mxu0 0.0
        %7821 = vmatprep.subr.mxu0 0.0
        %7822 = vmatpush1.msra.mxu0 0.0
        %v7823 = vand.u32 %v6792, 4294901760
        %7824 = vmatprep.subr.mxu0 %v7823
        %v7825 = vand.u32 %v6791, 4294901760
        %7826 = vmatpush1.msra.mxu0 %v7825
        %v7827 = vand.u32 %v6788, 4294901760
        %7828 = vmatprep.subr.mxu0 %v7827
        %v7829 = vand.u32 %v6787, 4294901760
        %7830 = vmatpush1.msra.mxu0 %v7829
        %v7831 = vand.u32 %v6784, 4294901760
        %7832 = vmatprep.subr.mxu0 %v7831
        %v7833 = vand.u32 %v6783, 4294901760
        %7834 = vmatpush1.msra.mxu0 %v7833
        %v7835 = vand.u32 %v6780, 4294901760
        %7836 = vmatprep.subr.mxu0 %v7835
        %v7837 = vand.u32 %v6779, 4294901760
        %7838 = vmatpush1.msra.mxu0 %v7837
        %7839 = vmatprep.subr.mxu0 0.0
        %7840 = vmatpush2.msra.mxu0 0.0
        %7841 = vmatprep.subr.mxu0 0.0
        %7842 = vmatpush2.msra.mxu0 0.0
        %7843 = vmatprep.subr.mxu0 0.0
        %7844 = vmatpush2.msra.mxu0 0.0
        %7845 = vmatprep.subr.mxu0 0.0
        %7846 = vmatpush2.msra.mxu0 0.0
        %7847 = vmatprep.subr.mxu0 0.0
        %7848 = vmatpush2.msra.mxu0 0.0
        %7849 = vmatprep.subr.mxu0 0.0
        %7850 = vmatpush2.msra.mxu0 0.0
        %7851 = vmatprep.subr.mxu0 0.0
        %7852 = vmatpush2.msra.mxu0 0.0
        %7853 = vmatprep.subr.mxu0 0.0
        %7854 = vmatpush2.msra.mxu0 0.0
        %7855 = vmatprep.subr.mxu0 0.0
        %7856 = vmatpush2.msra.mxu0 0.0
        %7857 = vmatprep.subr.mxu0 0.0
        %7858 = vmatpush2.msra.mxu0 0.0
        %7859 = vmatprep.subr.mxu0 0.0
        %7860 = vmatpush2.msra.mxu0 0.0
        %7861 = vmatprep.subr.mxu0 0.0
        %7862 = vmatpush2.msra.mxu0 0.0
        %7863 = vmatprep.subr.mxu0 0.0
        %7864 = vmatpush2.msra.mxu0 0.0
        %7865 = vmatprep.subr.mxu0 0.0
        %7866 = vmatpush2.msra.mxu0 0.0
        %7867 = vmatprep.subr.mxu0 0.0
        %7868 = vmatpush2.msra.mxu0 0.0
        %7869 = vmatprep.subr.mxu0 0.0
        %7870 = vmatpush2.msra.mxu0 0.0
        %7871 = vmatprep.mubr.f32.mxu0 0.0
        %v7872 = vand.u32 %v3045, 4294901760
        %7873 = vmatmul.mubr.f32.gmra.mxu0 %v7872
        %v7874 = vpop.f32.mrf.mxu0
        %v7875 = vadd.f32 %v7795, %v7874
        %v7876 = vpop.f32.mrf.mxu0
        %v7877 = vadd.f32 %v7797, %v7876
        %7878 = vdwg.mxu0
        %v7883 = vcombine.low %v7332, %v7334
        %v7884 = vcombine.low %v7875, %v7877
        %7887 = vst [vmem:[%s284 + $0x10] sm:$0x77] %v7883
        %7888 = vst [vmem:[%s284 + $0x18] sm:$0x77] %v7884
        %s7889 = sand.u32 %s181, 1
        %s7890 = scalar_lea.sflag [#allocation3], %s7889
        %s7891 = sand.u32 %s181, 1
        %s7892 = smul.addr %s7891, 32
        %s7893 = scalar_lea.vmem [#allocation2], %s7892
        // Predicated region
        $region49: #{feed_forward.1} parent=47 // pred_check
          %p7894 = pneg %p191
        $region50: #{feed_forward.1} parent=47 // pred_check_branch
          %7896 = sbr.rel (%p7894) target = $region52
        $region51: #{feed_forward.1} parent=47 // pred_region
          %s7897 = smul.u32 8, %s21
          %s7898 = ssub.s32 9, %s7897
          %p7899 = scmp.lt.s32.totalorder %s7898, 8
          %s7900 = scalar_select %p7899, %s7898, 8
          %s7901 = smul.u32 64, %s7900
          %s7903 = ssub.s32 512, %s7901
          %7904 = vsyncadd %s7890, %s7903
          %p7905 = scmp.ne.s32.totalorder 0, %s7901
          %s7906 = smul.addr %s7897, 64
          %s7907 = scalar_lea.hbm %s7, %s7906
          %s7908 = smul.u32 %s7900, 4
          %s7909 = sshll.u32 %s7908, 4
          %s7910 = sshll.u32 %s7893, 4
          %s7911 = int_to_ptr.vmem [resolvable:$true] %s7910
          %7913 = dma.vmem_to_hbm [thread:$0]  (%p7905), %s7911, %s7909, %s7907, %s7890
        $region52: #{feed_forward.1} parent=47 // pred_fallthru
          _
      $region48: #{feed_forward.1} parent=5 // pred_fallthru
        _
      %p7914 = scmp.le.s32.totalorder 2, %s16
      // Predicated region
      $region53: #{feed_forward.1} parent=5 // pred_check
        %p7915 = pneg %p7914
      $region54: #{feed_forward.1} parent=5 // pred_check_branch
        %7917 = sbr.rel (%p7915) target = $region56
      $region55: #{feed_forward.1} parent=5 // pred_region
        %s7918 = ssub.s32 %s16, 2
        // Predicated region
        $region57: #{feed_forward.1} parent=55 // pred_check
          %p7919 = pneg %p197
        $region58: #{feed_forward.1} parent=55 // pred_check_branch
          %7921 = sbr.rel (%p7919) target = $region60
        $region59: #{feed_forward.1} parent=55 // pred_region
          %s7922 = sand.u32 %s182, 1
          %s7923 = scalar_lea.sflag [#allocation3], %s7922
          %s7924 = sand.u32 %s182, 1
          %s7925 = smul.addr %s7924, 32
          %s7926 = scalar_lea.vmem [#allocation2], %s7925
          %7927 = dma.done %s7923, 512
        $region60: #{feed_forward.1} parent=55 // pred_fallthru
          _
      $region56: #{feed_forward.1} parent=5 // pred_fallthru
        _
    $region6: #{feed_forward.1} parent=1 // loop_footer
      %s20 = sadd.s32 1, %s16
    $region7: #{feed_forward.1} parent=1 // loop_footer_branch
      %15 = sbr.rel target = $region3
    $region8: #{feed_forward.1} parent=1 // loop_exit
      _
    %7928 = vsyncpa [#allocation3], 1
    %s7929 = scalar_lea.sflag [#allocation3], 1
    %7930 = vsyncpa %s7929, 1

</llo_original>
